<compile_context>
chip_gen: v7x
topology: tpu7x:2x2x1
jax: 0.10.0
libtpu: 0.0.40
codegen_flags: <defaults>
</compile_context>

<pallas_src>
import jax
import jax.numpy as jnp
from jax import lax
from jax.experimental import pallas as pl
from jax.experimental.pallas import tpu as pltpu


# ---------------------------------------------------------------------------
# In-kernel helpers (traced inside the Pallas kernel)
# ---------------------------------------------------------------------------
def _conv_pool_relu(h, w_ref, b_ref, L, B):
    """Conv1d(k=3,s=1,p=1) + MaxPool1d(4,2,1) + ReLU on position-major rows.

    h: (L*B, Cin) with row index = pos*B + b.  Returns ((L//2)*B, Cout).
    """
    N = L * B
    Cout = w_ref.shape[2]

    # Conv taps as three full-resolution matmuls: out[i] = p0[i-1]+p1[i]+p2[i+1]
    p0 = jnp.dot(h, w_ref[0], preferred_element_type=jnp.float32)
    p1 = jnp.dot(h, w_ref[1], preferred_element_type=jnp.float32)
    p2 = jnp.dot(h, w_ref[2], preferred_element_type=jnp.float32)

    row = lax.broadcasted_iota(jnp.int32, (N, 1), 0)
    at_first = row < B                 # position 0
    at_last = row >= (L - 1) * B       # position L-1
    at_last2 = row >= (L - 2) * B      # positions >= L-2

    # Shifts by whole sample-position rows (multiples of B => vreg-aligned).
    a0 = jnp.where(at_first, 0.0, pltpu.roll(p0, shift=B, axis=0))
    a2 = jnp.where(at_last, 0.0, pltpu.roll(p2, shift=N - B, axis=0))
    acc = p1 + a0 + a2 + b_ref[...]

    # MaxPool window for output j is {2j-1, 2j, 2j+1, 2j+2}.  Out-of-range taps
    # contribute 0 instead of -inf; exact because ReLU follows immediately.
    t_m1 = jnp.where(at_first, 0.0, pltpu.roll(acc, shift=B, axis=0))
    t_p1 = jnp.where(at_last, 0.0, pltpu.roll(acc, shift=N - B, axis=0))
    t_p2 = jnp.where(at_last2, 0.0, pltpu.roll(acc, shift=N - 2 * B, axis=0))
    pooled = jnp.maximum(jnp.maximum(acc, t_m1), jnp.maximum(t_p1, t_p2))
    pooled = jnp.maximum(pooled, 0.0)  # ReLU

    # Keep even positions only: (L*B, C) -> (L//2, 2, B, C) -> [:, 0] -> merge.
    return pooled.reshape(L // 2, 2, B, Cout)[:, 0].reshape((L // 2) * B, Cout)


def har_kernel(x_ref, w1_ref, b1_ref, w2_ref, b2_ref, w3_ref, b3_ref,
               fw1_ref, fb1_ref, fw2_ref, fb2_ref, fw3_ref, fb3_ref, o_ref):
    B = o_ref.shape[0]                                # samples in this block
    x = x_ref[...].reshape(128 * B, 9)                # position-major rows
    h = _conv_pool_relu(x, w1_ref, b1_ref, 128, B)    # (64*B, 32)
    h = _conv_pool_relu(h, w2_ref, b2_ref, 64, B)     # (32*B, 64)
    h = _conv_pool_relu(h, w3_ref, b3_ref, 32, B)     # (16*B, 128)

    # fc1 as a single contraction: lane-concat the 16 position slices into
    # (B, 2048); fw1 is pre-permuted so lane index l*128 + c matches PyTorch's
    # channel-major flatten index c*16 + l.
    h = h.reshape(16, B, 128)
    flat = jnp.concatenate([h[l] for l in range(16)], axis=1)    # (B, 2048)

    y = jnp.tanh(jnp.dot(flat, fw1_ref[...],
                         preferred_element_type=jnp.float32) + fb1_ref[...])
    y = jnp.tanh(jnp.dot(y, fw2_ref[...],
                         preferred_element_type=jnp.float32) + fb2_ref[...])
    y = jnp.dot(y, fw3_ref[...],
                preferred_element_type=jnp.float32) + fb3_ref[...]
    o_ref[...] = y                                    # (B, 128) lane-dense


# ---------------------------------------------------------------------------
# Wrapper
# ---------------------------------------------------------------------------
def har_forward(x_ncw, params, *, block_b=8):
    (w1, b1, w2, b2, w3, b3, fw1, fb1, fw2, fb2, fw3, fb3) = params
    assert block_b % 8 == 0, "block_b must be a multiple of 8"
    B = x_ncw.shape[0]
    Bp = ((B + block_b - 1) // block_b) * block_b

    # Position-major layout: (L=128, B, Cin=9).
    x_pm = jnp.transpose(x_ncw.astype(jnp.float32), (2, 0, 1))
    if Bp != B:
        x_pm = jnp.pad(x_pm, ((0, 0), (0, Bp - B), (0, 0)))

    def full(a):
        return pl.BlockSpec(a.shape, lambda i, nd=a.ndim: (0,) * nd)

    out = pl.pallas_call(
        har_kernel,
        out_shape=jax.ShapeDtypeStruct((Bp, 128), jnp.float32),
        grid=(Bp // block_b,),
        in_specs=[pl.BlockSpec((128, block_b, 9), lambda i: (0, i, 0)),
                  full(w1), full(b1), full(w2), full(b2), full(w3), full(b3),
                  full(fw1), full(fb1), full(fw2), full(fb2),
                  full(fw3), full(fb3)],
        out_specs=pl.BlockSpec((block_b, 128), lambda i: (i, 0)),
        compiler_params=pltpu.CompilerParams(dimension_semantics=("parallel",)),
    )(x_pm, w1, b1, w2, b2, w3, b3, fw1, fb1, fw2, fb2, fw3, fb3)
    return out[:B, :6]


# ---------------------------------------------------------------------------
# Deterministic parameter init (mirrors HARClassifier.reset_params)
# ---------------------------------------------------------------------------
def torch_init_params(key):
    ks = jax.random.split(key, 6)

    def kaiming(k, shape):  # conv weight (Cout, Cin, K), fan_out mode, relu gain
        fan_out = shape[0] * shape[2]
        return ((2.0 / fan_out) ** 0.5) * jax.random.normal(k, shape, jnp.float32)

    conv1_w = kaiming(ks[0], (32, 9, 3))
    conv2_w = kaiming(ks[1], (64, 32, 3))
    conv3_w = kaiming(ks[2], (128, 64, 3))
    fc1_w = 0.01 * jax.random.normal(ks[3], (100, 128 * 16), jnp.float32)
    fc2_w = 0.01 * jax.random.normal(ks[4], (100, 100), jnp.float32)
    fc3_w = 0.01 * jax.random.normal(ks[5], (6, 100), jnp.float32)
    return conv1_w, conv2_w, conv3_w, fc1_w, fc2_w, fc3_w


def to_kernel_params(tp):
    conv1_w, conv2_w, conv3_w, fc1_w, fc2_w, fc3_w = tp
    w1 = jnp.transpose(conv1_w, (2, 1, 0))                       # (3, 9, 32)
    w2 = jnp.transpose(conv2_w, (2, 1, 0))                       # (3, 32, 64)
    w3 = jnp.transpose(conv3_w, (2, 1, 0))                       # (3, 64, 128)
    b1 = jnp.zeros((1, 32), jnp.float32)                         # biases init 0
    b2 = jnp.zeros((1, 64), jnp.float32)
    b3 = jnp.zeros((1, 128), jnp.float32)
    # PyTorch flatten index is c*16 + l; kernel flat lane index is l*128 + c.
    fw1 = jnp.transpose(fc1_w.reshape(100, 128, 16),
                        (2, 1, 0)).reshape(16 * 128, 100)        # (2048, 100)
    fb1 = jnp.zeros((1, 100), jnp.float32)
    fw2 = fc2_w.T                                                # (100, 100)
    fb2 = jnp.zeros((1, 100), jnp.float32)
    fw3 = jnp.pad(fc3_w.T, ((0, 0), (0, 128 - 6)))               # (100, 128)
    fb3 = jnp.zeros((1, 128), jnp.float32)
    return (w1, b1, w2, b2, w3, b3, fw1, fb1, fw2, fb2, fw3, fb3)


# ---------------------------------------------------------------------------
# Pure-JAX reference (NCW, exactly mirrors the PyTorch forward)
# ---------------------------------------------------------------------------
def ref_forward(x, tp):
    conv1_w, conv2_w, conv3_w, fc1_w, fc2_w, fc3_w = tp

    def conv(h, w):
        return lax.conv_general_dilated(h, w, (1,), ((1, 1),),
                                        dimension_numbers=("NCH", "OIH", "NCH"))

    def pool(h):  # MaxPool1d(4, 2, 1) with -inf padding
        return lax.reduce_window(h, jnp.float32(-jnp.inf), lax.max,
                                 (1, 1, 4), (1, 1, 2),
                                 ((0, 0), (0, 0), (1, 1)))

    h = jax.nn.relu(pool(conv(x, conv1_w)))
    h = jax.nn.relu(pool(conv(h, conv2_w)))
    h = jax.nn.relu(pool(conv(h, conv3_w)))
    h = h.reshape(h.shape[0], -1)
    h = jnp.tanh(h @ fc1_w.T)
    h = jnp.tanh(h @ fc2_w.T)
    return h @ fc3_w.T


if __name__ == "__main__":
    key = jax.random.PRNGKey(0)
    kx, kp = jax.random.split(key)
    # HAR input: 9 sensor channels, 128 timesteps; batch 16 -> grid of 2 blocks.
    x = jax.random.normal(kx, (16, 9, 128), jnp.float32)
    tp = torch_init_params(kp)
    params = to_kernel_params(tp)

    out = jax.block_until_ready(har_forward(x, params, block_b=8))

    ref = ref_forward(x, tp)
    assert out.shape == (16, 6)
    err = float(jnp.max(jnp.abs(out - ref)))
    assert err < 2e-3, "max abs diff %e" % err
    print("KERNEL_OK")
</pallas_src>

<mosaic_0001>
module attributes {stable_mosaic.version = 11 : i64} {
  func.func @har_kernel(%arg0: i32, %arg1: memref<128x8x9xf32, #tpu.memory_space<vmem>>, %arg2: memref<3x9x32xf32, #tpu.memory_space<vmem>>, %arg3: memref<1x32xf32, #tpu.memory_space<vmem>>, %arg4: memref<3x32x64xf32, #tpu.memory_space<vmem>>, %arg5: memref<1x64xf32, #tpu.memory_space<vmem>>, %arg6: memref<3x64x128xf32, #tpu.memory_space<vmem>>, %arg7: memref<1x128xf32, #tpu.memory_space<vmem>>, %arg8: memref<2048x100xf32, #tpu.memory_space<vmem>>, %arg9: memref<1x100xf32, #tpu.memory_space<vmem>>, %arg10: memref<100x100xf32, #tpu.memory_space<vmem>>, %arg11: memref<1x100xf32, #tpu.memory_space<vmem>>, %arg12: memref<100x128xf32, #tpu.memory_space<vmem>>, %arg13: memref<1x128xf32, #tpu.memory_space<vmem>>, %arg14: memref<8x128xf32, #tpu.memory_space<vmem>>) attributes {dimension_semantics = [#tpu.dimension_semantics<parallel>], iteration_bounds = array<i64: 2>, scalar_prefetch = 0 : i64, scratch_operands = 0 : i64, tpu.core_type = #tpu.core_type<tc>, window_params = [{transform_indices = @transform_0, window_bounds = array<i64: 128, 8, 9>}, {pipeline_mode = #tpu.pipeline_mode<synchronous>, transform_indices = @transform_1, window_bounds = array<i64: 3, 9, 32>}, {pipeline_mode = #tpu.pipeline_mode<synchronous>, transform_indices = @transform_2, window_bounds = array<i64: 1, 32>}, {pipeline_mode = #tpu.pipeline_mode<synchronous>, transform_indices = @transform_3, window_bounds = array<i64: 3, 32, 64>}, {pipeline_mode = #tpu.pipeline_mode<synchronous>, transform_indices = @transform_4, window_bounds = array<i64: 1, 64>}, {pipeline_mode = #tpu.pipeline_mode<synchronous>, transform_indices = @transform_5, window_bounds = array<i64: 3, 64, 128>}, {pipeline_mode = #tpu.pipeline_mode<synchronous>, transform_indices = @transform_6, window_bounds = array<i64: 1, 128>}, {pipeline_mode = #tpu.pipeline_mode<synchronous>, transform_indices = @transform_7, window_bounds = array<i64: 2048, 100>}, {pipeline_mode = #tpu.pipeline_mode<synchronous>, transform_indices = @transform_8, window_bounds = array<i64: 1, 100>}, {pipeline_mode = #tpu.pipeline_mode<synchronous>, transform_indices = @transform_9, window_bounds = array<i64: 100, 100>}, {pipeline_mode = #tpu.pipeline_mode<synchronous>, transform_indices = @transform_10, window_bounds = array<i64: 1, 100>}, {pipeline_mode = #tpu.pipeline_mode<synchronous>, transform_indices = @transform_11, window_bounds = array<i64: 100, 128>}, {pipeline_mode = #tpu.pipeline_mode<synchronous>, transform_indices = @transform_12, window_bounds = array<i64: 1, 128>}, {transform_indices = @transform_13, window_bounds = array<i64: 8, 128>}]} {
    %c0 = arith.constant 0 : index
    %c0_0 = arith.constant 0 : index
    %c0_1 = arith.constant 0 : index
    %0 = vector.load %arg1[%c0, %c0_0, %c0_1] : memref<128x8x9xf32, #tpu.memory_space<vmem>>, vector<128x8x9xf32>
    %1 = vector.shape_cast %0 : vector<128x8x9xf32> to vector<1024x9xf32>
    %c0_2 = arith.constant 0 : index
    %c0_3 = arith.constant 0 : index
    %c0_4 = arith.constant 0 : index
    %2 = vector.load %arg2[%c0_2, %c0_3, %c0_4] : memref<3x9x32xf32, #tpu.memory_space<vmem>>, vector<1x9x32xf32>
    %3 = vector.shape_cast %2 : vector<1x9x32xf32> to vector<9x32xf32>
    %cst = arith.constant dense<0.000000e+00> : vector<1024x32xf32>
    %4 = tpu.matmul %1, %3, %cst {dimension_numbers = #tpu.dot_dimension_numbers<[1], [0], [0], [1], [0, 0, 1, 1], [], []>} : vector<1024x9xf32>, vector<9x32xf32>, vector<1024x32xf32> -> vector<1024x32xf32>
    %c1 = arith.constant 1 : index
    %c0_5 = arith.constant 0 : index
    %c0_6 = arith.constant 0 : index
    %5 = vector.load %arg2[%c1, %c0_5, %c0_6] : memref<3x9x32xf32, #tpu.memory_space<vmem>>, vector<1x9x32xf32>
    %6 = vector.shape_cast %5 : vector<1x9x32xf32> to vector<9x32xf32>
    %cst_7 = arith.constant dense<0.000000e+00> : vector<1024x32xf32>
    %7 = tpu.matmul %1, %6, %cst_7 {dimension_numbers = #tpu.dot_dimension_numbers<[1], [0], [0], [1], [0, 0, 1, 1], [], []>} : vector<1024x9xf32>, vector<9x32xf32>, vector<1024x32xf32> -> vector<1024x32xf32>
    %c2 = arith.constant 2 : index
    %c0_8 = arith.constant 0 : index
    %c0_9 = arith.constant 0 : index
    %8 = vector.load %arg2[%c2, %c0_8, %c0_9] : memref<3x9x32xf32, #tpu.memory_space<vmem>>, vector<1x9x32xf32>
    %9 = vector.shape_cast %8 : vector<1x9x32xf32> to vector<9x32xf32>
    %cst_10 = arith.constant dense<0.000000e+00> : vector<1024x32xf32>
    %10 = tpu.matmul %1, %9, %cst_10 {dimension_numbers = #tpu.dot_dimension_numbers<[1], [0], [0], [1], [0, 0, 1, 1], [], []>} : vector<1024x9xf32>, vector<9x32xf32>, vector<1024x32xf32> -> vector<1024x32xf32>
    %11 = tpu.iota {dimensions = array<i32: 0>} : vector<1024x1xi32>
    %c8_i32 = arith.constant 8 : i32
    %12 = vector.broadcast %c8_i32 : i32 to vector<1024x1xi32>
    %13 = arith.cmpi slt, %11, %12 : vector<1024x1xi32>
    %c1016_i32 = arith.constant 1016 : i32
    %14 = vector.broadcast %c1016_i32 : i32 to vector<1024x1xi32>
    %15 = arith.cmpi sge, %11, %14 : vector<1024x1xi32>
    %c1008_i32 = arith.constant 1008 : i32
    %16 = vector.broadcast %c1008_i32 : i32 to vector<1024x1xi32>
    %17 = arith.cmpi sge, %11, %16 : vector<1024x1xi32>
    %c8_i32_11 = arith.constant 8 : i32
    %18 = tpu.dynamic_rotate %4 by %c8_i32_11 dim 0 : vector<1024x32xf32>, i32 -> vector<1024x32xf32>
    %cst_12 = arith.constant 0.000000e+00 : f32
    %19 = vector.shape_cast %13 : vector<1024x1xi1> to vector<1024x1xi1>
    %20 = vector.broadcast %19 : vector<1024x1xi1> to vector<1024x32xi1>
    %21 = vector.broadcast %cst_12 : f32 to vector<1024x32xf32>
    %22 = arith.select %20, %21, %18 : vector<1024x32xi1>, vector<1024x32xf32>
    %c1016_i32_13 = arith.constant 1016 : i32
    %23 = tpu.dynamic_rotate %10 by %c1016_i32_13 dim 0 : vector<1024x32xf32>, i32 -> vector<1024x32xf32>
    %cst_14 = arith.constant 0.000000e+00 : f32
    %24 = vector.shape_cast %15 : vector<1024x1xi1> to vector<1024x1xi1>
    %25 = vector.broadcast %24 : vector<1024x1xi1> to vector<1024x32xi1>
    %26 = vector.broadcast %cst_14 : f32 to vector<1024x32xf32>
    %27 = arith.select %25, %26, %23 : vector<1024x32xi1>, vector<1024x32xf32>
    %28 = arith.addf %7, %22 : vector<1024x32xf32>
    %29 = arith.addf %28, %27 : vector<1024x32xf32>
    %c0_15 = arith.constant 0 : index
    %c0_16 = arith.constant 0 : index
    %30 = vector.load %arg3[%c0_15, %c0_16] : memref<1x32xf32, #tpu.memory_space<vmem>>, vector<1x32xf32>
    %31 = vector.broadcast %30 : vector<1x32xf32> to vector<1024x32xf32>
    %32 = arith.addf %29, %31 : vector<1024x32xf32>
    %c8_i32_17 = arith.constant 8 : i32
    %33 = tpu.dynamic_rotate %32 by %c8_i32_17 dim 0 : vector<1024x32xf32>, i32 -> vector<1024x32xf32>
    %cst_18 = arith.constant 0.000000e+00 : f32
    %34 = vector.shape_cast %13 : vector<1024x1xi1> to vector<1024x1xi1>
    %35 = vector.broadcast %34 : vector<1024x1xi1> to vector<1024x32xi1>
    %36 = vector.broadcast %cst_18 : f32 to vector<1024x32xf32>
    %37 = arith.select %35, %36, %33 : vector<1024x32xi1>, vector<1024x32xf32>
    %c1016_i32_19 = arith.constant 1016 : i32
    %38 = tpu.dynamic_rotate %32 by %c1016_i32_19 dim 0 : vector<1024x32xf32>, i32 -> vector<1024x32xf32>
    %cst_20 = arith.constant 0.000000e+00 : f32
    %39 = vector.shape_cast %15 : vector<1024x1xi1> to vector<1024x1xi1>
    %40 = vector.broadcast %39 : vector<1024x1xi1> to vector<1024x32xi1>
    %41 = vector.broadcast %cst_20 : f32 to vector<1024x32xf32>
    %42 = arith.select %40, %41, %38 : vector<1024x32xi1>, vector<1024x32xf32>
    %c1008_i32_21 = arith.constant 1008 : i32
    %43 = tpu.dynamic_rotate %32 by %c1008_i32_21 dim 0 : vector<1024x32xf32>, i32 -> vector<1024x32xf32>
    %cst_22 = arith.constant 0.000000e+00 : f32
    %44 = vector.shape_cast %17 : vector<1024x1xi1> to vector<1024x1xi1>
    %45 = vector.broadcast %44 : vector<1024x1xi1> to vector<1024x32xi1>
    %46 = vector.broadcast %cst_22 : f32 to vector<1024x32xf32>
    %47 = arith.select %45, %46, %43 : vector<1024x32xi1>, vector<1024x32xf32>
    %48 = arith.maximumf %32, %37 : vector<1024x32xf32>
    %49 = arith.maximumf %42, %47 : vector<1024x32xf32>
    %50 = arith.maximumf %48, %49 : vector<1024x32xf32>
    %cst_23 = arith.constant 0.000000e+00 : f32
    %51 = vector.broadcast %cst_23 : f32 to vector<1024x32xf32>
    %52 = arith.maximumf %50, %51 : vector<1024x32xf32>
    %53 = vector.shape_cast %52 : vector<1024x32xf32> to vector<64x2x8x32xf32>
    %54 = vector.extract_strided_slice %53 {offsets = [0, 0, 0, 0], sizes = [64, 1, 8, 32], strides = [1, 1, 1, 1]} : vector<64x2x8x32xf32> to vector<64x1x8x32xf32>
    %55 = vector.shape_cast %54 : vector<64x1x8x32xf32> to vector<64x8x32xf32>
    %56 = vector.shape_cast %55 : vector<64x8x32xf32> to vector<512x32xf32>
    %c0_24 = arith.constant 0 : index
    %c0_25 = arith.constant 0 : index
    %c0_26 = arith.constant 0 : index
    %57 = vector.load %arg4[%c0_24, %c0_25, %c0_26] : memref<3x32x64xf32, #tpu.memory_space<vmem>>, vector<1x32x64xf32>
    %58 = vector.shape_cast %57 : vector<1x32x64xf32> to vector<32x64xf32>
    %cst_27 = arith.constant dense<0.000000e+00> : vector<512x64xf32>
    %59 = tpu.matmul %56, %58, %cst_27 {dimension_numbers = #tpu.dot_dimension_numbers<[1], [0], [0], [1], [0, 0, 1, 1], [], []>} : vector<512x32xf32>, vector<32x64xf32>, vector<512x64xf32> -> vector<512x64xf32>
    %c1_28 = arith.constant 1 : index
    %c0_29 = arith.constant 0 : index
    %c0_30 = arith.constant 0 : index
    %60 = vector.load %arg4[%c1_28, %c0_29, %c0_30] : memref<3x32x64xf32, #tpu.memory_space<vmem>>, vector<1x32x64xf32>
    %61 = vector.shape_cast %60 : vector<1x32x64xf32> to vector<32x64xf32>
    %cst_31 = arith.constant dense<0.000000e+00> : vector<512x64xf32>
    %62 = tpu.matmul %56, %61, %cst_31 {dimension_numbers = #tpu.dot_dimension_numbers<[1], [0], [0], [1], [0, 0, 1, 1], [], []>} : vector<512x32xf32>, vector<32x64xf32>, vector<512x64xf32> -> vector<512x64xf32>
    %c2_32 = arith.constant 2 : index
    %c0_33 = arith.constant 0 : index
    %c0_34 = arith.constant 0 : index
    %63 = vector.load %arg4[%c2_32, %c0_33, %c0_34] : memref<3x32x64xf32, #tpu.memory_space<vmem>>, vector<1x32x64xf32>
    %64 = vector.shape_cast %63 : vector<1x32x64xf32> to vector<32x64xf32>
    %cst_35 = arith.constant dense<0.000000e+00> : vector<512x64xf32>
    %65 = tpu.matmul %56, %64, %cst_35 {dimension_numbers = #tpu.dot_dimension_numbers<[1], [0], [0], [1], [0, 0, 1, 1], [], []>} : vector<512x32xf32>, vector<32x64xf32>, vector<512x64xf32> -> vector<512x64xf32>
    %66 = tpu.iota {dimensions = array<i32: 0>} : vector<512x1xi32>
    %c8_i32_36 = arith.constant 8 : i32
    %67 = vector.broadcast %c8_i32_36 : i32 to vector<512x1xi32>
    %68 = arith.cmpi slt, %66, %67 : vector<512x1xi32>
    %c504_i32 = arith.constant 504 : i32
    %69 = vector.broadcast %c504_i32 : i32 to vector<512x1xi32>
    %70 = arith.cmpi sge, %66, %69 : vector<512x1xi32>
    %c496_i32 = arith.constant 496 : i32
    %71 = vector.broadcast %c496_i32 : i32 to vector<512x1xi32>
    %72 = arith.cmpi sge, %66, %71 : vector<512x1xi32>
    %c8_i32_37 = arith.constant 8 : i32
    %73 = tpu.dynamic_rotate %59 by %c8_i32_37 dim 0 : vector<512x64xf32>, i32 -> vector<512x64xf32>
    %cst_38 = arith.constant 0.000000e+00 : f32
    %74 = vector.shape_cast %68 : vector<512x1xi1> to vector<512x1xi1>
    %75 = vector.broadcast %74 : vector<512x1xi1> to vector<512x64xi1>
    %76 = vector.broadcast %cst_38 : f32 to vector<512x64xf32>
    %77 = arith.select %75, %76, %73 : vector<512x64xi1>, vector<512x64xf32>
    %c504_i32_39 = arith.constant 504 : i32
    %78 = tpu.dynamic_rotate %65 by %c504_i32_39 dim 0 : vector<512x64xf32>, i32 -> vector<512x64xf32>
    %cst_40 = arith.constant 0.000000e+00 : f32
    %79 = vector.shape_cast %70 : vector<512x1xi1> to vector<512x1xi1>
    %80 = vector.broadcast %79 : vector<512x1xi1> to vector<512x64xi1>
    %81 = vector.broadcast %cst_40 : f32 to vector<512x64xf32>
    %82 = arith.select %80, %81, %78 : vector<512x64xi1>, vector<512x64xf32>
    %83 = arith.addf %62, %77 : vector<512x64xf32>
    %84 = arith.addf %83, %82 : vector<512x64xf32>
    %c0_41 = arith.constant 0 : index
    %c0_42 = arith.constant 0 : index
    %85 = vector.load %arg5[%c0_41, %c0_42] : memref<1x64xf32, #tpu.memory_space<vmem>>, vector<1x64xf32>
    %86 = vector.broadcast %85 : vector<1x64xf32> to vector<512x64xf32>
    %87 = arith.addf %84, %86 : vector<512x64xf32>
    %c8_i32_43 = arith.constant 8 : i32
    %88 = tpu.dynamic_rotate %87 by %c8_i32_43 dim 0 : vector<512x64xf32>, i32 -> vector<512x64xf32>
    %cst_44 = arith.constant 0.000000e+00 : f32
    %89 = vector.shape_cast %68 : vector<512x1xi1> to vector<512x1xi1>
    %90 = vector.broadcast %89 : vector<512x1xi1> to vector<512x64xi1>
    %91 = vector.broadcast %cst_44 : f32 to vector<512x64xf32>
    %92 = arith.select %90, %91, %88 : vector<512x64xi1>, vector<512x64xf32>
    %c504_i32_45 = arith.constant 504 : i32
    %93 = tpu.dynamic_rotate %87 by %c504_i32_45 dim 0 : vector<512x64xf32>, i32 -> vector<512x64xf32>
    %cst_46 = arith.constant 0.000000e+00 : f32
    %94 = vector.shape_cast %70 : vector<512x1xi1> to vector<512x1xi1>
    %95 = vector.broadcast %94 : vector<512x1xi1> to vector<512x64xi1>
    %96 = vector.broadcast %cst_46 : f32 to vector<512x64xf32>
    %97 = arith.select %95, %96, %93 : vector<512x64xi1>, vector<512x64xf32>
    %c496_i32_47 = arith.constant 496 : i32
    %98 = tpu.dynamic_rotate %87 by %c496_i32_47 dim 0 : vector<512x64xf32>, i32 -> vector<512x64xf32>
    %cst_48 = arith.constant 0.000000e+00 : f32
    %99 = vector.shape_cast %72 : vector<512x1xi1> to vector<512x1xi1>
    %100 = vector.broadcast %99 : vector<512x1xi1> to vector<512x64xi1>
    %101 = vector.broadcast %cst_48 : f32 to vector<512x64xf32>
    %102 = arith.select %100, %101, %98 : vector<512x64xi1>, vector<512x64xf32>
    %103 = arith.maximumf %87, %92 : vector<512x64xf32>
    %104 = arith.maximumf %97, %102 : vector<512x64xf32>
    %105 = arith.maximumf %103, %104 : vector<512x64xf32>
    %cst_49 = arith.constant 0.000000e+00 : f32
    %106 = vector.broadcast %cst_49 : f32 to vector<512x64xf32>
    %107 = arith.maximumf %105, %106 : vector<512x64xf32>
    %108 = vector.shape_cast %107 : vector<512x64xf32> to vector<32x2x8x64xf32>
    %109 = vector.extract_strided_slice %108 {offsets = [0, 0, 0, 0], sizes = [32, 1, 8, 64], strides = [1, 1, 1, 1]} : vector<32x2x8x64xf32> to vector<32x1x8x64xf32>
    %110 = vector.shape_cast %109 : vector<32x1x8x64xf32> to vector<32x8x64xf32>
    %111 = vector.shape_cast %110 : vector<32x8x64xf32> to vector<256x64xf32>
    %c0_50 = arith.constant 0 : index
    %c0_51 = arith.constant 0 : index
    %c0_52 = arith.constant 0 : index
    %112 = vector.load %arg6[%c0_50, %c0_51, %c0_52] : memref<3x64x128xf32, #tpu.memory_space<vmem>>, vector<1x64x128xf32>
    %113 = vector.shape_cast %112 : vector<1x64x128xf32> to vector<64x128xf32>
    %cst_53 = arith.constant dense<0.000000e+00> : vector<256x128xf32>
    %114 = tpu.matmul %111, %113, %cst_53 {dimension_numbers = #tpu.dot_dimension_numbers<[1], [0], [0], [1], [0, 0, 1, 1], [], []>} : vector<256x64xf32>, vector<64x128xf32>, vector<256x128xf32> -> vector<256x128xf32>
    %c1_54 = arith.constant 1 : index
    %c0_55 = arith.constant 0 : index
    %c0_56 = arith.constant 0 : index
    %115 = vector.load %arg6[%c1_54, %c0_55, %c0_56] : memref<3x64x128xf32, #tpu.memory_space<vmem>>, vector<1x64x128xf32>
    %116 = vector.shape_cast %115 : vector<1x64x128xf32> to vector<64x128xf32>
    %cst_57 = arith.constant dense<0.000000e+00> : vector<256x128xf32>
    %117 = tpu.matmul %111, %116, %cst_57 {dimension_numbers = #tpu.dot_dimension_numbers<[1], [0], [0], [1], [0, 0, 1, 1], [], []>} : vector<256x64xf32>, vector<64x128xf32>, vector<256x128xf32> -> vector<256x128xf32>
    %c2_58 = arith.constant 2 : index
    %c0_59 = arith.constant 0 : index
    %c0_60 = arith.constant 0 : index
    %118 = vector.load %arg6[%c2_58, %c0_59, %c0_60] : memref<3x64x128xf32, #tpu.memory_space<vmem>>, vector<1x64x128xf32>
    %119 = vector.shape_cast %118 : vector<1x64x128xf32> to vector<64x128xf32>
    %cst_61 = arith.constant dense<0.000000e+00> : vector<256x128xf32>
    %120 = tpu.matmul %111, %119, %cst_61 {dimension_numbers = #tpu.dot_dimension_numbers<[1], [0], [0], [1], [0, 0, 1, 1], [], []>} : vector<256x64xf32>, vector<64x128xf32>, vector<256x128xf32> -> vector<256x128xf32>
    %121 = tpu.iota {dimensions = array<i32: 0>} : vector<256x1xi32>
    %c8_i32_62 = arith.constant 8 : i32
    %122 = vector.broadcast %c8_i32_62 : i32 to vector<256x1xi32>
    %123 = arith.cmpi slt, %121, %122 : vector<256x1xi32>
    %c248_i32 = arith.constant 248 : i32
    %124 = vector.broadcast %c248_i32 : i32 to vector<256x1xi32>
    %125 = arith.cmpi sge, %121, %124 : vector<256x1xi32>
    %c240_i32 = arith.constant 240 : i32
    %126 = vector.broadcast %c240_i32 : i32 to vector<256x1xi32>
    %127 = arith.cmpi sge, %121, %126 : vector<256x1xi32>
    %c8_i32_63 = arith.constant 8 : i32
    %128 = tpu.dynamic_rotate %114 by %c8_i32_63 dim 0 : vector<256x128xf32>, i32 -> vector<256x128xf32>
    %cst_64 = arith.constant 0.000000e+00 : f32
    %129 = vector.shape_cast %123 : vector<256x1xi1> to vector<256x1xi1>
    %130 = vector.broadcast %129 : vector<256x1xi1> to vector<256x128xi1>
    %131 = vector.broadcast %cst_64 : f32 to vector<256x128xf32>
    %132 = arith.select %130, %131, %128 : vector<256x128xi1>, vector<256x128xf32>
    %c248_i32_65 = arith.constant 248 : i32
    %133 = tpu.dynamic_rotate %120 by %c248_i32_65 dim 0 : vector<256x128xf32>, i32 -> vector<256x128xf32>
    %cst_66 = arith.constant 0.000000e+00 : f32
    %134 = vector.shape_cast %125 : vector<256x1xi1> to vector<256x1xi1>
    %135 = vector.broadcast %134 : vector<256x1xi1> to vector<256x128xi1>
    %136 = vector.broadcast %cst_66 : f32 to vector<256x128xf32>
    %137 = arith.select %135, %136, %133 : vector<256x128xi1>, vector<256x128xf32>
    %138 = arith.addf %117, %132 : vector<256x128xf32>
    %139 = arith.addf %138, %137 : vector<256x128xf32>
    %c0_67 = arith.constant 0 : index
    %c0_68 = arith.constant 0 : index
    %140 = vector.load %arg7[%c0_67, %c0_68] : memref<1x128xf32, #tpu.memory_space<vmem>>, vector<1x128xf32>
    %141 = vector.broadcast %140 : vector<1x128xf32> to vector<256x128xf32>
    %142 = arith.addf %139, %141 : vector<256x128xf32>
    %c8_i32_69 = arith.constant 8 : i32
    %143 = tpu.dynamic_rotate %142 by %c8_i32_69 dim 0 : vector<256x128xf32>, i32 -> vector<256x128xf32>
    %cst_70 = arith.constant 0.000000e+00 : f32
    %144 = vector.shape_cast %123 : vector<256x1xi1> to vector<256x1xi1>
    %145 = vector.broadcast %144 : vector<256x1xi1> to vector<256x128xi1>
    %146 = vector.broadcast %cst_70 : f32 to vector<256x128xf32>
    %147 = arith.select %145, %146, %143 : vector<256x128xi1>, vector<256x128xf32>
    %c248_i32_71 = arith.constant 248 : i32
    %148 = tpu.dynamic_rotate %142 by %c248_i32_71 dim 0 : vector<256x128xf32>, i32 -> vector<256x128xf32>
    %cst_72 = arith.constant 0.000000e+00 : f32
    %149 = vector.shape_cast %125 : vector<256x1xi1> to vector<256x1xi1>
    %150 = vector.broadcast %149 : vector<256x1xi1> to vector<256x128xi1>
    %151 = vector.broadcast %cst_72 : f32 to vector<256x128xf32>
    %152 = arith.select %150, %151, %148 : vector<256x128xi1>, vector<256x128xf32>
    %c240_i32_73 = arith.constant 240 : i32
    %153 = tpu.dynamic_rotate %142 by %c240_i32_73 dim 0 : vector<256x128xf32>, i32 -> vector<256x128xf32>
    %cst_74 = arith.constant 0.000000e+00 : f32
    %154 = vector.shape_cast %127 : vector<256x1xi1> to vector<256x1xi1>
    %155 = vector.broadcast %154 : vector<256x1xi1> to vector<256x128xi1>
    %156 = vector.broadcast %cst_74 : f32 to vector<256x128xf32>
    %157 = arith.select %155, %156, %153 : vector<256x128xi1>, vector<256x128xf32>
    %158 = arith.maximumf %142, %147 : vector<256x128xf32>
    %159 = arith.maximumf %152, %157 : vector<256x128xf32>
    %160 = arith.maximumf %158, %159 : vector<256x128xf32>
    %cst_75 = arith.constant 0.000000e+00 : f32
    %161 = vector.broadcast %cst_75 : f32 to vector<256x128xf32>
    %162 = arith.maximumf %160, %161 : vector<256x128xf32>
    %163 = vector.shape_cast %162 : vector<256x128xf32> to vector<16x2x8x128xf32>
    %164 = vector.extract_strided_slice %163 {offsets = [0, 0, 0, 0], sizes = [16, 1, 8, 128], strides = [1, 1, 1, 1]} : vector<16x2x8x128xf32> to vector<16x1x8x128xf32>
    %165 = vector.shape_cast %164 : vector<16x1x8x128xf32> to vector<16x8x128xf32>
    %166 = vector.shape_cast %165 : vector<16x8x128xf32> to vector<128x128xf32>
    %167 = vector.shape_cast %166 : vector<128x128xf32> to vector<16x8x128xf32>
    %168 = vector.extract_strided_slice %167 {offsets = [0, 0, 0], sizes = [1, 8, 128], strides = [1, 1, 1]} : vector<16x8x128xf32> to vector<1x8x128xf32>
    %169 = vector.shape_cast %168 : vector<1x8x128xf32> to vector<8x128xf32>
    %170 = vector.extract_strided_slice %167 {offsets = [1, 0, 0], sizes = [1, 8, 128], strides = [1, 1, 1]} : vector<16x8x128xf32> to vector<1x8x128xf32>
    %171 = vector.shape_cast %170 : vector<1x8x128xf32> to vector<8x128xf32>
    %172 = vector.extract_strided_slice %167 {offsets = [2, 0, 0], sizes = [1, 8, 128], strides = [1, 1, 1]} : vector<16x8x128xf32> to vector<1x8x128xf32>
    %173 = vector.shape_cast %172 : vector<1x8x128xf32> to vector<8x128xf32>
    %174 = vector.extract_strided_slice %167 {offsets = [3, 0, 0], sizes = [1, 8, 128], strides = [1, 1, 1]} : vector<16x8x128xf32> to vector<1x8x128xf32>
    %175 = vector.shape_cast %174 : vector<1x8x128xf32> to vector<8x128xf32>
    %176 = vector.extract_strided_slice %167 {offsets = [4, 0, 0], sizes = [1, 8, 128], strides = [1, 1, 1]} : vector<16x8x128xf32> to vector<1x8x128xf32>
    %177 = vector.shape_cast %176 : vector<1x8x128xf32> to vector<8x128xf32>
    %178 = vector.extract_strided_slice %167 {offsets = [5, 0, 0], sizes = [1, 8, 128], strides = [1, 1, 1]} : vector<16x8x128xf32> to vector<1x8x128xf32>
    %179 = vector.shape_cast %178 : vector<1x8x128xf32> to vector<8x128xf32>
    %180 = vector.extract_strided_slice %167 {offsets = [6, 0, 0], sizes = [1, 8, 128], strides = [1, 1, 1]} : vector<16x8x128xf32> to vector<1x8x128xf32>
    %181 = vector.shape_cast %180 : vector<1x8x128xf32> to vector<8x128xf32>
    %182 = vector.extract_strided_slice %167 {offsets = [7, 0, 0], sizes = [1, 8, 128], strides = [1, 1, 1]} : vector<16x8x128xf32> to vector<1x8x128xf32>
    %183 = vector.shape_cast %182 : vector<1x8x128xf32> to vector<8x128xf32>
    %184 = vector.extract_strided_slice %167 {offsets = [8, 0, 0], sizes = [1, 8, 128], strides = [1, 1, 1]} : vector<16x8x128xf32> to vector<1x8x128xf32>
    %185 = vector.shape_cast %184 : vector<1x8x128xf32> to vector<8x128xf32>
    %186 = vector.extract_strided_slice %167 {offsets = [9, 0, 0], sizes = [1, 8, 128], strides = [1, 1, 1]} : vector<16x8x128xf32> to vector<1x8x128xf32>
    %187 = vector.shape_cast %186 : vector<1x8x128xf32> to vector<8x128xf32>
    %188 = vector.extract_strided_slice %167 {offsets = [10, 0, 0], sizes = [1, 8, 128], strides = [1, 1, 1]} : vector<16x8x128xf32> to vector<1x8x128xf32>
    %189 = vector.shape_cast %188 : vector<1x8x128xf32> to vector<8x128xf32>
    %190 = vector.extract_strided_slice %167 {offsets = [11, 0, 0], sizes = [1, 8, 128], strides = [1, 1, 1]} : vector<16x8x128xf32> to vector<1x8x128xf32>
    %191 = vector.shape_cast %190 : vector<1x8x128xf32> to vector<8x128xf32>
    %192 = vector.extract_strided_slice %167 {offsets = [12, 0, 0], sizes = [1, 8, 128], strides = [1, 1, 1]} : vector<16x8x128xf32> to vector<1x8x128xf32>
    %193 = vector.shape_cast %192 : vector<1x8x128xf32> to vector<8x128xf32>
    %194 = vector.extract_strided_slice %167 {offsets = [13, 0, 0], sizes = [1, 8, 128], strides = [1, 1, 1]} : vector<16x8x128xf32> to vector<1x8x128xf32>
    %195 = vector.shape_cast %194 : vector<1x8x128xf32> to vector<8x128xf32>
    %196 = vector.extract_strided_slice %167 {offsets = [14, 0, 0], sizes = [1, 8, 128], strides = [1, 1, 1]} : vector<16x8x128xf32> to vector<1x8x128xf32>
    %197 = vector.shape_cast %196 : vector<1x8x128xf32> to vector<8x128xf32>
    %198 = vector.extract_strided_slice %167 {offsets = [15, 0, 0], sizes = [1, 8, 128], strides = [1, 1, 1]} : vector<16x8x128xf32> to vector<1x8x128xf32>
    %199 = vector.shape_cast %198 : vector<1x8x128xf32> to vector<8x128xf32>
    %200 = tpu.concatenate %169, %171, %173, %175, %177, %179, %181, %183, %185, %187, %189, %191, %193, %195, %197, %199 in 1 : vector<8x128xf32>, vector<8x128xf32>, vector<8x128xf32>, vector<8x128xf32>, vector<8x128xf32>, vector<8x128xf32>, vector<8x128xf32>, vector<8x128xf32>, vector<8x128xf32>, vector<8x128xf32>, vector<8x128xf32>, vector<8x128xf32>, vector<8x128xf32>, vector<8x128xf32>, vector<8x128xf32>, vector<8x128xf32> -> vector<8x2048xf32>
    %c0_76 = arith.constant 0 : index
    %c0_77 = arith.constant 0 : index
    %201 = vector.load %arg8[%c0_76, %c0_77] : memref<2048x100xf32, #tpu.memory_space<vmem>>, vector<2048x100xf32>
    %cst_78 = arith.constant dense<0.000000e+00> : vector<8x100xf32>
    %202 = tpu.matmul %200, %201, %cst_78 {dimension_numbers = #tpu.dot_dimension_numbers<[1], [0], [0], [1], [0, 0, 1, 1], [], []>} : vector<8x2048xf32>, vector<2048x100xf32>, vector<8x100xf32> -> vector<8x100xf32>
    %c0_79 = arith.constant 0 : index
    %c0_80 = arith.constant 0 : index
    %203 = vector.load %arg9[%c0_79, %c0_80] : memref<1x100xf32, #tpu.memory_space<vmem>>, vector<1x100xf32>
    %204 = vector.broadcast %203 : vector<1x100xf32> to vector<8x100xf32>
    %205 = arith.addf %202, %204 : vector<8x100xf32>
    %206 = math.tanh %205 : vector<8x100xf32>
    %c0_81 = arith.constant 0 : index
    %c0_82 = arith.constant 0 : index
    %207 = vector.load %arg10[%c0_81, %c0_82] : memref<100x100xf32, #tpu.memory_space<vmem>>, vector<100x100xf32>
    %cst_83 = arith.constant dense<0.000000e+00> : vector<8x100xf32>
    %208 = tpu.matmul %206, %207, %cst_83 {dimension_numbers = #tpu.dot_dimension_numbers<[1], [0], [0], [1], [0, 0, 1, 1], [], []>} : vector<8x100xf32>, vector<100x100xf32>, vector<8x100xf32> -> vector<8x100xf32>
    %c0_84 = arith.constant 0 : index
    %c0_85 = arith.constant 0 : index
    %209 = vector.load %arg11[%c0_84, %c0_85] : memref<1x100xf32, #tpu.memory_space<vmem>>, vector<1x100xf32>
    %210 = vector.broadcast %209 : vector<1x100xf32> to vector<8x100xf32>
    %211 = arith.addf %208, %210 : vector<8x100xf32>
    %212 = math.tanh %211 : vector<8x100xf32>
    %c0_86 = arith.constant 0 : index
    %c0_87 = arith.constant 0 : index
    %213 = vector.load %arg12[%c0_86, %c0_87] : memref<100x128xf32, #tpu.memory_space<vmem>>, vector<100x128xf32>
    %cst_88 = arith.constant dense<0.000000e+00> : vector<8x128xf32>
    %214 = tpu.matmul %212, %213, %cst_88 {dimension_numbers = #tpu.dot_dimension_numbers<[1], [0], [0], [1], [0, 0, 1, 1], [], []>} : vector<8x100xf32>, vector<100x128xf32>, vector<8x128xf32> -> vector<8x128xf32>
    %c0_89 = arith.constant 0 : index
    %c0_90 = arith.constant 0 : index
    %215 = vector.load %arg13[%c0_89, %c0_90] : memref<1x128xf32, #tpu.memory_space<vmem>>, vector<1x128xf32>
    %216 = vector.broadcast %215 : vector<1x128xf32> to vector<8x128xf32>
    %217 = arith.addf %214, %216 : vector<8x128xf32>
    %c0_91 = arith.constant 0 : index
    %c0_92 = arith.constant 0 : index
    %218 = vector.load %arg14[%c0_91, %c0_92] : memref<8x128xf32, #tpu.memory_space<vmem>>, vector<8x128xf32>
    tpu.vector_store %arg14[%c0_91, %c0_92], %217 {strides = array<i32>} : memref<8x128xf32, #tpu.memory_space<vmem>>, vector<8x128xf32>,
    return
  }
  func.func @transform_0(%arg0: i32) -> (i32, i32, i32) {
    %c0_i32 = arith.constant 0 : i32
    %c0_i32_0 = arith.constant 0 : i32
    %c0_i32_1 = arith.constant 0 : i32
    return %c0_i32, %arg0, %c0_i32_0 : i32, i32, i32
  }
  func.func @transform_1(%arg0: i32) -> (i32, i32, i32) {
    %c0_i32 = arith.constant 0 : i32
    %c0_i32_0 = arith.constant 0 : i32
    %c0_i32_1 = arith.constant 0 : i32
    %c0_i32_2 = arith.constant 0 : i32
    return %c0_i32, %c0_i32_0, %c0_i32_1 : i32, i32, i32
  }
  func.func @transform_2(%arg0: i32) -> (i32, i32) {
    %c0_i32 = arith.constant 0 : i32
    %c0_i32_0 = arith.constant 0 : i32
    %c0_i32_1 = arith.constant 0 : i32
    return %c0_i32, %c0_i32_0 : i32, i32
  }
  func.func @transform_3(%arg0: i32) -> (i32, i32, i32) {
    %c0_i32 = arith.constant 0 : i32
    %c0_i32_0 = arith.constant 0 : i32
    %c0_i32_1 = arith.constant 0 : i32
    %c0_i32_2 = arith.constant 0 : i32
    return %c0_i32, %c0_i32_0, %c0_i32_1 : i32, i32, i32
  }
  func.func @transform_4(%arg0: i32) -> (i32, i32) {
    %c0_i32 = arith.constant 0 : i32
    %c0_i32_0 = arith.constant 0 : i32
    %c0_i32_1 = arith.constant 0 : i32
    return %c0_i32, %c0_i32_0 : i32, i32
  }
  func.func @transform_5(%arg0: i32) -> (i32, i32, i32) {
    %c0_i32 = arith.constant 0 : i32
    %c0_i32_0 = arith.constant 0 : i32
    %c0_i32_1 = arith.constant 0 : i32
    %c0_i32_2 = arith.constant 0 : i32
    return %c0_i32, %c0_i32_0, %c0_i32_1 : i32, i32, i32
  }
  func.func @transform_6(%arg0: i32) -> (i32, i32) {
    %c0_i32 = arith.constant 0 : i32
    %c0_i32_0 = arith.constant 0 : i32
    %c0_i32_1 = arith.constant 0 : i32
    return %c0_i32, %c0_i32_0 : i32, i32
  }
  func.func @transform_7(%arg0: i32) -> (i32, i32) {
    %c0_i32 = arith.constant 0 : i32
    %c0_i32_0 = arith.constant 0 : i32
    %c0_i32_1 = arith.constant 0 : i32
    return %c0_i32, %c0_i32_0 : i32, i32
  }
  func.func @transform_8(%arg0: i32) -> (i32, i32) {
    %c0_i32 = arith.constant 0 : i32
    %c0_i32_0 = arith.constant 0 : i32
    %c0_i32_1 = arith.constant 0 : i32
    return %c0_i32, %c0_i32_0 : i32, i32
  }
  func.func @transform_9(%arg0: i32) -> (i32, i32) {
    %c0_i32 = arith.constant 0 : i32
    %c0_i32_0 = arith.constant 0 : i32
    %c0_i32_1 = arith.constant 0 : i32
    return %c0_i32, %c0_i32_0 : i32, i32
  }
  func.func @transform_10(%arg0: i32) -> (i32, i32) {
    %c0_i32 = arith.constant 0 : i32
    %c0_i32_0 = arith.constant 0 : i32
    %c0_i32_1 = arith.constant 0 : i32
    return %c0_i32, %c0_i32_0 : i32, i32
  }
  func.func @transform_11(%arg0: i32) -> (i32, i32) {
    %c0_i32 = arith.constant 0 : i32
    %c0_i32_0 = arith.constant 0 : i32
    %c0_i32_1 = arith.constant 0 : i32
    return %c0_i32, %c0_i32_0 : i32, i32
  }
  func.func @transform_12(%arg0: i32) -> (i32, i32) {
    %c0_i32 = arith.constant 0 : i32
    %c0_i32_0 = arith.constant 0 : i32
    %c0_i32_1 = arith.constant 0 : i32
    return %c0_i32, %c0_i32_0 : i32, i32
  }
  func.func @transform_13(%arg0: i32) -> (i32, i32) {
    %c0_i32 = arith.constant 0 : i32
    %c0_i32_0 = arith.constant 0 : i32
    return %arg0, %c0_i32 : i32, i32
  }
}

</mosaic_0001>

<llo_original>
// kernel: tpu_custom_call.1
$region0: #{tpu_custom_call.1}
  #allocation0 [shape = 'u32[]', space=smem, size = 0x4, offset = 0x4, fixed_abs, tag = 'smem constant byte address 0x4 - core index']
  #allocation1 [shape = 'u32[144,128]{1,0:T(1,128)}', space=vmem, size = 0x12000, scoped, tag = 'internal scratch']
  %s0 = inlined_call_operand.vmem [shape: f32[128,16,9], index: 0, kind: input, shape index: {}]
  %s1 = inlined_call_operand.vmem [shape: f32[3,9,32], index: 1, kind: input, shape index: {}]
  %s2 = inlined_call_operand.vmem [shape: f32[1,32], index: 2, kind: input, shape index: {}]
  %s3 = inlined_call_operand.vmem [shape: f32[3,32,64], index: 3, kind: input, shape index: {}]
  %s4 = inlined_call_operand.vmem [shape: f32[1,64], index: 4, kind: input, shape index: {}]
  %s5 = inlined_call_operand.vmem [shape: f32[3,64,128], index: 5, kind: input, shape index: {}]
  %s6 = inlined_call_operand.vmem [shape: f32[1,128], index: 6, kind: input, shape index: {}]
  %s7 = inlined_call_operand.vmem [shape: f32[2048,100], index: 7, kind: input, shape index: {}]
  %s8 = inlined_call_operand.vmem [shape: f32[1,100], index: 8, kind: input, shape index: {}]
  %s9 = inlined_call_operand.vmem [shape: f32[100,100], index: 9, kind: input, shape index: {}]
  %s10 = inlined_call_operand.vmem [shape: f32[1,100], index: 10, kind: input, shape index: {}]
  %s11 = inlined_call_operand.vmem [shape: f32[100,128], index: 11, kind: input, shape index: {}]
  %s12 = inlined_call_operand.vmem [shape: f32[1,128], index: 12, kind: input, shape index: {}]
  %s13 = inlined_call_operand.hbm [shape: f32[16,128], index: 13, kind: output, shape index: {}]
  %s14 = sld [smem:[#allocation0]]
  $region123: #{tpu_custom_call.1} parent=0
    _
  %s16 = ssub.s32 1, %s14
  %s17 = scalar_select 0, %s16, %s14
  $region1: #{tpu_custom_call.1} parent=0
    #allocation2 [shape = 'u8[1048576]{0}', space=vmem, size = 0x100000, scoped, tag = 'input window, operand 0']
    #allocation3 [shape = 'u8[8192]{0}', space=vmem, size = 0x2000, scoped, tag = 'output window, operand 0']
    #allocation4 [shape = 's32[2]{0}', space=sflag, size = 0x8, scoped, tag = 'scoped memory for tpu_custom_call.1']
    %18 = vsyncpa [#allocation4], 0
    %s19 = scalar_lea.sflag [#allocation4], 1
    %20 = vsyncpa %s19, 0
    loop: start=0, step=1, limit=4
    $region2: #{tpu_custom_call.1} parent=1 // loop_pre_header
      _
    $region3: #{tpu_custom_call.1} parent=1 // loop_header
      %s22 = sphi 0, %s26
      %p23 = scmp.ge.s32.totalorder %s22, 4
      %s32 = sphi 0, %s34
      %s35 = sphi 0, %s32
      %s36 = sphi 0, %s35
      %s52 = sphi 0, %s36
      %s56 = sphi 0, %s56
      %s58 = sphi 0, %s56
      %s59 = sphi 0, %s58
      %s73 = sphi 0, %s59
      %s77 = sphi 0, %s77
      %s79 = sphi 0, %s77
      %s80 = sphi 0, %s79
      %s94 = sphi 0, %s80
      %s98 = sphi 0, %s98
      %s100 = sphi 0, %s98
      %s101 = sphi 0, %s100
      %s115 = sphi 0, %s101
      %s119 = sphi 0, %s119
      %s121 = sphi 0, %s119
      %s122 = sphi 0, %s121
      %s136 = sphi 0, %s122
      %s140 = sphi 0, %s140
      %s142 = sphi 0, %s140
      %s143 = sphi 0, %s142
      %s157 = sphi 0, %s143
      %s161 = sphi 0, %s161
      %s163 = sphi 0, %s161
      %s164 = sphi 0, %s163
      %s178 = sphi 0, %s164
      %s182 = sphi 0, %s182
      %s184 = sphi 0, %s182
      %s185 = sphi 0, %s184
      %s199 = sphi 0, %s185
      %s203 = sphi 0, %s203
      %s205 = sphi 0, %s203
      %s206 = sphi 0, %s205
      %s220 = sphi 0, %s206
      %s224 = sphi 0, %s224
      %s226 = sphi 0, %s224
      %s227 = sphi 0, %s226
      %s241 = sphi 0, %s227
      %s245 = sphi 0, %s245
      %s247 = sphi 0, %s245
      %s248 = sphi 0, %s247
      %s262 = sphi 0, %s248
      %s266 = sphi 0, %s266
      %s268 = sphi 0, %s266
      %s269 = sphi 0, %s268
      %s283 = sphi 0, %s269
      %s287 = sphi 0, %s287
      %s289 = sphi 0, %s287
      %s290 = sphi 0, %s289
      %s304 = sphi 0, %s290
      %s310 = sphi 0, %s312
      %s313 = sphi 0, %s310
      %s314 = sphi 0, %s313
      %s330 = sphi 0, %s314
    $region4: #{tpu_custom_call.1} parent=1 // loop_header_branch
      %25 = sbr.rel (%p23) target = $region8
    $region5: #{tpu_custom_call.1} parent=1 // loop_body
      %s27 = ssub.s32 %s22, 1
      %s28 = ssub.s32 %s22, 2
      %s29 = sadd.s32 %s22, 1
      %s30 = ssub.s32 %s22, %s29
      %p31 = scmp.eq.s32.totalorder %s30, 0
      %s33 = sadd.s32 %s32, 1
      %s34 = scalar_select %p31, %s32, %s33
      %p37 = pneg %p31
      %p38 = scmp.eq.s32.totalorder %s22, 1
      %p39 = por %p37, %p38
      %p40 = scmp.ne.s32.totalorder %s32, %s35
      %p41 = scmp.eq.s32.totalorder %s22, 0
      %p42 = por %p40, %p41
      %p43 = scmp.ne.s32.totalorder %s32, %s35
      %p44 = scmp.eq.s32.totalorder %s27, 1
      %p45 = por %p43, %p44
      %p46 = scmp.ne.s32.totalorder %s35, %s36
      %p47 = scmp.eq.s32.totalorder %s27, 0
      %p48 = por %p46, %p47
      %p49 = scmp.ne.s32.totalorder %s35, %s36
      %p50 = scmp.eq.s32.totalorder %s28, 1
      %p51 = por %p49, %p50
      %p53 = scmp.ne.s32.totalorder %s36, %s52
      %p54 = scmp.eq.s32.totalorder %s28, 0
      %p55 = por %p53, %p54
      %s57 = sadd.s32 %s56, 1
      %p60 = scmp.eq.s32.totalorder %s22, 1
      %p61 = scmp.ne.s32.totalorder %s56, %s58
      %p62 = scmp.eq.s32.totalorder %s22, 0
      %p63 = por %p61, %p62
      %p64 = scmp.ne.s32.totalorder %s56, %s58
      %p65 = scmp.eq.s32.totalorder %s27, 1
      %p66 = por %p64, %p65
      %p67 = scmp.ne.s32.totalorder %s58, %s59
      %p68 = scmp.eq.s32.totalorder %s27, 0
      %p69 = por %p67, %p68
      %p70 = scmp.ne.s32.totalorder %s58, %s59
      %p71 = scmp.eq.s32.totalorder %s28, 1
      %p72 = por %p70, %p71
      %p74 = scmp.ne.s32.totalorder %s59, %s73
      %p75 = scmp.eq.s32.totalorder %s28, 0
      %p76 = por %p74, %p75
      %s78 = sadd.s32 %s77, 1
      %p81 = scmp.eq.s32.totalorder %s22, 1
      %p82 = scmp.ne.s32.totalorder %s77, %s79
      %p83 = scmp.eq.s32.totalorder %s22, 0
      %p84 = por %p82, %p83
      %p85 = scmp.ne.s32.totalorder %s77, %s79
      %p86 = scmp.eq.s32.totalorder %s27, 1
      %p87 = por %p85, %p86
      %p88 = scmp.ne.s32.totalorder %s79, %s80
      %p89 = scmp.eq.s32.totalorder %s27, 0
      %p90 = por %p88, %p89
      %p91 = scmp.ne.s32.totalorder %s79, %s80
      %p92 = scmp.eq.s32.totalorder %s28, 1
      %p93 = por %p91, %p92
      %p95 = scmp.ne.s32.totalorder %s80, %s94
      %p96 = scmp.eq.s32.totalorder %s28, 0
      %p97 = por %p95, %p96
      %s99 = sadd.s32 %s98, 1
      %p102 = scmp.eq.s32.totalorder %s22, 1
      %p103 = scmp.ne.s32.totalorder %s98, %s100
      %p104 = scmp.eq.s32.totalorder %s22, 0
      %p105 = por %p103, %p104
      %p106 = scmp.ne.s32.totalorder %s98, %s100
      %p107 = scmp.eq.s32.totalorder %s27, 1
      %p108 = por %p106, %p107
      %p109 = scmp.ne.s32.totalorder %s100, %s101
      %p110 = scmp.eq.s32.totalorder %s27, 0
      %p111 = por %p109, %p110
      %p112 = scmp.ne.s32.totalorder %s100, %s101
      %p113 = scmp.eq.s32.totalorder %s28, 1
      %p114 = por %p112, %p113
      %p116 = scmp.ne.s32.totalorder %s101, %s115
      %p117 = scmp.eq.s32.totalorder %s28, 0
      %p118 = por %p116, %p117
      %s120 = sadd.s32 %s119, 1
      %p123 = scmp.eq.s32.totalorder %s22, 1
      %p124 = scmp.ne.s32.totalorder %s119, %s121
      %p125 = scmp.eq.s32.totalorder %s22, 0
      %p126 = por %p124, %p125
      %p127 = scmp.ne.s32.totalorder %s119, %s121
      %p128 = scmp.eq.s32.totalorder %s27, 1
      %p129 = por %p127, %p128
      %p130 = scmp.ne.s32.totalorder %s121, %s122
      %p131 = scmp.eq.s32.totalorder %s27, 0
      %p132 = por %p130, %p131
      %p133 = scmp.ne.s32.totalorder %s121, %s122
      %p134 = scmp.eq.s32.totalorder %s28, 1
      %p135 = por %p133, %p134
      %p137 = scmp.ne.s32.totalorder %s122, %s136
      %p138 = scmp.eq.s32.totalorder %s28, 0
      %p139 = por %p137, %p138
      %s141 = sadd.s32 %s140, 1
      %p144 = scmp.eq.s32.totalorder %s22, 1
      %p145 = scmp.ne.s32.totalorder %s140, %s142
      %p146 = scmp.eq.s32.totalorder %s22, 0
      %p147 = por %p145, %p146
      %p148 = scmp.ne.s32.totalorder %s140, %s142
      %p149 = scmp.eq.s32.totalorder %s27, 1
      %p150 = por %p148, %p149
      %p151 = scmp.ne.s32.totalorder %s142, %s143
      %p152 = scmp.eq.s32.totalorder %s27, 0
      %p153 = por %p151, %p152
      %p154 = scmp.ne.s32.totalorder %s142, %s143
      %p155 = scmp.eq.s32.totalorder %s28, 1
      %p156 = por %p154, %p155
      %p158 = scmp.ne.s32.totalorder %s143, %s157
      %p159 = scmp.eq.s32.totalorder %s28, 0
      %p160 = por %p158, %p159
      %s162 = sadd.s32 %s161, 1
      %p165 = scmp.eq.s32.totalorder %s22, 1
      %p166 = scmp.ne.s32.totalorder %s161, %s163
      %p167 = scmp.eq.s32.totalorder %s22, 0
      %p168 = por %p166, %p167
      %p169 = scmp.ne.s32.totalorder %s161, %s163
      %p170 = scmp.eq.s32.totalorder %s27, 1
      %p171 = por %p169, %p170
      %p172 = scmp.ne.s32.totalorder %s163, %s164
      %p173 = scmp.eq.s32.totalorder %s27, 0
      %p174 = por %p172, %p173
      %p175 = scmp.ne.s32.totalorder %s163, %s164
      %p176 = scmp.eq.s32.totalorder %s28, 1
      %p177 = por %p175, %p176
      %p179 = scmp.ne.s32.totalorder %s164, %s178
      %p180 = scmp.eq.s32.totalorder %s28, 0
      %p181 = por %p179, %p180
      %s183 = sadd.s32 %s182, 1
      %p186 = scmp.eq.s32.totalorder %s22, 1
      %p187 = scmp.ne.s32.totalorder %s182, %s184
      %p188 = scmp.eq.s32.totalorder %s22, 0
      %p189 = por %p187, %p188
      %p190 = scmp.ne.s32.totalorder %s182, %s184
      %p191 = scmp.eq.s32.totalorder %s27, 1
      %p192 = por %p190, %p191
      %p193 = scmp.ne.s32.totalorder %s184, %s185
      %p194 = scmp.eq.s32.totalorder %s27, 0
      %p195 = por %p193, %p194
      %p196 = scmp.ne.s32.totalorder %s184, %s185
      %p197 = scmp.eq.s32.totalorder %s28, 1
      %p198 = por %p196, %p197
      %p200 = scmp.ne.s32.totalorder %s185, %s199
      %p201 = scmp.eq.s32.totalorder %s28, 0
      %p202 = por %p200, %p201
      %s204 = sadd.s32 %s203, 1
      %p207 = scmp.eq.s32.totalorder %s22, 1
      %p208 = scmp.ne.s32.totalorder %s203, %s205
      %p209 = scmp.eq.s32.totalorder %s22, 0
      %p210 = por %p208, %p209
      %p211 = scmp.ne.s32.totalorder %s203, %s205
      %p212 = scmp.eq.s32.totalorder %s27, 1
      %p213 = por %p211, %p212
      %p214 = scmp.ne.s32.totalorder %s205, %s206
      %p215 = scmp.eq.s32.totalorder %s27, 0
      %p216 = por %p214, %p215
      %p217 = scmp.ne.s32.totalorder %s205, %s206
      %p218 = scmp.eq.s32.totalorder %s28, 1
      %p219 = por %p217, %p218
      %p221 = scmp.ne.s32.totalorder %s206, %s220
      %p222 = scmp.eq.s32.totalorder %s28, 0
      %p223 = por %p221, %p222
      %s225 = sadd.s32 %s224, 1
      %p228 = scmp.eq.s32.totalorder %s22, 1
      %p229 = scmp.ne.s32.totalorder %s224, %s226
      %p230 = scmp.eq.s32.totalorder %s22, 0
      %p231 = por %p229, %p230
      %p232 = scmp.ne.s32.totalorder %s224, %s226
      %p233 = scmp.eq.s32.totalorder %s27, 1
      %p234 = por %p232, %p233
      %p235 = scmp.ne.s32.totalorder %s226, %s227
      %p236 = scmp.eq.s32.totalorder %s27, 0
      %p237 = por %p235, %p236
      %p238 = scmp.ne.s32.totalorder %s226, %s227
      %p239 = scmp.eq.s32.totalorder %s28, 1
      %p240 = por %p238, %p239
      %p242 = scmp.ne.s32.totalorder %s227, %s241
      %p243 = scmp.eq.s32.totalorder %s28, 0
      %p244 = por %p242, %p243
      %s246 = sadd.s32 %s245, 1
      %p249 = scmp.eq.s32.totalorder %s22, 1
      %p250 = scmp.ne.s32.totalorder %s245, %s247
      %p251 = scmp.eq.s32.totalorder %s22, 0
      %p252 = por %p250, %p251
      %p253 = scmp.ne.s32.totalorder %s245, %s247
      %p254 = scmp.eq.s32.totalorder %s27, 1
      %p255 = por %p253, %p254
      %p256 = scmp.ne.s32.totalorder %s247, %s248
      %p257 = scmp.eq.s32.totalorder %s27, 0
      %p258 = por %p256, %p257
      %p259 = scmp.ne.s32.totalorder %s247, %s248
      %p260 = scmp.eq.s32.totalorder %s28, 1
      %p261 = por %p259, %p260
      %p263 = scmp.ne.s32.totalorder %s248, %s262
      %p264 = scmp.eq.s32.totalorder %s28, 0
      %p265 = por %p263, %p264
      %s267 = sadd.s32 %s266, 1
      %p270 = scmp.eq.s32.totalorder %s22, 1
      %p271 = scmp.ne.s32.totalorder %s266, %s268
      %p272 = scmp.eq.s32.totalorder %s22, 0
      %p273 = por %p271, %p272
      %p274 = scmp.ne.s32.totalorder %s266, %s268
      %p275 = scmp.eq.s32.totalorder %s27, 1
      %p276 = por %p274, %p275
      %p277 = scmp.ne.s32.totalorder %s268, %s269
      %p278 = scmp.eq.s32.totalorder %s27, 0
      %p279 = por %p277, %p278
      %p280 = scmp.ne.s32.totalorder %s268, %s269
      %p281 = scmp.eq.s32.totalorder %s28, 1
      %p282 = por %p280, %p281
      %p284 = scmp.ne.s32.totalorder %s269, %s283
      %p285 = scmp.eq.s32.totalorder %s28, 0
      %p286 = por %p284, %p285
      %s288 = sadd.s32 %s287, 1
      %p291 = scmp.eq.s32.totalorder %s22, 1
      %p292 = scmp.ne.s32.totalorder %s287, %s289
      %p293 = scmp.eq.s32.totalorder %s22, 0
      %p294 = por %p292, %p293
      %p295 = scmp.ne.s32.totalorder %s287, %s289
      %p296 = scmp.eq.s32.totalorder %s27, 1
      %p297 = por %p295, %p296
      %p298 = scmp.ne.s32.totalorder %s289, %s290
      %p299 = scmp.eq.s32.totalorder %s27, 0
      %p300 = por %p298, %p299
      %p301 = scmp.ne.s32.totalorder %s289, %s290
      %p302 = scmp.eq.s32.totalorder %s28, 1
      %p303 = por %p301, %p302
      %p305 = scmp.ne.s32.totalorder %s290, %s304
      %p306 = scmp.eq.s32.totalorder %s28, 0
      %p307 = por %p305, %p306
      %s308 = ssub.s32 %s22, %s29
      %p309 = scmp.eq.s32.totalorder %s308, 0
      %s311 = sadd.s32 %s310, 1
      %s312 = scalar_select %p309, %s310, %s311
      %p315 = pneg %p309
      %p316 = scmp.eq.s32.totalorder %s22, 1
      %p317 = por %p315, %p316
      %p318 = scmp.ne.s32.totalorder %s310, %s313
      %p319 = scmp.eq.s32.totalorder %s22, 0
      %p320 = por %p318, %p319
      %p321 = scmp.ne.s32.totalorder %s310, %s313
      %p322 = scmp.eq.s32.totalorder %s27, 1
      %p323 = por %p321, %p322
      %p324 = scmp.ne.s32.totalorder %s313, %s314
      %p325 = scmp.eq.s32.totalorder %s27, 0
      %p326 = por %p324, %p325
      %p327 = scmp.ne.s32.totalorder %s313, %s314
      %p328 = scmp.eq.s32.totalorder %s28, 1
      %p329 = por %p327, %p328
      %p331 = scmp.ne.s32.totalorder %s314, %s330
      %p332 = scmp.eq.s32.totalorder %s28, 0
      %p333 = por %p331, %p332
      %p334 = scmp.le.s32.totalorder 1, %s22
      %p335 = scmp.lt.s32.totalorder %s22, 3
      %p336 = pnand %p334, %p335
      %p337 = pneg %p336
      // Predicated region
      $region9: #{tpu_custom_call.1} parent=5 // pred_check
        _
      $region10: #{tpu_custom_call.1} parent=5 // pred_check_branch
        %339 = sbr.rel (%p336) target = $region12
      $region11: #{tpu_custom_call.1} parent=5 // pred_region
        %s340 = ssub.s32 %s22, 1
        // Predicated region
        $region13: #{tpu_custom_call.1} parent=11 // pred_check
          %p341 = pneg %p69
        $region14: #{tpu_custom_call.1} parent=11 // pred_check_branch
          %343 = sbr.rel (%p341) target = $region16
        $region15: #{tpu_custom_call.1} parent=11 // pred_region
          _
        $region16: #{tpu_custom_call.1} parent=11 // pred_fallthru
          _
        // Predicated region
        $region17: #{tpu_custom_call.1} parent=11 // pred_check
          %p344 = pneg %p90
        $region18: #{tpu_custom_call.1} parent=11 // pred_check_branch
          %346 = sbr.rel (%p344) target = $region20
        $region19: #{tpu_custom_call.1} parent=11 // pred_region
          _
        $region20: #{tpu_custom_call.1} parent=11 // pred_fallthru
          _
        // Predicated region
        $region21: #{tpu_custom_call.1} parent=11 // pred_check
          %p347 = pneg %p111
        $region22: #{tpu_custom_call.1} parent=11 // pred_check_branch
          %349 = sbr.rel (%p347) target = $region24
        $region23: #{tpu_custom_call.1} parent=11 // pred_region
          _
        $region24: #{tpu_custom_call.1} parent=11 // pred_fallthru
          _
        // Predicated region
        $region25: #{tpu_custom_call.1} parent=11 // pred_check
          %p350 = pneg %p132
        $region26: #{tpu_custom_call.1} parent=11 // pred_check_branch
          %352 = sbr.rel (%p350) target = $region28
        $region27: #{tpu_custom_call.1} parent=11 // pred_region
          _
        $region28: #{tpu_custom_call.1} parent=11 // pred_fallthru
          _
        // Predicated region
        $region29: #{tpu_custom_call.1} parent=11 // pred_check
          %p353 = pneg %p153
        $region30: #{tpu_custom_call.1} parent=11 // pred_check_branch
          %355 = sbr.rel (%p353) target = $region32
        $region31: #{tpu_custom_call.1} parent=11 // pred_region
          _
        $region32: #{tpu_custom_call.1} parent=11 // pred_fallthru
          _
        // Predicated region
        $region33: #{tpu_custom_call.1} parent=11 // pred_check
          %p356 = pneg %p174
        $region34: #{tpu_custom_call.1} parent=11 // pred_check_branch
          %358 = sbr.rel (%p356) target = $region36
        $region35: #{tpu_custom_call.1} parent=11 // pred_region
          _
        $region36: #{tpu_custom_call.1} parent=11 // pred_fallthru
          _
        // Predicated region
        $region37: #{tpu_custom_call.1} parent=11 // pred_check
          %p359 = pneg %p195
        $region38: #{tpu_custom_call.1} parent=11 // pred_check_branch
          %361 = sbr.rel (%p359) target = $region40
        $region39: #{tpu_custom_call.1} parent=11 // pred_region
          _
        $region40: #{tpu_custom_call.1} parent=11 // pred_fallthru
          _
        // Predicated region
        $region41: #{tpu_custom_call.1} parent=11 // pred_check
          %p362 = pneg %p216
        $region42: #{tpu_custom_call.1} parent=11 // pred_check_branch
          %364 = sbr.rel (%p362) target = $region44
        $region43: #{tpu_custom_call.1} parent=11 // pred_region
          _
        $region44: #{tpu_custom_call.1} parent=11 // pred_fallthru
          _
        // Predicated region
        $region45: #{tpu_custom_call.1} parent=11 // pred_check
          %p365 = pneg %p237
        $region46: #{tpu_custom_call.1} parent=11 // pred_check_branch
          %367 = sbr.rel (%p365) target = $region48
        $region47: #{tpu_custom_call.1} parent=11 // pred_region
          _
        $region48: #{tpu_custom_call.1} parent=11 // pred_fallthru
          _
        // Predicated region
        $region49: #{tpu_custom_call.1} parent=11 // pred_check
          %p368 = pneg %p258
        $region50: #{tpu_custom_call.1} parent=11 // pred_check_branch
          %370 = sbr.rel (%p368) target = $region52
        $region51: #{tpu_custom_call.1} parent=11 // pred_region
          _
        $region52: #{tpu_custom_call.1} parent=11 // pred_fallthru
          _
        // Predicated region
        $region53: #{tpu_custom_call.1} parent=11 // pred_check
          %p371 = pneg %p279
        $region54: #{tpu_custom_call.1} parent=11 // pred_check_branch
          %373 = sbr.rel (%p371) target = $region56
        $region55: #{tpu_custom_call.1} parent=11 // pred_region
          _
        $region56: #{tpu_custom_call.1} parent=11 // pred_fallthru
          _
        // Predicated region
        $region57: #{tpu_custom_call.1} parent=11 // pred_check
          %p374 = pneg %p300
        $region58: #{tpu_custom_call.1} parent=11 // pred_check_branch
          %376 = sbr.rel (%p374) target = $region60
        $region59: #{tpu_custom_call.1} parent=11 // pred_region
          _
        $region60: #{tpu_custom_call.1} parent=11 // pred_fallthru
          _
      $region12: #{tpu_custom_call.1} parent=5 // pred_fallthru
        _
      %p377 = scmp.lt.s32.totalorder %s22, 2
      // Predicated region
      $region61: #{tpu_custom_call.1} parent=5 // pred_check
        %p378 = pneg %p377
      $region62: #{tpu_custom_call.1} parent=5 // pred_check_branch
        %380 = sbr.rel (%p378) target = $region64
      $region63: #{tpu_custom_call.1} parent=5 // pred_region
        // Predicated region
        $region65: #{tpu_custom_call.1} parent=63 // pred_check
          %p381 = pneg %p42
        $region66: #{tpu_custom_call.1} parent=63 // pred_check_branch
          %383 = sbr.rel (%p381) target = $region68
        $region67: #{tpu_custom_call.1} parent=63 // pred_region
          %s384 = sand.u32 %s32, 1
          %s385 = sand.u32 %s32, 1
          %s386 = smul.addr %s385, 1024
          %s387 = scalar_lea.vmem [#allocation2], %s386
          %s388 = smul.addr %s22, 8
          %s389 = scalar_lea.vmem %s0, %s388
          // Predicated region
          $region69: #{tpu_custom_call.1} parent=67 // pred_check
            _
          $region70: #{tpu_custom_call.1} parent=67 // pred_check_branch
            %391 = sbr.rel (0) target = $region72
          $region71: #{tpu_custom_call.1} parent=67 // pred_region
            // Predicated region
            $region73: #{tpu_custom_call.1} parent=71 // pred_check
              _
            $region74: #{tpu_custom_call.1} parent=71 // pred_check_branch
              %393 = sbr.rel (0) target = $region76
            $region75: #{tpu_custom_call.1} parent=71 // pred_region
              // Predicated region
              $region88: #{tpu_custom_call.1} parent=75 // pred_check
                _
              $region89: #{tpu_custom_call.1} parent=75 // pred_check_branch
                %662 = sbr.rel (0) target = $region91
              $region90: #{tpu_custom_call.1} parent=75 // pred_region
                loop: start=0, step=1, limit=1
                $region92: #{tpu_custom_call.1} parent=90 // loop_pre_header
                  _
                $region93: #{tpu_custom_call.1} parent=90 // loop_header
                  %s664 = sphi 0, %s668
                  %p665 = scmp.ge.s32.totalorder %s664, 1
                  %s669 = sphi %s389, %s389
                  %s670 = sphi %s387, %s387
                $region94: #{tpu_custom_call.1} parent=90 // loop_header_branch
                  %667 = sbr.rel (%p665) target = $region98
                $region95: #{tpu_custom_call.1} parent=90 // loop_body
                  %v671 = vld [vmem:[%s669] sm:$0xff]
                  %672 = vst [vmem:[%s670] sm:$0xff] %v671
                  %v673 = vld [vmem:[%s669 + $0x10] sm:$0xff]
                  %674 = vst [vmem:[%s670 + $0x8] sm:$0xff] %v673
                  %v675 = vld [vmem:[%s669 + $0x20] sm:$0xff]
                  %676 = vst [vmem:[%s670 + $0x10] sm:$0xff] %v675
                  %v677 = vld [vmem:[%s669 + $0x30] sm:$0xff]
                  %678 = vst [vmem:[%s670 + $0x18] sm:$0xff] %v677
                  %v679 = vld [vmem:[%s669 + $0x40] sm:$0xff]
                  %680 = vst [vmem:[%s670 + $0x20] sm:$0xff] %v679
                  %v681 = vld [vmem:[%s669 + $0x50] sm:$0xff]
                  %682 = vst [vmem:[%s670 + $0x28] sm:$0xff] %v681
                  %v683 = vld [vmem:[%s669 + $0x60] sm:$0xff]
                  %684 = vst [vmem:[%s670 + $0x30] sm:$0xff] %v683
                  %v685 = vld [vmem:[%s669 + $0x70] sm:$0xff]
                  %686 = vst [vmem:[%s670 + $0x38] sm:$0xff] %v685
                  %v687 = vld [vmem:[%s669 + $0x80] sm:$0xff]
                  %688 = vst [vmem:[%s670 + $0x40] sm:$0xff] %v687
                  %v689 = vld [vmem:[%s669 + $0x90] sm:$0xff]
                  %690 = vst [vmem:[%s670 + $0x48] sm:$0xff] %v689
                  %v691 = vld [vmem:[%s669 + $0xa0] sm:$0xff]
                  %692 = vst [vmem:[%s670 + $0x50] sm:$0xff] %v691
                  %v693 = vld [vmem:[%s669 + $0xb0] sm:$0xff]
                  %694 = vst [vmem:[%s670 + $0x58] sm:$0xff] %v693
                  %v695 = vld [vmem:[%s669 + $0xc0] sm:$0xff]
                  %696 = vst [vmem:[%s670 + $0x60] sm:$0xff] %v695
                  %v697 = vld [vmem:[%s669 + $0xd0] sm:$0xff]
                  %698 = vst [vmem:[%s670 + $0x68] sm:$0xff] %v697
                  %v699 = vld [vmem:[%s669 + $0xe0] sm:$0xff]
                  %700 = vst [vmem:[%s670 + $0x70] sm:$0xff] %v699
                  %v701 = vld [vmem:[%s669 + $0xf0] sm:$0xff]
                  %702 = vst [vmem:[%s670 + $0x78] sm:$0xff] %v701
                  %v703 = vld [vmem:[%s669 + $0x100] sm:$0xff]
                  %704 = vst [vmem:[%s670 + $0x80] sm:$0xff] %v703
                  %v705 = vld [vmem:[%s669 + $0x110] sm:$0xff]
                  %706 = vst [vmem:[%s670 + $0x88] sm:$0xff] %v705
                  %v707 = vld [vmem:[%s669 + $0x120] sm:$0xff]
                  %708 = vst [vmem:[%s670 + $0x90] sm:$0xff] %v707
                  %v709 = vld [vmem:[%s669 + $0x130] sm:$0xff]
                  %710 = vst [vmem:[%s670 + $0x98] sm:$0xff] %v709
                  %v711 = vld [vmem:[%s669 + $0x140] sm:$0xff]
                  %712 = vst [vmem:[%s670 + $0xa0] sm:$0xff] %v711
                  %v713 = vld [vmem:[%s669 + $0x150] sm:$0xff]
                  %714 = vst [vmem:[%s670 + $0xa8] sm:$0xff] %v713
                  %v715 = vld [vmem:[%s669 + $0x160] sm:$0xff]
                  %716 = vst [vmem:[%s670 + $0xb0] sm:$0xff] %v715
                  %v717 = vld [vmem:[%s669 + $0x170] sm:$0xff]
                  %718 = vst [vmem:[%s670 + $0xb8] sm:$0xff] %v717
                  %v719 = vld [vmem:[%s669 + $0x180] sm:$0xff]
                  %720 = vst [vmem:[%s670 + $0xc0] sm:$0xff] %v719
                  %v721 = vld [vmem:[%s669 + $0x190] sm:$0xff]
                  %722 = vst [vmem:[%s670 + $0xc8] sm:$0xff] %v721
                  %v723 = vld [vmem:[%s669 + $0x1a0] sm:$0xff]
                  %724 = vst [vmem:[%s670 + $0xd0] sm:$0xff] %v723
                  %v725 = vld [vmem:[%s669 + $0x1b0] sm:$0xff]
                  %726 = vst [vmem:[%s670 + $0xd8] sm:$0xff] %v725
                  %v727 = vld [vmem:[%s669 + $0x1c0] sm:$0xff]
                  %728 = vst [vmem:[%s670 + $0xe0] sm:$0xff] %v727
                  %v729 = vld [vmem:[%s669 + $0x1d0] sm:$0xff]
                  %730 = vst [vmem:[%s670 + $0xe8] sm:$0xff] %v729
                  %v731 = vld [vmem:[%s669 + $0x1e0] sm:$0xff]
                  %732 = vst [vmem:[%s670 + $0xf0] sm:$0xff] %v731
                  %v733 = vld [vmem:[%s669 + $0x1f0] sm:$0xff]
                  %734 = vst [vmem:[%s670 + $0xf8] sm:$0xff] %v733
                  %v735 = vld [vmem:[%s669 + $0x200] sm:$0xff]
                  %736 = vst [vmem:[%s670 + $0x100] sm:$0xff] %v735
                  %v737 = vld [vmem:[%s669 + $0x210] sm:$0xff]
                  %738 = vst [vmem:[%s670 + $0x108] sm:$0xff] %v737
                  %v739 = vld [vmem:[%s669 + $0x220] sm:$0xff]
                  %740 = vst [vmem:[%s670 + $0x110] sm:$0xff] %v739
                  %v741 = vld [vmem:[%s669 + $0x230] sm:$0xff]
                  %742 = vst [vmem:[%s670 + $0x118] sm:$0xff] %v741
                  %v743 = vld [vmem:[%s669 + $0x240] sm:$0xff]
                  %744 = vst [vmem:[%s670 + $0x120] sm:$0xff] %v743
                  %v745 = vld [vmem:[%s669 + $0x250] sm:$0xff]
                  %746 = vst [vmem:[%s670 + $0x128] sm:$0xff] %v745
                  %v747 = vld [vmem:[%s669 + $0x260] sm:$0xff]
                  %748 = vst [vmem:[%s670 + $0x130] sm:$0xff] %v747
                  %v749 = vld [vmem:[%s669 + $0x270] sm:$0xff]
                  %750 = vst [vmem:[%s670 + $0x138] sm:$0xff] %v749
                  %v751 = vld [vmem:[%s669 + $0x280] sm:$0xff]
                  %752 = vst [vmem:[%s670 + $0x140] sm:$0xff] %v751
                  %v753 = vld [vmem:[%s669 + $0x290] sm:$0xff]
                  %754 = vst [vmem:[%s670 + $0x148] sm:$0xff] %v753
                  %v755 = vld [vmem:[%s669 + $0x2a0] sm:$0xff]
                  %756 = vst [vmem:[%s670 + $0x150] sm:$0xff] %v755
                  %v757 = vld [vmem:[%s669 + $0x2b0] sm:$0xff]
                  %758 = vst [vmem:[%s670 + $0x158] sm:$0xff] %v757
                  %v759 = vld [vmem:[%s669 + $0x2c0] sm:$0xff]
                  %760 = vst [vmem:[%s670 + $0x160] sm:$0xff] %v759
                  %v761 = vld [vmem:[%s669 + $0x2d0] sm:$0xff]
                  %762 = vst [vmem:[%s670 + $0x168] sm:$0xff] %v761
                  %v763 = vld [vmem:[%s669 + $0x2e0] sm:$0xff]
                  %764 = vst [vmem:[%s670 + $0x170] sm:$0xff] %v763
                  %v765 = vld [vmem:[%s669 + $0x2f0] sm:$0xff]
                  %766 = vst [vmem:[%s670 + $0x178] sm:$0xff] %v765
                  %v767 = vld [vmem:[%s669 + $0x300] sm:$0xff]
                  %768 = vst [vmem:[%s670 + $0x180] sm:$0xff] %v767
                  %v769 = vld [vmem:[%s669 + $0x310] sm:$0xff]
                  %770 = vst [vmem:[%s670 + $0x188] sm:$0xff] %v769
                  %v771 = vld [vmem:[%s669 + $0x320] sm:$0xff]
                  %772 = vst [vmem:[%s670 + $0x190] sm:$0xff] %v771
                  %v773 = vld [vmem:[%s669 + $0x330] sm:$0xff]
                  %774 = vst [vmem:[%s670 + $0x198] sm:$0xff] %v773
                  %v775 = vld [vmem:[%s669 + $0x340] sm:$0xff]
                  %776 = vst [vmem:[%s670 + $0x1a0] sm:$0xff] %v775
                  %v777 = vld [vmem:[%s669 + $0x350] sm:$0xff]
                  %778 = vst [vmem:[%s670 + $0x1a8] sm:$0xff] %v777
                  %v779 = vld [vmem:[%s669 + $0x360] sm:$0xff]
                  %780 = vst [vmem:[%s670 + $0x1b0] sm:$0xff] %v779
                  %v781 = vld [vmem:[%s669 + $0x370] sm:$0xff]
                  %782 = vst [vmem:[%s670 + $0x1b8] sm:$0xff] %v781
                  %v783 = vld [vmem:[%s669 + $0x380] sm:$0xff]
                  %784 = vst [vmem:[%s670 + $0x1c0] sm:$0xff] %v783
                  %v785 = vld [vmem:[%s669 + $0x390] sm:$0xff]
                  %786 = vst [vmem:[%s670 + $0x1c8] sm:$0xff] %v785
                  %v787 = vld [vmem:[%s669 + $0x3a0] sm:$0xff]
                  %788 = vst [vmem:[%s670 + $0x1d0] sm:$0xff] %v787
                  %v789 = vld [vmem:[%s669 + $0x3b0] sm:$0xff]
                  %790 = vst [vmem:[%s670 + $0x1d8] sm:$0xff] %v789
                  %v791 = vld [vmem:[%s669 + $0x3c0] sm:$0xff]
                  %792 = vst [vmem:[%s670 + $0x1e0] sm:$0xff] %v791
                  %v793 = vld [vmem:[%s669 + $0x3d0] sm:$0xff]
                  %794 = vst [vmem:[%s670 + $0x1e8] sm:$0xff] %v793
                  %v795 = vld [vmem:[%s669 + $0x3e0] sm:$0xff]
                  %796 = vst [vmem:[%s670 + $0x1f0] sm:$0xff] %v795
                  %v797 = vld [vmem:[%s669 + $0x3f0] sm:$0xff]
                  %798 = vst [vmem:[%s670 + $0x1f8] sm:$0xff] %v797
                  %v799 = vld [vmem:[%s669 + $0x400] sm:$0xff]
                  %800 = vst [vmem:[%s670 + $0x200] sm:$0xff] %v799
                  %v801 = vld [vmem:[%s669 + $0x410] sm:$0xff]
                  %802 = vst [vmem:[%s670 + $0x208] sm:$0xff] %v801
                  %v803 = vld [vmem:[%s669 + $0x420] sm:$0xff]
                  %804 = vst [vmem:[%s670 + $0x210] sm:$0xff] %v803
                  %v805 = vld [vmem:[%s669 + $0x430] sm:$0xff]
                  %806 = vst [vmem:[%s670 + $0x218] sm:$0xff] %v805
                  %v807 = vld [vmem:[%s669 + $0x440] sm:$0xff]
                  %808 = vst [vmem:[%s670 + $0x220] sm:$0xff] %v807
                  %v809 = vld [vmem:[%s669 + $0x450] sm:$0xff]
                  %810 = vst [vmem:[%s670 + $0x228] sm:$0xff] %v809
                  %v811 = vld [vmem:[%s669 + $0x460] sm:$0xff]
                  %812 = vst [vmem:[%s670 + $0x230] sm:$0xff] %v811
                  %v813 = vld [vmem:[%s669 + $0x470] sm:$0xff]
                  %814 = vst [vmem:[%s670 + $0x238] sm:$0xff] %v813
                  %v815 = vld [vmem:[%s669 + $0x480] sm:$0xff]
                  %816 = vst [vmem:[%s670 + $0x240] sm:$0xff] %v815
                  %v817 = vld [vmem:[%s669 + $0x490] sm:$0xff]
                  %818 = vst [vmem:[%s670 + $0x248] sm:$0xff] %v817
                  %v819 = vld [vmem:[%s669 + $0x4a0] sm:$0xff]
                  %820 = vst [vmem:[%s670 + $0x250] sm:$0xff] %v819
                  %v821 = vld [vmem:[%s669 + $0x4b0] sm:$0xff]
                  %822 = vst [vmem:[%s670 + $0x258] sm:$0xff] %v821
                  %v823 = vld [vmem:[%s669 + $0x4c0] sm:$0xff]
                  %824 = vst [vmem:[%s670 + $0x260] sm:$0xff] %v823
                  %v825 = vld [vmem:[%s669 + $0x4d0] sm:$0xff]
                  %826 = vst [vmem:[%s670 + $0x268] sm:$0xff] %v825
                  %v827 = vld [vmem:[%s669 + $0x4e0] sm:$0xff]
                  %828 = vst [vmem:[%s670 + $0x270] sm:$0xff] %v827
                  %v829 = vld [vmem:[%s669 + $0x4f0] sm:$0xff]
                  %830 = vst [vmem:[%s670 + $0x278] sm:$0xff] %v829
                  %v831 = vld [vmem:[%s669 + $0x500] sm:$0xff]
                  %832 = vst [vmem:[%s670 + $0x280] sm:$0xff] %v831
                  %v833 = vld [vmem:[%s669 + $0x510] sm:$0xff]
                  %834 = vst [vmem:[%s670 + $0x288] sm:$0xff] %v833
                  %v835 = vld [vmem:[%s669 + $0x520] sm:$0xff]
                  %836 = vst [vmem:[%s670 + $0x290] sm:$0xff] %v835
                  %v837 = vld [vmem:[%s669 + $0x530] sm:$0xff]
                  %838 = vst [vmem:[%s670 + $0x298] sm:$0xff] %v837
                  %v839 = vld [vmem:[%s669 + $0x540] sm:$0xff]
                  %840 = vst [vmem:[%s670 + $0x2a0] sm:$0xff] %v839
                  %v841 = vld [vmem:[%s669 + $0x550] sm:$0xff]
                  %842 = vst [vmem:[%s670 + $0x2a8] sm:$0xff] %v841
                  %v843 = vld [vmem:[%s669 + $0x560] sm:$0xff]
                  %844 = vst [vmem:[%s670 + $0x2b0] sm:$0xff] %v843
                  %v845 = vld [vmem:[%s669 + $0x570] sm:$0xff]
                  %846 = vst [vmem:[%s670 + $0x2b8] sm:$0xff] %v845
                  %v847 = vld [vmem:[%s669 + $0x580] sm:$0xff]
                  %848 = vst [vmem:[%s670 + $0x2c0] sm:$0xff] %v847
                  %v849 = vld [vmem:[%s669 + $0x590] sm:$0xff]
                  %850 = vst [vmem:[%s670 + $0x2c8] sm:$0xff] %v849
                  %v851 = vld [vmem:[%s669 + $0x5a0] sm:$0xff]
                  %852 = vst [vmem:[%s670 + $0x2d0] sm:$0xff] %v851
                  %v853 = vld [vmem:[%s669 + $0x5b0] sm:$0xff]
                  %854 = vst [vmem:[%s670 + $0x2d8] sm:$0xff] %v853
                  %v855 = vld [vmem:[%s669 + $0x5c0] sm:$0xff]
                  %856 = vst [vmem:[%s670 + $0x2e0] sm:$0xff] %v855
                  %v857 = vld [vmem:[%s669 + $0x5d0] sm:$0xff]
                  %858 = vst [vmem:[%s670 + $0x2e8] sm:$0xff] %v857
                  %v859 = vld [vmem:[%s669 + $0x5e0] sm:$0xff]
                  %860 = vst [vmem:[%s670 + $0x2f0] sm:$0xff] %v859
                  %v861 = vld [vmem:[%s669 + $0x5f0] sm:$0xff]
                  %862 = vst [vmem:[%s670 + $0x2f8] sm:$0xff] %v861
                  %v863 = vld [vmem:[%s669 + $0x600] sm:$0xff]
                  %864 = vst [vmem:[%s670 + $0x300] sm:$0xff] %v863
                  %v865 = vld [vmem:[%s669 + $0x610] sm:$0xff]
                  %866 = vst [vmem:[%s670 + $0x308] sm:$0xff] %v865
                  %v867 = vld [vmem:[%s669 + $0x620] sm:$0xff]
                  %868 = vst [vmem:[%s670 + $0x310] sm:$0xff] %v867
                  %v869 = vld [vmem:[%s669 + $0x630] sm:$0xff]
                  %870 = vst [vmem:[%s670 + $0x318] sm:$0xff] %v869
                  %v871 = vld [vmem:[%s669 + $0x640] sm:$0xff]
                  %872 = vst [vmem:[%s670 + $0x320] sm:$0xff] %v871
                  %v873 = vld [vmem:[%s669 + $0x650] sm:$0xff]
                  %874 = vst [vmem:[%s670 + $0x328] sm:$0xff] %v873
                  %v875 = vld [vmem:[%s669 + $0x660] sm:$0xff]
                  %876 = vst [vmem:[%s670 + $0x330] sm:$0xff] %v875
                  %v877 = vld [vmem:[%s669 + $0x670] sm:$0xff]
                  %878 = vst [vmem:[%s670 + $0x338] sm:$0xff] %v877
                  %v879 = vld [vmem:[%s669 + $0x680] sm:$0xff]
                  %880 = vst [vmem:[%s670 + $0x340] sm:$0xff] %v879
                  %v881 = vld [vmem:[%s669 + $0x690] sm:$0xff]
                  %882 = vst [vmem:[%s670 + $0x348] sm:$0xff] %v881
                  %v883 = vld [vmem:[%s669 + $0x6a0] sm:$0xff]
                  %884 = vst [vmem:[%s670 + $0x350] sm:$0xff] %v883
                  %v885 = vld [vmem:[%s669 + $0x6b0] sm:$0xff]
                  %886 = vst [vmem:[%s670 + $0x358] sm:$0xff] %v885
                  %v887 = vld [vmem:[%s669 + $0x6c0] sm:$0xff]
                  %888 = vst [vmem:[%s670 + $0x360] sm:$0xff] %v887
                  %v889 = vld [vmem:[%s669 + $0x6d0] sm:$0xff]
                  %890 = vst [vmem:[%s670 + $0x368] sm:$0xff] %v889
                  %v891 = vld [vmem:[%s669 + $0x6e0] sm:$0xff]
                  %892 = vst [vmem:[%s670 + $0x370] sm:$0xff] %v891
                  %v893 = vld [vmem:[%s669 + $0x6f0] sm:$0xff]
                  %894 = vst [vmem:[%s670 + $0x378] sm:$0xff] %v893
                  %v895 = vld [vmem:[%s669 + $0x700] sm:$0xff]
                  %896 = vst [vmem:[%s670 + $0x380] sm:$0xff] %v895
                  %v897 = vld [vmem:[%s669 + $0x710] sm:$0xff]
                  %898 = vst [vmem:[%s670 + $0x388] sm:$0xff] %v897
                  %v899 = vld [vmem:[%s669 + $0x720] sm:$0xff]
                  %900 = vst [vmem:[%s670 + $0x390] sm:$0xff] %v899
                  %v901 = vld [vmem:[%s669 + $0x730] sm:$0xff]
                  %902 = vst [vmem:[%s670 + $0x398] sm:$0xff] %v901
                  %v903 = vld [vmem:[%s669 + $0x740] sm:$0xff]
                  %904 = vst [vmem:[%s670 + $0x3a0] sm:$0xff] %v903
                  %v905 = vld [vmem:[%s669 + $0x750] sm:$0xff]
                  %906 = vst [vmem:[%s670 + $0x3a8] sm:$0xff] %v905
                  %v907 = vld [vmem:[%s669 + $0x760] sm:$0xff]
                  %908 = vst [vmem:[%s670 + $0x3b0] sm:$0xff] %v907
                  %v909 = vld [vmem:[%s669 + $0x770] sm:$0xff]
                  %910 = vst [vmem:[%s670 + $0x3b8] sm:$0xff] %v909
                  %v911 = vld [vmem:[%s669 + $0x780] sm:$0xff]
                  %912 = vst [vmem:[%s670 + $0x3c0] sm:$0xff] %v911
                  %v913 = vld [vmem:[%s669 + $0x790] sm:$0xff]
                  %914 = vst [vmem:[%s670 + $0x3c8] sm:$0xff] %v913
                  %v915 = vld [vmem:[%s669 + $0x7a0] sm:$0xff]
                  %916 = vst [vmem:[%s670 + $0x3d0] sm:$0xff] %v915
                  %v917 = vld [vmem:[%s669 + $0x7b0] sm:$0xff]
                  %918 = vst [vmem:[%s670 + $0x3d8] sm:$0xff] %v917
                  %v919 = vld [vmem:[%s669 + $0x7c0] sm:$0xff]
                  %920 = vst [vmem:[%s670 + $0x3e0] sm:$0xff] %v919
                  %v921 = vld [vmem:[%s669 + $0x7d0] sm:$0xff]
                  %922 = vst [vmem:[%s670 + $0x3e8] sm:$0xff] %v921
                  %v923 = vld [vmem:[%s669 + $0x7e0] sm:$0xff]
                  %924 = vst [vmem:[%s670 + $0x3f0] sm:$0xff] %v923
                  %v925 = vld [vmem:[%s669 + $0x7f0] sm:$0xff]
                  %926 = vst [vmem:[%s670 + $0x3f8] sm:$0xff] %v925
                $region96: #{tpu_custom_call.1} parent=90 // loop_footer
                  %s668 = sadd.s32 1, %s664
                $region97: #{tpu_custom_call.1} parent=90 // loop_footer_branch
                  %663 = sbr.rel target = $region93
                $region98: #{tpu_custom_call.1} parent=90 // loop_exit
                  _
              $region91: #{tpu_custom_call.1} parent=75 // pred_fallthru
                _
              // Predicated region
              $region99: #{tpu_custom_call.1} parent=75 // pred_check
                _
              $region100: #{tpu_custom_call.1} parent=75 // pred_check_branch
                %928 = sbr.rel target = $region102
              $region101: #{tpu_custom_call.1} parent=75 // pred_region
                _
              $region102: #{tpu_custom_call.1} parent=75 // pred_fallthru
                _
            $region76: #{tpu_custom_call.1} parent=71 // pred_fallthru
              _
            // Predicated region
            $region77: #{tpu_custom_call.1} parent=71 // pred_check
              _
            $region78: #{tpu_custom_call.1} parent=71 // pred_check_branch
              %395 = sbr.rel target = $region80
            $region79: #{tpu_custom_call.1} parent=71 // pred_region
              loop: start=0, step=1, limit=1
              $region81: #{tpu_custom_call.1} parent=79 // loop_pre_header
                _
              $region82: #{tpu_custom_call.1} parent=79 // loop_header
                %s398 = sphi 0, %s402
                %p399 = scmp.ge.s32.totalorder %s398, 1
                %s403 = sphi %s389, %s389
                %s404 = sphi %s387, %s387
              $region83: #{tpu_custom_call.1} parent=79 // loop_header_branch
                %401 = sbr.rel (%p399) target = $region87
              $region84: #{tpu_custom_call.1} parent=79 // loop_body
                %v405 = vld [vmem:[%s403] sm:$0xff]
                %406 = vst [vmem:[%s404] sm:$0xff] %v405
                %v407 = vld [vmem:[%s403 + $0x10] sm:$0xff]
                %408 = vst [vmem:[%s404 + $0x8] sm:$0xff] %v407
                %v409 = vld [vmem:[%s403 + $0x20] sm:$0xff]
                %410 = vst [vmem:[%s404 + $0x10] sm:$0xff] %v409
                %v411 = vld [vmem:[%s403 + $0x30] sm:$0xff]
                %412 = vst [vmem:[%s404 + $0x18] sm:$0xff] %v411
                %v413 = vld [vmem:[%s403 + $0x40] sm:$0xff]
                %414 = vst [vmem:[%s404 + $0x20] sm:$0xff] %v413
                %v415 = vld [vmem:[%s403 + $0x50] sm:$0xff]
                %416 = vst [vmem:[%s404 + $0x28] sm:$0xff] %v415
                %v417 = vld [vmem:[%s403 + $0x60] sm:$0xff]
                %418 = vst [vmem:[%s404 + $0x30] sm:$0xff] %v417
                %v419 = vld [vmem:[%s403 + $0x70] sm:$0xff]
                %420 = vst [vmem:[%s404 + $0x38] sm:$0xff] %v419
                %v421 = vld [vmem:[%s403 + $0x80] sm:$0xff]
                %422 = vst [vmem:[%s404 + $0x40] sm:$0xff] %v421
                %v423 = vld [vmem:[%s403 + $0x90] sm:$0xff]
                %424 = vst [vmem:[%s404 + $0x48] sm:$0xff] %v423
                %v425 = vld [vmem:[%s403 + $0xa0] sm:$0xff]
                %426 = vst [vmem:[%s404 + $0x50] sm:$0xff] %v425
                %v427 = vld [vmem:[%s403 + $0xb0] sm:$0xff]
                %428 = vst [vmem:[%s404 + $0x58] sm:$0xff] %v427
                %v429 = vld [vmem:[%s403 + $0xc0] sm:$0xff]
                %430 = vst [vmem:[%s404 + $0x60] sm:$0xff] %v429
                %v431 = vld [vmem:[%s403 + $0xd0] sm:$0xff]
                %432 = vst [vmem:[%s404 + $0x68] sm:$0xff] %v431
                %v433 = vld [vmem:[%s403 + $0xe0] sm:$0xff]
                %434 = vst [vmem:[%s404 + $0x70] sm:$0xff] %v433
                %v435 = vld [vmem:[%s403 + $0xf0] sm:$0xff]
                %436 = vst [vmem:[%s404 + $0x78] sm:$0xff] %v435
                %v437 = vld [vmem:[%s403 + $0x100] sm:$0xff]
                %438 = vst [vmem:[%s404 + $0x80] sm:$0xff] %v437
                %v439 = vld [vmem:[%s403 + $0x110] sm:$0xff]
                %440 = vst [vmem:[%s404 + $0x88] sm:$0xff] %v439
                %v441 = vld [vmem:[%s403 + $0x120] sm:$0xff]
                %442 = vst [vmem:[%s404 + $0x90] sm:$0xff] %v441
                %v443 = vld [vmem:[%s403 + $0x130] sm:$0xff]
                %444 = vst [vmem:[%s404 + $0x98] sm:$0xff] %v443
                %v445 = vld [vmem:[%s403 + $0x140] sm:$0xff]
                %446 = vst [vmem:[%s404 + $0xa0] sm:$0xff] %v445
                %v447 = vld [vmem:[%s403 + $0x150] sm:$0xff]
                %448 = vst [vmem:[%s404 + $0xa8] sm:$0xff] %v447
                %v449 = vld [vmem:[%s403 + $0x160] sm:$0xff]
                %450 = vst [vmem:[%s404 + $0xb0] sm:$0xff] %v449
                %v451 = vld [vmem:[%s403 + $0x170] sm:$0xff]
                %452 = vst [vmem:[%s404 + $0xb8] sm:$0xff] %v451
                %v453 = vld [vmem:[%s403 + $0x180] sm:$0xff]
                %454 = vst [vmem:[%s404 + $0xc0] sm:$0xff] %v453
                %v455 = vld [vmem:[%s403 + $0x190] sm:$0xff]
                %456 = vst [vmem:[%s404 + $0xc8] sm:$0xff] %v455
                %v457 = vld [vmem:[%s403 + $0x1a0] sm:$0xff]
                %458 = vst [vmem:[%s404 + $0xd0] sm:$0xff] %v457
                %v459 = vld [vmem:[%s403 + $0x1b0] sm:$0xff]
                %460 = vst [vmem:[%s404 + $0xd8] sm:$0xff] %v459
                %v461 = vld [vmem:[%s403 + $0x1c0] sm:$0xff]
                %462 = vst [vmem:[%s404 + $0xe0] sm:$0xff] %v461
                %v463 = vld [vmem:[%s403 + $0x1d0] sm:$0xff]
                %464 = vst [vmem:[%s404 + $0xe8] sm:$0xff] %v463
                %v465 = vld [vmem:[%s403 + $0x1e0] sm:$0xff]
                %466 = vst [vmem:[%s404 + $0xf0] sm:$0xff] %v465
                %v467 = vld [vmem:[%s403 + $0x1f0] sm:$0xff]
                %468 = vst [vmem:[%s404 + $0xf8] sm:$0xff] %v467
                %v469 = vld [vmem:[%s403 + $0x200] sm:$0xff]
                %470 = vst [vmem:[%s404 + $0x100] sm:$0xff] %v469
                %v471 = vld [vmem:[%s403 + $0x210] sm:$0xff]
                %472 = vst [vmem:[%s404 + $0x108] sm:$0xff] %v471
                %v473 = vld [vmem:[%s403 + $0x220] sm:$0xff]
                %474 = vst [vmem:[%s404 + $0x110] sm:$0xff] %v473
                %v475 = vld [vmem:[%s403 + $0x230] sm:$0xff]
                %476 = vst [vmem:[%s404 + $0x118] sm:$0xff] %v475
                %v477 = vld [vmem:[%s403 + $0x240] sm:$0xff]
                %478 = vst [vmem:[%s404 + $0x120] sm:$0xff] %v477
                %v479 = vld [vmem:[%s403 + $0x250] sm:$0xff]
                %480 = vst [vmem:[%s404 + $0x128] sm:$0xff] %v479
                %v481 = vld [vmem:[%s403 + $0x260] sm:$0xff]
                %482 = vst [vmem:[%s404 + $0x130] sm:$0xff] %v481
                %v483 = vld [vmem:[%s403 + $0x270] sm:$0xff]
                %484 = vst [vmem:[%s404 + $0x138] sm:$0xff] %v483
                %v485 = vld [vmem:[%s403 + $0x280] sm:$0xff]
                %486 = vst [vmem:[%s404 + $0x140] sm:$0xff] %v485
                %v487 = vld [vmem:[%s403 + $0x290] sm:$0xff]
                %488 = vst [vmem:[%s404 + $0x148] sm:$0xff] %v487
                %v489 = vld [vmem:[%s403 + $0x2a0] sm:$0xff]
                %490 = vst [vmem:[%s404 + $0x150] sm:$0xff] %v489
                %v491 = vld [vmem:[%s403 + $0x2b0] sm:$0xff]
                %492 = vst [vmem:[%s404 + $0x158] sm:$0xff] %v491
                %v493 = vld [vmem:[%s403 + $0x2c0] sm:$0xff]
                %494 = vst [vmem:[%s404 + $0x160] sm:$0xff] %v493
                %v495 = vld [vmem:[%s403 + $0x2d0] sm:$0xff]
                %496 = vst [vmem:[%s404 + $0x168] sm:$0xff] %v495
                %v497 = vld [vmem:[%s403 + $0x2e0] sm:$0xff]
                %498 = vst [vmem:[%s404 + $0x170] sm:$0xff] %v497
                %v499 = vld [vmem:[%s403 + $0x2f0] sm:$0xff]
                %500 = vst [vmem:[%s404 + $0x178] sm:$0xff] %v499
                %v501 = vld [vmem:[%s403 + $0x300] sm:$0xff]
                %502 = vst [vmem:[%s404 + $0x180] sm:$0xff] %v501
                %v503 = vld [vmem:[%s403 + $0x310] sm:$0xff]
                %504 = vst [vmem:[%s404 + $0x188] sm:$0xff] %v503
                %v505 = vld [vmem:[%s403 + $0x320] sm:$0xff]
                %506 = vst [vmem:[%s404 + $0x190] sm:$0xff] %v505
                %v507 = vld [vmem:[%s403 + $0x330] sm:$0xff]
                %508 = vst [vmem:[%s404 + $0x198] sm:$0xff] %v507
                %v509 = vld [vmem:[%s403 + $0x340] sm:$0xff]
                %510 = vst [vmem:[%s404 + $0x1a0] sm:$0xff] %v509
                %v511 = vld [vmem:[%s403 + $0x350] sm:$0xff]
                %512 = vst [vmem:[%s404 + $0x1a8] sm:$0xff] %v511
                %v513 = vld [vmem:[%s403 + $0x360] sm:$0xff]
                %514 = vst [vmem:[%s404 + $0x1b0] sm:$0xff] %v513
                %v515 = vld [vmem:[%s403 + $0x370] sm:$0xff]
                %516 = vst [vmem:[%s404 + $0x1b8] sm:$0xff] %v515
                %v517 = vld [vmem:[%s403 + $0x380] sm:$0xff]
                %518 = vst [vmem:[%s404 + $0x1c0] sm:$0xff] %v517
                %v519 = vld [vmem:[%s403 + $0x390] sm:$0xff]
                %520 = vst [vmem:[%s404 + $0x1c8] sm:$0xff] %v519
                %v521 = vld [vmem:[%s403 + $0x3a0] sm:$0xff]
                %522 = vst [vmem:[%s404 + $0x1d0] sm:$0xff] %v521
                %v523 = vld [vmem:[%s403 + $0x3b0] sm:$0xff]
                %524 = vst [vmem:[%s404 + $0x1d8] sm:$0xff] %v523
                %v525 = vld [vmem:[%s403 + $0x3c0] sm:$0xff]
                %526 = vst [vmem:[%s404 + $0x1e0] sm:$0xff] %v525
                %v527 = vld [vmem:[%s403 + $0x3d0] sm:$0xff]
                %528 = vst [vmem:[%s404 + $0x1e8] sm:$0xff] %v527
                %v529 = vld [vmem:[%s403 + $0x3e0] sm:$0xff]
                %530 = vst [vmem:[%s404 + $0x1f0] sm:$0xff] %v529
                %v531 = vld [vmem:[%s403 + $0x3f0] sm:$0xff]
                %532 = vst [vmem:[%s404 + $0x1f8] sm:$0xff] %v531
                %v533 = vld [vmem:[%s403 + $0x400] sm:$0xff]
                %534 = vst [vmem:[%s404 + $0x200] sm:$0xff] %v533
                %v535 = vld [vmem:[%s403 + $0x410] sm:$0xff]
                %536 = vst [vmem:[%s404 + $0x208] sm:$0xff] %v535
                %v537 = vld [vmem:[%s403 + $0x420] sm:$0xff]
                %538 = vst [vmem:[%s404 + $0x210] sm:$0xff] %v537
                %v539 = vld [vmem:[%s403 + $0x430] sm:$0xff]
                %540 = vst [vmem:[%s404 + $0x218] sm:$0xff] %v539
                %v541 = vld [vmem:[%s403 + $0x440] sm:$0xff]
                %542 = vst [vmem:[%s404 + $0x220] sm:$0xff] %v541
                %v543 = vld [vmem:[%s403 + $0x450] sm:$0xff]
                %544 = vst [vmem:[%s404 + $0x228] sm:$0xff] %v543
                %v545 = vld [vmem:[%s403 + $0x460] sm:$0xff]
                %546 = vst [vmem:[%s404 + $0x230] sm:$0xff] %v545
                %v547 = vld [vmem:[%s403 + $0x470] sm:$0xff]
                %548 = vst [vmem:[%s404 + $0x238] sm:$0xff] %v547
                %v549 = vld [vmem:[%s403 + $0x480] sm:$0xff]
                %550 = vst [vmem:[%s404 + $0x240] sm:$0xff] %v549
                %v551 = vld [vmem:[%s403 + $0x490] sm:$0xff]
                %552 = vst [vmem:[%s404 + $0x248] sm:$0xff] %v551
                %v553 = vld [vmem:[%s403 + $0x4a0] sm:$0xff]
                %554 = vst [vmem:[%s404 + $0x250] sm:$0xff] %v553
                %v555 = vld [vmem:[%s403 + $0x4b0] sm:$0xff]
                %556 = vst [vmem:[%s404 + $0x258] sm:$0xff] %v555
                %v557 = vld [vmem:[%s403 + $0x4c0] sm:$0xff]
                %558 = vst [vmem:[%s404 + $0x260] sm:$0xff] %v557
                %v559 = vld [vmem:[%s403 + $0x4d0] sm:$0xff]
                %560 = vst [vmem:[%s404 + $0x268] sm:$0xff] %v559
                %v561 = vld [vmem:[%s403 + $0x4e0] sm:$0xff]
                %562 = vst [vmem:[%s404 + $0x270] sm:$0xff] %v561
                %v563 = vld [vmem:[%s403 + $0x4f0] sm:$0xff]
                %564 = vst [vmem:[%s404 + $0x278] sm:$0xff] %v563
                %v565 = vld [vmem:[%s403 + $0x500] sm:$0xff]
                %566 = vst [vmem:[%s404 + $0x280] sm:$0xff] %v565
                %v567 = vld [vmem:[%s403 + $0x510] sm:$0xff]
                %568 = vst [vmem:[%s404 + $0x288] sm:$0xff] %v567
                %v569 = vld [vmem:[%s403 + $0x520] sm:$0xff]
                %570 = vst [vmem:[%s404 + $0x290] sm:$0xff] %v569
                %v571 = vld [vmem:[%s403 + $0x530] sm:$0xff]
                %572 = vst [vmem:[%s404 + $0x298] sm:$0xff] %v571
                %v573 = vld [vmem:[%s403 + $0x540] sm:$0xff]
                %574 = vst [vmem:[%s404 + $0x2a0] sm:$0xff] %v573
                %v575 = vld [vmem:[%s403 + $0x550] sm:$0xff]
                %576 = vst [vmem:[%s404 + $0x2a8] sm:$0xff] %v575
                %v577 = vld [vmem:[%s403 + $0x560] sm:$0xff]
                %578 = vst [vmem:[%s404 + $0x2b0] sm:$0xff] %v577
                %v579 = vld [vmem:[%s403 + $0x570] sm:$0xff]
                %580 = vst [vmem:[%s404 + $0x2b8] sm:$0xff] %v579
                %v581 = vld [vmem:[%s403 + $0x580] sm:$0xff]
                %582 = vst [vmem:[%s404 + $0x2c0] sm:$0xff] %v581
                %v583 = vld [vmem:[%s403 + $0x590] sm:$0xff]
                %584 = vst [vmem:[%s404 + $0x2c8] sm:$0xff] %v583
                %v585 = vld [vmem:[%s403 + $0x5a0] sm:$0xff]
                %586 = vst [vmem:[%s404 + $0x2d0] sm:$0xff] %v585
                %v587 = vld [vmem:[%s403 + $0x5b0] sm:$0xff]
                %588 = vst [vmem:[%s404 + $0x2d8] sm:$0xff] %v587
                %v589 = vld [vmem:[%s403 + $0x5c0] sm:$0xff]
                %590 = vst [vmem:[%s404 + $0x2e0] sm:$0xff] %v589
                %v591 = vld [vmem:[%s403 + $0x5d0] sm:$0xff]
                %592 = vst [vmem:[%s404 + $0x2e8] sm:$0xff] %v591
                %v593 = vld [vmem:[%s403 + $0x5e0] sm:$0xff]
                %594 = vst [vmem:[%s404 + $0x2f0] sm:$0xff] %v593
                %v595 = vld [vmem:[%s403 + $0x5f0] sm:$0xff]
                %596 = vst [vmem:[%s404 + $0x2f8] sm:$0xff] %v595
                %v597 = vld [vmem:[%s403 + $0x600] sm:$0xff]
                %598 = vst [vmem:[%s404 + $0x300] sm:$0xff] %v597
                %v599 = vld [vmem:[%s403 + $0x610] sm:$0xff]
                %600 = vst [vmem:[%s404 + $0x308] sm:$0xff] %v599
                %v601 = vld [vmem:[%s403 + $0x620] sm:$0xff]
                %602 = vst [vmem:[%s404 + $0x310] sm:$0xff] %v601
                %v603 = vld [vmem:[%s403 + $0x630] sm:$0xff]
                %604 = vst [vmem:[%s404 + $0x318] sm:$0xff] %v603
                %v605 = vld [vmem:[%s403 + $0x640] sm:$0xff]
                %606 = vst [vmem:[%s404 + $0x320] sm:$0xff] %v605
                %v607 = vld [vmem:[%s403 + $0x650] sm:$0xff]
                %608 = vst [vmem:[%s404 + $0x328] sm:$0xff] %v607
                %v609 = vld [vmem:[%s403 + $0x660] sm:$0xff]
                %610 = vst [vmem:[%s404 + $0x330] sm:$0xff] %v609
                %v611 = vld [vmem:[%s403 + $0x670] sm:$0xff]
                %612 = vst [vmem:[%s404 + $0x338] sm:$0xff] %v611
                %v613 = vld [vmem:[%s403 + $0x680] sm:$0xff]
                %614 = vst [vmem:[%s404 + $0x340] sm:$0xff] %v613
                %v615 = vld [vmem:[%s403 + $0x690] sm:$0xff]
                %616 = vst [vmem:[%s404 + $0x348] sm:$0xff] %v615
                %v617 = vld [vmem:[%s403 + $0x6a0] sm:$0xff]
                %618 = vst [vmem:[%s404 + $0x350] sm:$0xff] %v617
                %v619 = vld [vmem:[%s403 + $0x6b0] sm:$0xff]
                %620 = vst [vmem:[%s404 + $0x358] sm:$0xff] %v619
                %v621 = vld [vmem:[%s403 + $0x6c0] sm:$0xff]
                %622 = vst [vmem:[%s404 + $0x360] sm:$0xff] %v621
                %v623 = vld [vmem:[%s403 + $0x6d0] sm:$0xff]
                %624 = vst [vmem:[%s404 + $0x368] sm:$0xff] %v623
                %v625 = vld [vmem:[%s403 + $0x6e0] sm:$0xff]
                %626 = vst [vmem:[%s404 + $0x370] sm:$0xff] %v625
                %v627 = vld [vmem:[%s403 + $0x6f0] sm:$0xff]
                %628 = vst [vmem:[%s404 + $0x378] sm:$0xff] %v627
                %v629 = vld [vmem:[%s403 + $0x700] sm:$0xff]
                %630 = vst [vmem:[%s404 + $0x380] sm:$0xff] %v629
                %v631 = vld [vmem:[%s403 + $0x710] sm:$0xff]
                %632 = vst [vmem:[%s404 + $0x388] sm:$0xff] %v631
                %v633 = vld [vmem:[%s403 + $0x720] sm:$0xff]
                %634 = vst [vmem:[%s404 + $0x390] sm:$0xff] %v633
                %v635 = vld [vmem:[%s403 + $0x730] sm:$0xff]
                %636 = vst [vmem:[%s404 + $0x398] sm:$0xff] %v635
                %v637 = vld [vmem:[%s403 + $0x740] sm:$0xff]
                %638 = vst [vmem:[%s404 + $0x3a0] sm:$0xff] %v637
                %v639 = vld [vmem:[%s403 + $0x750] sm:$0xff]
                %640 = vst [vmem:[%s404 + $0x3a8] sm:$0xff] %v639
                %v641 = vld [vmem:[%s403 + $0x760] sm:$0xff]
                %642 = vst [vmem:[%s404 + $0x3b0] sm:$0xff] %v641
                %v643 = vld [vmem:[%s403 + $0x770] sm:$0xff]
                %644 = vst [vmem:[%s404 + $0x3b8] sm:$0xff] %v643
                %v645 = vld [vmem:[%s403 + $0x780] sm:$0xff]
                %646 = vst [vmem:[%s404 + $0x3c0] sm:$0xff] %v645
                %v647 = vld [vmem:[%s403 + $0x790] sm:$0xff]
                %648 = vst [vmem:[%s404 + $0x3c8] sm:$0xff] %v647
                %v649 = vld [vmem:[%s403 + $0x7a0] sm:$0xff]
                %650 = vst [vmem:[%s404 + $0x3d0] sm:$0xff] %v649
                %v651 = vld [vmem:[%s403 + $0x7b0] sm:$0xff]
                %652 = vst [vmem:[%s404 + $0x3d8] sm:$0xff] %v651
                %v653 = vld [vmem:[%s403 + $0x7c0] sm:$0xff]
                %654 = vst [vmem:[%s404 + $0x3e0] sm:$0xff] %v653
                %v655 = vld [vmem:[%s403 + $0x7d0] sm:$0xff]
                %656 = vst [vmem:[%s404 + $0x3e8] sm:$0xff] %v655
                %v657 = vld [vmem:[%s403 + $0x7e0] sm:$0xff]
                %658 = vst [vmem:[%s404 + $0x3f0] sm:$0xff] %v657
                %v659 = vld [vmem:[%s403 + $0x7f0] sm:$0xff]
                %660 = vst [vmem:[%s404 + $0x3f8] sm:$0xff] %v659
              $region85: #{tpu_custom_call.1} parent=79 // loop_footer
                %s402 = sadd.s32 1, %s398
              $region86: #{tpu_custom_call.1} parent=79 // loop_footer_branch
                %397 = sbr.rel target = $region82
              $region87: #{tpu_custom_call.1} parent=79 // loop_exit
                _
            $region80: #{tpu_custom_call.1} parent=71 // pred_fallthru
              _
          $region72: #{tpu_custom_call.1} parent=67 // pred_fallthru
            _
          %929 = vnop
        $region68: #{tpu_custom_call.1} parent=63 // pred_fallthru
          _
      $region64: #{tpu_custom_call.1} parent=5 // pred_fallthru
        _
      %p930 = scmp.le.s32.totalorder 1, %s22
      %p931 = scmp.lt.s32.totalorder %s22, 3
      %p932 = pnand %p930, %p931
      %p933 = pneg %p932
      // Predicated region
      $region103: #{tpu_custom_call.1} parent=5 // pred_check
        _
      $region104: #{tpu_custom_call.1} parent=5 // pred_check_branch
        %935 = sbr.rel (%p932) target = $region106
      $region105: #{tpu_custom_call.1} parent=5 // pred_region
        %s936 = ssub.s32 %s22, 1
        %s937 = sand.u32 %s35, 1
        %s938 = sand.u32 %s35, 1
        %s939 = smul.addr %s938, 1024
        %s940 = scalar_lea.vmem [#allocation2], %s939
        // Predicated region
        $region107: #{tpu_custom_call.1} parent=105 // pred_check
          %p941 = pneg %p48
        $region108: #{tpu_custom_call.1} parent=105 // pred_check_branch
          %943 = sbr.rel (%p941) target = $region110
        $region109: #{tpu_custom_call.1} parent=105 // pred_region
          _
        $region110: #{tpu_custom_call.1} parent=105 // pred_fallthru
          _
        %s944 = sand.u32 %s35, 1
        %s945 = sand.u32 %s35, 1
        %s946 = smul.addr %s945, 1024
        %s947 = scalar_lea.vmem [#allocation2], %s946
        %p948 = pneg %p48
        %p949 = pneg %p45
        %p950 = pneg %p69
        %p951 = pneg %p66
        %p952 = pneg %p90
        %p953 = pneg %p87
        %p954 = pneg %p111
        %p955 = pneg %p108
        %p956 = pneg %p132
        %p957 = pneg %p129
        %p958 = pneg %p153
        %p959 = pneg %p150
        %p960 = pneg %p174
        %p961 = pneg %p171
        %p962 = pneg %p195
        %p963 = pneg %p192
        %p964 = pneg %p216
        %p965 = pneg %p213
        %p966 = pneg %p237
        %p967 = pneg %p234
        %p968 = pneg %p258
        %p969 = pneg %p255
        %p970 = pneg %p279
        %p971 = pneg %p276
        %p972 = pneg %p300
        %p973 = pneg %p297
        %p974 = pneg %p326
        %p975 = pneg %p323
        %s976 = sand.u32 %s313, 1
        %s977 = scalar_lea.sflag [#allocation4], %s976
        %s978 = sand.u32 %s313, 1
        %s979 = smul.addr %s978, 8
        %s980 = scalar_lea.vmem [#allocation3], %s979
        %v981 = vld [vmem:[%s940] sm:$0xff]
        %v982 = vld [vmem:[%s940 + $0x8] sm:$0xff]
        %v983 = vld [vmem:[%s940 + $0x10] sm:$0xff]
        %v984 = vld [vmem:[%s940 + $0x18] sm:$0xff]
        %v985 = vld [vmem:[%s940 + $0x20] sm:$0xff]
        %v986 = vld [vmem:[%s940 + $0x28] sm:$0xff]
        %v987 = vld [vmem:[%s940 + $0x30] sm:$0xff]
        %v988 = vld [vmem:[%s940 + $0x38] sm:$0xff]
        %v989 = vld [vmem:[%s940 + $0x40] sm:$0xff]
        %v990 = vld [vmem:[%s940 + $0x48] sm:$0xff]
        %v991 = vld [vmem:[%s940 + $0x50] sm:$0xff]
        %v992 = vld [vmem:[%s940 + $0x58] sm:$0xff]
        %v993 = vld [vmem:[%s940 + $0x60] sm:$0xff]
        %v994 = vld [vmem:[%s940 + $0x68] sm:$0xff]
        %v995 = vld [vmem:[%s940 + $0x70] sm:$0xff]
        %v996 = vld [vmem:[%s940 + $0x78] sm:$0xff]
        %v997 = vld [vmem:[%s940 + $0x80] sm:$0xff]
        %v998 = vld [vmem:[%s940 + $0x88] sm:$0xff]
        %v999 = vld [vmem:[%s940 + $0x90] sm:$0xff]
        %v1000 = vld [vmem:[%s940 + $0x98] sm:$0xff]
        %v1001 = vld [vmem:[%s940 + $0xa0] sm:$0xff]
        %v1002 = vld [vmem:[%s940 + $0xa8] sm:$0xff]
        %v1003 = vld [vmem:[%s940 + $0xb0] sm:$0xff]
        %v1004 = vld [vmem:[%s940 + $0xb8] sm:$0xff]
        %v1005 = vld [vmem:[%s940 + $0xc0] sm:$0xff]
        %v1006 = vld [vmem:[%s940 + $0xc8] sm:$0xff]
        %v1007 = vld [vmem:[%s940 + $0xd0] sm:$0xff]
        %v1008 = vld [vmem:[%s940 + $0xd8] sm:$0xff]
        %v1009 = vld [vmem:[%s940 + $0xe0] sm:$0xff]
        %v1010 = vld [vmem:[%s940 + $0xe8] sm:$0xff]
        %v1011 = vld [vmem:[%s940 + $0xf0] sm:$0xff]
        %v1012 = vld [vmem:[%s940 + $0xf8] sm:$0xff]
        %v1013 = vld [vmem:[%s940 + $0x100] sm:$0xff]
        %v1014 = vld [vmem:[%s940 + $0x108] sm:$0xff]
        %v1015 = vld [vmem:[%s940 + $0x110] sm:$0xff]
        %v1016 = vld [vmem:[%s940 + $0x118] sm:$0xff]
        %v1017 = vld [vmem:[%s940 + $0x120] sm:$0xff]
        %v1018 = vld [vmem:[%s940 + $0x128] sm:$0xff]
        %v1019 = vld [vmem:[%s940 + $0x130] sm:$0xff]
        %v1020 = vld [vmem:[%s940 + $0x138] sm:$0xff]
        %v1021 = vld [vmem:[%s940 + $0x140] sm:$0xff]
        %v1022 = vld [vmem:[%s940 + $0x148] sm:$0xff]
        %v1023 = vld [vmem:[%s940 + $0x150] sm:$0xff]
        %v1024 = vld [vmem:[%s940 + $0x158] sm:$0xff]
        %v1025 = vld [vmem:[%s940 + $0x160] sm:$0xff]
        %v1026 = vld [vmem:[%s940 + $0x168] sm:$0xff]
        %v1027 = vld [vmem:[%s940 + $0x170] sm:$0xff]
        %v1028 = vld [vmem:[%s940 + $0x178] sm:$0xff]
        %v1029 = vld [vmem:[%s940 + $0x180] sm:$0xff]
        %v1030 = vld [vmem:[%s940 + $0x188] sm:$0xff]
        %v1031 = vld [vmem:[%s940 + $0x190] sm:$0xff]
        %v1032 = vld [vmem:[%s940 + $0x198] sm:$0xff]
        %v1033 = vld [vmem:[%s940 + $0x1a0] sm:$0xff]
        %v1034 = vld [vmem:[%s940 + $0x1a8] sm:$0xff]
        %v1035 = vld [vmem:[%s940 + $0x1b0] sm:$0xff]
        %v1036 = vld [vmem:[%s940 + $0x1b8] sm:$0xff]
        %v1037 = vld [vmem:[%s940 + $0x1c0] sm:$0xff]
        %v1038 = vld [vmem:[%s940 + $0x1c8] sm:$0xff]
        %v1039 = vld [vmem:[%s940 + $0x1d0] sm:$0xff]
        %v1040 = vld [vmem:[%s940 + $0x1d8] sm:$0xff]
        %v1041 = vld [vmem:[%s940 + $0x1e0] sm:$0xff]
        %v1042 = vld [vmem:[%s940 + $0x1e8] sm:$0xff]
        %v1043 = vld [vmem:[%s940 + $0x1f0] sm:$0xff]
        %v1044 = vld [vmem:[%s940 + $0x1f8] sm:$0xff]
        %v1045 = vld [vmem:[%s940 + $0x200] sm:$0xff]
        %v1046 = vld [vmem:[%s940 + $0x208] sm:$0xff]
        %v1047 = vld [vmem:[%s940 + $0x210] sm:$0xff]
        %v1048 = vld [vmem:[%s940 + $0x218] sm:$0xff]
        %v1049 = vld [vmem:[%s940 + $0x220] sm:$0xff]
        %v1050 = vld [vmem:[%s940 + $0x228] sm:$0xff]
        %v1051 = vld [vmem:[%s940 + $0x230] sm:$0xff]
        %v1052 = vld [vmem:[%s940 + $0x238] sm:$0xff]
        %v1053 = vld [vmem:[%s940 + $0x240] sm:$0xff]
        %v1054 = vld [vmem:[%s940 + $0x248] sm:$0xff]
        %v1055 = vld [vmem:[%s940 + $0x250] sm:$0xff]
        %v1056 = vld [vmem:[%s940 + $0x258] sm:$0xff]
        %v1057 = vld [vmem:[%s940 + $0x260] sm:$0xff]
        %v1058 = vld [vmem:[%s940 + $0x268] sm:$0xff]
        %v1059 = vld [vmem:[%s940 + $0x270] sm:$0xff]
        %v1060 = vld [vmem:[%s940 + $0x278] sm:$0xff]
        %v1061 = vld [vmem:[%s940 + $0x280] sm:$0xff]
        %v1062 = vld [vmem:[%s940 + $0x288] sm:$0xff]
        %v1063 = vld [vmem:[%s940 + $0x290] sm:$0xff]
        %v1064 = vld [vmem:[%s940 + $0x298] sm:$0xff]
        %v1065 = vld [vmem:[%s940 + $0x2a0] sm:$0xff]
        %v1066 = vld [vmem:[%s940 + $0x2a8] sm:$0xff]
        %v1067 = vld [vmem:[%s940 + $0x2b0] sm:$0xff]
        %v1068 = vld [vmem:[%s940 + $0x2b8] sm:$0xff]
        %v1069 = vld [vmem:[%s940 + $0x2c0] sm:$0xff]
        %v1070 = vld [vmem:[%s940 + $0x2c8] sm:$0xff]
        %v1071 = vld [vmem:[%s940 + $0x2d0] sm:$0xff]
        %v1072 = vld [vmem:[%s940 + $0x2d8] sm:$0xff]
        %v1073 = vld [vmem:[%s940 + $0x2e0] sm:$0xff]
        %v1074 = vld [vmem:[%s940 + $0x2e8] sm:$0xff]
        %v1075 = vld [vmem:[%s940 + $0x2f0] sm:$0xff]
        %v1076 = vld [vmem:[%s940 + $0x2f8] sm:$0xff]
        %v1077 = vld [vmem:[%s940 + $0x300] sm:$0xff]
        %v1078 = vld [vmem:[%s940 + $0x308] sm:$0xff]
        %v1079 = vld [vmem:[%s940 + $0x310] sm:$0xff]
        %v1080 = vld [vmem:[%s940 + $0x318] sm:$0xff]
        %v1081 = vld [vmem:[%s940 + $0x320] sm:$0xff]
        %v1082 = vld [vmem:[%s940 + $0x328] sm:$0xff]
        %v1083 = vld [vmem:[%s940 + $0x330] sm:$0xff]
        %v1084 = vld [vmem:[%s940 + $0x338] sm:$0xff]
        %v1085 = vld [vmem:[%s940 + $0x340] sm:$0xff]
        %v1086 = vld [vmem:[%s940 + $0x348] sm:$0xff]
        %v1087 = vld [vmem:[%s940 + $0x350] sm:$0xff]
        %v1088 = vld [vmem:[%s940 + $0x358] sm:$0xff]
        %v1089 = vld [vmem:[%s940 + $0x360] sm:$0xff]
        %v1090 = vld [vmem:[%s940 + $0x368] sm:$0xff]
        %v1091 = vld [vmem:[%s940 + $0x370] sm:$0xff]
        %v1092 = vld [vmem:[%s940 + $0x378] sm:$0xff]
        %v1093 = vld [vmem:[%s940 + $0x380] sm:$0xff]
        %v1094 = vld [vmem:[%s940 + $0x388] sm:$0xff]
        %v1095 = vld [vmem:[%s940 + $0x390] sm:$0xff]
        %v1096 = vld [vmem:[%s940 + $0x398] sm:$0xff]
        %v1097 = vld [vmem:[%s940 + $0x3a0] sm:$0xff]
        %v1098 = vld [vmem:[%s940 + $0x3a8] sm:$0xff]
        %v1099 = vld [vmem:[%s940 + $0x3b0] sm:$0xff]
        %v1100 = vld [vmem:[%s940 + $0x3b8] sm:$0xff]
        %v1101 = vld [vmem:[%s940 + $0x3c0] sm:$0xff]
        %v1102 = vld [vmem:[%s940 + $0x3c8] sm:$0xff]
        %v1103 = vld [vmem:[%s940 + $0x3d0] sm:$0xff]
        %v1104 = vld [vmem:[%s940 + $0x3d8] sm:$0xff]
        %v1105 = vld [vmem:[%s940 + $0x3e0] sm:$0xff]
        %v1106 = vld [vmem:[%s940 + $0x3e8] sm:$0xff]
        %v1107 = vld [vmem:[%s940 + $0x3f0] sm:$0xff]
        %v1108 = vld [vmem:[%s940 + $0x3f8] sm:$0xff]
        %v1109 = vld [vmem:[%s1] sm:$0xff]
        %v1110 = vld [vmem:[%s1 + $0x8] sm:$0x1]
        %vm1111 = vcmask 72704
        %v1113 = vsel %vm1111, %v981, 0
        %v1116 = vsel %vm1111, %v982, 0
        %v1119 = vsel %vm1111, %v983, 0
        %v1122 = vsel %vm1111, %v984, 0
        %v1125 = vsel %vm1111, %v985, 0
        %v1128 = vsel %vm1111, %v986, 0
        %v1131 = vsel %vm1111, %v987, 0
        %v1134 = vsel %vm1111, %v988, 0
        %v1137 = vsel %vm1111, %v989, 0
        %v1140 = vsel %vm1111, %v990, 0
        %v1143 = vsel %vm1111, %v991, 0
        %v1146 = vsel %vm1111, %v992, 0
        %v1149 = vsel %vm1111, %v993, 0
        %v1152 = vsel %vm1111, %v994, 0
        %v1155 = vsel %vm1111, %v995, 0
        %v1158 = vsel %vm1111, %v996, 0
        %v1161 = vsel %vm1111, %v997, 0
        %v1164 = vsel %vm1111, %v998, 0
        %v1167 = vsel %vm1111, %v999, 0
        %v1170 = vsel %vm1111, %v1000, 0
        %v1173 = vsel %vm1111, %v1001, 0
        %v1176 = vsel %vm1111, %v1002, 0
        %v1179 = vsel %vm1111, %v1003, 0
        %v1182 = vsel %vm1111, %v1004, 0
        %v1185 = vsel %vm1111, %v1005, 0
        %v1188 = vsel %vm1111, %v1006, 0
        %v1191 = vsel %vm1111, %v1007, 0
        %v1194 = vsel %vm1111, %v1008, 0
        %v1197 = vsel %vm1111, %v1009, 0
        %v1200 = vsel %vm1111, %v1010, 0
        %v1203 = vsel %vm1111, %v1011, 0
        %v1206 = vsel %vm1111, %v1012, 0
        %v1209 = vsel %vm1111, %v1013, 0
        %v1212 = vsel %vm1111, %v1014, 0
        %v1215 = vsel %vm1111, %v1015, 0
        %v1218 = vsel %vm1111, %v1016, 0
        %v1221 = vsel %vm1111, %v1017, 0
        %v1224 = vsel %vm1111, %v1018, 0
        %v1227 = vsel %vm1111, %v1019, 0
        %v1230 = vsel %vm1111, %v1020, 0
        %v1233 = vsel %vm1111, %v1021, 0
        %v1236 = vsel %vm1111, %v1022, 0
        %v1239 = vsel %vm1111, %v1023, 0
        %v1242 = vsel %vm1111, %v1024, 0
        %v1245 = vsel %vm1111, %v1025, 0
        %v1248 = vsel %vm1111, %v1026, 0
        %v1251 = vsel %vm1111, %v1027, 0
        %v1254 = vsel %vm1111, %v1028, 0
        %v1257 = vsel %vm1111, %v1029, 0
        %v1260 = vsel %vm1111, %v1030, 0
        %v1263 = vsel %vm1111, %v1031, 0
        %v1266 = vsel %vm1111, %v1032, 0
        %v1269 = vsel %vm1111, %v1033, 0
        %v1272 = vsel %vm1111, %v1034, 0
        %v1275 = vsel %vm1111, %v1035, 0
        %v1278 = vsel %vm1111, %v1036, 0
        %v1281 = vsel %vm1111, %v1037, 0
        %v1284 = vsel %vm1111, %v1038, 0
        %v1287 = vsel %vm1111, %v1039, 0
        %v1290 = vsel %vm1111, %v1040, 0
        %v1293 = vsel %vm1111, %v1041, 0
        %v1296 = vsel %vm1111, %v1042, 0
        %v1299 = vsel %vm1111, %v1043, 0
        %v1302 = vsel %vm1111, %v1044, 0
        %v1305 = vsel %vm1111, %v1045, 0
        %v1308 = vsel %vm1111, %v1046, 0
        %v1311 = vsel %vm1111, %v1047, 0
        %v1314 = vsel %vm1111, %v1048, 0
        %v1317 = vsel %vm1111, %v1049, 0
        %v1320 = vsel %vm1111, %v1050, 0
        %v1323 = vsel %vm1111, %v1051, 0
        %v1326 = vsel %vm1111, %v1052, 0
        %v1329 = vsel %vm1111, %v1053, 0
        %v1332 = vsel %vm1111, %v1054, 0
        %v1335 = vsel %vm1111, %v1055, 0
        %v1338 = vsel %vm1111, %v1056, 0
        %v1341 = vsel %vm1111, %v1057, 0
        %v1344 = vsel %vm1111, %v1058, 0
        %v1347 = vsel %vm1111, %v1059, 0
        %v1350 = vsel %vm1111, %v1060, 0
        %v1353 = vsel %vm1111, %v1061, 0
        %v1356 = vsel %vm1111, %v1062, 0
        %v1359 = vsel %vm1111, %v1063, 0
        %v1362 = vsel %vm1111, %v1064, 0
        %v1365 = vsel %vm1111, %v1065, 0
        %v1368 = vsel %vm1111, %v1066, 0
        %v1371 = vsel %vm1111, %v1067, 0
        %v1374 = vsel %vm1111, %v1068, 0
        %v1377 = vsel %vm1111, %v1069, 0
        %v1380 = vsel %vm1111, %v1070, 0
        %v1383 = vsel %vm1111, %v1071, 0
        %v1386 = vsel %vm1111, %v1072, 0
        %v1389 = vsel %vm1111, %v1073, 0
        %v1392 = vsel %vm1111, %v1074, 0
        %v1395 = vsel %vm1111, %v1075, 0
        %v1398 = vsel %vm1111, %v1076, 0
        %v1401 = vsel %vm1111, %v1077, 0
        %v1404 = vsel %vm1111, %v1078, 0
        %v1407 = vsel %vm1111, %v1079, 0
        %v1410 = vsel %vm1111, %v1080, 0
        %v1413 = vsel %vm1111, %v1081, 0
        %v1416 = vsel %vm1111, %v1082, 0
        %v1419 = vsel %vm1111, %v1083, 0
        %v1422 = vsel %vm1111, %v1084, 0
        %v1425 = vsel %vm1111, %v1085, 0
        %v1428 = vsel %vm1111, %v1086, 0
        %v1431 = vsel %vm1111, %v1087, 0
        %v1434 = vsel %vm1111, %v1088, 0
        %v1437 = vsel %vm1111, %v1089, 0
        %v1440 = vsel %vm1111, %v1090, 0
        %v1443 = vsel %vm1111, %v1091, 0
        %v1446 = vsel %vm1111, %v1092, 0
        %v1449 = vsel %vm1111, %v1093, 0
        %v1452 = vsel %vm1111, %v1094, 0
        %v1455 = vsel %vm1111, %v1095, 0
        %v1458 = vsel %vm1111, %v1096, 0
        %v1461 = vsel %vm1111, %v1097, 0
        %v1464 = vsel %vm1111, %v1098, 0
        %v1467 = vsel %vm1111, %v1099, 0
        %v1470 = vsel %vm1111, %v1100, 0
        %v1473 = vsel %vm1111, %v1101, 0
        %v1476 = vsel %vm1111, %v1102, 0
        %v1479 = vsel %vm1111, %v1103, 0
        %v1482 = vsel %vm1111, %v1104, 0
        %v1485 = vsel %vm1111, %v1105, 0
        %v1488 = vsel %vm1111, %v1106, 0
        %v1491 = vsel %vm1111, %v1107, 0
        %v1494 = vsel %vm1111, %v1108, 0
        %vm1496 = vcmask 1040384
        %v1498 = vsel %vm1496, %v1110, 0
        %1500 = vmatprep.subr.mxu0 0.0
        %1501 = vmatpush1.msra.mxu0 %v1109
        %1502 = vmatprep.subr.mxu0 0.0
        %1503 = vmatpush1.msra.mxu0 %v1498
        %1504 = vmatprep.subr.mxu0 0.0
        %1505 = vmatpush1.msra.mxu0 0.0
        %1506 = vmatprep.subr.mxu0 0.0
        %1507 = vmatpush1.msra.mxu0 0.0
        %1508 = vmatprep.subr.mxu0 0.0
        %1509 = vmatpush1.msra.mxu0 0.0
        %1510 = vmatprep.subr.mxu0 0.0
        %1511 = vmatpush1.msra.mxu0 0.0
        %1512 = vmatprep.subr.mxu0 0.0
        %1513 = vmatpush1.msra.mxu0 0.0
        %1514 = vmatprep.subr.mxu0 0.0
        %1515 = vmatpush1.msra.mxu0 0.0
        %1516 = vmatprep.subr.mxu0 0.0
        %1517 = vmatpush1.msra.mxu0 0.0
        %1518 = vmatprep.subr.mxu0 0.0
        %1519 = vmatpush1.msra.mxu0 0.0
        %1520 = vmatprep.subr.mxu0 0.0
        %1521 = vmatpush1.msra.mxu0 0.0
        %1522 = vmatprep.subr.mxu0 0.0
        %1523 = vmatpush1.msra.mxu0 0.0
        %1524 = vmatprep.subr.mxu0 0.0
        %1525 = vmatpush1.msra.mxu0 0.0
        %1526 = vmatprep.subr.mxu0 0.0
        %1527 = vmatpush1.msra.mxu0 0.0
        %1528 = vmatprep.subr.mxu0 0.0
        %1529 = vmatpush1.msra.mxu0 0.0
        %1530 = vmatprep.subr.mxu0 0.0
        %1531 = vmatpush1.msra.mxu0 0.0
        %1532 = vmatprep.subr.mxu0 0.0
        %1533 = vmatpush1.msra.mxu0 0.0
        %1534 = vmatprep.subr.mxu0 0.0
        %1535 = vmatpush1.msra.mxu0 0.0
        %1536 = vmatprep.subr.mxu0 0.0
        %1537 = vmatpush1.msra.mxu0 0.0
        %1538 = vmatprep.subr.mxu0 0.0
        %1539 = vmatpush1.msra.mxu0 0.0
        %1540 = vmatprep.subr.mxu0 0.0
        %1541 = vmatpush1.msra.mxu0 0.0
        %1542 = vmatprep.subr.mxu0 0.0
        %1543 = vmatpush1.msra.mxu0 0.0
        %1544 = vmatprep.subr.mxu0 0.0
        %1545 = vmatpush1.msra.mxu0 0.0
        %1546 = vmatprep.subr.mxu0 0.0
        %1547 = vmatpush1.msra.mxu0 0.0
        %1548 = vmatprep.subr.mxu0 0.0
        %1549 = vmatpush1.msra.mxu0 0.0
        %1550 = vmatprep.subr.mxu0 0.0
        %1551 = vmatpush1.msra.mxu0 0.0
        %1552 = vmatprep.subr.mxu0 0.0
        %1553 = vmatpush1.msra.mxu0 0.0
        %1554 = vmatprep.subr.mxu0 0.0
        %1555 = vmatpush1.msra.mxu0 0.0
        %1556 = vmatprep.subr.mxu0 0.0
        %1557 = vmatpush1.msra.mxu0 0.0
        %1558 = vmatprep.subr.mxu0 0.0
        %1559 = vmatpush1.msra.mxu0 0.0
        %1560 = vmatprep.subr.mxu0 0.0
        %1561 = vmatpush1.msra.mxu0 0.0
        %1562 = vmatprep.subr.mxu0 0.0
        %1563 = vmatpush1.msra.mxu0 0.0
        %1564 = vmatprep.mubr.f32.mxu0 0.0
        %1565 = vmatmul.mubr.f32.gmra.mrb[0].mxu0 %v1113
        %v1566 = vpop.f32.mrb[0].mxu0
        %v1567 = vadd.f32 0.0, %v1566
        %v1568 = vpop.f32.mrb[0].mxu0
        %1569 = vmatprep.mubr.f32.mxu0 0.0
        %1570 = vmatmul.mubr.f32.gmra.mrb[0].mxu0 %v1116
        %v1571 = vpop.f32.mrb[0].mxu0
        %v1572 = vadd.f32 0.0, %v1571
        %v1573 = vpop.f32.mrb[0].mxu0
        %1574 = vmatprep.mubr.f32.mxu0 0.0
        %1575 = vmatmul.mubr.f32.gmra.mrb[0].mxu0 %v1119
        %v1576 = vpop.f32.mrb[0].mxu0
        %v1577 = vadd.f32 0.0, %v1576
        %v1578 = vpop.f32.mrb[0].mxu0
        %1579 = vmatprep.mubr.f32.mxu0 0.0
        %1580 = vmatmul.mubr.f32.gmra.mrb[0].mxu0 %v1122
        %v1581 = vpop.f32.mrb[0].mxu0
        %v1582 = vadd.f32 0.0, %v1581
        %v1583 = vpop.f32.mrb[0].mxu0
        %1584 = vmatprep.mubr.f32.mxu0 0.0
        %1585 = vmatmul.mubr.f32.gmra.mrb[0].mxu0 %v1125
        %v1586 = vpop.f32.mrb[0].mxu0
        %v1587 = vadd.f32 0.0, %v1586
        %v1588 = vpop.f32.mrb[0].mxu0
        %1589 = vmatprep.mubr.f32.mxu0 0.0
        %1590 = vmatmul.mubr.f32.gmra.mrb[0].mxu0 %v1128
        %v1591 = vpop.f32.mrb[0].mxu0
        %v1592 = vadd.f32 0.0, %v1591
        %v1593 = vpop.f32.mrb[0].mxu0
        %1594 = vmatprep.mubr.f32.mxu0 0.0
        %1595 = vmatmul.mubr.f32.gmra.mrb[0].mxu0 %v1131
        %v1596 = vpop.f32.mrb[0].mxu0
        %v1597 = vadd.f32 0.0, %v1596
        %v1598 = vpop.f32.mrb[0].mxu0
        %1599 = vmatprep.mubr.f32.mxu0 0.0
        %1600 = vmatmul.mubr.f32.gmra.mrb[0].mxu0 %v1134
        %v1601 = vpop.f32.mrb[0].mxu0
        %v1602 = vadd.f32 0.0, %v1601
        %v1603 = vpop.f32.mrb[0].mxu0
        %1604 = vmatprep.mubr.f32.mxu0 0.0
        %1605 = vmatmul.mubr.f32.gmra.mrb[0].mxu0 %v1137
        %v1606 = vpop.f32.mrb[0].mxu0
        %v1607 = vadd.f32 0.0, %v1606
        %v1608 = vpop.f32.mrb[0].mxu0
        %1609 = vmatprep.mubr.f32.mxu0 0.0
        %1610 = vmatmul.mubr.f32.gmra.mrb[0].mxu0 %v1140
        %v1611 = vpop.f32.mrb[0].mxu0
        %v1612 = vadd.f32 0.0, %v1611
        %v1613 = vpop.f32.mrb[0].mxu0
        %1614 = vmatprep.mubr.f32.mxu0 0.0
        %1615 = vmatmul.mubr.f32.gmra.mrb[0].mxu0 %v1143
        %v1616 = vpop.f32.mrb[0].mxu0
        %v1617 = vadd.f32 0.0, %v1616
        %v1618 = vpop.f32.mrb[0].mxu0
        %1619 = vmatprep.mubr.f32.mxu0 0.0
        %1620 = vmatmul.mubr.f32.gmra.mrb[0].mxu0 %v1146
        %v1621 = vpop.f32.mrb[0].mxu0
        %v1622 = vadd.f32 0.0, %v1621
        %v1623 = vpop.f32.mrb[0].mxu0
        %1624 = vmatprep.mubr.f32.mxu0 0.0
        %1625 = vmatmul.mubr.f32.gmra.mrb[0].mxu0 %v1149
        %v1626 = vpop.f32.mrb[0].mxu0
        %v1627 = vadd.f32 0.0, %v1626
        %v1628 = vpop.f32.mrb[0].mxu0
        %1629 = vmatprep.mubr.f32.mxu0 0.0
        %1630 = vmatmul.mubr.f32.gmra.mrb[0].mxu0 %v1152
        %v1631 = vpop.f32.mrb[0].mxu0
        %v1632 = vadd.f32 0.0, %v1631
        %v1633 = vpop.f32.mrb[0].mxu0
        %1634 = vmatprep.mubr.f32.mxu0 0.0
        %1635 = vmatmul.mubr.f32.gmra.mrb[0].mxu0 %v1155
        %v1636 = vpop.f32.mrb[0].mxu0
        %v1637 = vadd.f32 0.0, %v1636
        %v1638 = vpop.f32.mrb[0].mxu0
        %1639 = vmatprep.mubr.f32.mxu0 0.0
        %1640 = vmatmul.mubr.f32.gmra.mrb[0].mxu0 %v1158
        %v1641 = vpop.f32.mrb[0].mxu0
        %v1642 = vadd.f32 0.0, %v1641
        %v1643 = vpop.f32.mrb[0].mxu0
        %1644 = vmatprep.mubr.f32.mxu0 0.0
        %1645 = vmatmul.mubr.f32.gmra.mrb[0].mxu0 %v1161
        %v1646 = vpop.f32.mrb[0].mxu0
        %v1647 = vadd.f32 0.0, %v1646
        %v1648 = vpop.f32.mrb[0].mxu0
        %1649 = vmatprep.mubr.f32.mxu0 0.0
        %1650 = vmatmul.mubr.f32.gmra.mrb[0].mxu0 %v1164
        %v1651 = vpop.f32.mrb[0].mxu0
        %v1652 = vadd.f32 0.0, %v1651
        %v1653 = vpop.f32.mrb[0].mxu0
        %1654 = vmatprep.mubr.f32.mxu0 0.0
        %1655 = vmatmul.mubr.f32.gmra.mrb[0].mxu0 %v1167
        %v1656 = vpop.f32.mrb[0].mxu0
        %v1657 = vadd.f32 0.0, %v1656
        %v1658 = vpop.f32.mrb[0].mxu0
        %1659 = vmatprep.mubr.f32.mxu0 0.0
        %1660 = vmatmul.mubr.f32.gmra.mrb[0].mxu0 %v1170
        %v1661 = vpop.f32.mrb[0].mxu0
        %v1662 = vadd.f32 0.0, %v1661
        %v1663 = vpop.f32.mrb[0].mxu0
        %1664 = vmatprep.mubr.f32.mxu0 0.0
        %1665 = vmatmul.mubr.f32.gmra.mrb[0].mxu0 %v1173
        %v1666 = vpop.f32.mrb[0].mxu0
        %v1667 = vadd.f32 0.0, %v1666
        %v1668 = vpop.f32.mrb[0].mxu0
        %1669 = vmatprep.mubr.f32.mxu0 0.0
        %1670 = vmatmul.mubr.f32.gmra.mrb[0].mxu0 %v1176
        %v1671 = vpop.f32.mrb[0].mxu0
        %v1672 = vadd.f32 0.0, %v1671
        %v1673 = vpop.f32.mrb[0].mxu0
        %1674 = vmatprep.mubr.f32.mxu0 0.0
        %1675 = vmatmul.mubr.f32.gmra.mrb[0].mxu0 %v1179
        %v1676 = vpop.f32.mrb[0].mxu0
        %v1677 = vadd.f32 0.0, %v1676
        %v1678 = vpop.f32.mrb[0].mxu0
        %1679 = vmatprep.mubr.f32.mxu0 0.0
        %1680 = vmatmul.mubr.f32.gmra.mrb[0].mxu0 %v1182
        %v1681 = vpop.f32.mrb[0].mxu0
        %v1682 = vadd.f32 0.0, %v1681
        %v1683 = vpop.f32.mrb[0].mxu0
        %1684 = vmatprep.mubr.f32.mxu0 0.0
        %1685 = vmatmul.mubr.f32.gmra.mrb[0].mxu0 %v1185
        %v1686 = vpop.f32.mrb[0].mxu0
        %v1687 = vadd.f32 0.0, %v1686
        %v1688 = vpop.f32.mrb[0].mxu0
        %1689 = vmatprep.mubr.f32.mxu0 0.0
        %1690 = vmatmul.mubr.f32.gmra.mrb[0].mxu0 %v1188
        %v1691 = vpop.f32.mrb[0].mxu0
        %v1692 = vadd.f32 0.0, %v1691
        %v1693 = vpop.f32.mrb[0].mxu0
        %1694 = vmatprep.mubr.f32.mxu0 0.0
        %1695 = vmatmul.mubr.f32.gmra.mrb[0].mxu0 %v1191
        %v1696 = vpop.f32.mrb[0].mxu0
        %v1697 = vadd.f32 0.0, %v1696
        %v1698 = vpop.f32.mrb[0].mxu0
        %1699 = vmatprep.mubr.f32.mxu0 0.0
        %1700 = vmatmul.mubr.f32.gmra.mrb[0].mxu0 %v1194
        %v1701 = vpop.f32.mrb[0].mxu0
        %v1702 = vadd.f32 0.0, %v1701
        %v1703 = vpop.f32.mrb[0].mxu0
        %1704 = vmatprep.mubr.f32.mxu0 0.0
        %1705 = vmatmul.mubr.f32.gmra.mrb[0].mxu0 %v1197
        %v1706 = vpop.f32.mrb[0].mxu0
        %v1707 = vadd.f32 0.0, %v1706
        %v1708 = vpop.f32.mrb[0].mxu0
        %1709 = vmatprep.mubr.f32.mxu0 0.0
        %1710 = vmatmul.mubr.f32.gmra.mrb[0].mxu0 %v1200
        %v1711 = vpop.f32.mrb[0].mxu0
        %v1712 = vadd.f32 0.0, %v1711
        %v1713 = vpop.f32.mrb[0].mxu0
        %1714 = vmatprep.mubr.f32.mxu0 0.0
        %1715 = vmatmul.mubr.f32.gmra.mrb[0].mxu0 %v1203
        %v1716 = vpop.f32.mrb[0].mxu0
        %v1717 = vadd.f32 0.0, %v1716
        %v1718 = vpop.f32.mrb[0].mxu0
        %1719 = vmatprep.mubr.f32.mxu0 0.0
        %1720 = vmatmul.mubr.f32.gmra.mrb[0].mxu0 %v1206
        %v1721 = vpop.f32.mrb[0].mxu0
        %v1722 = vadd.f32 0.0, %v1721
        %v1723 = vpop.f32.mrb[0].mxu0
        %1724 = vmatprep.mubr.f32.mxu0 0.0
        %1725 = vmatmul.mubr.f32.gmra.mrb[0].mxu0 %v1209
        %v1726 = vpop.f32.mrb[0].mxu0
        %v1727 = vadd.f32 0.0, %v1726
        %v1728 = vpop.f32.mrb[0].mxu0
        %1729 = vmatprep.mubr.f32.mxu0 0.0
        %1730 = vmatmul.mubr.f32.gmra.mrb[0].mxu0 %v1212
        %v1731 = vpop.f32.mrb[0].mxu0
        %v1732 = vadd.f32 0.0, %v1731
        %v1733 = vpop.f32.mrb[0].mxu0
        %1734 = vmatprep.mubr.f32.mxu0 0.0
        %1735 = vmatmul.mubr.f32.gmra.mrb[0].mxu0 %v1215
        %v1736 = vpop.f32.mrb[0].mxu0
        %v1737 = vadd.f32 0.0, %v1736
        %v1738 = vpop.f32.mrb[0].mxu0
        %1739 = vmatprep.mubr.f32.mxu0 0.0
        %1740 = vmatmul.mubr.f32.gmra.mrb[0].mxu0 %v1218
        %v1741 = vpop.f32.mrb[0].mxu0
        %v1742 = vadd.f32 0.0, %v1741
        %v1743 = vpop.f32.mrb[0].mxu0
        %1744 = vmatprep.mubr.f32.mxu0 0.0
        %1745 = vmatmul.mubr.f32.gmra.mrb[0].mxu0 %v1221
        %v1746 = vpop.f32.mrb[0].mxu0
        %v1747 = vadd.f32 0.0, %v1746
        %v1748 = vpop.f32.mrb[0].mxu0
        %1749 = vmatprep.mubr.f32.mxu0 0.0
        %1750 = vmatmul.mubr.f32.gmra.mrb[0].mxu0 %v1224
        %v1751 = vpop.f32.mrb[0].mxu0
        %v1752 = vadd.f32 0.0, %v1751
        %v1753 = vpop.f32.mrb[0].mxu0
        %1754 = vmatprep.mubr.f32.mxu0 0.0
        %1755 = vmatmul.mubr.f32.gmra.mrb[0].mxu0 %v1227
        %v1756 = vpop.f32.mrb[0].mxu0
        %v1757 = vadd.f32 0.0, %v1756
        %v1758 = vpop.f32.mrb[0].mxu0
        %1759 = vmatprep.mubr.f32.mxu0 0.0
        %1760 = vmatmul.mubr.f32.gmra.mrb[0].mxu0 %v1230
        %v1761 = vpop.f32.mrb[0].mxu0
        %v1762 = vadd.f32 0.0, %v1761
        %v1763 = vpop.f32.mrb[0].mxu0
        %1764 = vmatprep.mubr.f32.mxu0 0.0
        %1765 = vmatmul.mubr.f32.gmra.mrb[0].mxu0 %v1233
        %v1766 = vpop.f32.mrb[0].mxu0
        %v1767 = vadd.f32 0.0, %v1766
        %v1768 = vpop.f32.mrb[0].mxu0
        %1769 = vmatprep.mubr.f32.mxu0 0.0
        %1770 = vmatmul.mubr.f32.gmra.mrb[0].mxu0 %v1236
        %v1771 = vpop.f32.mrb[0].mxu0
        %v1772 = vadd.f32 0.0, %v1771
        %v1773 = vpop.f32.mrb[0].mxu0
        %1774 = vmatprep.mubr.f32.mxu0 0.0
        %1775 = vmatmul.mubr.f32.gmra.mrb[0].mxu0 %v1239
        %v1776 = vpop.f32.mrb[0].mxu0
        %v1777 = vadd.f32 0.0, %v1776
        %v1778 = vpop.f32.mrb[0].mxu0
        %1779 = vmatprep.mubr.f32.mxu0 0.0
        %1780 = vmatmul.mubr.f32.gmra.mrb[0].mxu0 %v1242
        %v1781 = vpop.f32.mrb[0].mxu0
        %v1782 = vadd.f32 0.0, %v1781
        %v1783 = vpop.f32.mrb[0].mxu0
        %1784 = vmatprep.mubr.f32.mxu0 0.0
        %1785 = vmatmul.mubr.f32.gmra.mrb[0].mxu0 %v1245
        %v1786 = vpop.f32.mrb[0].mxu0
        %v1787 = vadd.f32 0.0, %v1786
        %v1788 = vpop.f32.mrb[0].mxu0
        %1789 = vmatprep.mubr.f32.mxu0 0.0
        %1790 = vmatmul.mubr.f32.gmra.mrb[0].mxu0 %v1248
        %v1791 = vpop.f32.mrb[0].mxu0
        %v1792 = vadd.f32 0.0, %v1791
        %v1793 = vpop.f32.mrb[0].mxu0
        %1794 = vmatprep.mubr.f32.mxu0 0.0
        %1795 = vmatmul.mubr.f32.gmra.mrb[0].mxu0 %v1251
        %v1796 = vpop.f32.mrb[0].mxu0
        %v1797 = vadd.f32 0.0, %v1796
        %v1798 = vpop.f32.mrb[0].mxu0
        %1799 = vmatprep.mubr.f32.mxu0 0.0
        %1800 = vmatmul.mubr.f32.gmra.mrb[0].mxu0 %v1254
        %v1801 = vpop.f32.mrb[0].mxu0
        %v1802 = vadd.f32 0.0, %v1801
        %v1803 = vpop.f32.mrb[0].mxu0
        %1804 = vmatprep.mubr.f32.mxu0 0.0
        %1805 = vmatmul.mubr.f32.gmra.mrb[0].mxu0 %v1257
        %v1806 = vpop.f32.mrb[0].mxu0
        %v1807 = vadd.f32 0.0, %v1806
        %v1808 = vpop.f32.mrb[0].mxu0
        %1809 = vmatprep.mubr.f32.mxu0 0.0
        %1810 = vmatmul.mubr.f32.gmra.mrb[0].mxu0 %v1260
        %v1811 = vpop.f32.mrb[0].mxu0
        %v1812 = vadd.f32 0.0, %v1811
        %v1813 = vpop.f32.mrb[0].mxu0
        %1814 = vmatprep.mubr.f32.mxu0 0.0
        %1815 = vmatmul.mubr.f32.gmra.mrb[0].mxu0 %v1263
        %v1816 = vpop.f32.mrb[0].mxu0
        %v1817 = vadd.f32 0.0, %v1816
        %v1818 = vpop.f32.mrb[0].mxu0
        %1819 = vmatprep.mubr.f32.mxu0 0.0
        %1820 = vmatmul.mubr.f32.gmra.mrb[0].mxu0 %v1266
        %v1821 = vpop.f32.mrb[0].mxu0
        %v1822 = vadd.f32 0.0, %v1821
        %v1823 = vpop.f32.mrb[0].mxu0
        %1824 = vmatprep.mubr.f32.mxu0 0.0
        %1825 = vmatmul.mubr.f32.gmra.mrb[0].mxu0 %v1269
        %v1826 = vpop.f32.mrb[0].mxu0
        %v1827 = vadd.f32 0.0, %v1826
        %v1828 = vpop.f32.mrb[0].mxu0
        %1829 = vmatprep.mubr.f32.mxu0 0.0
        %1830 = vmatmul.mubr.f32.gmra.mrb[0].mxu0 %v1272
        %v1831 = vpop.f32.mrb[0].mxu0
        %v1832 = vadd.f32 0.0, %v1831
        %v1833 = vpop.f32.mrb[0].mxu0
        %1834 = vmatprep.mubr.f32.mxu0 0.0
        %1835 = vmatmul.mubr.f32.gmra.mrb[0].mxu0 %v1275
        %v1836 = vpop.f32.mrb[0].mxu0
        %v1837 = vadd.f32 0.0, %v1836
        %v1838 = vpop.f32.mrb[0].mxu0
        %1839 = vmatprep.mubr.f32.mxu0 0.0
        %1840 = vmatmul.mubr.f32.gmra.mrb[0].mxu0 %v1278
        %v1841 = vpop.f32.mrb[0].mxu0
        %v1842 = vadd.f32 0.0, %v1841
        %v1843 = vpop.f32.mrb[0].mxu0
        %1844 = vmatprep.mubr.f32.mxu0 0.0
        %1845 = vmatmul.mubr.f32.gmra.mrb[0].mxu0 %v1281
        %v1846 = vpop.f32.mrb[0].mxu0
        %v1847 = vadd.f32 0.0, %v1846
        %v1848 = vpop.f32.mrb[0].mxu0
        %1849 = vmatprep.mubr.f32.mxu0 0.0
        %1850 = vmatmul.mubr.f32.gmra.mrb[0].mxu0 %v1284
        %v1851 = vpop.f32.mrb[0].mxu0
        %v1852 = vadd.f32 0.0, %v1851
        %v1853 = vpop.f32.mrb[0].mxu0
        %1854 = vmatprep.mubr.f32.mxu0 0.0
        %1855 = vmatmul.mubr.f32.gmra.mrb[0].mxu0 %v1287
        %v1856 = vpop.f32.mrb[0].mxu0
        %v1857 = vadd.f32 0.0, %v1856
        %v1858 = vpop.f32.mrb[0].mxu0
        %1859 = vmatprep.mubr.f32.mxu0 0.0
        %1860 = vmatmul.mubr.f32.gmra.mrb[0].mxu0 %v1290
        %v1861 = vpop.f32.mrb[0].mxu0
        %v1862 = vadd.f32 0.0, %v1861
        %v1863 = vpop.f32.mrb[0].mxu0
        %1864 = vmatprep.mubr.f32.mxu0 0.0
        %1865 = vmatmul.mubr.f32.gmra.mrb[0].mxu0 %v1293
        %v1866 = vpop.f32.mrb[0].mxu0
        %v1867 = vadd.f32 0.0, %v1866
        %v1868 = vpop.f32.mrb[0].mxu0
        %1869 = vmatprep.mubr.f32.mxu0 0.0
        %1870 = vmatmul.mubr.f32.gmra.mrb[0].mxu0 %v1296
        %v1871 = vpop.f32.mrb[0].mxu0
        %v1872 = vadd.f32 0.0, %v1871
        %v1873 = vpop.f32.mrb[0].mxu0
        %1874 = vmatprep.mubr.f32.mxu0 0.0
        %1875 = vmatmul.mubr.f32.gmra.mrb[0].mxu0 %v1299
        %v1876 = vpop.f32.mrb[0].mxu0
        %v1877 = vadd.f32 0.0, %v1876
        %v1878 = vpop.f32.mrb[0].mxu0
        %1879 = vmatprep.mubr.f32.mxu0 0.0
        %1880 = vmatmul.mubr.f32.gmra.mrb[0].mxu0 %v1302
        %v1881 = vpop.f32.mrb[0].mxu0
        %v1882 = vadd.f32 0.0, %v1881
        %v1883 = vpop.f32.mrb[0].mxu0
        %1884 = vmatprep.mubr.f32.mxu0 0.0
        %1885 = vmatmul.mubr.f32.gmra.mrb[0].mxu0 %v1305
        %v1886 = vpop.f32.mrb[0].mxu0
        %v1887 = vadd.f32 0.0, %v1886
        %v1888 = vpop.f32.mrb[0].mxu0
        %1889 = vmatprep.mubr.f32.mxu0 0.0
        %1890 = vmatmul.mubr.f32.gmra.mrb[0].mxu0 %v1308
        %v1891 = vpop.f32.mrb[0].mxu0
        %v1892 = vadd.f32 0.0, %v1891
        %v1893 = vpop.f32.mrb[0].mxu0
        %1894 = vmatprep.mubr.f32.mxu0 0.0
        %1895 = vmatmul.mubr.f32.gmra.mrb[0].mxu0 %v1311
        %v1896 = vpop.f32.mrb[0].mxu0
        %v1897 = vadd.f32 0.0, %v1896
        %v1898 = vpop.f32.mrb[0].mxu0
        %1899 = vmatprep.mubr.f32.mxu0 0.0
        %1900 = vmatmul.mubr.f32.gmra.mrb[0].mxu0 %v1314
        %v1901 = vpop.f32.mrb[0].mxu0
        %v1902 = vadd.f32 0.0, %v1901
        %v1903 = vpop.f32.mrb[0].mxu0
        %1904 = vmatprep.mubr.f32.mxu0 0.0
        %1905 = vmatmul.mubr.f32.gmra.mrb[0].mxu0 %v1317
        %v1906 = vpop.f32.mrb[0].mxu0
        %v1907 = vadd.f32 0.0, %v1906
        %v1908 = vpop.f32.mrb[0].mxu0
        %1909 = vmatprep.mubr.f32.mxu0 0.0
        %1910 = vmatmul.mubr.f32.gmra.mrb[0].mxu0 %v1320
        %v1911 = vpop.f32.mrb[0].mxu0
        %v1912 = vadd.f32 0.0, %v1911
        %v1913 = vpop.f32.mrb[0].mxu0
        %1914 = vmatprep.mubr.f32.mxu0 0.0
        %1915 = vmatmul.mubr.f32.gmra.mrb[0].mxu0 %v1323
        %v1916 = vpop.f32.mrb[0].mxu0
        %v1917 = vadd.f32 0.0, %v1916
        %v1918 = vpop.f32.mrb[0].mxu0
        %1919 = vmatprep.mubr.f32.mxu0 0.0
        %1920 = vmatmul.mubr.f32.gmra.mrb[0].mxu0 %v1326
        %v1921 = vpop.f32.mrb[0].mxu0
        %v1922 = vadd.f32 0.0, %v1921
        %v1923 = vpop.f32.mrb[0].mxu0
        %1924 = vmatprep.mubr.f32.mxu0 0.0
        %1925 = vmatmul.mubr.f32.gmra.mrb[0].mxu0 %v1329
        %v1926 = vpop.f32.mrb[0].mxu0
        %v1927 = vadd.f32 0.0, %v1926
        %v1928 = vpop.f32.mrb[0].mxu0
        %1929 = vmatprep.mubr.f32.mxu0 0.0
        %1930 = vmatmul.mubr.f32.gmra.mrb[0].mxu0 %v1332
        %v1931 = vpop.f32.mrb[0].mxu0
        %v1932 = vadd.f32 0.0, %v1931
        %v1933 = vpop.f32.mrb[0].mxu0
        %1934 = vmatprep.mubr.f32.mxu0 0.0
        %1935 = vmatmul.mubr.f32.gmra.mrb[0].mxu0 %v1335
        %v1936 = vpop.f32.mrb[0].mxu0
        %v1937 = vadd.f32 0.0, %v1936
        %v1938 = vpop.f32.mrb[0].mxu0
        %1939 = vmatprep.mubr.f32.mxu0 0.0
        %1940 = vmatmul.mubr.f32.gmra.mrb[0].mxu0 %v1338
        %v1941 = vpop.f32.mrb[0].mxu0
        %v1942 = vadd.f32 0.0, %v1941
        %v1943 = vpop.f32.mrb[0].mxu0
        %1944 = vmatprep.mubr.f32.mxu0 0.0
        %1945 = vmatmul.mubr.f32.gmra.mrb[0].mxu0 %v1341
        %v1946 = vpop.f32.mrb[0].mxu0
        %v1947 = vadd.f32 0.0, %v1946
        %v1948 = vpop.f32.mrb[0].mxu0
        %1949 = vmatprep.mubr.f32.mxu0 0.0
        %1950 = vmatmul.mubr.f32.gmra.mrb[0].mxu0 %v1344
        %v1951 = vpop.f32.mrb[0].mxu0
        %v1952 = vadd.f32 0.0, %v1951
        %v1953 = vpop.f32.mrb[0].mxu0
        %1954 = vmatprep.mubr.f32.mxu0 0.0
        %1955 = vmatmul.mubr.f32.gmra.mrb[0].mxu0 %v1347
        %v1956 = vpop.f32.mrb[0].mxu0
        %v1957 = vadd.f32 0.0, %v1956
        %v1958 = vpop.f32.mrb[0].mxu0
        %1959 = vmatprep.mubr.f32.mxu0 0.0
        %1960 = vmatmul.mubr.f32.gmra.mrb[0].mxu0 %v1350
        %v1961 = vpop.f32.mrb[0].mxu0
        %v1962 = vadd.f32 0.0, %v1961
        %v1963 = vpop.f32.mrb[0].mxu0
        %1964 = vmatprep.mubr.f32.mxu0 0.0
        %1965 = vmatmul.mubr.f32.gmra.mrb[0].mxu0 %v1353
        %v1966 = vpop.f32.mrb[0].mxu0
        %v1967 = vadd.f32 0.0, %v1966
        %v1968 = vpop.f32.mrb[0].mxu0
        %1969 = vmatprep.mubr.f32.mxu0 0.0
        %1970 = vmatmul.mubr.f32.gmra.mrb[0].mxu0 %v1356
        %v1971 = vpop.f32.mrb[0].mxu0
        %v1972 = vadd.f32 0.0, %v1971
        %v1973 = vpop.f32.mrb[0].mxu0
        %1974 = vmatprep.mubr.f32.mxu0 0.0
        %1975 = vmatmul.mubr.f32.gmra.mrb[0].mxu0 %v1359
        %v1976 = vpop.f32.mrb[0].mxu0
        %v1977 = vadd.f32 0.0, %v1976
        %v1978 = vpop.f32.mrb[0].mxu0
        %1979 = vmatprep.mubr.f32.mxu0 0.0
        %1980 = vmatmul.mubr.f32.gmra.mrb[0].mxu0 %v1362
        %v1981 = vpop.f32.mrb[0].mxu0
        %v1982 = vadd.f32 0.0, %v1981
        %v1983 = vpop.f32.mrb[0].mxu0
        %1984 = vmatprep.mubr.f32.mxu0 0.0
        %1985 = vmatmul.mubr.f32.gmra.mrb[0].mxu0 %v1365
        %v1986 = vpop.f32.mrb[0].mxu0
        %v1987 = vadd.f32 0.0, %v1986
        %v1988 = vpop.f32.mrb[0].mxu0
        %1989 = vmatprep.mubr.f32.mxu0 0.0
        %1990 = vmatmul.mubr.f32.gmra.mrb[0].mxu0 %v1368
        %v1991 = vpop.f32.mrb[0].mxu0
        %v1992 = vadd.f32 0.0, %v1991
        %v1993 = vpop.f32.mrb[0].mxu0
        %1994 = vmatprep.mubr.f32.mxu0 0.0
        %1995 = vmatmul.mubr.f32.gmra.mrb[0].mxu0 %v1371
        %v1996 = vpop.f32.mrb[0].mxu0
        %v1997 = vadd.f32 0.0, %v1996
        %v1998 = vpop.f32.mrb[0].mxu0
        %1999 = vmatprep.mubr.f32.mxu0 0.0
        %2000 = vmatmul.mubr.f32.gmra.mrb[0].mxu0 %v1374
        %v2001 = vpop.f32.mrb[0].mxu0
        %v2002 = vadd.f32 0.0, %v2001
        %v2003 = vpop.f32.mrb[0].mxu0
        %2004 = vmatprep.mubr.f32.mxu0 0.0
        %2005 = vmatmul.mubr.f32.gmra.mrb[0].mxu0 %v1377
        %v2006 = vpop.f32.mrb[0].mxu0
        %v2007 = vadd.f32 0.0, %v2006
        %v2008 = vpop.f32.mrb[0].mxu0
        %2009 = vmatprep.mubr.f32.mxu0 0.0
        %2010 = vmatmul.mubr.f32.gmra.mrb[0].mxu0 %v1380
        %v2011 = vpop.f32.mrb[0].mxu0
        %v2012 = vadd.f32 0.0, %v2011
        %v2013 = vpop.f32.mrb[0].mxu0
        %2014 = vmatprep.mubr.f32.mxu0 0.0
        %2015 = vmatmul.mubr.f32.gmra.mrb[0].mxu0 %v1383
        %v2016 = vpop.f32.mrb[0].mxu0
        %v2017 = vadd.f32 0.0, %v2016
        %v2018 = vpop.f32.mrb[0].mxu0
        %2019 = vmatprep.mubr.f32.mxu0 0.0
        %2020 = vmatmul.mubr.f32.gmra.mrb[0].mxu0 %v1386
        %v2021 = vpop.f32.mrb[0].mxu0
        %v2022 = vadd.f32 0.0, %v2021
        %v2023 = vpop.f32.mrb[0].mxu0
        %2024 = vmatprep.mubr.f32.mxu0 0.0
        %2025 = vmatmul.mubr.f32.gmra.mrb[0].mxu0 %v1389
        %v2026 = vpop.f32.mrb[0].mxu0
        %v2027 = vadd.f32 0.0, %v2026
        %v2028 = vpop.f32.mrb[0].mxu0
        %2029 = vmatprep.mubr.f32.mxu0 0.0
        %2030 = vmatmul.mubr.f32.gmra.mrb[0].mxu0 %v1392
        %v2031 = vpop.f32.mrb[0].mxu0
        %v2032 = vadd.f32 0.0, %v2031
        %v2033 = vpop.f32.mrb[0].mxu0
        %2034 = vmatprep.mubr.f32.mxu0 0.0
        %2035 = vmatmul.mubr.f32.gmra.mrb[0].mxu0 %v1395
        %v2036 = vpop.f32.mrb[0].mxu0
        %v2037 = vadd.f32 0.0, %v2036
        %v2038 = vpop.f32.mrb[0].mxu0
        %2039 = vmatprep.mubr.f32.mxu0 0.0
        %2040 = vmatmul.mubr.f32.gmra.mrb[0].mxu0 %v1398
        %v2041 = vpop.f32.mrb[0].mxu0
        %v2042 = vadd.f32 0.0, %v2041
        %v2043 = vpop.f32.mrb[0].mxu0
        %2044 = vmatprep.mubr.f32.mxu0 0.0
        %2045 = vmatmul.mubr.f32.gmra.mrb[0].mxu0 %v1401
        %v2046 = vpop.f32.mrb[0].mxu0
        %v2047 = vadd.f32 0.0, %v2046
        %v2048 = vpop.f32.mrb[0].mxu0
        %2049 = vmatprep.mubr.f32.mxu0 0.0
        %2050 = vmatmul.mubr.f32.gmra.mrb[0].mxu0 %v1404
        %v2051 = vpop.f32.mrb[0].mxu0
        %v2052 = vadd.f32 0.0, %v2051
        %v2053 = vpop.f32.mrb[0].mxu0
        %2054 = vmatprep.mubr.f32.mxu0 0.0
        %2055 = vmatmul.mubr.f32.gmra.mrb[0].mxu0 %v1407
        %v2056 = vpop.f32.mrb[0].mxu0
        %v2057 = vadd.f32 0.0, %v2056
        %v2058 = vpop.f32.mrb[0].mxu0
        %2059 = vmatprep.mubr.f32.mxu0 0.0
        %2060 = vmatmul.mubr.f32.gmra.mrb[0].mxu0 %v1410
        %v2061 = vpop.f32.mrb[0].mxu0
        %v2062 = vadd.f32 0.0, %v2061
        %v2063 = vpop.f32.mrb[0].mxu0
        %2064 = vmatprep.mubr.f32.mxu0 0.0
        %2065 = vmatmul.mubr.f32.gmra.mrb[0].mxu0 %v1413
        %v2066 = vpop.f32.mrb[0].mxu0
        %v2067 = vadd.f32 0.0, %v2066
        %v2068 = vpop.f32.mrb[0].mxu0
        %2069 = vmatprep.mubr.f32.mxu0 0.0
        %2070 = vmatmul.mubr.f32.gmra.mrb[0].mxu0 %v1416
        %v2071 = vpop.f32.mrb[0].mxu0
        %v2072 = vadd.f32 0.0, %v2071
        %v2073 = vpop.f32.mrb[0].mxu0
        %2074 = vmatprep.mubr.f32.mxu0 0.0
        %2075 = vmatmul.mubr.f32.gmra.mrb[0].mxu0 %v1419
        %v2076 = vpop.f32.mrb[0].mxu0
        %v2077 = vadd.f32 0.0, %v2076
        %v2078 = vpop.f32.mrb[0].mxu0
        %2079 = vmatprep.mubr.f32.mxu0 0.0
        %2080 = vmatmul.mubr.f32.gmra.mrb[0].mxu0 %v1422
        %v2081 = vpop.f32.mrb[0].mxu0
        %v2082 = vadd.f32 0.0, %v2081
        %v2083 = vpop.f32.mrb[0].mxu0
        %2084 = vmatprep.mubr.f32.mxu0 0.0
        %2085 = vmatmul.mubr.f32.gmra.mrb[0].mxu0 %v1425
        %v2086 = vpop.f32.mrb[0].mxu0
        %v2087 = vadd.f32 0.0, %v2086
        %v2088 = vpop.f32.mrb[0].mxu0
        %2089 = vmatprep.mubr.f32.mxu0 0.0
        %2090 = vmatmul.mubr.f32.gmra.mrb[0].mxu0 %v1428
        %v2091 = vpop.f32.mrb[0].mxu0
        %v2092 = vadd.f32 0.0, %v2091
        %v2093 = vpop.f32.mrb[0].mxu0
        %2094 = vmatprep.mubr.f32.mxu0 0.0
        %2095 = vmatmul.mubr.f32.gmra.mrb[0].mxu0 %v1431
        %v2096 = vpop.f32.mrb[0].mxu0
        %v2097 = vadd.f32 0.0, %v2096
        %v2098 = vpop.f32.mrb[0].mxu0
        %2099 = vmatprep.mubr.f32.mxu0 0.0
        %2100 = vmatmul.mubr.f32.gmra.mrb[0].mxu0 %v1434
        %v2101 = vpop.f32.mrb[0].mxu0
        %v2102 = vadd.f32 0.0, %v2101
        %v2103 = vpop.f32.mrb[0].mxu0
        %2104 = vmatprep.mubr.f32.mxu0 0.0
        %2105 = vmatmul.mubr.f32.gmra.mrb[0].mxu0 %v1437
        %v2106 = vpop.f32.mrb[0].mxu0
        %v2107 = vadd.f32 0.0, %v2106
        %v2108 = vpop.f32.mrb[0].mxu0
        %2109 = vmatprep.mubr.f32.mxu0 0.0
        %2110 = vmatmul.mubr.f32.gmra.mrb[0].mxu0 %v1440
        %v2111 = vpop.f32.mrb[0].mxu0
        %v2112 = vadd.f32 0.0, %v2111
        %v2113 = vpop.f32.mrb[0].mxu0
        %2114 = vmatprep.mubr.f32.mxu0 0.0
        %2115 = vmatmul.mubr.f32.gmra.mrb[0].mxu0 %v1443
        %v2116 = vpop.f32.mrb[0].mxu0
        %v2117 = vadd.f32 0.0, %v2116
        %v2118 = vpop.f32.mrb[0].mxu0
        %2119 = vmatprep.mubr.f32.mxu0 0.0
        %2120 = vmatmul.mubr.f32.gmra.mrb[0].mxu0 %v1446
        %v2121 = vpop.f32.mrb[0].mxu0
        %v2122 = vadd.f32 0.0, %v2121
        %v2123 = vpop.f32.mrb[0].mxu0
        %2124 = vmatprep.mubr.f32.mxu0 0.0
        %2125 = vmatmul.mubr.f32.gmra.mrb[0].mxu0 %v1449
        %v2126 = vpop.f32.mrb[0].mxu0
        %v2127 = vadd.f32 0.0, %v2126
        %v2128 = vpop.f32.mrb[0].mxu0
        %2129 = vmatprep.mubr.f32.mxu0 0.0
        %2130 = vmatmul.mubr.f32.gmra.mrb[0].mxu0 %v1452
        %v2131 = vpop.f32.mrb[0].mxu0
        %v2132 = vadd.f32 0.0, %v2131
        %v2133 = vpop.f32.mrb[0].mxu0
        %2134 = vmatprep.mubr.f32.mxu0 0.0
        %2135 = vmatmul.mubr.f32.gmra.mrb[0].mxu0 %v1455
        %v2136 = vpop.f32.mrb[0].mxu0
        %v2137 = vadd.f32 0.0, %v2136
        %v2138 = vpop.f32.mrb[0].mxu0
        %2139 = vmatprep.mubr.f32.mxu0 0.0
        %2140 = vmatmul.mubr.f32.gmra.mrb[0].mxu0 %v1458
        %v2141 = vpop.f32.mrb[0].mxu0
        %v2142 = vadd.f32 0.0, %v2141
        %v2143 = vpop.f32.mrb[0].mxu0
        %2144 = vmatprep.mubr.f32.mxu0 0.0
        %2145 = vmatmul.mubr.f32.gmra.mrb[0].mxu0 %v1461
        %v2146 = vpop.f32.mrb[0].mxu0
        %v2147 = vadd.f32 0.0, %v2146
        %v2148 = vpop.f32.mrb[0].mxu0
        %2149 = vmatprep.mubr.f32.mxu0 0.0
        %2150 = vmatmul.mubr.f32.gmra.mrb[0].mxu0 %v1464
        %v2151 = vpop.f32.mrb[0].mxu0
        %v2152 = vadd.f32 0.0, %v2151
        %v2153 = vpop.f32.mrb[0].mxu0
        %2154 = vmatprep.mubr.f32.mxu0 0.0
        %2155 = vmatmul.mubr.f32.gmra.mrb[0].mxu0 %v1467
        %v2156 = vpop.f32.mrb[0].mxu0
        %v2157 = vadd.f32 0.0, %v2156
        %v2158 = vpop.f32.mrb[0].mxu0
        %2159 = vmatprep.mubr.f32.mxu0 0.0
        %2160 = vmatmul.mubr.f32.gmra.mrb[0].mxu0 %v1470
        %v2161 = vpop.f32.mrb[0].mxu0
        %v2162 = vadd.f32 0.0, %v2161
        %v2163 = vpop.f32.mrb[0].mxu0
        %2164 = vmatprep.mubr.f32.mxu0 0.0
        %2165 = vmatmul.mubr.f32.gmra.mrb[0].mxu0 %v1473
        %v2166 = vpop.f32.mrb[0].mxu0
        %v2167 = vadd.f32 0.0, %v2166
        %v2168 = vpop.f32.mrb[0].mxu0
        %2169 = vmatprep.mubr.f32.mxu0 0.0
        %2170 = vmatmul.mubr.f32.gmra.mrb[0].mxu0 %v1476
        %v2171 = vpop.f32.mrb[0].mxu0
        %v2172 = vadd.f32 0.0, %v2171
        %v2173 = vpop.f32.mrb[0].mxu0
        %2174 = vmatprep.mubr.f32.mxu0 0.0
        %2175 = vmatmul.mubr.f32.gmra.mrb[0].mxu0 %v1479
        %v2176 = vpop.f32.mrb[0].mxu0
        %v2177 = vadd.f32 0.0, %v2176
        %v2178 = vpop.f32.mrb[0].mxu0
        %2179 = vmatprep.mubr.f32.mxu0 0.0
        %2180 = vmatmul.mubr.f32.gmra.mrb[0].mxu0 %v1482
        %v2181 = vpop.f32.mrb[0].mxu0
        %v2182 = vadd.f32 0.0, %v2181
        %v2183 = vpop.f32.mrb[0].mxu0
        %2184 = vmatprep.mubr.f32.mxu0 0.0
        %2185 = vmatmul.mubr.f32.gmra.mrb[0].mxu0 %v1485
        %v2186 = vpop.f32.mrb[0].mxu0
        %v2187 = vadd.f32 0.0, %v2186
        %v2188 = vpop.f32.mrb[0].mxu0
        %2189 = vmatprep.mubr.f32.mxu0 0.0
        %2190 = vmatmul.mubr.f32.gmra.mrb[0].mxu0 %v1488
        %v2191 = vpop.f32.mrb[0].mxu0
        %v2192 = vadd.f32 0.0, %v2191
        %v2193 = vpop.f32.mrb[0].mxu0
        %2194 = vmatprep.mubr.f32.mxu0 0.0
        %2195 = vmatmul.mubr.f32.gmra.mrb[0].mxu0 %v1491
        %v2196 = vpop.f32.mrb[0].mxu0
        %v2197 = vadd.f32 0.0, %v2196
        %v2198 = vpop.f32.mrb[0].mxu0
        %2199 = vmatprep.mubr.f32.mxu0 0.0
        %2200 = vmatmul.mubr.f32.gmra.mrb[0].mxu0 %v1494
        %v2201 = vpop.f32.mrb[0].mxu0
        %v2202 = vadd.f32 0.0, %v2201
        %v2203 = vpop.f32.mrb[0].mxu0
        %2204 = vdwg.mxu0
        %s2205 = scalar_lea.vmem %s1, 16
        %v2206 = vld [vmem:[%s2205] sm:$0xff]
        %v2207 = vld [vmem:[%s2205 + $0x8] sm:$0x1]
        %s2208 = scalar_lea.vmem %s1, 32
        %v2209 = vld [vmem:[%s2208] sm:$0xff]
        %v2210 = vld [vmem:[%s2208 + $0x8] sm:$0x1]
        %v2212 = vsel %vm1496, %v2210, 0
        %2214 = vmatprep.subr.mxu0 0.0
        %2215 = vmatpush1.msra.mxu0 %v2209
        %2216 = vmatprep.subr.mxu0 0.0
        %2217 = vmatpush1.msra.mxu0 %v2212
        %2218 = vmatprep.subr.mxu0 0.0
        %2219 = vmatpush1.msra.mxu0 0.0
        %2220 = vmatprep.subr.mxu0 0.0
        %2221 = vmatpush1.msra.mxu0 0.0
        %2222 = vmatprep.subr.mxu0 0.0
        %2223 = vmatpush1.msra.mxu0 0.0
        %2224 = vmatprep.subr.mxu0 0.0
        %2225 = vmatpush1.msra.mxu0 0.0
        %2226 = vmatprep.subr.mxu0 0.0
        %2227 = vmatpush1.msra.mxu0 0.0
        %2228 = vmatprep.subr.mxu0 0.0
        %2229 = vmatpush1.msra.mxu0 0.0
        %2230 = vmatprep.subr.mxu0 0.0
        %2231 = vmatpush1.msra.mxu0 0.0
        %2232 = vmatprep.subr.mxu0 0.0
        %2233 = vmatpush1.msra.mxu0 0.0
        %2234 = vmatprep.subr.mxu0 0.0
        %2235 = vmatpush1.msra.mxu0 0.0
        %2236 = vmatprep.subr.mxu0 0.0
        %2237 = vmatpush1.msra.mxu0 0.0
        %2238 = vmatprep.subr.mxu0 0.0
        %2239 = vmatpush1.msra.mxu0 0.0
        %2240 = vmatprep.subr.mxu0 0.0
        %2241 = vmatpush1.msra.mxu0 0.0
        %2242 = vmatprep.subr.mxu0 0.0
        %2243 = vmatpush1.msra.mxu0 0.0
        %2244 = vmatprep.subr.mxu0 0.0
        %2245 = vmatpush1.msra.mxu0 0.0
        %2246 = vmatprep.subr.mxu0 0.0
        %2247 = vmatpush1.msra.mxu0 0.0
        %2248 = vmatprep.subr.mxu0 0.0
        %2249 = vmatpush1.msra.mxu0 0.0
        %2250 = vmatprep.subr.mxu0 0.0
        %2251 = vmatpush1.msra.mxu0 0.0
        %2252 = vmatprep.subr.mxu0 0.0
        %2253 = vmatpush1.msra.mxu0 0.0
        %2254 = vmatprep.subr.mxu0 0.0
        %2255 = vmatpush1.msra.mxu0 0.0
        %2256 = vmatprep.subr.mxu0 0.0
        %2257 = vmatpush1.msra.mxu0 0.0
        %2258 = vmatprep.subr.mxu0 0.0
        %2259 = vmatpush1.msra.mxu0 0.0
        %2260 = vmatprep.subr.mxu0 0.0
        %2261 = vmatpush1.msra.mxu0 0.0
        %2262 = vmatprep.subr.mxu0 0.0
        %2263 = vmatpush1.msra.mxu0 0.0
        %2264 = vmatprep.subr.mxu0 0.0
        %2265 = vmatpush1.msra.mxu0 0.0
        %2266 = vmatprep.subr.mxu0 0.0
        %2267 = vmatpush1.msra.mxu0 0.0
        %2268 = vmatprep.subr.mxu0 0.0
        %2269 = vmatpush1.msra.mxu0 0.0
        %2270 = vmatprep.subr.mxu0 0.0
        %2271 = vmatpush1.msra.mxu0 0.0
        %2272 = vmatprep.subr.mxu0 0.0
        %2273 = vmatpush1.msra.mxu0 0.0
        %2274 = vmatprep.subr.mxu0 0.0
        %2275 = vmatpush1.msra.mxu0 0.0
        %2276 = vmatprep.subr.mxu0 0.0
        %2277 = vmatpush1.msra.mxu0 0.0
        %2278 = vmatprep.mubr.f32.mxu0 0.0
        %2279 = vmatmul.mubr.f32.gmra.mrb[0].mxu0 %v1113
        %v2280 = vpop.f32.mrb[0].mxu0
        %v2281 = vadd.f32 0.0, %v2280
        %v2282 = vpop.f32.mrb[0].mxu0
        %2283 = vmatprep.mubr.f32.mxu0 0.0
        %2284 = vmatmul.mubr.f32.gmra.mrb[0].mxu0 %v1116
        %v2285 = vpop.f32.mrb[0].mxu0
        %v2286 = vadd.f32 0.0, %v2285
        %v2287 = vpop.f32.mrb[0].mxu0
        %2288 = vmatprep.mubr.f32.mxu0 0.0
        %2289 = vmatmul.mubr.f32.gmra.mrb[0].mxu0 %v1119
        %v2290 = vpop.f32.mrb[0].mxu0
        %v2291 = vadd.f32 0.0, %v2290
        %v2292 = vpop.f32.mrb[0].mxu0
        %2293 = vmatprep.mubr.f32.mxu0 0.0
        %2294 = vmatmul.mubr.f32.gmra.mrb[0].mxu0 %v1122
        %v2295 = vpop.f32.mrb[0].mxu0
        %v2296 = vadd.f32 0.0, %v2295
        %v2297 = vpop.f32.mrb[0].mxu0
        %2298 = vmatprep.mubr.f32.mxu0 0.0
        %2299 = vmatmul.mubr.f32.gmra.mrb[0].mxu0 %v1125
        %v2300 = vpop.f32.mrb[0].mxu0
        %v2301 = vadd.f32 0.0, %v2300
        %v2302 = vpop.f32.mrb[0].mxu0
        %2303 = vmatprep.mubr.f32.mxu0 0.0
        %2304 = vmatmul.mubr.f32.gmra.mrb[0].mxu0 %v1128
        %v2305 = vpop.f32.mrb[0].mxu0
        %v2306 = vadd.f32 0.0, %v2305
        %v2307 = vpop.f32.mrb[0].mxu0
        %2308 = vmatprep.mubr.f32.mxu0 0.0
        %2309 = vmatmul.mubr.f32.gmra.mrb[0].mxu0 %v1131
        %v2310 = vpop.f32.mrb[0].mxu0
        %v2311 = vadd.f32 0.0, %v2310
        %v2312 = vpop.f32.mrb[0].mxu0
        %2313 = vmatprep.mubr.f32.mxu0 0.0
        %2314 = vmatmul.mubr.f32.gmra.mrb[0].mxu0 %v1134
        %v2315 = vpop.f32.mrb[0].mxu0
        %v2316 = vadd.f32 0.0, %v2315
        %v2317 = vpop.f32.mrb[0].mxu0
        %2318 = vmatprep.mubr.f32.mxu0 0.0
        %2319 = vmatmul.mubr.f32.gmra.mrb[0].mxu0 %v1137
        %v2320 = vpop.f32.mrb[0].mxu0
        %v2321 = vadd.f32 0.0, %v2320
        %v2322 = vpop.f32.mrb[0].mxu0
        %2323 = vmatprep.mubr.f32.mxu0 0.0
        %2324 = vmatmul.mubr.f32.gmra.mrb[0].mxu0 %v1140
        %v2325 = vpop.f32.mrb[0].mxu0
        %v2326 = vadd.f32 0.0, %v2325
        %v2327 = vpop.f32.mrb[0].mxu0
        %2328 = vmatprep.mubr.f32.mxu0 0.0
        %2329 = vmatmul.mubr.f32.gmra.mrb[0].mxu0 %v1143
        %v2330 = vpop.f32.mrb[0].mxu0
        %v2331 = vadd.f32 0.0, %v2330
        %v2332 = vpop.f32.mrb[0].mxu0
        %2333 = vmatprep.mubr.f32.mxu0 0.0
        %2334 = vmatmul.mubr.f32.gmra.mrb[0].mxu0 %v1146
        %v2335 = vpop.f32.mrb[0].mxu0
        %v2336 = vadd.f32 0.0, %v2335
        %v2337 = vpop.f32.mrb[0].mxu0
        %2338 = vmatprep.mubr.f32.mxu0 0.0
        %2339 = vmatmul.mubr.f32.gmra.mrb[0].mxu0 %v1149
        %v2340 = vpop.f32.mrb[0].mxu0
        %v2341 = vadd.f32 0.0, %v2340
        %v2342 = vpop.f32.mrb[0].mxu0
        %2343 = vmatprep.mubr.f32.mxu0 0.0
        %2344 = vmatmul.mubr.f32.gmra.mrb[0].mxu0 %v1152
        %v2345 = vpop.f32.mrb[0].mxu0
        %v2346 = vadd.f32 0.0, %v2345
        %v2347 = vpop.f32.mrb[0].mxu0
        %2348 = vmatprep.mubr.f32.mxu0 0.0
        %2349 = vmatmul.mubr.f32.gmra.mrb[0].mxu0 %v1155
        %v2350 = vpop.f32.mrb[0].mxu0
        %v2351 = vadd.f32 0.0, %v2350
        %v2352 = vpop.f32.mrb[0].mxu0
        %2353 = vmatprep.mubr.f32.mxu0 0.0
        %2354 = vmatmul.mubr.f32.gmra.mrb[0].mxu0 %v1158
        %v2355 = vpop.f32.mrb[0].mxu0
        %v2356 = vadd.f32 0.0, %v2355
        %v2357 = vpop.f32.mrb[0].mxu0
        %2358 = vmatprep.mubr.f32.mxu0 0.0
        %2359 = vmatmul.mubr.f32.gmra.mrb[0].mxu0 %v1161
        %v2360 = vpop.f32.mrb[0].mxu0
        %v2361 = vadd.f32 0.0, %v2360
        %v2362 = vpop.f32.mrb[0].mxu0
        %2363 = vmatprep.mubr.f32.mxu0 0.0
        %2364 = vmatmul.mubr.f32.gmra.mrb[0].mxu0 %v1164
        %v2365 = vpop.f32.mrb[0].mxu0
        %v2366 = vadd.f32 0.0, %v2365
        %v2367 = vpop.f32.mrb[0].mxu0
        %2368 = vmatprep.mubr.f32.mxu0 0.0
        %2369 = vmatmul.mubr.f32.gmra.mrb[0].mxu0 %v1167
        %v2370 = vpop.f32.mrb[0].mxu0
        %v2371 = vadd.f32 0.0, %v2370
        %v2372 = vpop.f32.mrb[0].mxu0
        %2373 = vmatprep.mubr.f32.mxu0 0.0
        %2374 = vmatmul.mubr.f32.gmra.mrb[0].mxu0 %v1170
        %v2375 = vpop.f32.mrb[0].mxu0
        %v2376 = vadd.f32 0.0, %v2375
        %v2377 = vpop.f32.mrb[0].mxu0
        %2378 = vmatprep.mubr.f32.mxu0 0.0
        %2379 = vmatmul.mubr.f32.gmra.mrb[0].mxu0 %v1173
        %v2380 = vpop.f32.mrb[0].mxu0
        %v2381 = vadd.f32 0.0, %v2380
        %v2382 = vpop.f32.mrb[0].mxu0
        %2383 = vmatprep.mubr.f32.mxu0 0.0
        %2384 = vmatmul.mubr.f32.gmra.mrb[0].mxu0 %v1176
        %v2385 = vpop.f32.mrb[0].mxu0
        %v2386 = vadd.f32 0.0, %v2385
        %v2387 = vpop.f32.mrb[0].mxu0
        %2388 = vmatprep.mubr.f32.mxu0 0.0
        %2389 = vmatmul.mubr.f32.gmra.mrb[0].mxu0 %v1179
        %v2390 = vpop.f32.mrb[0].mxu0
        %v2391 = vadd.f32 0.0, %v2390
        %v2392 = vpop.f32.mrb[0].mxu0
        %2393 = vmatprep.mubr.f32.mxu0 0.0
        %2394 = vmatmul.mubr.f32.gmra.mrb[0].mxu0 %v1182
        %v2395 = vpop.f32.mrb[0].mxu0
        %v2396 = vadd.f32 0.0, %v2395
        %v2397 = vpop.f32.mrb[0].mxu0
        %2398 = vmatprep.mubr.f32.mxu0 0.0
        %2399 = vmatmul.mubr.f32.gmra.mrb[0].mxu0 %v1185
        %v2400 = vpop.f32.mrb[0].mxu0
        %v2401 = vadd.f32 0.0, %v2400
        %v2402 = vpop.f32.mrb[0].mxu0
        %2403 = vmatprep.mubr.f32.mxu0 0.0
        %2404 = vmatmul.mubr.f32.gmra.mrb[0].mxu0 %v1188
        %v2405 = vpop.f32.mrb[0].mxu0
        %v2406 = vadd.f32 0.0, %v2405
        %v2407 = vpop.f32.mrb[0].mxu0
        %2408 = vmatprep.mubr.f32.mxu0 0.0
        %2409 = vmatmul.mubr.f32.gmra.mrb[0].mxu0 %v1191
        %v2410 = vpop.f32.mrb[0].mxu0
        %v2411 = vadd.f32 0.0, %v2410
        %v2412 = vpop.f32.mrb[0].mxu0
        %2413 = vmatprep.mubr.f32.mxu0 0.0
        %2414 = vmatmul.mubr.f32.gmra.mrb[0].mxu0 %v1194
        %v2415 = vpop.f32.mrb[0].mxu0
        %v2416 = vadd.f32 0.0, %v2415
        %v2417 = vpop.f32.mrb[0].mxu0
        %2418 = vmatprep.mubr.f32.mxu0 0.0
        %2419 = vmatmul.mubr.f32.gmra.mrb[0].mxu0 %v1197
        %v2420 = vpop.f32.mrb[0].mxu0
        %v2421 = vadd.f32 0.0, %v2420
        %v2422 = vpop.f32.mrb[0].mxu0
        %2423 = vmatprep.mubr.f32.mxu0 0.0
        %2424 = vmatmul.mubr.f32.gmra.mrb[0].mxu0 %v1200
        %v2425 = vpop.f32.mrb[0].mxu0
        %v2426 = vadd.f32 0.0, %v2425
        %v2427 = vpop.f32.mrb[0].mxu0
        %2428 = vmatprep.mubr.f32.mxu0 0.0
        %2429 = vmatmul.mubr.f32.gmra.mrb[0].mxu0 %v1203
        %v2430 = vpop.f32.mrb[0].mxu0
        %v2431 = vadd.f32 0.0, %v2430
        %v2432 = vpop.f32.mrb[0].mxu0
        %2433 = vmatprep.mubr.f32.mxu0 0.0
        %2434 = vmatmul.mubr.f32.gmra.mrb[0].mxu0 %v1206
        %v2435 = vpop.f32.mrb[0].mxu0
        %v2436 = vadd.f32 0.0, %v2435
        %v2437 = vpop.f32.mrb[0].mxu0
        %2438 = vmatprep.mubr.f32.mxu0 0.0
        %2439 = vmatmul.mubr.f32.gmra.mrb[0].mxu0 %v1209
        %v2440 = vpop.f32.mrb[0].mxu0
        %v2441 = vadd.f32 0.0, %v2440
        %v2442 = vpop.f32.mrb[0].mxu0
        %2443 = vmatprep.mubr.f32.mxu0 0.0
        %2444 = vmatmul.mubr.f32.gmra.mrb[0].mxu0 %v1212
        %v2445 = vpop.f32.mrb[0].mxu0
        %v2446 = vadd.f32 0.0, %v2445
        %v2447 = vpop.f32.mrb[0].mxu0
        %2448 = vmatprep.mubr.f32.mxu0 0.0
        %2449 = vmatmul.mubr.f32.gmra.mrb[0].mxu0 %v1215
        %v2450 = vpop.f32.mrb[0].mxu0
        %v2451 = vadd.f32 0.0, %v2450
        %v2452 = vpop.f32.mrb[0].mxu0
        %2453 = vmatprep.mubr.f32.mxu0 0.0
        %2454 = vmatmul.mubr.f32.gmra.mrb[0].mxu0 %v1218
        %v2455 = vpop.f32.mrb[0].mxu0
        %v2456 = vadd.f32 0.0, %v2455
        %v2457 = vpop.f32.mrb[0].mxu0
        %2458 = vmatprep.mubr.f32.mxu0 0.0
        %2459 = vmatmul.mubr.f32.gmra.mrb[0].mxu0 %v1221
        %v2460 = vpop.f32.mrb[0].mxu0
        %v2461 = vadd.f32 0.0, %v2460
        %v2462 = vpop.f32.mrb[0].mxu0
        %2463 = vmatprep.mubr.f32.mxu0 0.0
        %2464 = vmatmul.mubr.f32.gmra.mrb[0].mxu0 %v1224
        %v2465 = vpop.f32.mrb[0].mxu0
        %v2466 = vadd.f32 0.0, %v2465
        %v2467 = vpop.f32.mrb[0].mxu0
        %2468 = vmatprep.mubr.f32.mxu0 0.0
        %2469 = vmatmul.mubr.f32.gmra.mrb[0].mxu0 %v1227
        %v2470 = vpop.f32.mrb[0].mxu0
        %v2471 = vadd.f32 0.0, %v2470
        %v2472 = vpop.f32.mrb[0].mxu0
        %2473 = vmatprep.mubr.f32.mxu0 0.0
        %2474 = vmatmul.mubr.f32.gmra.mrb[0].mxu0 %v1230
        %v2475 = vpop.f32.mrb[0].mxu0
        %v2476 = vadd.f32 0.0, %v2475
        %v2477 = vpop.f32.mrb[0].mxu0
        %2478 = vmatprep.mubr.f32.mxu0 0.0
        %2479 = vmatmul.mubr.f32.gmra.mrb[0].mxu0 %v1233
        %v2480 = vpop.f32.mrb[0].mxu0
        %v2481 = vadd.f32 0.0, %v2480
        %v2482 = vpop.f32.mrb[0].mxu0
        %2483 = vmatprep.mubr.f32.mxu0 0.0
        %2484 = vmatmul.mubr.f32.gmra.mrb[0].mxu0 %v1236
        %v2485 = vpop.f32.mrb[0].mxu0
        %v2486 = vadd.f32 0.0, %v2485
        %v2487 = vpop.f32.mrb[0].mxu0
        %2488 = vmatprep.mubr.f32.mxu0 0.0
        %2489 = vmatmul.mubr.f32.gmra.mrb[0].mxu0 %v1239
        %v2490 = vpop.f32.mrb[0].mxu0
        %v2491 = vadd.f32 0.0, %v2490
        %v2492 = vpop.f32.mrb[0].mxu0
        %2493 = vmatprep.mubr.f32.mxu0 0.0
        %2494 = vmatmul.mubr.f32.gmra.mrb[0].mxu0 %v1242
        %v2495 = vpop.f32.mrb[0].mxu0
        %v2496 = vadd.f32 0.0, %v2495
        %v2497 = vpop.f32.mrb[0].mxu0
        %2498 = vmatprep.mubr.f32.mxu0 0.0
        %2499 = vmatmul.mubr.f32.gmra.mrb[0].mxu0 %v1245
        %v2500 = vpop.f32.mrb[0].mxu0
        %v2501 = vadd.f32 0.0, %v2500
        %v2502 = vpop.f32.mrb[0].mxu0
        %2503 = vmatprep.mubr.f32.mxu0 0.0
        %2504 = vmatmul.mubr.f32.gmra.mrb[0].mxu0 %v1248
        %v2505 = vpop.f32.mrb[0].mxu0
        %v2506 = vadd.f32 0.0, %v2505
        %v2507 = vpop.f32.mrb[0].mxu0
        %2508 = vmatprep.mubr.f32.mxu0 0.0
        %2509 = vmatmul.mubr.f32.gmra.mrb[0].mxu0 %v1251
        %v2510 = vpop.f32.mrb[0].mxu0
        %v2511 = vadd.f32 0.0, %v2510
        %v2512 = vpop.f32.mrb[0].mxu0
        %2513 = vmatprep.mubr.f32.mxu0 0.0
        %2514 = vmatmul.mubr.f32.gmra.mrb[0].mxu0 %v1254
        %v2515 = vpop.f32.mrb[0].mxu0
        %v2516 = vadd.f32 0.0, %v2515
        %v2517 = vpop.f32.mrb[0].mxu0
        %2518 = vmatprep.mubr.f32.mxu0 0.0
        %2519 = vmatmul.mubr.f32.gmra.mrb[0].mxu0 %v1257
        %v2520 = vpop.f32.mrb[0].mxu0
        %v2521 = vadd.f32 0.0, %v2520
        %v2522 = vpop.f32.mrb[0].mxu0
        %2523 = vmatprep.mubr.f32.mxu0 0.0
        %2524 = vmatmul.mubr.f32.gmra.mrb[0].mxu0 %v1260
        %v2525 = vpop.f32.mrb[0].mxu0
        %v2526 = vadd.f32 0.0, %v2525
        %v2527 = vpop.f32.mrb[0].mxu0
        %2528 = vmatprep.mubr.f32.mxu0 0.0
        %2529 = vmatmul.mubr.f32.gmra.mrb[0].mxu0 %v1263
        %v2530 = vpop.f32.mrb[0].mxu0
        %v2531 = vadd.f32 0.0, %v2530
        %v2532 = vpop.f32.mrb[0].mxu0
        %2533 = vmatprep.mubr.f32.mxu0 0.0
        %2534 = vmatmul.mubr.f32.gmra.mrb[0].mxu0 %v1266
        %v2535 = vpop.f32.mrb[0].mxu0
        %v2536 = vadd.f32 0.0, %v2535
        %v2537 = vpop.f32.mrb[0].mxu0
        %2538 = vmatprep.mubr.f32.mxu0 0.0
        %2539 = vmatmul.mubr.f32.gmra.mrb[0].mxu0 %v1269
        %v2540 = vpop.f32.mrb[0].mxu0
        %v2541 = vadd.f32 0.0, %v2540
        %v2542 = vpop.f32.mrb[0].mxu0
        %2543 = vmatprep.mubr.f32.mxu0 0.0
        %2544 = vmatmul.mubr.f32.gmra.mrb[0].mxu0 %v1272
        %v2545 = vpop.f32.mrb[0].mxu0
        %v2546 = vadd.f32 0.0, %v2545
        %v2547 = vpop.f32.mrb[0].mxu0
        %2548 = vmatprep.mubr.f32.mxu0 0.0
        %2549 = vmatmul.mubr.f32.gmra.mrb[0].mxu0 %v1275
        %v2550 = vpop.f32.mrb[0].mxu0
        %v2551 = vadd.f32 0.0, %v2550
        %v2552 = vpop.f32.mrb[0].mxu0
        %2553 = vmatprep.mubr.f32.mxu0 0.0
        %2554 = vmatmul.mubr.f32.gmra.mrb[0].mxu0 %v1278
        %v2555 = vpop.f32.mrb[0].mxu0
        %v2556 = vadd.f32 0.0, %v2555
        %v2557 = vpop.f32.mrb[0].mxu0
        %2558 = vmatprep.mubr.f32.mxu0 0.0
        %2559 = vmatmul.mubr.f32.gmra.mrb[0].mxu0 %v1281
        %v2560 = vpop.f32.mrb[0].mxu0
        %v2561 = vadd.f32 0.0, %v2560
        %v2562 = vpop.f32.mrb[0].mxu0
        %2563 = vmatprep.mubr.f32.mxu0 0.0
        %2564 = vmatmul.mubr.f32.gmra.mrb[0].mxu0 %v1284
        %v2565 = vpop.f32.mrb[0].mxu0
        %v2566 = vadd.f32 0.0, %v2565
        %v2567 = vpop.f32.mrb[0].mxu0
        %2568 = vmatprep.mubr.f32.mxu0 0.0
        %2569 = vmatmul.mubr.f32.gmra.mrb[0].mxu0 %v1287
        %v2570 = vpop.f32.mrb[0].mxu0
        %v2571 = vadd.f32 0.0, %v2570
        %v2572 = vpop.f32.mrb[0].mxu0
        %2573 = vmatprep.mubr.f32.mxu0 0.0
        %2574 = vmatmul.mubr.f32.gmra.mrb[0].mxu0 %v1290
        %v2575 = vpop.f32.mrb[0].mxu0
        %v2576 = vadd.f32 0.0, %v2575
        %v2577 = vpop.f32.mrb[0].mxu0
        %2578 = vmatprep.mubr.f32.mxu0 0.0
        %2579 = vmatmul.mubr.f32.gmra.mrb[0].mxu0 %v1293
        %v2580 = vpop.f32.mrb[0].mxu0
        %v2581 = vadd.f32 0.0, %v2580
        %v2582 = vpop.f32.mrb[0].mxu0
        %2583 = vmatprep.mubr.f32.mxu0 0.0
        %2584 = vmatmul.mubr.f32.gmra.mrb[0].mxu0 %v1296
        %v2585 = vpop.f32.mrb[0].mxu0
        %v2586 = vadd.f32 0.0, %v2585
        %v2587 = vpop.f32.mrb[0].mxu0
        %2588 = vmatprep.mubr.f32.mxu0 0.0
        %2589 = vmatmul.mubr.f32.gmra.mrb[0].mxu0 %v1299
        %v2590 = vpop.f32.mrb[0].mxu0
        %v2591 = vadd.f32 0.0, %v2590
        %v2592 = vpop.f32.mrb[0].mxu0
        %2593 = vmatprep.mubr.f32.mxu0 0.0
        %2594 = vmatmul.mubr.f32.gmra.mrb[0].mxu0 %v1302
        %v2595 = vpop.f32.mrb[0].mxu0
        %v2596 = vadd.f32 0.0, %v2595
        %v2597 = vpop.f32.mrb[0].mxu0
        %2598 = vmatprep.mubr.f32.mxu0 0.0
        %2599 = vmatmul.mubr.f32.gmra.mrb[0].mxu0 %v1305
        %v2600 = vpop.f32.mrb[0].mxu0
        %v2601 = vadd.f32 0.0, %v2600
        %v2602 = vpop.f32.mrb[0].mxu0
        %2603 = vmatprep.mubr.f32.mxu0 0.0
        %2604 = vmatmul.mubr.f32.gmra.mrb[0].mxu0 %v1308
        %v2605 = vpop.f32.mrb[0].mxu0
        %v2606 = vadd.f32 0.0, %v2605
        %v2607 = vpop.f32.mrb[0].mxu0
        %2608 = vmatprep.mubr.f32.mxu0 0.0
        %2609 = vmatmul.mubr.f32.gmra.mrb[0].mxu0 %v1311
        %v2610 = vpop.f32.mrb[0].mxu0
        %v2611 = vadd.f32 0.0, %v2610
        %v2612 = vpop.f32.mrb[0].mxu0
        %2613 = vmatprep.mubr.f32.mxu0 0.0
        %2614 = vmatmul.mubr.f32.gmra.mrb[0].mxu0 %v1314
        %v2615 = vpop.f32.mrb[0].mxu0
        %v2616 = vadd.f32 0.0, %v2615
        %v2617 = vpop.f32.mrb[0].mxu0
        %2618 = vmatprep.mubr.f32.mxu0 0.0
        %2619 = vmatmul.mubr.f32.gmra.mrb[0].mxu0 %v1317
        %v2620 = vpop.f32.mrb[0].mxu0
        %v2621 = vadd.f32 0.0, %v2620
        %v2622 = vpop.f32.mrb[0].mxu0
        %2623 = vmatprep.mubr.f32.mxu0 0.0
        %2624 = vmatmul.mubr.f32.gmra.mrb[0].mxu0 %v1320
        %v2625 = vpop.f32.mrb[0].mxu0
        %v2626 = vadd.f32 0.0, %v2625
        %v2627 = vpop.f32.mrb[0].mxu0
        %2628 = vmatprep.mubr.f32.mxu0 0.0
        %2629 = vmatmul.mubr.f32.gmra.mrb[0].mxu0 %v1323
        %v2630 = vpop.f32.mrb[0].mxu0
        %v2631 = vadd.f32 0.0, %v2630
        %v2632 = vpop.f32.mrb[0].mxu0
        %2633 = vmatprep.mubr.f32.mxu0 0.0
        %2634 = vmatmul.mubr.f32.gmra.mrb[0].mxu0 %v1326
        %v2635 = vpop.f32.mrb[0].mxu0
        %v2636 = vadd.f32 0.0, %v2635
        %v2637 = vpop.f32.mrb[0].mxu0
        %2638 = vmatprep.mubr.f32.mxu0 0.0
        %2639 = vmatmul.mubr.f32.gmra.mrb[0].mxu0 %v1329
        %v2640 = vpop.f32.mrb[0].mxu0
        %v2641 = vadd.f32 0.0, %v2640
        %v2642 = vpop.f32.mrb[0].mxu0
        %2643 = vmatprep.mubr.f32.mxu0 0.0
        %2644 = vmatmul.mubr.f32.gmra.mrb[0].mxu0 %v1332
        %v2645 = vpop.f32.mrb[0].mxu0
        %v2646 = vadd.f32 0.0, %v2645
        %v2647 = vpop.f32.mrb[0].mxu0
        %2648 = vmatprep.mubr.f32.mxu0 0.0
        %2649 = vmatmul.mubr.f32.gmra.mrb[0].mxu0 %v1335
        %v2650 = vpop.f32.mrb[0].mxu0
        %v2651 = vadd.f32 0.0, %v2650
        %v2652 = vpop.f32.mrb[0].mxu0
        %2653 = vmatprep.mubr.f32.mxu0 0.0
        %2654 = vmatmul.mubr.f32.gmra.mrb[0].mxu0 %v1338
        %v2655 = vpop.f32.mrb[0].mxu0
        %v2656 = vadd.f32 0.0, %v2655
        %v2657 = vpop.f32.mrb[0].mxu0
        %2658 = vmatprep.mubr.f32.mxu0 0.0
        %2659 = vmatmul.mubr.f32.gmra.mrb[0].mxu0 %v1341
        %v2660 = vpop.f32.mrb[0].mxu0
        %v2661 = vadd.f32 0.0, %v2660
        %v2662 = vpop.f32.mrb[0].mxu0
        %2663 = vmatprep.mubr.f32.mxu0 0.0
        %2664 = vmatmul.mubr.f32.gmra.mrb[0].mxu0 %v1344
        %v2665 = vpop.f32.mrb[0].mxu0
        %v2666 = vadd.f32 0.0, %v2665
        %v2667 = vpop.f32.mrb[0].mxu0
        %2668 = vmatprep.mubr.f32.mxu0 0.0
        %2669 = vmatmul.mubr.f32.gmra.mrb[0].mxu0 %v1347
        %v2670 = vpop.f32.mrb[0].mxu0
        %v2671 = vadd.f32 0.0, %v2670
        %v2672 = vpop.f32.mrb[0].mxu0
        %2673 = vmatprep.mubr.f32.mxu0 0.0
        %2674 = vmatmul.mubr.f32.gmra.mrb[0].mxu0 %v1350
        %v2675 = vpop.f32.mrb[0].mxu0
        %v2676 = vadd.f32 0.0, %v2675
        %v2677 = vpop.f32.mrb[0].mxu0
        %2678 = vmatprep.mubr.f32.mxu0 0.0
        %2679 = vmatmul.mubr.f32.gmra.mrb[0].mxu0 %v1353
        %v2680 = vpop.f32.mrb[0].mxu0
        %v2681 = vadd.f32 0.0, %v2680
        %v2682 = vpop.f32.mrb[0].mxu0
        %2683 = vmatprep.mubr.f32.mxu0 0.0
        %2684 = vmatmul.mubr.f32.gmra.mrb[0].mxu0 %v1356
        %v2685 = vpop.f32.mrb[0].mxu0
        %v2686 = vadd.f32 0.0, %v2685
        %v2687 = vpop.f32.mrb[0].mxu0
        %2688 = vmatprep.mubr.f32.mxu0 0.0
        %2689 = vmatmul.mubr.f32.gmra.mrb[0].mxu0 %v1359
        %v2690 = vpop.f32.mrb[0].mxu0
        %v2691 = vadd.f32 0.0, %v2690
        %v2692 = vpop.f32.mrb[0].mxu0
        %2693 = vmatprep.mubr.f32.mxu0 0.0
        %2694 = vmatmul.mubr.f32.gmra.mrb[0].mxu0 %v1362
        %v2695 = vpop.f32.mrb[0].mxu0
        %v2696 = vadd.f32 0.0, %v2695
        %v2697 = vpop.f32.mrb[0].mxu0
        %2698 = vmatprep.mubr.f32.mxu0 0.0
        %2699 = vmatmul.mubr.f32.gmra.mrb[0].mxu0 %v1365
        %v2700 = vpop.f32.mrb[0].mxu0
        %v2701 = vadd.f32 0.0, %v2700
        %v2702 = vpop.f32.mrb[0].mxu0
        %2703 = vmatprep.mubr.f32.mxu0 0.0
        %2704 = vmatmul.mubr.f32.gmra.mrb[0].mxu0 %v1368
        %v2705 = vpop.f32.mrb[0].mxu0
        %v2706 = vadd.f32 0.0, %v2705
        %v2707 = vpop.f32.mrb[0].mxu0
        %2708 = vmatprep.mubr.f32.mxu0 0.0
        %2709 = vmatmul.mubr.f32.gmra.mrb[0].mxu0 %v1371
        %v2710 = vpop.f32.mrb[0].mxu0
        %v2711 = vadd.f32 0.0, %v2710
        %v2712 = vpop.f32.mrb[0].mxu0
        %2713 = vmatprep.mubr.f32.mxu0 0.0
        %2714 = vmatmul.mubr.f32.gmra.mrb[0].mxu0 %v1374
        %v2715 = vpop.f32.mrb[0].mxu0
        %v2716 = vadd.f32 0.0, %v2715
        %v2717 = vpop.f32.mrb[0].mxu0
        %2718 = vmatprep.mubr.f32.mxu0 0.0
        %2719 = vmatmul.mubr.f32.gmra.mrb[0].mxu0 %v1377
        %v2720 = vpop.f32.mrb[0].mxu0
        %v2721 = vadd.f32 0.0, %v2720
        %v2722 = vpop.f32.mrb[0].mxu0
        %2723 = vmatprep.mubr.f32.mxu0 0.0
        %2724 = vmatmul.mubr.f32.gmra.mrb[0].mxu0 %v1380
        %v2725 = vpop.f32.mrb[0].mxu0
        %v2726 = vadd.f32 0.0, %v2725
        %v2727 = vpop.f32.mrb[0].mxu0
        %2728 = vmatprep.mubr.f32.mxu0 0.0
        %2729 = vmatmul.mubr.f32.gmra.mrb[0].mxu0 %v1383
        %v2730 = vpop.f32.mrb[0].mxu0
        %v2731 = vadd.f32 0.0, %v2730
        %v2732 = vpop.f32.mrb[0].mxu0
        %2733 = vmatprep.mubr.f32.mxu0 0.0
        %2734 = vmatmul.mubr.f32.gmra.mrb[0].mxu0 %v1386
        %v2735 = vpop.f32.mrb[0].mxu0
        %v2736 = vadd.f32 0.0, %v2735
        %v2737 = vpop.f32.mrb[0].mxu0
        %2738 = vmatprep.mubr.f32.mxu0 0.0
        %2739 = vmatmul.mubr.f32.gmra.mrb[0].mxu0 %v1389
        %v2740 = vpop.f32.mrb[0].mxu0
        %v2741 = vadd.f32 0.0, %v2740
        %v2742 = vpop.f32.mrb[0].mxu0
        %2743 = vmatprep.mubr.f32.mxu0 0.0
        %2744 = vmatmul.mubr.f32.gmra.mrb[0].mxu0 %v1392
        %v2745 = vpop.f32.mrb[0].mxu0
        %v2746 = vadd.f32 0.0, %v2745
        %v2747 = vpop.f32.mrb[0].mxu0
        %2748 = vmatprep.mubr.f32.mxu0 0.0
        %2749 = vmatmul.mubr.f32.gmra.mrb[0].mxu0 %v1395
        %v2750 = vpop.f32.mrb[0].mxu0
        %v2751 = vadd.f32 0.0, %v2750
        %v2752 = vpop.f32.mrb[0].mxu0
        %2753 = vmatprep.mubr.f32.mxu0 0.0
        %2754 = vmatmul.mubr.f32.gmra.mrb[0].mxu0 %v1398
        %v2755 = vpop.f32.mrb[0].mxu0
        %v2756 = vadd.f32 0.0, %v2755
        %v2757 = vpop.f32.mrb[0].mxu0
        %2758 = vmatprep.mubr.f32.mxu0 0.0
        %2759 = vmatmul.mubr.f32.gmra.mrb[0].mxu0 %v1401
        %v2760 = vpop.f32.mrb[0].mxu0
        %v2761 = vadd.f32 0.0, %v2760
        %v2762 = vpop.f32.mrb[0].mxu0
        %2763 = vmatprep.mubr.f32.mxu0 0.0
        %2764 = vmatmul.mubr.f32.gmra.mrb[0].mxu0 %v1404
        %v2765 = vpop.f32.mrb[0].mxu0
        %v2766 = vadd.f32 0.0, %v2765
        %v2767 = vpop.f32.mrb[0].mxu0
        %2768 = vmatprep.mubr.f32.mxu0 0.0
        %2769 = vmatmul.mubr.f32.gmra.mrb[0].mxu0 %v1407
        %v2770 = vpop.f32.mrb[0].mxu0
        %v2771 = vadd.f32 0.0, %v2770
        %v2772 = vpop.f32.mrb[0].mxu0
        %2773 = vmatprep.mubr.f32.mxu0 0.0
        %2774 = vmatmul.mubr.f32.gmra.mrb[0].mxu0 %v1410
        %v2775 = vpop.f32.mrb[0].mxu0
        %v2776 = vadd.f32 0.0, %v2775
        %v2777 = vpop.f32.mrb[0].mxu0
        %2778 = vmatprep.mubr.f32.mxu0 0.0
        %2779 = vmatmul.mubr.f32.gmra.mrb[0].mxu0 %v1413
        %v2780 = vpop.f32.mrb[0].mxu0
        %v2781 = vadd.f32 0.0, %v2780
        %v2782 = vpop.f32.mrb[0].mxu0
        %2783 = vmatprep.mubr.f32.mxu0 0.0
        %2784 = vmatmul.mubr.f32.gmra.mrb[0].mxu0 %v1416
        %v2785 = vpop.f32.mrb[0].mxu0
        %v2786 = vadd.f32 0.0, %v2785
        %v2787 = vpop.f32.mrb[0].mxu0
        %2788 = vmatprep.mubr.f32.mxu0 0.0
        %2789 = vmatmul.mubr.f32.gmra.mrb[0].mxu0 %v1419
        %v2790 = vpop.f32.mrb[0].mxu0
        %v2791 = vadd.f32 0.0, %v2790
        %v2792 = vpop.f32.mrb[0].mxu0
        %2793 = vmatprep.mubr.f32.mxu0 0.0
        %2794 = vmatmul.mubr.f32.gmra.mrb[0].mxu0 %v1422
        %v2795 = vpop.f32.mrb[0].mxu0
        %v2796 = vadd.f32 0.0, %v2795
        %v2797 = vpop.f32.mrb[0].mxu0
        %2798 = vmatprep.mubr.f32.mxu0 0.0
        %2799 = vmatmul.mubr.f32.gmra.mrb[0].mxu0 %v1425
        %v2800 = vpop.f32.mrb[0].mxu0
        %v2801 = vadd.f32 0.0, %v2800
        %v2802 = vpop.f32.mrb[0].mxu0
        %2803 = vmatprep.mubr.f32.mxu0 0.0
        %2804 = vmatmul.mubr.f32.gmra.mrb[0].mxu0 %v1428
        %v2805 = vpop.f32.mrb[0].mxu0
        %v2806 = vadd.f32 0.0, %v2805
        %v2807 = vpop.f32.mrb[0].mxu0
        %2808 = vmatprep.mubr.f32.mxu0 0.0
        %2809 = vmatmul.mubr.f32.gmra.mrb[0].mxu0 %v1431
        %v2810 = vpop.f32.mrb[0].mxu0
        %v2811 = vadd.f32 0.0, %v2810
        %v2812 = vpop.f32.mrb[0].mxu0
        %2813 = vmatprep.mubr.f32.mxu0 0.0
        %2814 = vmatmul.mubr.f32.gmra.mrb[0].mxu0 %v1434
        %v2815 = vpop.f32.mrb[0].mxu0
        %v2816 = vadd.f32 0.0, %v2815
        %v2817 = vpop.f32.mrb[0].mxu0
        %2818 = vmatprep.mubr.f32.mxu0 0.0
        %2819 = vmatmul.mubr.f32.gmra.mrb[0].mxu0 %v1437
        %v2820 = vpop.f32.mrb[0].mxu0
        %v2821 = vadd.f32 0.0, %v2820
        %v2822 = vpop.f32.mrb[0].mxu0
        %2823 = vmatprep.mubr.f32.mxu0 0.0
        %2824 = vmatmul.mubr.f32.gmra.mrb[0].mxu0 %v1440
        %v2825 = vpop.f32.mrb[0].mxu0
        %v2826 = vadd.f32 0.0, %v2825
        %v2827 = vpop.f32.mrb[0].mxu0
        %2828 = vmatprep.mubr.f32.mxu0 0.0
        %2829 = vmatmul.mubr.f32.gmra.mrb[0].mxu0 %v1443
        %v2830 = vpop.f32.mrb[0].mxu0
        %v2831 = vadd.f32 0.0, %v2830
        %v2832 = vpop.f32.mrb[0].mxu0
        %2833 = vmatprep.mubr.f32.mxu0 0.0
        %2834 = vmatmul.mubr.f32.gmra.mrb[0].mxu0 %v1446
        %v2835 = vpop.f32.mrb[0].mxu0
        %v2836 = vadd.f32 0.0, %v2835
        %v2837 = vpop.f32.mrb[0].mxu0
        %2838 = vmatprep.mubr.f32.mxu0 0.0
        %2839 = vmatmul.mubr.f32.gmra.mrb[0].mxu0 %v1449
        %v2840 = vpop.f32.mrb[0].mxu0
        %v2841 = vadd.f32 0.0, %v2840
        %v2842 = vpop.f32.mrb[0].mxu0
        %2843 = vmatprep.mubr.f32.mxu0 0.0
        %2844 = vmatmul.mubr.f32.gmra.mrb[0].mxu0 %v1452
        %v2845 = vpop.f32.mrb[0].mxu0
        %v2846 = vadd.f32 0.0, %v2845
        %v2847 = vpop.f32.mrb[0].mxu0
        %2848 = vmatprep.mubr.f32.mxu0 0.0
        %2849 = vmatmul.mubr.f32.gmra.mrb[0].mxu0 %v1455
        %v2850 = vpop.f32.mrb[0].mxu0
        %v2851 = vadd.f32 0.0, %v2850
        %v2852 = vpop.f32.mrb[0].mxu0
        %2853 = vmatprep.mubr.f32.mxu0 0.0
        %2854 = vmatmul.mubr.f32.gmra.mrb[0].mxu0 %v1458
        %v2855 = vpop.f32.mrb[0].mxu0
        %v2856 = vadd.f32 0.0, %v2855
        %v2857 = vpop.f32.mrb[0].mxu0
        %2858 = vmatprep.mubr.f32.mxu0 0.0
        %2859 = vmatmul.mubr.f32.gmra.mrb[0].mxu0 %v1461
        %v2860 = vpop.f32.mrb[0].mxu0
        %v2861 = vadd.f32 0.0, %v2860
        %v2862 = vpop.f32.mrb[0].mxu0
        %2863 = vmatprep.mubr.f32.mxu0 0.0
        %2864 = vmatmul.mubr.f32.gmra.mrb[0].mxu0 %v1464
        %v2865 = vpop.f32.mrb[0].mxu0
        %v2866 = vadd.f32 0.0, %v2865
        %v2867 = vpop.f32.mrb[0].mxu0
        %2868 = vmatprep.mubr.f32.mxu0 0.0
        %2869 = vmatmul.mubr.f32.gmra.mrb[0].mxu0 %v1467
        %v2870 = vpop.f32.mrb[0].mxu0
        %v2871 = vadd.f32 0.0, %v2870
        %v2872 = vpop.f32.mrb[0].mxu0
        %2873 = vmatprep.mubr.f32.mxu0 0.0
        %2874 = vmatmul.mubr.f32.gmra.mrb[0].mxu0 %v1470
        %v2875 = vpop.f32.mrb[0].mxu0
        %v2876 = vadd.f32 0.0, %v2875
        %v2877 = vpop.f32.mrb[0].mxu0
        %2878 = vmatprep.mubr.f32.mxu0 0.0
        %2879 = vmatmul.mubr.f32.gmra.mrb[0].mxu0 %v1473
        %v2880 = vpop.f32.mrb[0].mxu0
        %v2881 = vadd.f32 0.0, %v2880
        %v2882 = vpop.f32.mrb[0].mxu0
        %2883 = vmatprep.mubr.f32.mxu0 0.0
        %2884 = vmatmul.mubr.f32.gmra.mrb[0].mxu0 %v1476
        %v2885 = vpop.f32.mrb[0].mxu0
        %v2886 = vadd.f32 0.0, %v2885
        %v2887 = vpop.f32.mrb[0].mxu0
        %2888 = vmatprep.mubr.f32.mxu0 0.0
        %2889 = vmatmul.mubr.f32.gmra.mrb[0].mxu0 %v1479
        %v2890 = vpop.f32.mrb[0].mxu0
        %v2891 = vadd.f32 0.0, %v2890
        %v2892 = vpop.f32.mrb[0].mxu0
        %2893 = vmatprep.mubr.f32.mxu0 0.0
        %2894 = vmatmul.mubr.f32.gmra.mrb[0].mxu0 %v1482
        %v2895 = vpop.f32.mrb[0].mxu0
        %v2896 = vadd.f32 0.0, %v2895
        %v2897 = vpop.f32.mrb[0].mxu0
        %2898 = vmatprep.mubr.f32.mxu0 0.0
        %2899 = vmatmul.mubr.f32.gmra.mrb[0].mxu0 %v1485
        %v2900 = vpop.f32.mrb[0].mxu0
        %v2901 = vadd.f32 0.0, %v2900
        %v2902 = vpop.f32.mrb[0].mxu0
        %2903 = vmatprep.mubr.f32.mxu0 0.0
        %2904 = vmatmul.mubr.f32.gmra.mrb[0].mxu0 %v1488
        %v2905 = vpop.f32.mrb[0].mxu0
        %v2906 = vadd.f32 0.0, %v2905
        %v2907 = vpop.f32.mrb[0].mxu0
        %2908 = vmatprep.mubr.f32.mxu0 0.0
        %2909 = vmatmul.mubr.f32.gmra.mrb[0].mxu0 %v1491
        %v2910 = vpop.f32.mrb[0].mxu0
        %v2911 = vadd.f32 0.0, %v2910
        %v2912 = vpop.f32.mrb[0].mxu0
        %2913 = vmatprep.mubr.f32.mxu0 0.0
        %2914 = vmatmul.mubr.f32.gmra.mrb[0].mxu0 %v1494
        %v2915 = vpop.f32.mrb[0].mxu0
        %v2916 = vadd.f32 0.0, %v2915
        %v2917 = vpop.f32.mrb[0].mxu0
        %2918 = vdwg.mxu0
        %v2919 = vlaneseq
        %v2920 = vshrl.u32 %v2919, 7
        %v2921 = vadd.s32 %v2920, 8
        %v2922 = vadd.s32 %v2920, 16
        %v2923 = vadd.s32 %v2920, 24
        %v2924 = vadd.s32 %v2920, 32
        %v2925 = vadd.s32 %v2920, 40
        %v2926 = vadd.s32 %v2920, 48
        %v2927 = vadd.s32 %v2920, 56
        %v2928 = vadd.s32 %v2920, 64
        %v2929 = vadd.s32 %v2920, 72
        %v2930 = vadd.s32 %v2920, 80
        %v2931 = vadd.s32 %v2920, 88
        %v2932 = vadd.s32 %v2920, 96
        %v2933 = vadd.s32 %v2920, 104
        %v2934 = vadd.s32 %v2920, 112
        %v2935 = vadd.s32 %v2920, 120
        %v2936 = vadd.s32 %v2920, 128
        %v2937 = vadd.s32 %v2920, 136
        %v2938 = vadd.s32 %v2920, 144
        %v2939 = vadd.s32 %v2920, 152
        %v2940 = vadd.s32 %v2920, 160
        %v2941 = vadd.s32 %v2920, 168
        %v2942 = vadd.s32 %v2920, 176
        %v2943 = vadd.s32 %v2920, 184
        %v2944 = vadd.s32 %v2920, 192
        %v2945 = vadd.s32 %v2920, 200
        %v2946 = vadd.s32 %v2920, 208
        %v2947 = vadd.s32 %v2920, 216
        %v2948 = vadd.s32 %v2920, 224
        %v2949 = vadd.s32 %v2920, 232
        %v2950 = vadd.s32 %v2920, 240
        %v2951 = vadd.s32 %v2920, 248
        %v2952 = vadd.s32 %v2920, 256
        %v2953 = vadd.s32 %v2920, 264
        %v2954 = vadd.s32 %v2920, 272
        %v2955 = vadd.s32 %v2920, 280
        %v2956 = vadd.s32 %v2920, 288
        %v2957 = vadd.s32 %v2920, 296
        %v2958 = vadd.s32 %v2920, 304
        %v2959 = vadd.s32 %v2920, 312
        %v2960 = vadd.s32 %v2920, 320
        %v2961 = vadd.s32 %v2920, 328
        %v2962 = vadd.s32 %v2920, 336
        %v2963 = vadd.s32 %v2920, 344
        %v2964 = vadd.s32 %v2920, 352
        %v2965 = vadd.s32 %v2920, 360
        %v2966 = vadd.s32 %v2920, 368
        %v2967 = vadd.s32 %v2920, 376
        %v2968 = vadd.s32 %v2920, 384
        %v2969 = vadd.s32 %v2920, 392
        %v2970 = vadd.s32 %v2920, 400
        %v2971 = vadd.s32 %v2920, 408
        %v2972 = vadd.s32 %v2920, 416
        %v2973 = vadd.s32 %v2920, 424
        %v2974 = vadd.s32 %v2920, 432
        %v2975 = vadd.s32 %v2920, 440
        %v2976 = vadd.s32 %v2920, 448
        %v2977 = vadd.s32 %v2920, 456
        %v2978 = vadd.s32 %v2920, 464
        %v2979 = vadd.s32 %v2920, 472
        %v2980 = vadd.s32 %v2920, 480
        %v2981 = vadd.s32 %v2920, 488
        %v2982 = vadd.s32 %v2920, 496
        %v2983 = vadd.s32 %v2920, 504
        %v2984 = vadd.s32 %v2920, 512
        %v2985 = vadd.s32 %v2920, 520
        %v2986 = vadd.s32 %v2920, 528
        %v2987 = vadd.s32 %v2920, 536
        %v2988 = vadd.s32 %v2920, 544
        %v2989 = vadd.s32 %v2920, 552
        %v2990 = vadd.s32 %v2920, 560
        %v2991 = vadd.s32 %v2920, 568
        %v2992 = vadd.s32 %v2920, 576
        %v2993 = vadd.s32 %v2920, 584
        %v2994 = vadd.s32 %v2920, 592
        %v2995 = vadd.s32 %v2920, 600
        %v2996 = vadd.s32 %v2920, 608
        %v2997 = vadd.s32 %v2920, 616
        %v2998 = vadd.s32 %v2920, 624
        %v2999 = vadd.s32 %v2920, 632
        %v3000 = vadd.s32 %v2920, 640
        %v3001 = vadd.s32 %v2920, 648
        %v3002 = vadd.s32 %v2920, 656
        %v3003 = vadd.s32 %v2920, 664
        %v3004 = vadd.s32 %v2920, 672
        %v3005 = vadd.s32 %v2920, 680
        %v3006 = vadd.s32 %v2920, 688
        %v3007 = vadd.s32 %v2920, 696
        %v3008 = vadd.s32 %v2920, 704
        %v3009 = vadd.s32 %v2920, 712
        %v3010 = vadd.s32 %v2920, 720
        %v3011 = vadd.s32 %v2920, 728
        %v3012 = vadd.s32 %v2920, 736
        %v3013 = vadd.s32 %v2920, 744
        %v3014 = vadd.s32 %v2920, 752
        %v3015 = vadd.s32 %v2920, 760
        %v3016 = vadd.s32 %v2920, 768
        %v3017 = vadd.s32 %v2920, 776
        %v3018 = vadd.s32 %v2920, 784
        %v3019 = vadd.s32 %v2920, 792
        %v3020 = vadd.s32 %v2920, 800
        %v3021 = vadd.s32 %v2920, 808
        %v3022 = vadd.s32 %v2920, 816
        %v3023 = vadd.s32 %v2920, 824
        %v3024 = vadd.s32 %v2920, 832
        %v3025 = vadd.s32 %v2920, 840
        %v3026 = vadd.s32 %v2920, 848
        %v3027 = vadd.s32 %v2920, 856
        %v3028 = vadd.s32 %v2920, 864
        %v3029 = vadd.s32 %v2920, 872
        %v3030 = vadd.s32 %v2920, 880
        %v3031 = vadd.s32 %v2920, 888
        %v3032 = vadd.s32 %v2920, 896
        %v3033 = vadd.s32 %v2920, 904
        %v3034 = vadd.s32 %v2920, 912
        %v3035 = vadd.s32 %v2920, 920
        %v3036 = vadd.s32 %v2920, 928
        %v3037 = vadd.s32 %v2920, 936
        %v3038 = vadd.s32 %v2920, 944
        %v3039 = vadd.s32 %v2920, 952
        %v3040 = vadd.s32 %v2920, 960
        %v3041 = vadd.s32 %v2920, 968
        %v3042 = vadd.s32 %v2920, 976
        %v3043 = vadd.s32 %v2920, 984
        %v3044 = vadd.s32 %v2920, 992
        %v3045 = vadd.s32 %v2920, 1000
        %v3046 = vadd.s32 %v2920, 1008
        %v3047 = vadd.s32 %v2920, 1016
        %vm3048 = vcmp.lt.s32.totalorder %v2920, 8
        %vm3049 = vcmp.lt.s32.totalorder %v2921, 8
        %vm3050 = vcmp.lt.s32.totalorder %v2922, 8
        %vm3051 = vcmp.lt.s32.totalorder %v2923, 8
        %vm3052 = vcmp.lt.s32.totalorder %v2924, 8
        %vm3053 = vcmp.lt.s32.totalorder %v2925, 8
        %vm3054 = vcmp.lt.s32.totalorder %v2926, 8
        %vm3055 = vcmp.lt.s32.totalorder %v2927, 8
        %vm3056 = vcmp.lt.s32.totalorder %v2928, 8
        %vm3057 = vcmp.lt.s32.totalorder %v2929, 8
        %vm3058 = vcmp.lt.s32.totalorder %v2930, 8
        %vm3059 = vcmp.lt.s32.totalorder %v2931, 8
        %vm3060 = vcmp.lt.s32.totalorder %v2932, 8
        %vm3061 = vcmp.lt.s32.totalorder %v2933, 8
        %vm3062 = vcmp.lt.s32.totalorder %v2934, 8
        %vm3063 = vcmp.lt.s32.totalorder %v2935, 8
        %vm3064 = vcmp.lt.s32.totalorder %v2936, 8
        %vm3065 = vcmp.lt.s32.totalorder %v2937, 8
        %vm3066 = vcmp.lt.s32.totalorder %v2938, 8
        %vm3067 = vcmp.lt.s32.totalorder %v2939, 8
        %vm3068 = vcmp.lt.s32.totalorder %v2940, 8
        %vm3069 = vcmp.lt.s32.totalorder %v2941, 8
        %vm3070 = vcmp.lt.s32.totalorder %v2942, 8
        %vm3071 = vcmp.lt.s32.totalorder %v2943, 8
        %vm3072 = vcmp.lt.s32.totalorder %v2944, 8
        %vm3073 = vcmp.lt.s32.totalorder %v2945, 8
        %vm3074 = vcmp.lt.s32.totalorder %v2946, 8
        %vm3075 = vcmp.lt.s32.totalorder %v2947, 8
        %vm3076 = vcmp.lt.s32.totalorder %v2948, 8
        %vm3077 = vcmp.lt.s32.totalorder %v2949, 8
        %vm3078 = vcmp.lt.s32.totalorder %v2950, 8
        %vm3079 = vcmp.lt.s32.totalorder %v2951, 8
        %vm3080 = vcmp.lt.s32.totalorder %v2952, 8
        %vm3081 = vcmp.lt.s32.totalorder %v2953, 8
        %vm3082 = vcmp.lt.s32.totalorder %v2954, 8
        %vm3083 = vcmp.lt.s32.totalorder %v2955, 8
        %vm3084 = vcmp.lt.s32.totalorder %v2956, 8
        %vm3085 = vcmp.lt.s32.totalorder %v2957, 8
        %vm3086 = vcmp.lt.s32.totalorder %v2958, 8
        %vm3087 = vcmp.lt.s32.totalorder %v2959, 8
        %vm3088 = vcmp.lt.s32.totalorder %v2960, 8
        %vm3089 = vcmp.lt.s32.totalorder %v2961, 8
        %vm3090 = vcmp.lt.s32.totalorder %v2962, 8
        %vm3091 = vcmp.lt.s32.totalorder %v2963, 8
        %vm3092 = vcmp.lt.s32.totalorder %v2964, 8
        %vm3093 = vcmp.lt.s32.totalorder %v2965, 8
        %vm3094 = vcmp.lt.s32.totalorder %v2966, 8
        %vm3095 = vcmp.lt.s32.totalorder %v2967, 8
        %vm3096 = vcmp.lt.s32.totalorder %v2968, 8
        %vm3097 = vcmp.lt.s32.totalorder %v2969, 8
        %vm3098 = vcmp.lt.s32.totalorder %v2970, 8
        %vm3099 = vcmp.lt.s32.totalorder %v2971, 8
        %vm3100 = vcmp.lt.s32.totalorder %v2972, 8
        %vm3101 = vcmp.lt.s32.totalorder %v2973, 8
        %vm3102 = vcmp.lt.s32.totalorder %v2974, 8
        %vm3103 = vcmp.lt.s32.totalorder %v2975, 8
        %vm3104 = vcmp.lt.s32.totalorder %v2976, 8
        %vm3105 = vcmp.lt.s32.totalorder %v2977, 8
        %vm3106 = vcmp.lt.s32.totalorder %v2978, 8
        %vm3107 = vcmp.lt.s32.totalorder %v2979, 8
        %vm3108 = vcmp.lt.s32.totalorder %v2980, 8
        %vm3109 = vcmp.lt.s32.totalorder %v2981, 8
        %vm3110 = vcmp.lt.s32.totalorder %v2982, 8
        %vm3111 = vcmp.lt.s32.totalorder %v2983, 8
        %vm3112 = vcmp.lt.s32.totalorder %v2984, 8
        %vm3113 = vcmp.lt.s32.totalorder %v2985, 8
        %vm3114 = vcmp.lt.s32.totalorder %v2986, 8
        %vm3115 = vcmp.lt.s32.totalorder %v2987, 8
        %vm3116 = vcmp.lt.s32.totalorder %v2988, 8
        %vm3117 = vcmp.lt.s32.totalorder %v2989, 8
        %vm3118 = vcmp.lt.s32.totalorder %v2990, 8
        %vm3119 = vcmp.lt.s32.totalorder %v2991, 8
        %vm3120 = vcmp.lt.s32.totalorder %v2992, 8
        %vm3121 = vcmp.lt.s32.totalorder %v2993, 8
        %vm3122 = vcmp.lt.s32.totalorder %v2994, 8
        %vm3123 = vcmp.lt.s32.totalorder %v2995, 8
        %vm3124 = vcmp.lt.s32.totalorder %v2996, 8
        %vm3125 = vcmp.lt.s32.totalorder %v2997, 8
        %vm3126 = vcmp.lt.s32.totalorder %v2998, 8
        %vm3127 = vcmp.lt.s32.totalorder %v2999, 8
        %vm3128 = vcmp.lt.s32.totalorder %v3000, 8
        %vm3129 = vcmp.lt.s32.totalorder %v3001, 8
        %vm3130 = vcmp.lt.s32.totalorder %v3002, 8
        %vm3131 = vcmp.lt.s32.totalorder %v3003, 8
        %vm3132 = vcmp.lt.s32.totalorder %v3004, 8
        %vm3133 = vcmp.lt.s32.totalorder %v3005, 8
        %vm3134 = vcmp.lt.s32.totalorder %v3006, 8
        %vm3135 = vcmp.lt.s32.totalorder %v3007, 8
        %vm3136 = vcmp.lt.s32.totalorder %v3008, 8
        %vm3137 = vcmp.lt.s32.totalorder %v3009, 8
        %vm3138 = vcmp.lt.s32.totalorder %v3010, 8
        %vm3139 = vcmp.lt.s32.totalorder %v3011, 8
        %vm3140 = vcmp.lt.s32.totalorder %v3012, 8
        %vm3141 = vcmp.lt.s32.totalorder %v3013, 8
        %vm3142 = vcmp.lt.s32.totalorder %v3014, 8
        %vm3143 = vcmp.lt.s32.totalorder %v3015, 8
        %vm3144 = vcmp.lt.s32.totalorder %v3016, 8
        %vm3145 = vcmp.lt.s32.totalorder %v3017, 8
        %vm3146 = vcmp.lt.s32.totalorder %v3018, 8
        %vm3147 = vcmp.lt.s32.totalorder %v3019, 8
        %vm3148 = vcmp.lt.s32.totalorder %v3020, 8
        %vm3149 = vcmp.lt.s32.totalorder %v3021, 8
        %vm3150 = vcmp.lt.s32.totalorder %v3022, 8
        %vm3151 = vcmp.lt.s32.totalorder %v3023, 8
        %vm3152 = vcmp.lt.s32.totalorder %v3024, 8
        %vm3153 = vcmp.lt.s32.totalorder %v3025, 8
        %vm3154 = vcmp.lt.s32.totalorder %v3026, 8
        %vm3155 = vcmp.lt.s32.totalorder %v3027, 8
        %vm3156 = vcmp.lt.s32.totalorder %v3028, 8
        %vm3157 = vcmp.lt.s32.totalorder %v3029, 8
        %vm3158 = vcmp.lt.s32.totalorder %v3030, 8
        %vm3159 = vcmp.lt.s32.totalorder %v3031, 8
        %vm3160 = vcmp.lt.s32.totalorder %v3032, 8
        %vm3161 = vcmp.lt.s32.totalorder %v3033, 8
        %vm3162 = vcmp.lt.s32.totalorder %v3034, 8
        %vm3163 = vcmp.lt.s32.totalorder %v3035, 8
        %vm3164 = vcmp.lt.s32.totalorder %v3036, 8
        %vm3165 = vcmp.lt.s32.totalorder %v3037, 8
        %vm3166 = vcmp.lt.s32.totalorder %v3038, 8
        %vm3167 = vcmp.lt.s32.totalorder %v3039, 8
        %vm3168 = vcmp.lt.s32.totalorder %v3040, 8
        %vm3169 = vcmp.lt.s32.totalorder %v3041, 8
        %vm3170 = vcmp.lt.s32.totalorder %v3042, 8
        %vm3171 = vcmp.lt.s32.totalorder %v3043, 8
        %vm3172 = vcmp.lt.s32.totalorder %v3044, 8
        %vm3173 = vcmp.lt.s32.totalorder %v3045, 8
        %vm3174 = vcmp.lt.s32.totalorder %v3046, 8
        %vm3175 = vcmp.lt.s32.totalorder %v3047, 8
        %vm3176 = vcmp.ge.s32.totalorder %v2920, 1016
        %vm3177 = vcmp.ge.s32.totalorder %v2921, 1016
        %vm3178 = vcmp.ge.s32.totalorder %v2922, 1016
        %vm3179 = vcmp.ge.s32.totalorder %v2923, 1016
        %vm3180 = vcmp.ge.s32.totalorder %v2924, 1016
        %vm3181 = vcmp.ge.s32.totalorder %v2925, 1016
        %vm3182 = vcmp.ge.s32.totalorder %v2926, 1016
        %vm3183 = vcmp.ge.s32.totalorder %v2927, 1016
        %vm3184 = vcmp.ge.s32.totalorder %v2928, 1016
        %vm3185 = vcmp.ge.s32.totalorder %v2929, 1016
        %vm3186 = vcmp.ge.s32.totalorder %v2930, 1016
        %vm3187 = vcmp.ge.s32.totalorder %v2931, 1016
        %vm3188 = vcmp.ge.s32.totalorder %v2932, 1016
        %vm3189 = vcmp.ge.s32.totalorder %v2933, 1016
        %vm3190 = vcmp.ge.s32.totalorder %v2934, 1016
        %vm3191 = vcmp.ge.s32.totalorder %v2935, 1016
        %vm3192 = vcmp.ge.s32.totalorder %v2936, 1016
        %vm3193 = vcmp.ge.s32.totalorder %v2937, 1016
        %vm3194 = vcmp.ge.s32.totalorder %v2938, 1016
        %vm3195 = vcmp.ge.s32.totalorder %v2939, 1016
        %vm3196 = vcmp.ge.s32.totalorder %v2940, 1016
        %vm3197 = vcmp.ge.s32.totalorder %v2941, 1016
        %vm3198 = vcmp.ge.s32.totalorder %v2942, 1016
        %vm3199 = vcmp.ge.s32.totalorder %v2943, 1016
        %vm3200 = vcmp.ge.s32.totalorder %v2944, 1016
        %vm3201 = vcmp.ge.s32.totalorder %v2945, 1016
        %vm3202 = vcmp.ge.s32.totalorder %v2946, 1016
        %vm3203 = vcmp.ge.s32.totalorder %v2947, 1016
        %vm3204 = vcmp.ge.s32.totalorder %v2948, 1016
        %vm3205 = vcmp.ge.s32.totalorder %v2949, 1016
        %vm3206 = vcmp.ge.s32.totalorder %v2950, 1016
        %vm3207 = vcmp.ge.s32.totalorder %v2951, 1016
        %vm3208 = vcmp.ge.s32.totalorder %v2952, 1016
        %vm3209 = vcmp.ge.s32.totalorder %v2953, 1016
        %vm3210 = vcmp.ge.s32.totalorder %v2954, 1016
        %vm3211 = vcmp.ge.s32.totalorder %v2955, 1016
        %vm3212 = vcmp.ge.s32.totalorder %v2956, 1016
        %vm3213 = vcmp.ge.s32.totalorder %v2957, 1016
        %vm3214 = vcmp.ge.s32.totalorder %v2958, 1016
        %vm3215 = vcmp.ge.s32.totalorder %v2959, 1016
        %vm3216 = vcmp.ge.s32.totalorder %v2960, 1016
        %vm3217 = vcmp.ge.s32.totalorder %v2961, 1016
        %vm3218 = vcmp.ge.s32.totalorder %v2962, 1016
        %vm3219 = vcmp.ge.s32.totalorder %v2963, 1016
        %vm3220 = vcmp.ge.s32.totalorder %v2964, 1016
        %vm3221 = vcmp.ge.s32.totalorder %v2965, 1016
        %vm3222 = vcmp.ge.s32.totalorder %v2966, 1016
        %vm3223 = vcmp.ge.s32.totalorder %v2967, 1016
        %vm3224 = vcmp.ge.s32.totalorder %v2968, 1016
        %vm3225 = vcmp.ge.s32.totalorder %v2969, 1016
        %vm3226 = vcmp.ge.s32.totalorder %v2970, 1016
        %vm3227 = vcmp.ge.s32.totalorder %v2971, 1016
        %vm3228 = vcmp.ge.s32.totalorder %v2972, 1016
        %vm3229 = vcmp.ge.s32.totalorder %v2973, 1016
        %vm3230 = vcmp.ge.s32.totalorder %v2974, 1016
        %vm3231 = vcmp.ge.s32.totalorder %v2975, 1016
        %vm3232 = vcmp.ge.s32.totalorder %v2976, 1016
        %vm3233 = vcmp.ge.s32.totalorder %v2977, 1016
        %vm3234 = vcmp.ge.s32.totalorder %v2978, 1016
        %vm3235 = vcmp.ge.s32.totalorder %v2979, 1016
        %vm3236 = vcmp.ge.s32.totalorder %v2980, 1016
        %vm3237 = vcmp.ge.s32.totalorder %v2981, 1016
        %vm3238 = vcmp.ge.s32.totalorder %v2982, 1016
        %vm3239 = vcmp.ge.s32.totalorder %v2983, 1016
        %vm3240 = vcmp.ge.s32.totalorder %v2984, 1016
        %vm3241 = vcmp.ge.s32.totalorder %v2985, 1016
        %vm3242 = vcmp.ge.s32.totalorder %v2986, 1016
        %vm3243 = vcmp.ge.s32.totalorder %v2987, 1016
        %vm3244 = vcmp.ge.s32.totalorder %v2988, 1016
        %vm3245 = vcmp.ge.s32.totalorder %v2989, 1016
        %vm3246 = vcmp.ge.s32.totalorder %v2990, 1016
        %vm3247 = vcmp.ge.s32.totalorder %v2991, 1016
        %vm3248 = vcmp.ge.s32.totalorder %v2992, 1016
        %vm3249 = vcmp.ge.s32.totalorder %v2993, 1016
        %vm3250 = vcmp.ge.s32.totalorder %v2994, 1016
        %vm3251 = vcmp.ge.s32.totalorder %v2995, 1016
        %vm3252 = vcmp.ge.s32.totalorder %v2996, 1016
        %vm3253 = vcmp.ge.s32.totalorder %v2997, 1016
        %vm3254 = vcmp.ge.s32.totalorder %v2998, 1016
        %vm3255 = vcmp.ge.s32.totalorder %v2999, 1016
        %vm3256 = vcmp.ge.s32.totalorder %v3000, 1016
        %vm3257 = vcmp.ge.s32.totalorder %v3001, 1016
        %vm3258 = vcmp.ge.s32.totalorder %v3002, 1016
        %vm3259 = vcmp.ge.s32.totalorder %v3003, 1016
        %vm3260 = vcmp.ge.s32.totalorder %v3004, 1016
        %vm3261 = vcmp.ge.s32.totalorder %v3005, 1016
        %vm3262 = vcmp.ge.s32.totalorder %v3006, 1016
        %vm3263 = vcmp.ge.s32.totalorder %v3007, 1016
        %vm3264 = vcmp.ge.s32.totalorder %v3008, 1016
        %vm3265 = vcmp.ge.s32.totalorder %v3009, 1016
        %vm3266 = vcmp.ge.s32.totalorder %v3010, 1016
        %vm3267 = vcmp.ge.s32.totalorder %v3011, 1016
        %vm3268 = vcmp.ge.s32.totalorder %v3012, 1016
        %vm3269 = vcmp.ge.s32.totalorder %v3013, 1016
        %vm3270 = vcmp.ge.s32.totalorder %v3014, 1016
        %vm3271 = vcmp.ge.s32.totalorder %v3015, 1016
        %vm3272 = vcmp.ge.s32.totalorder %v3016, 1016
        %vm3273 = vcmp.ge.s32.totalorder %v3017, 1016
        %vm3274 = vcmp.ge.s32.totalorder %v3018, 1016
        %vm3275 = vcmp.ge.s32.totalorder %v3019, 1016
        %vm3276 = vcmp.ge.s32.totalorder %v3020, 1016
        %vm3277 = vcmp.ge.s32.totalorder %v3021, 1016
        %vm3278 = vcmp.ge.s32.totalorder %v3022, 1016
        %vm3279 = vcmp.ge.s32.totalorder %v3023, 1016
        %vm3280 = vcmp.ge.s32.totalorder %v3024, 1016
        %vm3281 = vcmp.ge.s32.totalorder %v3025, 1016
        %vm3282 = vcmp.ge.s32.totalorder %v3026, 1016
        %vm3283 = vcmp.ge.s32.totalorder %v3027, 1016
        %vm3284 = vcmp.ge.s32.totalorder %v3028, 1016
        %vm3285 = vcmp.ge.s32.totalorder %v3029, 1016
        %vm3286 = vcmp.ge.s32.totalorder %v3030, 1016
        %vm3287 = vcmp.ge.s32.totalorder %v3031, 1016
        %vm3288 = vcmp.ge.s32.totalorder %v3032, 1016
        %vm3289 = vcmp.ge.s32.totalorder %v3033, 1016
        %vm3290 = vcmp.ge.s32.totalorder %v3034, 1016
        %vm3291 = vcmp.ge.s32.totalorder %v3035, 1016
        %vm3292 = vcmp.ge.s32.totalorder %v3036, 1016
        %vm3293 = vcmp.ge.s32.totalorder %v3037, 1016
        %vm3294 = vcmp.ge.s32.totalorder %v3038, 1016
        %vm3295 = vcmp.ge.s32.totalorder %v3039, 1016
        %vm3296 = vcmp.ge.s32.totalorder %v3040, 1016
        %vm3297 = vcmp.ge.s32.totalorder %v3041, 1016
        %vm3298 = vcmp.ge.s32.totalorder %v3042, 1016
        %vm3299 = vcmp.ge.s32.totalorder %v3043, 1016
        %vm3300 = vcmp.ge.s32.totalorder %v3044, 1016
        %vm3301 = vcmp.ge.s32.totalorder %v3045, 1016
        %vm3302 = vcmp.ge.s32.totalorder %v3046, 1016
        %vm3303 = vcmp.ge.s32.totalorder %v3047, 1016
        %vm3304 = vcmp.ge.s32.totalorder %v2920, 1008
        %vm3305 = vcmp.ge.s32.totalorder %v2922, 1008
        %vm3306 = vcmp.ge.s32.totalorder %v2924, 1008
        %vm3307 = vcmp.ge.s32.totalorder %v2926, 1008
        %vm3308 = vcmp.ge.s32.totalorder %v2928, 1008
        %vm3309 = vcmp.ge.s32.totalorder %v2930, 1008
        %vm3310 = vcmp.ge.s32.totalorder %v2932, 1008
        %vm3311 = vcmp.ge.s32.totalorder %v2934, 1008
        %vm3312 = vcmp.ge.s32.totalorder %v2936, 1008
        %vm3313 = vcmp.ge.s32.totalorder %v2938, 1008
        %vm3314 = vcmp.ge.s32.totalorder %v2940, 1008
        %vm3315 = vcmp.ge.s32.totalorder %v2942, 1008
        %vm3316 = vcmp.ge.s32.totalorder %v2944, 1008
        %vm3317 = vcmp.ge.s32.totalorder %v2946, 1008
        %vm3318 = vcmp.ge.s32.totalorder %v2948, 1008
        %vm3319 = vcmp.ge.s32.totalorder %v2950, 1008
        %vm3320 = vcmp.ge.s32.totalorder %v2952, 1008
        %vm3321 = vcmp.ge.s32.totalorder %v2954, 1008
        %vm3322 = vcmp.ge.s32.totalorder %v2956, 1008
        %vm3323 = vcmp.ge.s32.totalorder %v2958, 1008
        %vm3324 = vcmp.ge.s32.totalorder %v2960, 1008
        %vm3325 = vcmp.ge.s32.totalorder %v2962, 1008
        %vm3326 = vcmp.ge.s32.totalorder %v2964, 1008
        %vm3327 = vcmp.ge.s32.totalorder %v2966, 1008
        %vm3328 = vcmp.ge.s32.totalorder %v2968, 1008
        %vm3329 = vcmp.ge.s32.totalorder %v2970, 1008
        %vm3330 = vcmp.ge.s32.totalorder %v2972, 1008
        %vm3331 = vcmp.ge.s32.totalorder %v2974, 1008
        %vm3332 = vcmp.ge.s32.totalorder %v2976, 1008
        %vm3333 = vcmp.ge.s32.totalorder %v2978, 1008
        %vm3334 = vcmp.ge.s32.totalorder %v2980, 1008
        %vm3335 = vcmp.ge.s32.totalorder %v2982, 1008
        %vm3336 = vcmp.ge.s32.totalorder %v2984, 1008
        %vm3337 = vcmp.ge.s32.totalorder %v2986, 1008
        %vm3338 = vcmp.ge.s32.totalorder %v2988, 1008
        %vm3339 = vcmp.ge.s32.totalorder %v2990, 1008
        %vm3340 = vcmp.ge.s32.totalorder %v2992, 1008
        %vm3341 = vcmp.ge.s32.totalorder %v2994, 1008
        %vm3342 = vcmp.ge.s32.totalorder %v2996, 1008
        %vm3343 = vcmp.ge.s32.totalorder %v2998, 1008
        %vm3344 = vcmp.ge.s32.totalorder %v3000, 1008
        %vm3345 = vcmp.ge.s32.totalorder %v3002, 1008
        %vm3346 = vcmp.ge.s32.totalorder %v3004, 1008
        %vm3347 = vcmp.ge.s32.totalorder %v3006, 1008
        %vm3348 = vcmp.ge.s32.totalorder %v3008, 1008
        %vm3349 = vcmp.ge.s32.totalorder %v3010, 1008
        %vm3350 = vcmp.ge.s32.totalorder %v3012, 1008
        %vm3351 = vcmp.ge.s32.totalorder %v3014, 1008
        %vm3352 = vcmp.ge.s32.totalorder %v3016, 1008
        %vm3353 = vcmp.ge.s32.totalorder %v3018, 1008
        %vm3354 = vcmp.ge.s32.totalorder %v3020, 1008
        %vm3355 = vcmp.ge.s32.totalorder %v3022, 1008
        %vm3356 = vcmp.ge.s32.totalorder %v3024, 1008
        %vm3357 = vcmp.ge.s32.totalorder %v3026, 1008
        %vm3358 = vcmp.ge.s32.totalorder %v3028, 1008
        %vm3359 = vcmp.ge.s32.totalorder %v3030, 1008
        %vm3360 = vcmp.ge.s32.totalorder %v3032, 1008
        %vm3361 = vcmp.ge.s32.totalorder %v3034, 1008
        %vm3362 = vcmp.ge.s32.totalorder %v3036, 1008
        %vm3363 = vcmp.ge.s32.totalorder %v3038, 1008
        %vm3364 = vcmp.ge.s32.totalorder %v3040, 1008
        %vm3365 = vcmp.ge.s32.totalorder %v3042, 1008
        %vm3366 = vcmp.ge.s32.totalorder %v3044, 1008
        %vm3367 = vcmp.ge.s32.totalorder %v3046, 1008
        %v3368 = vsel %vm3048, 1, 0
        %v3369 = vsel %vm3049, 1, 0
        %v3370 = vsel %vm3050, 1, 0
        %v3371 = vsel %vm3051, 1, 0
        %v3372 = vsel %vm3052, 1, 0
        %v3373 = vsel %vm3053, 1, 0
        %v3374 = vsel %vm3054, 1, 0
        %v3375 = vsel %vm3055, 1, 0
        %v3376 = vsel %vm3056, 1, 0
        %v3377 = vsel %vm3057, 1, 0
        %v3378 = vsel %vm3058, 1, 0
        %v3379 = vsel %vm3059, 1, 0
        %v3380 = vsel %vm3060, 1, 0
        %v3381 = vsel %vm3061, 1, 0
        %v3382 = vsel %vm3062, 1, 0
        %v3383 = vsel %vm3063, 1, 0
        %v3384 = vsel %vm3064, 1, 0
        %v3385 = vsel %vm3065, 1, 0
        %v3386 = vsel %vm3066, 1, 0
        %v3387 = vsel %vm3067, 1, 0
        %v3388 = vsel %vm3068, 1, 0
        %v3389 = vsel %vm3069, 1, 0
        %v3390 = vsel %vm3070, 1, 0
        %v3391 = vsel %vm3071, 1, 0
        %v3392 = vsel %vm3072, 1, 0
        %v3393 = vsel %vm3073, 1, 0
        %v3394 = vsel %vm3074, 1, 0
        %v3395 = vsel %vm3075, 1, 0
        %v3396 = vsel %vm3076, 1, 0
        %v3397 = vsel %vm3077, 1, 0
        %v3398 = vsel %vm3078, 1, 0
        %v3399 = vsel %vm3079, 1, 0
        %v3400 = vsel %vm3080, 1, 0
        %v3401 = vsel %vm3081, 1, 0
        %v3402 = vsel %vm3082, 1, 0
        %v3403 = vsel %vm3083, 1, 0
        %v3404 = vsel %vm3084, 1, 0
        %v3405 = vsel %vm3085, 1, 0
        %v3406 = vsel %vm3086, 1, 0
        %v3407 = vsel %vm3087, 1, 0
        %v3408 = vsel %vm3088, 1, 0
        %v3409 = vsel %vm3089, 1, 0
        %v3410 = vsel %vm3090, 1, 0
        %v3411 = vsel %vm3091, 1, 0
        %v3412 = vsel %vm3092, 1, 0
        %v3413 = vsel %vm3093, 1, 0
        %v3414 = vsel %vm3094, 1, 0
        %v3415 = vsel %vm3095, 1, 0
        %v3416 = vsel %vm3096, 1, 0
        %v3417 = vsel %vm3097, 1, 0
        %v3418 = vsel %vm3098, 1, 0
        %v3419 = vsel %vm3099, 1, 0
        %v3420 = vsel %vm3100, 1, 0
        %v3421 = vsel %vm3101, 1, 0
        %v3422 = vsel %vm3102, 1, 0
        %v3423 = vsel %vm3103, 1, 0
        %v3424 = vsel %vm3104, 1, 0
        %v3425 = vsel %vm3105, 1, 0
        %v3426 = vsel %vm3106, 1, 0
        %v3427 = vsel %vm3107, 1, 0
        %v3428 = vsel %vm3108, 1, 0
        %v3429 = vsel %vm3109, 1, 0
        %v3430 = vsel %vm3110, 1, 0
        %v3431 = vsel %vm3111, 1, 0
        %v3432 = vsel %vm3112, 1, 0
        %v3433 = vsel %vm3113, 1, 0
        %v3434 = vsel %vm3114, 1, 0
        %v3435 = vsel %vm3115, 1, 0
        %v3436 = vsel %vm3116, 1, 0
        %v3437 = vsel %vm3117, 1, 0
        %v3438 = vsel %vm3118, 1, 0
        %v3439 = vsel %vm3119, 1, 0
        %v3440 = vsel %vm3120, 1, 0
        %v3441 = vsel %vm3121, 1, 0
        %v3442 = vsel %vm3122, 1, 0
        %v3443 = vsel %vm3123, 1, 0
        %v3444 = vsel %vm3124, 1, 0
        %v3445 = vsel %vm3125, 1, 0
        %v3446 = vsel %vm3126, 1, 0
        %v3447 = vsel %vm3127, 1, 0
        %v3448 = vsel %vm3128, 1, 0
        %v3449 = vsel %vm3129, 1, 0
        %v3450 = vsel %vm3130, 1, 0
        %v3451 = vsel %vm3131, 1, 0
        %v3452 = vsel %vm3132, 1, 0
        %v3453 = vsel %vm3133, 1, 0
        %v3454 = vsel %vm3134, 1, 0
        %v3455 = vsel %vm3135, 1, 0
        %v3456 = vsel %vm3136, 1, 0
        %v3457 = vsel %vm3137, 1, 0
        %v3458 = vsel %vm3138, 1, 0
        %v3459 = vsel %vm3139, 1, 0
        %v3460 = vsel %vm3140, 1, 0
        %v3461 = vsel %vm3141, 1, 0
        %v3462 = vsel %vm3142, 1, 0
        %v3463 = vsel %vm3143, 1, 0
        %v3464 = vsel %vm3144, 1, 0
        %v3465 = vsel %vm3145, 1, 0
        %v3466 = vsel %vm3146, 1, 0
        %v3467 = vsel %vm3147, 1, 0
        %v3468 = vsel %vm3148, 1, 0
        %v3469 = vsel %vm3149, 1, 0
        %v3470 = vsel %vm3150, 1, 0
        %v3471 = vsel %vm3151, 1, 0
        %v3472 = vsel %vm3152, 1, 0
        %v3473 = vsel %vm3153, 1, 0
        %v3474 = vsel %vm3154, 1, 0
        %v3475 = vsel %vm3155, 1, 0
        %v3476 = vsel %vm3156, 1, 0
        %v3477 = vsel %vm3157, 1, 0
        %v3478 = vsel %vm3158, 1, 0
        %v3479 = vsel %vm3159, 1, 0
        %v3480 = vsel %vm3160, 1, 0
        %v3481 = vsel %vm3161, 1, 0
        %v3482 = vsel %vm3162, 1, 0
        %v3483 = vsel %vm3163, 1, 0
        %v3484 = vsel %vm3164, 1, 0
        %v3485 = vsel %vm3165, 1, 0
        %v3486 = vsel %vm3166, 1, 0
        %v3487 = vsel %vm3167, 1, 0
        %v3488 = vsel %vm3168, 1, 0
        %v3489 = vsel %vm3169, 1, 0
        %v3490 = vsel %vm3170, 1, 0
        %v3491 = vsel %vm3171, 1, 0
        %v3492 = vsel %vm3172, 1, 0
        %v3493 = vsel %vm3173, 1, 0
        %v3494 = vsel %vm3174, 1, 0
        %v3495 = vsel %vm3175, 1, 0
        %vm3496 = vcmp.eq.s32.totalorder %v3368, 1
        %vm3497 = vcmp.eq.s32.totalorder %v3369, 1
        %vm3498 = vcmp.eq.s32.totalorder %v3370, 1
        %vm3499 = vcmp.eq.s32.totalorder %v3371, 1
        %vm3500 = vcmp.eq.s32.totalorder %v3372, 1
        %vm3501 = vcmp.eq.s32.totalorder %v3373, 1
        %vm3502 = vcmp.eq.s32.totalorder %v3374, 1
        %vm3503 = vcmp.eq.s32.totalorder %v3375, 1
        %vm3504 = vcmp.eq.s32.totalorder %v3376, 1
        %vm3505 = vcmp.eq.s32.totalorder %v3377, 1
        %vm3506 = vcmp.eq.s32.totalorder %v3378, 1
        %vm3507 = vcmp.eq.s32.totalorder %v3379, 1
        %vm3508 = vcmp.eq.s32.totalorder %v3380, 1
        %vm3509 = vcmp.eq.s32.totalorder %v3381, 1
        %vm3510 = vcmp.eq.s32.totalorder %v3382, 1
        %vm3511 = vcmp.eq.s32.totalorder %v3383, 1
        %vm3512 = vcmp.eq.s32.totalorder %v3384, 1
        %vm3513 = vcmp.eq.s32.totalorder %v3385, 1
        %vm3514 = vcmp.eq.s32.totalorder %v3386, 1
        %vm3515 = vcmp.eq.s32.totalorder %v3387, 1
        %vm3516 = vcmp.eq.s32.totalorder %v3388, 1
        %vm3517 = vcmp.eq.s32.totalorder %v3389, 1
        %vm3518 = vcmp.eq.s32.totalorder %v3390, 1
        %vm3519 = vcmp.eq.s32.totalorder %v3391, 1
        %vm3520 = vcmp.eq.s32.totalorder %v3392, 1
        %vm3521 = vcmp.eq.s32.totalorder %v3393, 1
        %vm3522 = vcmp.eq.s32.totalorder %v3394, 1
        %vm3523 = vcmp.eq.s32.totalorder %v3395, 1
        %vm3524 = vcmp.eq.s32.totalorder %v3396, 1
        %vm3525 = vcmp.eq.s32.totalorder %v3397, 1
        %vm3526 = vcmp.eq.s32.totalorder %v3398, 1
        %vm3527 = vcmp.eq.s32.totalorder %v3399, 1
        %vm3528 = vcmp.eq.s32.totalorder %v3400, 1
        %vm3529 = vcmp.eq.s32.totalorder %v3401, 1
        %vm3530 = vcmp.eq.s32.totalorder %v3402, 1
        %vm3531 = vcmp.eq.s32.totalorder %v3403, 1
        %vm3532 = vcmp.eq.s32.totalorder %v3404, 1
        %vm3533 = vcmp.eq.s32.totalorder %v3405, 1
        %vm3534 = vcmp.eq.s32.totalorder %v3406, 1
        %vm3535 = vcmp.eq.s32.totalorder %v3407, 1
        %vm3536 = vcmp.eq.s32.totalorder %v3408, 1
        %vm3537 = vcmp.eq.s32.totalorder %v3409, 1
        %vm3538 = vcmp.eq.s32.totalorder %v3410, 1
        %vm3539 = vcmp.eq.s32.totalorder %v3411, 1
        %vm3540 = vcmp.eq.s32.totalorder %v3412, 1
        %vm3541 = vcmp.eq.s32.totalorder %v3413, 1
        %vm3542 = vcmp.eq.s32.totalorder %v3414, 1
        %vm3543 = vcmp.eq.s32.totalorder %v3415, 1
        %vm3544 = vcmp.eq.s32.totalorder %v3416, 1
        %vm3545 = vcmp.eq.s32.totalorder %v3417, 1
        %vm3546 = vcmp.eq.s32.totalorder %v3418, 1
        %vm3547 = vcmp.eq.s32.totalorder %v3419, 1
        %vm3548 = vcmp.eq.s32.totalorder %v3420, 1
        %vm3549 = vcmp.eq.s32.totalorder %v3421, 1
        %vm3550 = vcmp.eq.s32.totalorder %v3422, 1
        %vm3551 = vcmp.eq.s32.totalorder %v3423, 1
        %vm3552 = vcmp.eq.s32.totalorder %v3424, 1
        %vm3553 = vcmp.eq.s32.totalorder %v3425, 1
        %vm3554 = vcmp.eq.s32.totalorder %v3426, 1
        %vm3555 = vcmp.eq.s32.totalorder %v3427, 1
        %vm3556 = vcmp.eq.s32.totalorder %v3428, 1
        %vm3557 = vcmp.eq.s32.totalorder %v3429, 1
        %vm3558 = vcmp.eq.s32.totalorder %v3430, 1
        %vm3559 = vcmp.eq.s32.totalorder %v3431, 1
        %vm3560 = vcmp.eq.s32.totalorder %v3432, 1
        %vm3561 = vcmp.eq.s32.totalorder %v3433, 1
        %vm3562 = vcmp.eq.s32.totalorder %v3434, 1
        %vm3563 = vcmp.eq.s32.totalorder %v3435, 1
        %vm3564 = vcmp.eq.s32.totalorder %v3436, 1
        %vm3565 = vcmp.eq.s32.totalorder %v3437, 1
        %vm3566 = vcmp.eq.s32.totalorder %v3438, 1
        %vm3567 = vcmp.eq.s32.totalorder %v3439, 1
        %vm3568 = vcmp.eq.s32.totalorder %v3440, 1
        %vm3569 = vcmp.eq.s32.totalorder %v3441, 1
        %vm3570 = vcmp.eq.s32.totalorder %v3442, 1
        %vm3571 = vcmp.eq.s32.totalorder %v3443, 1
        %vm3572 = vcmp.eq.s32.totalorder %v3444, 1
        %vm3573 = vcmp.eq.s32.totalorder %v3445, 1
        %vm3574 = vcmp.eq.s32.totalorder %v3446, 1
        %vm3575 = vcmp.eq.s32.totalorder %v3447, 1
        %vm3576 = vcmp.eq.s32.totalorder %v3448, 1
        %vm3577 = vcmp.eq.s32.totalorder %v3449, 1
        %vm3578 = vcmp.eq.s32.totalorder %v3450, 1
        %vm3579 = vcmp.eq.s32.totalorder %v3451, 1
        %vm3580 = vcmp.eq.s32.totalorder %v3452, 1
        %vm3581 = vcmp.eq.s32.totalorder %v3453, 1
        %vm3582 = vcmp.eq.s32.totalorder %v3454, 1
        %vm3583 = vcmp.eq.s32.totalorder %v3455, 1
        %vm3584 = vcmp.eq.s32.totalorder %v3456, 1
        %vm3585 = vcmp.eq.s32.totalorder %v3457, 1
        %vm3586 = vcmp.eq.s32.totalorder %v3458, 1
        %vm3587 = vcmp.eq.s32.totalorder %v3459, 1
        %vm3588 = vcmp.eq.s32.totalorder %v3460, 1
        %vm3589 = vcmp.eq.s32.totalorder %v3461, 1
        %vm3590 = vcmp.eq.s32.totalorder %v3462, 1
        %vm3591 = vcmp.eq.s32.totalorder %v3463, 1
        %vm3592 = vcmp.eq.s32.totalorder %v3464, 1
        %vm3593 = vcmp.eq.s32.totalorder %v3465, 1
        %vm3594 = vcmp.eq.s32.totalorder %v3466, 1
        %vm3595 = vcmp.eq.s32.totalorder %v3467, 1
        %vm3596 = vcmp.eq.s32.totalorder %v3468, 1
        %vm3597 = vcmp.eq.s32.totalorder %v3469, 1
        %vm3598 = vcmp.eq.s32.totalorder %v3470, 1
        %vm3599 = vcmp.eq.s32.totalorder %v3471, 1
        %vm3600 = vcmp.eq.s32.totalorder %v3472, 1
        %vm3601 = vcmp.eq.s32.totalorder %v3473, 1
        %vm3602 = vcmp.eq.s32.totalorder %v3474, 1
        %vm3603 = vcmp.eq.s32.totalorder %v3475, 1
        %vm3604 = vcmp.eq.s32.totalorder %v3476, 1
        %vm3605 = vcmp.eq.s32.totalorder %v3477, 1
        %vm3606 = vcmp.eq.s32.totalorder %v3478, 1
        %vm3607 = vcmp.eq.s32.totalorder %v3479, 1
        %vm3608 = vcmp.eq.s32.totalorder %v3480, 1
        %vm3609 = vcmp.eq.s32.totalorder %v3481, 1
        %vm3610 = vcmp.eq.s32.totalorder %v3482, 1
        %vm3611 = vcmp.eq.s32.totalorder %v3483, 1
        %vm3612 = vcmp.eq.s32.totalorder %v3484, 1
        %vm3613 = vcmp.eq.s32.totalorder %v3485, 1
        %vm3614 = vcmp.eq.s32.totalorder %v3486, 1
        %vm3615 = vcmp.eq.s32.totalorder %v3487, 1
        %vm3616 = vcmp.eq.s32.totalorder %v3488, 1
        %vm3617 = vcmp.eq.s32.totalorder %v3489, 1
        %vm3618 = vcmp.eq.s32.totalorder %v3490, 1
        %vm3619 = vcmp.eq.s32.totalorder %v3491, 1
        %vm3620 = vcmp.eq.s32.totalorder %v3492, 1
        %vm3621 = vcmp.eq.s32.totalorder %v3493, 1
        %vm3622 = vcmp.eq.s32.totalorder %v3494, 1
        %vm3623 = vcmp.eq.s32.totalorder %v3495, 1
        %v3624 = vsel %vm3496, 0.0, %v2202
        %v3625 = vsel %vm3497, 0.0, %v1567
        %v3626 = vsel %vm3498, 0.0, %v1572
        %v3627 = vsel %vm3499, 0.0, %v1577
        %v3628 = vsel %vm3500, 0.0, %v1582
        %v3629 = vsel %vm3501, 0.0, %v1587
        %v3630 = vsel %vm3502, 0.0, %v1592
        %v3631 = vsel %vm3503, 0.0, %v1597
        %v3632 = vsel %vm3504, 0.0, %v1602
        %v3633 = vsel %vm3505, 0.0, %v1607
        %v3634 = vsel %vm3506, 0.0, %v1612
        %v3635 = vsel %vm3507, 0.0, %v1617
        %v3636 = vsel %vm3508, 0.0, %v1622
        %v3637 = vsel %vm3509, 0.0, %v1627
        %v3638 = vsel %vm3510, 0.0, %v1632
        %v3639 = vsel %vm3511, 0.0, %v1637
        %v3640 = vsel %vm3512, 0.0, %v1642
        %v3641 = vsel %vm3513, 0.0, %v1647
        %v3642 = vsel %vm3514, 0.0, %v1652
        %v3643 = vsel %vm3515, 0.0, %v1657
        %v3644 = vsel %vm3516, 0.0, %v1662
        %v3645 = vsel %vm3517, 0.0, %v1667
        %v3646 = vsel %vm3518, 0.0, %v1672
        %v3647 = vsel %vm3519, 0.0, %v1677
        %v3648 = vsel %vm3520, 0.0, %v1682
        %v3649 = vsel %vm3521, 0.0, %v1687
        %v3650 = vsel %vm3522, 0.0, %v1692
        %v3651 = vsel %vm3523, 0.0, %v1697
        %v3652 = vsel %vm3524, 0.0, %v1702
        %v3653 = vsel %vm3525, 0.0, %v1707
        %v3654 = vsel %vm3526, 0.0, %v1712
        %v3655 = vsel %vm3527, 0.0, %v1717
        %v3656 = vsel %vm3528, 0.0, %v1722
        %v3657 = vsel %vm3529, 0.0, %v1727
        %v3658 = vsel %vm3530, 0.0, %v1732
        %v3659 = vsel %vm3531, 0.0, %v1737
        %v3660 = vsel %vm3532, 0.0, %v1742
        %v3661 = vsel %vm3533, 0.0, %v1747
        %v3662 = vsel %vm3534, 0.0, %v1752
        %v3663 = vsel %vm3535, 0.0, %v1757
        %v3664 = vsel %vm3536, 0.0, %v1762
        %v3665 = vsel %vm3537, 0.0, %v1767
        %v3666 = vsel %vm3538, 0.0, %v1772
        %v3667 = vsel %vm3539, 0.0, %v1777
        %v3668 = vsel %vm3540, 0.0, %v1782
        %v3669 = vsel %vm3541, 0.0, %v1787
        %v3670 = vsel %vm3542, 0.0, %v1792
        %v3671 = vsel %vm3543, 0.0, %v1797
        %v3672 = vsel %vm3544, 0.0, %v1802
        %v3673 = vsel %vm3545, 0.0, %v1807
        %v3674 = vsel %vm3546, 0.0, %v1812
        %v3675 = vsel %vm3547, 0.0, %v1817
        %v3676 = vsel %vm3548, 0.0, %v1822
        %v3677 = vsel %vm3549, 0.0, %v1827
        %v3678 = vsel %vm3550, 0.0, %v1832
        %v3679 = vsel %vm3551, 0.0, %v1837
        %v3680 = vsel %vm3552, 0.0, %v1842
        %v3681 = vsel %vm3553, 0.0, %v1847
        %v3682 = vsel %vm3554, 0.0, %v1852
        %v3683 = vsel %vm3555, 0.0, %v1857
        %v3684 = vsel %vm3556, 0.0, %v1862
        %v3685 = vsel %vm3557, 0.0, %v1867
        %v3686 = vsel %vm3558, 0.0, %v1872
        %v3687 = vsel %vm3559, 0.0, %v1877
        %v3688 = vsel %vm3560, 0.0, %v1882
        %v3689 = vsel %vm3561, 0.0, %v1887
        %v3690 = vsel %vm3562, 0.0, %v1892
        %v3691 = vsel %vm3563, 0.0, %v1897
        %v3692 = vsel %vm3564, 0.0, %v1902
        %v3693 = vsel %vm3565, 0.0, %v1907
        %v3694 = vsel %vm3566, 0.0, %v1912
        %v3695 = vsel %vm3567, 0.0, %v1917
        %v3696 = vsel %vm3568, 0.0, %v1922
        %v3697 = vsel %vm3569, 0.0, %v1927
        %v3698 = vsel %vm3570, 0.0, %v1932
        %v3699 = vsel %vm3571, 0.0, %v1937
        %v3700 = vsel %vm3572, 0.0, %v1942
        %v3701 = vsel %vm3573, 0.0, %v1947
        %v3702 = vsel %vm3574, 0.0, %v1952
        %v3703 = vsel %vm3575, 0.0, %v1957
        %v3704 = vsel %vm3576, 0.0, %v1962
        %v3705 = vsel %vm3577, 0.0, %v1967
        %v3706 = vsel %vm3578, 0.0, %v1972
        %v3707 = vsel %vm3579, 0.0, %v1977
        %v3708 = vsel %vm3580, 0.0, %v1982
        %v3709 = vsel %vm3581, 0.0, %v1987
        %v3710 = vsel %vm3582, 0.0, %v1992
        %v3711 = vsel %vm3583, 0.0, %v1997
        %v3712 = vsel %vm3584, 0.0, %v2002
        %v3713 = vsel %vm3585, 0.0, %v2007
        %v3714 = vsel %vm3586, 0.0, %v2012
        %v3715 = vsel %vm3587, 0.0, %v2017
        %v3716 = vsel %vm3588, 0.0, %v2022
        %v3717 = vsel %vm3589, 0.0, %v2027
        %v3718 = vsel %vm3590, 0.0, %v2032
        %v3719 = vsel %vm3591, 0.0, %v2037
        %v3720 = vsel %vm3592, 0.0, %v2042
        %v3721 = vsel %vm3593, 0.0, %v2047
        %v3722 = vsel %vm3594, 0.0, %v2052
        %v3723 = vsel %vm3595, 0.0, %v2057
        %v3724 = vsel %vm3596, 0.0, %v2062
        %v3725 = vsel %vm3597, 0.0, %v2067
        %v3726 = vsel %vm3598, 0.0, %v2072
        %v3727 = vsel %vm3599, 0.0, %v2077
        %v3728 = vsel %vm3600, 0.0, %v2082
        %v3729 = vsel %vm3601, 0.0, %v2087
        %v3730 = vsel %vm3602, 0.0, %v2092
        %v3731 = vsel %vm3603, 0.0, %v2097
        %v3732 = vsel %vm3604, 0.0, %v2102
        %v3733 = vsel %vm3605, 0.0, %v2107
        %v3734 = vsel %vm3606, 0.0, %v2112
        %v3735 = vsel %vm3607, 0.0, %v2117
        %v3736 = vsel %vm3608, 0.0, %v2122
        %v3737 = vsel %vm3609, 0.0, %v2127
        %v3738 = vsel %vm3610, 0.0, %v2132
        %v3739 = vsel %vm3611, 0.0, %v2137
        %v3740 = vsel %vm3612, 0.0, %v2142
        %v3741 = vsel %vm3613, 0.0, %v2147
        %v3742 = vsel %vm3614, 0.0, %v2152
        %v3743 = vsel %vm3615, 0.0, %v2157
        %v3744 = vsel %vm3616, 0.0, %v2162
        %v3745 = vsel %vm3617, 0.0, %v2167
        %v3746 = vsel %vm3618, 0.0, %v2172
        %v3747 = vsel %vm3619, 0.0, %v2177
        %v3748 = vsel %vm3620, 0.0, %v2182
        %v3749 = vsel %vm3621, 0.0, %v2187
        %v3750 = vsel %vm3622, 0.0, %v2192
        %v3751 = vsel %vm3623, 0.0, %v2197
        %v3752 = vsel %vm3176, 1, 0
        %v3753 = vsel %vm3177, 1, 0
        %v3754 = vsel %vm3178, 1, 0
        %v3755 = vsel %vm3179, 1, 0
        %v3756 = vsel %vm3180, 1, 0
        %v3757 = vsel %vm3181, 1, 0
        %v3758 = vsel %vm3182, 1, 0
        %v3759 = vsel %vm3183, 1, 0
        %v3760 = vsel %vm3184, 1, 0
        %v3761 = vsel %vm3185, 1, 0
        %v3762 = vsel %vm3186, 1, 0
        %v3763 = vsel %vm3187, 1, 0
        %v3764 = vsel %vm3188, 1, 0
        %v3765 = vsel %vm3189, 1, 0
        %v3766 = vsel %vm3190, 1, 0
        %v3767 = vsel %vm3191, 1, 0
        %v3768 = vsel %vm3192, 1, 0
        %v3769 = vsel %vm3193, 1, 0
        %v3770 = vsel %vm3194, 1, 0
        %v3771 = vsel %vm3195, 1, 0
        %v3772 = vsel %vm3196, 1, 0
        %v3773 = vsel %vm3197, 1, 0
        %v3774 = vsel %vm3198, 1, 0
        %v3775 = vsel %vm3199, 1, 0
        %v3776 = vsel %vm3200, 1, 0
        %v3777 = vsel %vm3201, 1, 0
        %v3778 = vsel %vm3202, 1, 0
        %v3779 = vsel %vm3203, 1, 0
        %v3780 = vsel %vm3204, 1, 0
        %v3781 = vsel %vm3205, 1, 0
        %v3782 = vsel %vm3206, 1, 0
        %v3783 = vsel %vm3207, 1, 0
        %v3784 = vsel %vm3208, 1, 0
        %v3785 = vsel %vm3209, 1, 0
        %v3786 = vsel %vm3210, 1, 0
        %v3787 = vsel %vm3211, 1, 0
        %v3788 = vsel %vm3212, 1, 0
        %v3789 = vsel %vm3213, 1, 0
        %v3790 = vsel %vm3214, 1, 0
        %v3791 = vsel %vm3215, 1, 0
        %v3792 = vsel %vm3216, 1, 0
        %v3793 = vsel %vm3217, 1, 0
        %v3794 = vsel %vm3218, 1, 0
        %v3795 = vsel %vm3219, 1, 0
        %v3796 = vsel %vm3220, 1, 0
        %v3797 = vsel %vm3221, 1, 0
        %v3798 = vsel %vm3222, 1, 0
        %v3799 = vsel %vm3223, 1, 0
        %v3800 = vsel %vm3224, 1, 0
        %v3801 = vsel %vm3225, 1, 0
        %v3802 = vsel %vm3226, 1, 0
        %v3803 = vsel %vm3227, 1, 0
        %v3804 = vsel %vm3228, 1, 0
        %v3805 = vsel %vm3229, 1, 0
        %v3806 = vsel %vm3230, 1, 0
        %v3807 = vsel %vm3231, 1, 0
        %v3808 = vsel %vm3232, 1, 0
        %v3809 = vsel %vm3233, 1, 0
        %v3810 = vsel %vm3234, 1, 0
        %v3811 = vsel %vm3235, 1, 0
        %v3812 = vsel %vm3236, 1, 0
        %v3813 = vsel %vm3237, 1, 0
        %v3814 = vsel %vm3238, 1, 0
        %v3815 = vsel %vm3239, 1, 0
        %v3816 = vsel %vm3240, 1, 0
        %v3817 = vsel %vm3241, 1, 0
        %v3818 = vsel %vm3242, 1, 0
        %v3819 = vsel %vm3243, 1, 0
        %v3820 = vsel %vm3244, 1, 0
        %v3821 = vsel %vm3245, 1, 0
        %v3822 = vsel %vm3246, 1, 0
        %v3823 = vsel %vm3247, 1, 0
        %v3824 = vsel %vm3248, 1, 0
        %v3825 = vsel %vm3249, 1, 0
        %v3826 = vsel %vm3250, 1, 0
        %v3827 = vsel %vm3251, 1, 0
        %v3828 = vsel %vm3252, 1, 0
        %v3829 = vsel %vm3253, 1, 0
        %v3830 = vsel %vm3254, 1, 0
        %v3831 = vsel %vm3255, 1, 0
        %v3832 = vsel %vm3256, 1, 0
        %v3833 = vsel %vm3257, 1, 0
        %v3834 = vsel %vm3258, 1, 0
        %v3835 = vsel %vm3259, 1, 0
        %v3836 = vsel %vm3260, 1, 0
        %v3837 = vsel %vm3261, 1, 0
        %v3838 = vsel %vm3262, 1, 0
        %v3839 = vsel %vm3263, 1, 0
        %v3840 = vsel %vm3264, 1, 0
        %v3841 = vsel %vm3265, 1, 0
        %v3842 = vsel %vm3266, 1, 0
        %v3843 = vsel %vm3267, 1, 0
        %v3844 = vsel %vm3268, 1, 0
        %v3845 = vsel %vm3269, 1, 0
        %v3846 = vsel %vm3270, 1, 0
        %v3847 = vsel %vm3271, 1, 0
        %v3848 = vsel %vm3272, 1, 0
        %v3849 = vsel %vm3273, 1, 0
        %v3850 = vsel %vm3274, 1, 0
        %v3851 = vsel %vm3275, 1, 0
        %v3852 = vsel %vm3276, 1, 0
        %v3853 = vsel %vm3277, 1, 0
        %v3854 = vsel %vm3278, 1, 0
        %v3855 = vsel %vm3279, 1, 0
        %v3856 = vsel %vm3280, 1, 0
        %v3857 = vsel %vm3281, 1, 0
        %v3858 = vsel %vm3282, 1, 0
        %v3859 = vsel %vm3283, 1, 0
        %v3860 = vsel %vm3284, 1, 0
        %v3861 = vsel %vm3285, 1, 0
        %v3862 = vsel %vm3286, 1, 0
        %v3863 = vsel %vm3287, 1, 0
        %v3864 = vsel %vm3288, 1, 0
        %v3865 = vsel %vm3289, 1, 0
        %v3866 = vsel %vm3290, 1, 0
        %v3867 = vsel %vm3291, 1, 0
        %v3868 = vsel %vm3292, 1, 0
        %v3869 = vsel %vm3293, 1, 0
        %v3870 = vsel %vm3294, 1, 0
        %v3871 = vsel %vm3295, 1, 0
        %v3872 = vsel %vm3296, 1, 0
        %v3873 = vsel %vm3297, 1, 0
        %v3874 = vsel %vm3298, 1, 0
        %v3875 = vsel %vm3299, 1, 0
        %v3876 = vsel %vm3300, 1, 0
        %v3877 = vsel %vm3301, 1, 0
        %v3878 = vsel %vm3302, 1, 0
        %v3879 = vsel %vm3303, 1, 0
        %vm3880 = vcmp.eq.s32.totalorder %v3752, 1
        %vm3881 = vcmp.eq.s32.totalorder %v3753, 1
        %vm3882 = vcmp.eq.s32.totalorder %v3754, 1
        %vm3883 = vcmp.eq.s32.totalorder %v3755, 1
        %vm3884 = vcmp.eq.s32.totalorder %v3756, 1
        %vm3885 = vcmp.eq.s32.totalorder %v3757, 1
        %vm3886 = vcmp.eq.s32.totalorder %v3758, 1
        %vm3887 = vcmp.eq.s32.totalorder %v3759, 1
        %vm3888 = vcmp.eq.s32.totalorder %v3760, 1
        %vm3889 = vcmp.eq.s32.totalorder %v3761, 1
        %vm3890 = vcmp.eq.s32.totalorder %v3762, 1
        %vm3891 = vcmp.eq.s32.totalorder %v3763, 1
        %vm3892 = vcmp.eq.s32.totalorder %v3764, 1
        %vm3893 = vcmp.eq.s32.totalorder %v3765, 1
        %vm3894 = vcmp.eq.s32.totalorder %v3766, 1
        %vm3895 = vcmp.eq.s32.totalorder %v3767, 1
        %vm3896 = vcmp.eq.s32.totalorder %v3768, 1
        %vm3897 = vcmp.eq.s32.totalorder %v3769, 1
        %vm3898 = vcmp.eq.s32.totalorder %v3770, 1
        %vm3899 = vcmp.eq.s32.totalorder %v3771, 1
        %vm3900 = vcmp.eq.s32.totalorder %v3772, 1
        %vm3901 = vcmp.eq.s32.totalorder %v3773, 1
        %vm3902 = vcmp.eq.s32.totalorder %v3774, 1
        %vm3903 = vcmp.eq.s32.totalorder %v3775, 1
        %vm3904 = vcmp.eq.s32.totalorder %v3776, 1
        %vm3905 = vcmp.eq.s32.totalorder %v3777, 1
        %vm3906 = vcmp.eq.s32.totalorder %v3778, 1
        %vm3907 = vcmp.eq.s32.totalorder %v3779, 1
        %vm3908 = vcmp.eq.s32.totalorder %v3780, 1
        %vm3909 = vcmp.eq.s32.totalorder %v3781, 1
        %vm3910 = vcmp.eq.s32.totalorder %v3782, 1
        %vm3911 = vcmp.eq.s32.totalorder %v3783, 1
        %vm3912 = vcmp.eq.s32.totalorder %v3784, 1
        %vm3913 = vcmp.eq.s32.totalorder %v3785, 1
        %vm3914 = vcmp.eq.s32.totalorder %v3786, 1
        %vm3915 = vcmp.eq.s32.totalorder %v3787, 1
        %vm3916 = vcmp.eq.s32.totalorder %v3788, 1
        %vm3917 = vcmp.eq.s32.totalorder %v3789, 1
        %vm3918 = vcmp.eq.s32.totalorder %v3790, 1
        %vm3919 = vcmp.eq.s32.totalorder %v3791, 1
        %vm3920 = vcmp.eq.s32.totalorder %v3792, 1
        %vm3921 = vcmp.eq.s32.totalorder %v3793, 1
        %vm3922 = vcmp.eq.s32.totalorder %v3794, 1
        %vm3923 = vcmp.eq.s32.totalorder %v3795, 1
        %vm3924 = vcmp.eq.s32.totalorder %v3796, 1
        %vm3925 = vcmp.eq.s32.totalorder %v3797, 1
        %vm3926 = vcmp.eq.s32.totalorder %v3798, 1
        %vm3927 = vcmp.eq.s32.totalorder %v3799, 1
        %vm3928 = vcmp.eq.s32.totalorder %v3800, 1
        %vm3929 = vcmp.eq.s32.totalorder %v3801, 1
        %vm3930 = vcmp.eq.s32.totalorder %v3802, 1
        %vm3931 = vcmp.eq.s32.totalorder %v3803, 1
        %vm3932 = vcmp.eq.s32.totalorder %v3804, 1
        %vm3933 = vcmp.eq.s32.totalorder %v3805, 1
        %vm3934 = vcmp.eq.s32.totalorder %v3806, 1
        %vm3935 = vcmp.eq.s32.totalorder %v3807, 1
        %vm3936 = vcmp.eq.s32.totalorder %v3808, 1
        %vm3937 = vcmp.eq.s32.totalorder %v3809, 1
        %vm3938 = vcmp.eq.s32.totalorder %v3810, 1
        %vm3939 = vcmp.eq.s32.totalorder %v3811, 1
        %vm3940 = vcmp.eq.s32.totalorder %v3812, 1
        %vm3941 = vcmp.eq.s32.totalorder %v3813, 1
        %vm3942 = vcmp.eq.s32.totalorder %v3814, 1
        %vm3943 = vcmp.eq.s32.totalorder %v3815, 1
        %vm3944 = vcmp.eq.s32.totalorder %v3816, 1
        %vm3945 = vcmp.eq.s32.totalorder %v3817, 1
        %vm3946 = vcmp.eq.s32.totalorder %v3818, 1
        %vm3947 = vcmp.eq.s32.totalorder %v3819, 1
        %vm3948 = vcmp.eq.s32.totalorder %v3820, 1
        %vm3949 = vcmp.eq.s32.totalorder %v3821, 1
        %vm3950 = vcmp.eq.s32.totalorder %v3822, 1
        %vm3951 = vcmp.eq.s32.totalorder %v3823, 1
        %vm3952 = vcmp.eq.s32.totalorder %v3824, 1
        %vm3953 = vcmp.eq.s32.totalorder %v3825, 1
        %vm3954 = vcmp.eq.s32.totalorder %v3826, 1
        %vm3955 = vcmp.eq.s32.totalorder %v3827, 1
        %vm3956 = vcmp.eq.s32.totalorder %v3828, 1
        %vm3957 = vcmp.eq.s32.totalorder %v3829, 1
        %vm3958 = vcmp.eq.s32.totalorder %v3830, 1
        %vm3959 = vcmp.eq.s32.totalorder %v3831, 1
        %vm3960 = vcmp.eq.s32.totalorder %v3832, 1
        %vm3961 = vcmp.eq.s32.totalorder %v3833, 1
        %vm3962 = vcmp.eq.s32.totalorder %v3834, 1
        %vm3963 = vcmp.eq.s32.totalorder %v3835, 1
        %vm3964 = vcmp.eq.s32.totalorder %v3836, 1
        %vm3965 = vcmp.eq.s32.totalorder %v3837, 1
        %vm3966 = vcmp.eq.s32.totalorder %v3838, 1
        %vm3967 = vcmp.eq.s32.totalorder %v3839, 1
        %vm3968 = vcmp.eq.s32.totalorder %v3840, 1
        %vm3969 = vcmp.eq.s32.totalorder %v3841, 1
        %vm3970 = vcmp.eq.s32.totalorder %v3842, 1
        %vm3971 = vcmp.eq.s32.totalorder %v3843, 1
        %vm3972 = vcmp.eq.s32.totalorder %v3844, 1
        %vm3973 = vcmp.eq.s32.totalorder %v3845, 1
        %vm3974 = vcmp.eq.s32.totalorder %v3846, 1
        %vm3975 = vcmp.eq.s32.totalorder %v3847, 1
        %vm3976 = vcmp.eq.s32.totalorder %v3848, 1
        %vm3977 = vcmp.eq.s32.totalorder %v3849, 1
        %vm3978 = vcmp.eq.s32.totalorder %v3850, 1
        %vm3979 = vcmp.eq.s32.totalorder %v3851, 1
        %vm3980 = vcmp.eq.s32.totalorder %v3852, 1
        %vm3981 = vcmp.eq.s32.totalorder %v3853, 1
        %vm3982 = vcmp.eq.s32.totalorder %v3854, 1
        %vm3983 = vcmp.eq.s32.totalorder %v3855, 1
        %vm3984 = vcmp.eq.s32.totalorder %v3856, 1
        %vm3985 = vcmp.eq.s32.totalorder %v3857, 1
        %vm3986 = vcmp.eq.s32.totalorder %v3858, 1
        %vm3987 = vcmp.eq.s32.totalorder %v3859, 1
        %vm3988 = vcmp.eq.s32.totalorder %v3860, 1
        %vm3989 = vcmp.eq.s32.totalorder %v3861, 1
        %vm3990 = vcmp.eq.s32.totalorder %v3862, 1
        %vm3991 = vcmp.eq.s32.totalorder %v3863, 1
        %vm3992 = vcmp.eq.s32.totalorder %v3864, 1
        %vm3993 = vcmp.eq.s32.totalorder %v3865, 1
        %vm3994 = vcmp.eq.s32.totalorder %v3866, 1
        %vm3995 = vcmp.eq.s32.totalorder %v3867, 1
        %vm3996 = vcmp.eq.s32.totalorder %v3868, 1
        %vm3997 = vcmp.eq.s32.totalorder %v3869, 1
        %vm3998 = vcmp.eq.s32.totalorder %v3870, 1
        %vm3999 = vcmp.eq.s32.totalorder %v3871, 1
        %vm4000 = vcmp.eq.s32.totalorder %v3872, 1
        %vm4001 = vcmp.eq.s32.totalorder %v3873, 1
        %vm4002 = vcmp.eq.s32.totalorder %v3874, 1
        %vm4003 = vcmp.eq.s32.totalorder %v3875, 1
        %vm4004 = vcmp.eq.s32.totalorder %v3876, 1
        %vm4005 = vcmp.eq.s32.totalorder %v3877, 1
        %vm4006 = vcmp.eq.s32.totalorder %v3878, 1
        %vm4007 = vcmp.eq.s32.totalorder %v3879, 1
        %v4008 = vsel %vm3880, 0.0, %v2286
        %v4009 = vsel %vm3881, 0.0, %v2291
        %v4010 = vsel %vm3882, 0.0, %v2296
        %v4011 = vsel %vm3883, 0.0, %v2301
        %v4012 = vsel %vm3884, 0.0, %v2306
        %v4013 = vsel %vm3885, 0.0, %v2311
        %v4014 = vsel %vm3886, 0.0, %v2316
        %v4015 = vsel %vm3887, 0.0, %v2321
        %v4016 = vsel %vm3888, 0.0, %v2326
        %v4017 = vsel %vm3889, 0.0, %v2331
        %v4018 = vsel %vm3890, 0.0, %v2336
        %v4019 = vsel %vm3891, 0.0, %v2341
        %v4020 = vsel %vm3892, 0.0, %v2346
        %v4021 = vsel %vm3893, 0.0, %v2351
        %v4022 = vsel %vm3894, 0.0, %v2356
        %v4023 = vsel %vm3895, 0.0, %v2361
        %v4024 = vsel %vm3896, 0.0, %v2366
        %v4025 = vsel %vm3897, 0.0, %v2371
        %v4026 = vsel %vm3898, 0.0, %v2376
        %v4027 = vsel %vm3899, 0.0, %v2381
        %v4028 = vsel %vm3900, 0.0, %v2386
        %v4029 = vsel %vm3901, 0.0, %v2391
        %v4030 = vsel %vm3902, 0.0, %v2396
        %v4031 = vsel %vm3903, 0.0, %v2401
        %v4032 = vsel %vm3904, 0.0, %v2406
        %v4033 = vsel %vm3905, 0.0, %v2411
        %v4034 = vsel %vm3906, 0.0, %v2416
        %v4035 = vsel %vm3907, 0.0, %v2421
        %v4036 = vsel %vm3908, 0.0, %v2426
        %v4037 = vsel %vm3909, 0.0, %v2431
        %v4038 = vsel %vm3910, 0.0, %v2436
        %v4039 = vsel %vm3911, 0.0, %v2441
        %v4040 = vsel %vm3912, 0.0, %v2446
        %v4041 = vsel %vm3913, 0.0, %v2451
        %v4042 = vsel %vm3914, 0.0, %v2456
        %v4043 = vsel %vm3915, 0.0, %v2461
        %v4044 = vsel %vm3916, 0.0, %v2466
        %v4045 = vsel %vm3917, 0.0, %v2471
        %v4046 = vsel %vm3918, 0.0, %v2476
        %v4047 = vsel %vm3919, 0.0, %v2481
        %v4048 = vsel %vm3920, 0.0, %v2486
        %v4049 = vsel %vm3921, 0.0, %v2491
        %v4050 = vsel %vm3922, 0.0, %v2496
        %v4051 = vsel %vm3923, 0.0, %v2501
        %v4052 = vsel %vm3924, 0.0, %v2506
        %v4053 = vsel %vm3925, 0.0, %v2511
        %v4054 = vsel %vm3926, 0.0, %v2516
        %v4055 = vsel %vm3927, 0.0, %v2521
        %v4056 = vsel %vm3928, 0.0, %v2526
        %v4057 = vsel %vm3929, 0.0, %v2531
        %v4058 = vsel %vm3930, 0.0, %v2536
        %v4059 = vsel %vm3931, 0.0, %v2541
        %v4060 = vsel %vm3932, 0.0, %v2546
        %v4061 = vsel %vm3933, 0.0, %v2551
        %v4062 = vsel %vm3934, 0.0, %v2556
        %v4063 = vsel %vm3935, 0.0, %v2561
        %v4064 = vsel %vm3936, 0.0, %v2566
        %v4065 = vsel %vm3937, 0.0, %v2571
        %v4066 = vsel %vm3938, 0.0, %v2576
        %v4067 = vsel %vm3939, 0.0, %v2581
        %v4068 = vsel %vm3940, 0.0, %v2586
        %v4069 = vsel %vm3941, 0.0, %v2591
        %v4070 = vsel %vm3942, 0.0, %v2596
        %v4071 = vsel %vm3943, 0.0, %v2601
        %v4072 = vsel %vm3944, 0.0, %v2606
        %v4073 = vsel %vm3945, 0.0, %v2611
        %v4074 = vsel %vm3946, 0.0, %v2616
        %v4075 = vsel %vm3947, 0.0, %v2621
        %v4076 = vsel %vm3948, 0.0, %v2626
        %v4077 = vsel %vm3949, 0.0, %v2631
        %v4078 = vsel %vm3950, 0.0, %v2636
        %v4079 = vsel %vm3951, 0.0, %v2641
        %v4080 = vsel %vm3952, 0.0, %v2646
        %v4081 = vsel %vm3953, 0.0, %v2651
        %v4082 = vsel %vm3954, 0.0, %v2656
        %v4083 = vsel %vm3955, 0.0, %v2661
        %v4084 = vsel %vm3956, 0.0, %v2666
        %v4085 = vsel %vm3957, 0.0, %v2671
        %v4086 = vsel %vm3958, 0.0, %v2676
        %v4087 = vsel %vm3959, 0.0, %v2681
        %v4088 = vsel %vm3960, 0.0, %v2686
        %v4089 = vsel %vm3961, 0.0, %v2691
        %v4090 = vsel %vm3962, 0.0, %v2696
        %v4091 = vsel %vm3963, 0.0, %v2701
        %v4092 = vsel %vm3964, 0.0, %v2706
        %v4093 = vsel %vm3965, 0.0, %v2711
        %v4094 = vsel %vm3966, 0.0, %v2716
        %v4095 = vsel %vm3967, 0.0, %v2721
        %v4096 = vsel %vm3968, 0.0, %v2726
        %v4097 = vsel %vm3969, 0.0, %v2731
        %v4098 = vsel %vm3970, 0.0, %v2736
        %v4099 = vsel %vm3971, 0.0, %v2741
        %v4100 = vsel %vm3972, 0.0, %v2746
        %v4101 = vsel %vm3973, 0.0, %v2751
        %v4102 = vsel %vm3974, 0.0, %v2756
        %v4103 = vsel %vm3975, 0.0, %v2761
        %v4104 = vsel %vm3976, 0.0, %v2766
        %v4105 = vsel %vm3977, 0.0, %v2771
        %v4106 = vsel %vm3978, 0.0, %v2776
        %v4107 = vsel %vm3979, 0.0, %v2781
        %v4108 = vsel %vm3980, 0.0, %v2786
        %v4109 = vsel %vm3981, 0.0, %v2791
        %v4110 = vsel %vm3982, 0.0, %v2796
        %v4111 = vsel %vm3983, 0.0, %v2801
        %v4112 = vsel %vm3984, 0.0, %v2806
        %v4113 = vsel %vm3985, 0.0, %v2811
        %v4114 = vsel %vm3986, 0.0, %v2816
        %v4115 = vsel %vm3987, 0.0, %v2821
        %v4116 = vsel %vm3988, 0.0, %v2826
        %v4117 = vsel %vm3989, 0.0, %v2831
        %v4118 = vsel %vm3990, 0.0, %v2836
        %v4119 = vsel %vm3991, 0.0, %v2841
        %v4120 = vsel %vm3992, 0.0, %v2846
        %v4121 = vsel %vm3993, 0.0, %v2851
        %v4122 = vsel %vm3994, 0.0, %v2856
        %v4123 = vsel %vm3995, 0.0, %v2861
        %v4124 = vsel %vm3996, 0.0, %v2866
        %v4125 = vsel %vm3997, 0.0, %v2871
        %v4126 = vsel %vm3998, 0.0, %v2876
        %v4127 = vsel %vm3999, 0.0, %v2881
        %v4128 = vsel %vm4000, 0.0, %v2886
        %v4129 = vsel %vm4001, 0.0, %v2891
        %v4130 = vsel %vm4002, 0.0, %v2896
        %v4131 = vsel %vm4003, 0.0, %v2901
        %v4132 = vsel %vm4004, 0.0, %v2906
        %v4133 = vsel %vm4005, 0.0, %v2911
        %v4134 = vsel %vm4006, 0.0, %v2916
        %v4135 = vsel %vm4007, 0.0, %v2281
        %v4137 = vsel %vm1496, %v2207, 0
        %4139 = vmatprep.subr.mxu0 0.0
        %4140 = vmatpush1.msra.mxu0 %v2206
        %4141 = vmatprep.subr.mxu0 0.0
        %4142 = vmatpush1.msra.mxu0 %v4137
        %4143 = vmatprep.subr.mxu0 0.0
        %4144 = vmatpush1.msra.mxu0 0.0
        %4145 = vmatprep.subr.mxu0 0.0
        %4146 = vmatpush1.msra.mxu0 0.0
        %4147 = vmatprep.subr.mxu0 0.0
        %4148 = vmatpush1.msra.mxu0 0.0
        %4149 = vmatprep.subr.mxu0 0.0
        %4150 = vmatpush1.msra.mxu0 0.0
        %4151 = vmatprep.subr.mxu0 0.0
        %4152 = vmatpush1.msra.mxu0 0.0
        %4153 = vmatprep.subr.mxu0 0.0
        %4154 = vmatpush1.msra.mxu0 0.0
        %4155 = vmatprep.subr.mxu0 0.0
        %4156 = vmatpush1.msra.mxu0 0.0
        %4157 = vmatprep.subr.mxu0 0.0
        %4158 = vmatpush1.msra.mxu0 0.0
        %4159 = vmatprep.subr.mxu0 0.0
        %4160 = vmatpush1.msra.mxu0 0.0
        %4161 = vmatprep.subr.mxu0 0.0
        %4162 = vmatpush1.msra.mxu0 0.0
        %4163 = vmatprep.subr.mxu0 0.0
        %4164 = vmatpush1.msra.mxu0 0.0
        %4165 = vmatprep.subr.mxu0 0.0
        %4166 = vmatpush1.msra.mxu0 0.0
        %4167 = vmatprep.subr.mxu0 0.0
        %4168 = vmatpush1.msra.mxu0 0.0
        %4169 = vmatprep.subr.mxu0 0.0
        %4170 = vmatpush1.msra.mxu0 0.0
        %4171 = vmatprep.subr.mxu0 0.0
        %4172 = vmatpush1.msra.mxu0 0.0
        %4173 = vmatprep.subr.mxu0 0.0
        %4174 = vmatpush1.msra.mxu0 0.0
        %4175 = vmatprep.subr.mxu0 0.0
        %4176 = vmatpush1.msra.mxu0 0.0
        %4177 = vmatprep.subr.mxu0 0.0
        %4178 = vmatpush1.msra.mxu0 0.0
        %4179 = vmatprep.subr.mxu0 0.0
        %4180 = vmatpush1.msra.mxu0 0.0
        %4181 = vmatprep.subr.mxu0 0.0
        %4182 = vmatpush1.msra.mxu0 0.0
        %4183 = vmatprep.subr.mxu0 0.0
        %4184 = vmatpush1.msra.mxu0 0.0
        %4185 = vmatprep.subr.mxu0 0.0
        %4186 = vmatpush1.msra.mxu0 0.0
        %4187 = vmatprep.subr.mxu0 0.0
        %4188 = vmatpush1.msra.mxu0 0.0
        %4189 = vmatprep.subr.mxu0 0.0
        %4190 = vmatpush1.msra.mxu0 0.0
        %4191 = vmatprep.subr.mxu0 0.0
        %4192 = vmatpush1.msra.mxu0 0.0
        %4193 = vmatprep.subr.mxu0 0.0
        %4194 = vmatpush1.msra.mxu0 0.0
        %4195 = vmatprep.subr.mxu0 0.0
        %4196 = vmatpush1.msra.mxu0 0.0
        %4197 = vmatprep.subr.mxu0 0.0
        %4198 = vmatpush1.msra.mxu0 0.0
        %4199 = vmatprep.subr.mxu0 0.0
        %4200 = vmatpush1.msra.mxu0 0.0
        %4201 = vmatprep.subr.mxu0 0.0
        %4202 = vmatpush1.msra.mxu0 0.0
        %4203 = vmatprep.mubr.f32.mxu0 0.0
        %4204 = vmatmul.mubr.f32.gmra.mrb[0].mxu0 %v1113
        %v4205 = vpop.f32.mrb[0].mxu0
        %v4206 = vadd.f32 %v3624, %v4205
        %v4207 = vpop.f32.mrb[0].mxu0
        %4208 = vmatprep.mubr.f32.mxu0 0.0
        %4209 = vmatmul.mubr.f32.gmra.mrb[0].mxu0 %v1116
        %v4210 = vpop.f32.mrb[0].mxu0
        %v4211 = vadd.f32 %v3625, %v4210
        %v4212 = vpop.f32.mrb[0].mxu0
        %4213 = vmatprep.mubr.f32.mxu0 0.0
        %4214 = vmatmul.mubr.f32.gmra.mrb[0].mxu0 %v1119
        %v4215 = vpop.f32.mrb[0].mxu0
        %v4216 = vadd.f32 %v3626, %v4215
        %v4217 = vpop.f32.mrb[0].mxu0
        %4218 = vmatprep.mubr.f32.mxu0 0.0
        %4219 = vmatmul.mubr.f32.gmra.mrb[0].mxu0 %v1122
        %v4220 = vpop.f32.mrb[0].mxu0
        %v4221 = vadd.f32 %v3627, %v4220
        %v4222 = vpop.f32.mrb[0].mxu0
        %4223 = vmatprep.mubr.f32.mxu0 0.0
        %4224 = vmatmul.mubr.f32.gmra.mrb[0].mxu0 %v1125
        %v4225 = vpop.f32.mrb[0].mxu0
        %v4226 = vadd.f32 %v3628, %v4225
        %v4227 = vpop.f32.mrb[0].mxu0
        %4228 = vmatprep.mubr.f32.mxu0 0.0
        %4229 = vmatmul.mubr.f32.gmra.mrb[0].mxu0 %v1128
        %v4230 = vpop.f32.mrb[0].mxu0
        %v4231 = vadd.f32 %v3629, %v4230
        %v4232 = vpop.f32.mrb[0].mxu0
        %4233 = vmatprep.mubr.f32.mxu0 0.0
        %4234 = vmatmul.mubr.f32.gmra.mrb[0].mxu0 %v1131
        %v4235 = vpop.f32.mrb[0].mxu0
        %v4236 = vadd.f32 %v3630, %v4235
        %v4237 = vpop.f32.mrb[0].mxu0
        %4238 = vmatprep.mubr.f32.mxu0 0.0
        %4239 = vmatmul.mubr.f32.gmra.mrb[0].mxu0 %v1134
        %v4240 = vpop.f32.mrb[0].mxu0
        %v4241 = vadd.f32 %v3631, %v4240
        %v4242 = vpop.f32.mrb[0].mxu0
        %4243 = vmatprep.mubr.f32.mxu0 0.0
        %4244 = vmatmul.mubr.f32.gmra.mrb[0].mxu0 %v1137
        %v4245 = vpop.f32.mrb[0].mxu0
        %v4246 = vadd.f32 %v3632, %v4245
        %v4247 = vpop.f32.mrb[0].mxu0
        %4248 = vmatprep.mubr.f32.mxu0 0.0
        %4249 = vmatmul.mubr.f32.gmra.mrb[0].mxu0 %v1140
        %v4250 = vpop.f32.mrb[0].mxu0
        %v4251 = vadd.f32 %v3633, %v4250
        %v4252 = vpop.f32.mrb[0].mxu0
        %4253 = vmatprep.mubr.f32.mxu0 0.0
        %4254 = vmatmul.mubr.f32.gmra.mrb[0].mxu0 %v1143
        %v4255 = vpop.f32.mrb[0].mxu0
        %v4256 = vadd.f32 %v3634, %v4255
        %v4257 = vpop.f32.mrb[0].mxu0
        %4258 = vmatprep.mubr.f32.mxu0 0.0
        %4259 = vmatmul.mubr.f32.gmra.mrb[0].mxu0 %v1146
        %v4260 = vpop.f32.mrb[0].mxu0
        %v4261 = vadd.f32 %v3635, %v4260
        %v4262 = vpop.f32.mrb[0].mxu0
        %4263 = vmatprep.mubr.f32.mxu0 0.0
        %4264 = vmatmul.mubr.f32.gmra.mrb[0].mxu0 %v1149
        %v4265 = vpop.f32.mrb[0].mxu0
        %v4266 = vadd.f32 %v3636, %v4265
        %v4267 = vpop.f32.mrb[0].mxu0
        %4268 = vmatprep.mubr.f32.mxu0 0.0
        %4269 = vmatmul.mubr.f32.gmra.mrb[0].mxu0 %v1152
        %v4270 = vpop.f32.mrb[0].mxu0
        %v4271 = vadd.f32 %v3637, %v4270
        %v4272 = vpop.f32.mrb[0].mxu0
        %4273 = vmatprep.mubr.f32.mxu0 0.0
        %4274 = vmatmul.mubr.f32.gmra.mrb[0].mxu0 %v1155
        %v4275 = vpop.f32.mrb[0].mxu0
        %v4276 = vadd.f32 %v3638, %v4275
        %v4277 = vpop.f32.mrb[0].mxu0
        %4278 = vmatprep.mubr.f32.mxu0 0.0
        %4279 = vmatmul.mubr.f32.gmra.mrb[0].mxu0 %v1158
        %v4280 = vpop.f32.mrb[0].mxu0
        %v4281 = vadd.f32 %v3639, %v4280
        %v4282 = vpop.f32.mrb[0].mxu0
        %4283 = vmatprep.mubr.f32.mxu0 0.0
        %4284 = vmatmul.mubr.f32.gmra.mrb[0].mxu0 %v1161
        %v4285 = vpop.f32.mrb[0].mxu0
        %v4286 = vadd.f32 %v3640, %v4285
        %v4287 = vpop.f32.mrb[0].mxu0
        %4288 = vmatprep.mubr.f32.mxu0 0.0
        %4289 = vmatmul.mubr.f32.gmra.mrb[0].mxu0 %v1164
        %v4290 = vpop.f32.mrb[0].mxu0
        %v4291 = vadd.f32 %v3641, %v4290
        %v4292 = vpop.f32.mrb[0].mxu0
        %4293 = vmatprep.mubr.f32.mxu0 0.0
        %4294 = vmatmul.mubr.f32.gmra.mrb[0].mxu0 %v1167
        %v4295 = vpop.f32.mrb[0].mxu0
        %v4296 = vadd.f32 %v3642, %v4295
        %v4297 = vpop.f32.mrb[0].mxu0
        %4298 = vmatprep.mubr.f32.mxu0 0.0
        %4299 = vmatmul.mubr.f32.gmra.mrb[0].mxu0 %v1170
        %v4300 = vpop.f32.mrb[0].mxu0
        %v4301 = vadd.f32 %v3643, %v4300
        %v4302 = vpop.f32.mrb[0].mxu0
        %4303 = vmatprep.mubr.f32.mxu0 0.0
        %4304 = vmatmul.mubr.f32.gmra.mrb[0].mxu0 %v1173
        %v4305 = vpop.f32.mrb[0].mxu0
        %v4306 = vadd.f32 %v3644, %v4305
        %v4307 = vpop.f32.mrb[0].mxu0
        %4308 = vmatprep.mubr.f32.mxu0 0.0
        %4309 = vmatmul.mubr.f32.gmra.mrb[0].mxu0 %v1176
        %v4310 = vpop.f32.mrb[0].mxu0
        %v4311 = vadd.f32 %v3645, %v4310
        %v4312 = vpop.f32.mrb[0].mxu0
        %4313 = vmatprep.mubr.f32.mxu0 0.0
        %4314 = vmatmul.mubr.f32.gmra.mrb[0].mxu0 %v1179
        %v4315 = vpop.f32.mrb[0].mxu0
        %v4316 = vadd.f32 %v3646, %v4315
        %v4317 = vpop.f32.mrb[0].mxu0
        %4318 = vmatprep.mubr.f32.mxu0 0.0
        %4319 = vmatmul.mubr.f32.gmra.mrb[0].mxu0 %v1182
        %v4320 = vpop.f32.mrb[0].mxu0
        %v4321 = vadd.f32 %v3647, %v4320
        %v4322 = vpop.f32.mrb[0].mxu0
        %4323 = vmatprep.mubr.f32.mxu0 0.0
        %4324 = vmatmul.mubr.f32.gmra.mrb[0].mxu0 %v1185
        %v4325 = vpop.f32.mrb[0].mxu0
        %v4326 = vadd.f32 %v3648, %v4325
        %v4327 = vpop.f32.mrb[0].mxu0
        %4328 = vmatprep.mubr.f32.mxu0 0.0
        %4329 = vmatmul.mubr.f32.gmra.mrb[0].mxu0 %v1188
        %v4330 = vpop.f32.mrb[0].mxu0
        %v4331 = vadd.f32 %v3649, %v4330
        %v4332 = vpop.f32.mrb[0].mxu0
        %4333 = vmatprep.mubr.f32.mxu0 0.0
        %4334 = vmatmul.mubr.f32.gmra.mrb[0].mxu0 %v1191
        %v4335 = vpop.f32.mrb[0].mxu0
        %v4336 = vadd.f32 %v3650, %v4335
        %v4337 = vpop.f32.mrb[0].mxu0
        %4338 = vmatprep.mubr.f32.mxu0 0.0
        %4339 = vmatmul.mubr.f32.gmra.mrb[0].mxu0 %v1194
        %v4340 = vpop.f32.mrb[0].mxu0
        %v4341 = vadd.f32 %v3651, %v4340
        %v4342 = vpop.f32.mrb[0].mxu0
        %4343 = vmatprep.mubr.f32.mxu0 0.0
        %4344 = vmatmul.mubr.f32.gmra.mrb[0].mxu0 %v1197
        %v4345 = vpop.f32.mrb[0].mxu0
        %v4346 = vadd.f32 %v3652, %v4345
        %v4347 = vpop.f32.mrb[0].mxu0
        %4348 = vmatprep.mubr.f32.mxu0 0.0
        %4349 = vmatmul.mubr.f32.gmra.mrb[0].mxu0 %v1200
        %v4350 = vpop.f32.mrb[0].mxu0
        %v4351 = vadd.f32 %v3653, %v4350
        %v4352 = vpop.f32.mrb[0].mxu0
        %4353 = vmatprep.mubr.f32.mxu0 0.0
        %4354 = vmatmul.mubr.f32.gmra.mrb[0].mxu0 %v1203
        %v4355 = vpop.f32.mrb[0].mxu0
        %v4356 = vadd.f32 %v3654, %v4355
        %v4357 = vpop.f32.mrb[0].mxu0
        %4358 = vmatprep.mubr.f32.mxu0 0.0
        %4359 = vmatmul.mubr.f32.gmra.mrb[0].mxu0 %v1206
        %v4360 = vpop.f32.mrb[0].mxu0
        %v4361 = vadd.f32 %v3655, %v4360
        %v4362 = vpop.f32.mrb[0].mxu0
        %4363 = vmatprep.mubr.f32.mxu0 0.0
        %4364 = vmatmul.mubr.f32.gmra.mrb[0].mxu0 %v1209
        %v4365 = vpop.f32.mrb[0].mxu0
        %v4366 = vadd.f32 %v3656, %v4365
        %v4367 = vpop.f32.mrb[0].mxu0
        %4368 = vmatprep.mubr.f32.mxu0 0.0
        %4369 = vmatmul.mubr.f32.gmra.mrb[0].mxu0 %v1212
        %v4370 = vpop.f32.mrb[0].mxu0
        %v4371 = vadd.f32 %v3657, %v4370
        %v4372 = vpop.f32.mrb[0].mxu0
        %4373 = vmatprep.mubr.f32.mxu0 0.0
        %4374 = vmatmul.mubr.f32.gmra.mrb[0].mxu0 %v1215
        %v4375 = vpop.f32.mrb[0].mxu0
        %v4376 = vadd.f32 %v3658, %v4375
        %v4377 = vpop.f32.mrb[0].mxu0
        %4378 = vmatprep.mubr.f32.mxu0 0.0
        %4379 = vmatmul.mubr.f32.gmra.mrb[0].mxu0 %v1218
        %v4380 = vpop.f32.mrb[0].mxu0
        %v4381 = vadd.f32 %v3659, %v4380
        %v4382 = vpop.f32.mrb[0].mxu0
        %4383 = vmatprep.mubr.f32.mxu0 0.0
        %4384 = vmatmul.mubr.f32.gmra.mrb[0].mxu0 %v1221
        %v4385 = vpop.f32.mrb[0].mxu0
        %v4386 = vadd.f32 %v3660, %v4385
        %v4387 = vpop.f32.mrb[0].mxu0
        %4388 = vmatprep.mubr.f32.mxu0 0.0
        %4389 = vmatmul.mubr.f32.gmra.mrb[0].mxu0 %v1224
        %v4390 = vpop.f32.mrb[0].mxu0
        %v4391 = vadd.f32 %v3661, %v4390
        %v4392 = vpop.f32.mrb[0].mxu0
        %4393 = vmatprep.mubr.f32.mxu0 0.0
        %4394 = vmatmul.mubr.f32.gmra.mrb[0].mxu0 %v1227
        %v4395 = vpop.f32.mrb[0].mxu0
        %v4396 = vadd.f32 %v3662, %v4395
        %v4397 = vpop.f32.mrb[0].mxu0
        %4398 = vmatprep.mubr.f32.mxu0 0.0
        %4399 = vmatmul.mubr.f32.gmra.mrb[0].mxu0 %v1230
        %v4400 = vpop.f32.mrb[0].mxu0
        %v4401 = vadd.f32 %v3663, %v4400
        %v4402 = vpop.f32.mrb[0].mxu0
        %4403 = vmatprep.mubr.f32.mxu0 0.0
        %4404 = vmatmul.mubr.f32.gmra.mrb[0].mxu0 %v1233
        %v4405 = vpop.f32.mrb[0].mxu0
        %v4406 = vadd.f32 %v3664, %v4405
        %v4407 = vpop.f32.mrb[0].mxu0
        %4408 = vmatprep.mubr.f32.mxu0 0.0
        %4409 = vmatmul.mubr.f32.gmra.mrb[0].mxu0 %v1236
        %v4410 = vpop.f32.mrb[0].mxu0
        %v4411 = vadd.f32 %v3665, %v4410
        %v4412 = vpop.f32.mrb[0].mxu0
        %4413 = vmatprep.mubr.f32.mxu0 0.0
        %4414 = vmatmul.mubr.f32.gmra.mrb[0].mxu0 %v1239
        %v4415 = vpop.f32.mrb[0].mxu0
        %v4416 = vadd.f32 %v3666, %v4415
        %v4417 = vpop.f32.mrb[0].mxu0
        %4418 = vmatprep.mubr.f32.mxu0 0.0
        %4419 = vmatmul.mubr.f32.gmra.mrb[0].mxu0 %v1242
        %v4420 = vpop.f32.mrb[0].mxu0
        %v4421 = vadd.f32 %v3667, %v4420
        %v4422 = vpop.f32.mrb[0].mxu0
        %4423 = vmatprep.mubr.f32.mxu0 0.0
        %4424 = vmatmul.mubr.f32.gmra.mrb[0].mxu0 %v1245
        %v4425 = vpop.f32.mrb[0].mxu0
        %v4426 = vadd.f32 %v3668, %v4425
        %v4427 = vpop.f32.mrb[0].mxu0
        %4428 = vmatprep.mubr.f32.mxu0 0.0
        %4429 = vmatmul.mubr.f32.gmra.mrb[0].mxu0 %v1248
        %v4430 = vpop.f32.mrb[0].mxu0
        %v4431 = vadd.f32 %v3669, %v4430
        %v4432 = vpop.f32.mrb[0].mxu0
        %4433 = vmatprep.mubr.f32.mxu0 0.0
        %4434 = vmatmul.mubr.f32.gmra.mrb[0].mxu0 %v1251
        %v4435 = vpop.f32.mrb[0].mxu0
        %v4436 = vadd.f32 %v3670, %v4435
        %v4437 = vpop.f32.mrb[0].mxu0
        %4438 = vmatprep.mubr.f32.mxu0 0.0
        %4439 = vmatmul.mubr.f32.gmra.mrb[0].mxu0 %v1254
        %v4440 = vpop.f32.mrb[0].mxu0
        %v4441 = vadd.f32 %v3671, %v4440
        %v4442 = vpop.f32.mrb[0].mxu0
        %4443 = vmatprep.mubr.f32.mxu0 0.0
        %4444 = vmatmul.mubr.f32.gmra.mrb[0].mxu0 %v1257
        %v4445 = vpop.f32.mrb[0].mxu0
        %v4446 = vadd.f32 %v3672, %v4445
        %v4447 = vpop.f32.mrb[0].mxu0
        %4448 = vmatprep.mubr.f32.mxu0 0.0
        %4449 = vmatmul.mubr.f32.gmra.mrb[0].mxu0 %v1260
        %v4450 = vpop.f32.mrb[0].mxu0
        %v4451 = vadd.f32 %v3673, %v4450
        %v4452 = vpop.f32.mrb[0].mxu0
        %4453 = vmatprep.mubr.f32.mxu0 0.0
        %4454 = vmatmul.mubr.f32.gmra.mrb[0].mxu0 %v1263
        %v4455 = vpop.f32.mrb[0].mxu0
        %v4456 = vadd.f32 %v3674, %v4455
        %v4457 = vpop.f32.mrb[0].mxu0
        %4458 = vmatprep.mubr.f32.mxu0 0.0
        %4459 = vmatmul.mubr.f32.gmra.mrb[0].mxu0 %v1266
        %v4460 = vpop.f32.mrb[0].mxu0
        %v4461 = vadd.f32 %v3675, %v4460
        %v4462 = vpop.f32.mrb[0].mxu0
        %4463 = vmatprep.mubr.f32.mxu0 0.0
        %4464 = vmatmul.mubr.f32.gmra.mrb[0].mxu0 %v1269
        %v4465 = vpop.f32.mrb[0].mxu0
        %v4466 = vadd.f32 %v3676, %v4465
        %v4467 = vpop.f32.mrb[0].mxu0
        %4468 = vmatprep.mubr.f32.mxu0 0.0
        %4469 = vmatmul.mubr.f32.gmra.mrb[0].mxu0 %v1272
        %v4470 = vpop.f32.mrb[0].mxu0
        %v4471 = vadd.f32 %v3677, %v4470
        %v4472 = vpop.f32.mrb[0].mxu0
        %4473 = vmatprep.mubr.f32.mxu0 0.0
        %4474 = vmatmul.mubr.f32.gmra.mrb[0].mxu0 %v1275
        %v4475 = vpop.f32.mrb[0].mxu0
        %v4476 = vadd.f32 %v3678, %v4475
        %v4477 = vpop.f32.mrb[0].mxu0
        %4478 = vmatprep.mubr.f32.mxu0 0.0
        %4479 = vmatmul.mubr.f32.gmra.mrb[0].mxu0 %v1278
        %v4480 = vpop.f32.mrb[0].mxu0
        %v4481 = vadd.f32 %v3679, %v4480
        %v4482 = vpop.f32.mrb[0].mxu0
        %4483 = vmatprep.mubr.f32.mxu0 0.0
        %4484 = vmatmul.mubr.f32.gmra.mrb[0].mxu0 %v1281
        %v4485 = vpop.f32.mrb[0].mxu0
        %v4486 = vadd.f32 %v3680, %v4485
        %v4487 = vpop.f32.mrb[0].mxu0
        %4488 = vmatprep.mubr.f32.mxu0 0.0
        %4489 = vmatmul.mubr.f32.gmra.mrb[0].mxu0 %v1284
        %v4490 = vpop.f32.mrb[0].mxu0
        %v4491 = vadd.f32 %v3681, %v4490
        %v4492 = vpop.f32.mrb[0].mxu0
        %4493 = vmatprep.mubr.f32.mxu0 0.0
        %4494 = vmatmul.mubr.f32.gmra.mrb[0].mxu0 %v1287
        %v4495 = vpop.f32.mrb[0].mxu0
        %v4496 = vadd.f32 %v3682, %v4495
        %v4497 = vpop.f32.mrb[0].mxu0
        %4498 = vmatprep.mubr.f32.mxu0 0.0
        %4499 = vmatmul.mubr.f32.gmra.mrb[0].mxu0 %v1290
        %v4500 = vpop.f32.mrb[0].mxu0
        %v4501 = vadd.f32 %v3683, %v4500
        %v4502 = vpop.f32.mrb[0].mxu0
        %4503 = vmatprep.mubr.f32.mxu0 0.0
        %4504 = vmatmul.mubr.f32.gmra.mrb[0].mxu0 %v1293
        %v4505 = vpop.f32.mrb[0].mxu0
        %v4506 = vadd.f32 %v3684, %v4505
        %v4507 = vpop.f32.mrb[0].mxu0
        %4508 = vmatprep.mubr.f32.mxu0 0.0
        %4509 = vmatmul.mubr.f32.gmra.mrb[0].mxu0 %v1296
        %v4510 = vpop.f32.mrb[0].mxu0
        %v4511 = vadd.f32 %v3685, %v4510
        %v4512 = vpop.f32.mrb[0].mxu0
        %4513 = vmatprep.mubr.f32.mxu0 0.0
        %4514 = vmatmul.mubr.f32.gmra.mrb[0].mxu0 %v1299
        %v4515 = vpop.f32.mrb[0].mxu0
        %v4516 = vadd.f32 %v3686, %v4515
        %v4517 = vpop.f32.mrb[0].mxu0
        %4518 = vmatprep.mubr.f32.mxu0 0.0
        %4519 = vmatmul.mubr.f32.gmra.mrb[0].mxu0 %v1302
        %v4520 = vpop.f32.mrb[0].mxu0
        %v4521 = vadd.f32 %v3687, %v4520
        %v4522 = vpop.f32.mrb[0].mxu0
        %4523 = vmatprep.mubr.f32.mxu0 0.0
        %4524 = vmatmul.mubr.f32.gmra.mrb[0].mxu0 %v1305
        %v4525 = vpop.f32.mrb[0].mxu0
        %v4526 = vadd.f32 %v3688, %v4525
        %v4527 = vpop.f32.mrb[0].mxu0
        %4528 = vmatprep.mubr.f32.mxu0 0.0
        %4529 = vmatmul.mubr.f32.gmra.mrb[0].mxu0 %v1308
        %v4530 = vpop.f32.mrb[0].mxu0
        %v4531 = vadd.f32 %v3689, %v4530
        %v4532 = vpop.f32.mrb[0].mxu0
        %4533 = vmatprep.mubr.f32.mxu0 0.0
        %4534 = vmatmul.mubr.f32.gmra.mrb[0].mxu0 %v1311
        %v4535 = vpop.f32.mrb[0].mxu0
        %v4536 = vadd.f32 %v3690, %v4535
        %v4537 = vpop.f32.mrb[0].mxu0
        %4538 = vmatprep.mubr.f32.mxu0 0.0
        %4539 = vmatmul.mubr.f32.gmra.mrb[0].mxu0 %v1314
        %v4540 = vpop.f32.mrb[0].mxu0
        %v4541 = vadd.f32 %v3691, %v4540
        %v4542 = vpop.f32.mrb[0].mxu0
        %4543 = vmatprep.mubr.f32.mxu0 0.0
        %4544 = vmatmul.mubr.f32.gmra.mrb[0].mxu0 %v1317
        %v4545 = vpop.f32.mrb[0].mxu0
        %v4546 = vadd.f32 %v3692, %v4545
        %v4547 = vpop.f32.mrb[0].mxu0
        %4548 = vmatprep.mubr.f32.mxu0 0.0
        %4549 = vmatmul.mubr.f32.gmra.mrb[0].mxu0 %v1320
        %v4550 = vpop.f32.mrb[0].mxu0
        %v4551 = vadd.f32 %v3693, %v4550
        %v4552 = vpop.f32.mrb[0].mxu0
        %4553 = vmatprep.mubr.f32.mxu0 0.0
        %4554 = vmatmul.mubr.f32.gmra.mrb[0].mxu0 %v1323
        %v4555 = vpop.f32.mrb[0].mxu0
        %v4556 = vadd.f32 %v3694, %v4555
        %v4557 = vpop.f32.mrb[0].mxu0
        %4558 = vmatprep.mubr.f32.mxu0 0.0
        %4559 = vmatmul.mubr.f32.gmra.mrb[0].mxu0 %v1326
        %v4560 = vpop.f32.mrb[0].mxu0
        %v4561 = vadd.f32 %v3695, %v4560
        %v4562 = vpop.f32.mrb[0].mxu0
        %4563 = vmatprep.mubr.f32.mxu0 0.0
        %4564 = vmatmul.mubr.f32.gmra.mrb[0].mxu0 %v1329
        %v4565 = vpop.f32.mrb[0].mxu0
        %v4566 = vadd.f32 %v3696, %v4565
        %v4567 = vpop.f32.mrb[0].mxu0
        %4568 = vmatprep.mubr.f32.mxu0 0.0
        %4569 = vmatmul.mubr.f32.gmra.mrb[0].mxu0 %v1332
        %v4570 = vpop.f32.mrb[0].mxu0
        %v4571 = vadd.f32 %v3697, %v4570
        %v4572 = vpop.f32.mrb[0].mxu0
        %4573 = vmatprep.mubr.f32.mxu0 0.0
        %4574 = vmatmul.mubr.f32.gmra.mrb[0].mxu0 %v1335
        %v4575 = vpop.f32.mrb[0].mxu0
        %v4576 = vadd.f32 %v3698, %v4575
        %v4577 = vpop.f32.mrb[0].mxu0
        %4578 = vmatprep.mubr.f32.mxu0 0.0
        %4579 = vmatmul.mubr.f32.gmra.mrb[0].mxu0 %v1338
        %v4580 = vpop.f32.mrb[0].mxu0
        %v4581 = vadd.f32 %v3699, %v4580
        %v4582 = vpop.f32.mrb[0].mxu0
        %4583 = vmatprep.mubr.f32.mxu0 0.0
        %4584 = vmatmul.mubr.f32.gmra.mrb[0].mxu0 %v1341
        %v4585 = vpop.f32.mrb[0].mxu0
        %v4586 = vadd.f32 %v3700, %v4585
        %v4587 = vpop.f32.mrb[0].mxu0
        %4588 = vmatprep.mubr.f32.mxu0 0.0
        %4589 = vmatmul.mubr.f32.gmra.mrb[0].mxu0 %v1344
        %v4590 = vpop.f32.mrb[0].mxu0
        %v4591 = vadd.f32 %v3701, %v4590
        %v4592 = vpop.f32.mrb[0].mxu0
        %4593 = vmatprep.mubr.f32.mxu0 0.0
        %4594 = vmatmul.mubr.f32.gmra.mrb[0].mxu0 %v1347
        %v4595 = vpop.f32.mrb[0].mxu0
        %v4596 = vadd.f32 %v3702, %v4595
        %v4597 = vpop.f32.mrb[0].mxu0
        %4598 = vmatprep.mubr.f32.mxu0 0.0
        %4599 = vmatmul.mubr.f32.gmra.mrb[0].mxu0 %v1350
        %v4600 = vpop.f32.mrb[0].mxu0
        %v4601 = vadd.f32 %v3703, %v4600
        %v4602 = vpop.f32.mrb[0].mxu0
        %4603 = vmatprep.mubr.f32.mxu0 0.0
        %4604 = vmatmul.mubr.f32.gmra.mrb[0].mxu0 %v1353
        %v4605 = vpop.f32.mrb[0].mxu0
        %v4606 = vadd.f32 %v3704, %v4605
        %v4607 = vpop.f32.mrb[0].mxu0
        %4608 = vmatprep.mubr.f32.mxu0 0.0
        %4609 = vmatmul.mubr.f32.gmra.mrb[0].mxu0 %v1356
        %v4610 = vpop.f32.mrb[0].mxu0
        %v4611 = vadd.f32 %v3705, %v4610
        %v4612 = vpop.f32.mrb[0].mxu0
        %4613 = vmatprep.mubr.f32.mxu0 0.0
        %4614 = vmatmul.mubr.f32.gmra.mrb[0].mxu0 %v1359
        %v4615 = vpop.f32.mrb[0].mxu0
        %v4616 = vadd.f32 %v3706, %v4615
        %v4617 = vpop.f32.mrb[0].mxu0
        %4618 = vmatprep.mubr.f32.mxu0 0.0
        %4619 = vmatmul.mubr.f32.gmra.mrb[0].mxu0 %v1362
        %v4620 = vpop.f32.mrb[0].mxu0
        %v4621 = vadd.f32 %v3707, %v4620
        %v4622 = vpop.f32.mrb[0].mxu0
        %4623 = vmatprep.mubr.f32.mxu0 0.0
        %4624 = vmatmul.mubr.f32.gmra.mrb[0].mxu0 %v1365
        %v4625 = vpop.f32.mrb[0].mxu0
        %v4626 = vadd.f32 %v3708, %v4625
        %v4627 = vpop.f32.mrb[0].mxu0
        %4628 = vmatprep.mubr.f32.mxu0 0.0
        %4629 = vmatmul.mubr.f32.gmra.mrb[0].mxu0 %v1368
        %v4630 = vpop.f32.mrb[0].mxu0
        %v4631 = vadd.f32 %v3709, %v4630
        %v4632 = vpop.f32.mrb[0].mxu0
        %4633 = vmatprep.mubr.f32.mxu0 0.0
        %4634 = vmatmul.mubr.f32.gmra.mrb[0].mxu0 %v1371
        %v4635 = vpop.f32.mrb[0].mxu0
        %v4636 = vadd.f32 %v3710, %v4635
        %v4637 = vpop.f32.mrb[0].mxu0
        %4638 = vmatprep.mubr.f32.mxu0 0.0
        %4639 = vmatmul.mubr.f32.gmra.mrb[0].mxu0 %v1374
        %v4640 = vpop.f32.mrb[0].mxu0
        %v4641 = vadd.f32 %v3711, %v4640
        %v4642 = vpop.f32.mrb[0].mxu0
        %4643 = vmatprep.mubr.f32.mxu0 0.0
        %4644 = vmatmul.mubr.f32.gmra.mrb[0].mxu0 %v1377
        %v4645 = vpop.f32.mrb[0].mxu0
        %v4646 = vadd.f32 %v3712, %v4645
        %v4647 = vpop.f32.mrb[0].mxu0
        %4648 = vmatprep.mubr.f32.mxu0 0.0
        %4649 = vmatmul.mubr.f32.gmra.mrb[0].mxu0 %v1380
        %v4650 = vpop.f32.mrb[0].mxu0
        %v4651 = vadd.f32 %v3713, %v4650
        %v4652 = vpop.f32.mrb[0].mxu0
        %4653 = vmatprep.mubr.f32.mxu0 0.0
        %4654 = vmatmul.mubr.f32.gmra.mrb[0].mxu0 %v1383
        %v4655 = vpop.f32.mrb[0].mxu0
        %v4656 = vadd.f32 %v3714, %v4655
        %v4657 = vpop.f32.mrb[0].mxu0
        %4658 = vmatprep.mubr.f32.mxu0 0.0
        %4659 = vmatmul.mubr.f32.gmra.mrb[0].mxu0 %v1386
        %v4660 = vpop.f32.mrb[0].mxu0
        %v4661 = vadd.f32 %v3715, %v4660
        %v4662 = vpop.f32.mrb[0].mxu0
        %4663 = vmatprep.mubr.f32.mxu0 0.0
        %4664 = vmatmul.mubr.f32.gmra.mrb[0].mxu0 %v1389
        %v4665 = vpop.f32.mrb[0].mxu0
        %v4666 = vadd.f32 %v3716, %v4665
        %v4667 = vpop.f32.mrb[0].mxu0
        %4668 = vmatprep.mubr.f32.mxu0 0.0
        %4669 = vmatmul.mubr.f32.gmra.mrb[0].mxu0 %v1392
        %v4670 = vpop.f32.mrb[0].mxu0
        %v4671 = vadd.f32 %v3717, %v4670
        %v4672 = vpop.f32.mrb[0].mxu0
        %4673 = vmatprep.mubr.f32.mxu0 0.0
        %4674 = vmatmul.mubr.f32.gmra.mrb[0].mxu0 %v1395
        %v4675 = vpop.f32.mrb[0].mxu0
        %v4676 = vadd.f32 %v3718, %v4675
        %v4677 = vpop.f32.mrb[0].mxu0
        %4678 = vmatprep.mubr.f32.mxu0 0.0
        %4679 = vmatmul.mubr.f32.gmra.mrb[0].mxu0 %v1398
        %v4680 = vpop.f32.mrb[0].mxu0
        %v4681 = vadd.f32 %v3719, %v4680
        %v4682 = vpop.f32.mrb[0].mxu0
        %4683 = vmatprep.mubr.f32.mxu0 0.0
        %4684 = vmatmul.mubr.f32.gmra.mrb[0].mxu0 %v1401
        %v4685 = vpop.f32.mrb[0].mxu0
        %v4686 = vadd.f32 %v3720, %v4685
        %v4687 = vpop.f32.mrb[0].mxu0
        %4688 = vmatprep.mubr.f32.mxu0 0.0
        %4689 = vmatmul.mubr.f32.gmra.mrb[0].mxu0 %v1404
        %v4690 = vpop.f32.mrb[0].mxu0
        %v4691 = vadd.f32 %v3721, %v4690
        %v4692 = vpop.f32.mrb[0].mxu0
        %4693 = vmatprep.mubr.f32.mxu0 0.0
        %4694 = vmatmul.mubr.f32.gmra.mrb[0].mxu0 %v1407
        %v4695 = vpop.f32.mrb[0].mxu0
        %v4696 = vadd.f32 %v3722, %v4695
        %v4697 = vpop.f32.mrb[0].mxu0
        %4698 = vmatprep.mubr.f32.mxu0 0.0
        %4699 = vmatmul.mubr.f32.gmra.mrb[0].mxu0 %v1410
        %v4700 = vpop.f32.mrb[0].mxu0
        %v4701 = vadd.f32 %v3723, %v4700
        %v4702 = vpop.f32.mrb[0].mxu0
        %4703 = vmatprep.mubr.f32.mxu0 0.0
        %4704 = vmatmul.mubr.f32.gmra.mrb[0].mxu0 %v1413
        %v4705 = vpop.f32.mrb[0].mxu0
        %v4706 = vadd.f32 %v3724, %v4705
        %v4707 = vpop.f32.mrb[0].mxu0
        %4708 = vmatprep.mubr.f32.mxu0 0.0
        %4709 = vmatmul.mubr.f32.gmra.mrb[0].mxu0 %v1416
        %v4710 = vpop.f32.mrb[0].mxu0
        %v4711 = vadd.f32 %v3725, %v4710
        %v4712 = vpop.f32.mrb[0].mxu0
        %4713 = vmatprep.mubr.f32.mxu0 0.0
        %4714 = vmatmul.mubr.f32.gmra.mrb[0].mxu0 %v1419
        %v4715 = vpop.f32.mrb[0].mxu0
        %v4716 = vadd.f32 %v3726, %v4715
        %v4717 = vpop.f32.mrb[0].mxu0
        %4718 = vmatprep.mubr.f32.mxu0 0.0
        %4719 = vmatmul.mubr.f32.gmra.mrb[0].mxu0 %v1422
        %v4720 = vpop.f32.mrb[0].mxu0
        %v4721 = vadd.f32 %v3727, %v4720
        %v4722 = vpop.f32.mrb[0].mxu0
        %4723 = vmatprep.mubr.f32.mxu0 0.0
        %4724 = vmatmul.mubr.f32.gmra.mrb[0].mxu0 %v1425
        %v4725 = vpop.f32.mrb[0].mxu0
        %v4726 = vadd.f32 %v3728, %v4725
        %v4727 = vpop.f32.mrb[0].mxu0
        %4728 = vmatprep.mubr.f32.mxu0 0.0
        %4729 = vmatmul.mubr.f32.gmra.mrb[0].mxu0 %v1428
        %v4730 = vpop.f32.mrb[0].mxu0
        %v4731 = vadd.f32 %v3729, %v4730
        %v4732 = vpop.f32.mrb[0].mxu0
        %4733 = vmatprep.mubr.f32.mxu0 0.0
        %4734 = vmatmul.mubr.f32.gmra.mrb[0].mxu0 %v1431
        %v4735 = vpop.f32.mrb[0].mxu0
        %v4736 = vadd.f32 %v3730, %v4735
        %v4737 = vpop.f32.mrb[0].mxu0
        %4738 = vmatprep.mubr.f32.mxu0 0.0
        %4739 = vmatmul.mubr.f32.gmra.mrb[0].mxu0 %v1434
        %v4740 = vpop.f32.mrb[0].mxu0
        %v4741 = vadd.f32 %v3731, %v4740
        %v4742 = vpop.f32.mrb[0].mxu0
        %4743 = vmatprep.mubr.f32.mxu0 0.0
        %4744 = vmatmul.mubr.f32.gmra.mrb[0].mxu0 %v1437
        %v4745 = vpop.f32.mrb[0].mxu0
        %v4746 = vadd.f32 %v3732, %v4745
        %v4747 = vpop.f32.mrb[0].mxu0
        %4748 = vmatprep.mubr.f32.mxu0 0.0
        %4749 = vmatmul.mubr.f32.gmra.mrb[0].mxu0 %v1440
        %v4750 = vpop.f32.mrb[0].mxu0
        %v4751 = vadd.f32 %v3733, %v4750
        %v4752 = vpop.f32.mrb[0].mxu0
        %4753 = vmatprep.mubr.f32.mxu0 0.0
        %4754 = vmatmul.mubr.f32.gmra.mrb[0].mxu0 %v1443
        %v4755 = vpop.f32.mrb[0].mxu0
        %v4756 = vadd.f32 %v3734, %v4755
        %v4757 = vpop.f32.mrb[0].mxu0
        %4758 = vmatprep.mubr.f32.mxu0 0.0
        %4759 = vmatmul.mubr.f32.gmra.mrb[0].mxu0 %v1446
        %v4760 = vpop.f32.mrb[0].mxu0
        %v4761 = vadd.f32 %v3735, %v4760
        %v4762 = vpop.f32.mrb[0].mxu0
        %4763 = vmatprep.mubr.f32.mxu0 0.0
        %4764 = vmatmul.mubr.f32.gmra.mrb[0].mxu0 %v1449
        %v4765 = vpop.f32.mrb[0].mxu0
        %v4766 = vadd.f32 %v3736, %v4765
        %v4767 = vpop.f32.mrb[0].mxu0
        %4768 = vmatprep.mubr.f32.mxu0 0.0
        %4769 = vmatmul.mubr.f32.gmra.mrb[0].mxu0 %v1452
        %v4770 = vpop.f32.mrb[0].mxu0
        %v4771 = vadd.f32 %v3737, %v4770
        %v4772 = vpop.f32.mrb[0].mxu0
        %4773 = vmatprep.mubr.f32.mxu0 0.0
        %4774 = vmatmul.mubr.f32.gmra.mrb[0].mxu0 %v1455
        %v4775 = vpop.f32.mrb[0].mxu0
        %v4776 = vadd.f32 %v3738, %v4775
        %v4777 = vpop.f32.mrb[0].mxu0
        %4778 = vmatprep.mubr.f32.mxu0 0.0
        %4779 = vmatmul.mubr.f32.gmra.mrb[0].mxu0 %v1458
        %v4780 = vpop.f32.mrb[0].mxu0
        %v4781 = vadd.f32 %v3739, %v4780
        %v4782 = vpop.f32.mrb[0].mxu0
        %4783 = vmatprep.mubr.f32.mxu0 0.0
        %4784 = vmatmul.mubr.f32.gmra.mrb[0].mxu0 %v1461
        %v4785 = vpop.f32.mrb[0].mxu0
        %v4786 = vadd.f32 %v3740, %v4785
        %v4787 = vpop.f32.mrb[0].mxu0
        %4788 = vmatprep.mubr.f32.mxu0 0.0
        %4789 = vmatmul.mubr.f32.gmra.mrb[0].mxu0 %v1464
        %v4790 = vpop.f32.mrb[0].mxu0
        %v4791 = vadd.f32 %v3741, %v4790
        %v4792 = vpop.f32.mrb[0].mxu0
        %4793 = vmatprep.mubr.f32.mxu0 0.0
        %4794 = vmatmul.mubr.f32.gmra.mrb[0].mxu0 %v1467
        %v4795 = vpop.f32.mrb[0].mxu0
        %v4796 = vadd.f32 %v3742, %v4795
        %v4797 = vpop.f32.mrb[0].mxu0
        %4798 = vmatprep.mubr.f32.mxu0 0.0
        %4799 = vmatmul.mubr.f32.gmra.mrb[0].mxu0 %v1470
        %v4800 = vpop.f32.mrb[0].mxu0
        %v4801 = vadd.f32 %v3743, %v4800
        %v4802 = vpop.f32.mrb[0].mxu0
        %4803 = vmatprep.mubr.f32.mxu0 0.0
        %4804 = vmatmul.mubr.f32.gmra.mrb[0].mxu0 %v1473
        %v4805 = vpop.f32.mrb[0].mxu0
        %v4806 = vadd.f32 %v3744, %v4805
        %v4807 = vpop.f32.mrb[0].mxu0
        %4808 = vmatprep.mubr.f32.mxu0 0.0
        %4809 = vmatmul.mubr.f32.gmra.mrb[0].mxu0 %v1476
        %v4810 = vpop.f32.mrb[0].mxu0
        %v4811 = vadd.f32 %v3745, %v4810
        %v4812 = vpop.f32.mrb[0].mxu0
        %4813 = vmatprep.mubr.f32.mxu0 0.0
        %4814 = vmatmul.mubr.f32.gmra.mrb[0].mxu0 %v1479
        %v4815 = vpop.f32.mrb[0].mxu0
        %v4816 = vadd.f32 %v3746, %v4815
        %v4817 = vpop.f32.mrb[0].mxu0
        %4818 = vmatprep.mubr.f32.mxu0 0.0
        %4819 = vmatmul.mubr.f32.gmra.mrb[0].mxu0 %v1482
        %v4820 = vpop.f32.mrb[0].mxu0
        %v4821 = vadd.f32 %v3747, %v4820
        %v4822 = vpop.f32.mrb[0].mxu0
        %4823 = vmatprep.mubr.f32.mxu0 0.0
        %4824 = vmatmul.mubr.f32.gmra.mrb[0].mxu0 %v1485
        %v4825 = vpop.f32.mrb[0].mxu0
        %v4826 = vadd.f32 %v3748, %v4825
        %v4827 = vpop.f32.mrb[0].mxu0
        %4828 = vmatprep.mubr.f32.mxu0 0.0
        %4829 = vmatmul.mubr.f32.gmra.mrb[0].mxu0 %v1488
        %v4830 = vpop.f32.mrb[0].mxu0
        %v4831 = vadd.f32 %v3749, %v4830
        %v4832 = vpop.f32.mrb[0].mxu0
        %4833 = vmatprep.mubr.f32.mxu0 0.0
        %4834 = vmatmul.mubr.f32.gmra.mrb[0].mxu0 %v1491
        %v4835 = vpop.f32.mrb[0].mxu0
        %v4836 = vadd.f32 %v3750, %v4835
        %v4837 = vpop.f32.mrb[0].mxu0
        %4838 = vmatprep.mubr.f32.mxu0 0.0
        %4839 = vmatmul.mubr.f32.gmra.mrb[0].mxu0 %v1494
        %v4840 = vpop.f32.mrb[0].mxu0
        %v4841 = vadd.f32 %v3751, %v4840
        %v4842 = vpop.f32.mrb[0].mxu0
        %4843 = vdwg.mxu0
        %v4844 = vadd.f32 %v4206, %v4008
        %v4845 = vadd.f32 %v4211, %v4009
        %v4846 = vadd.f32 %v4216, %v4010
        %v4847 = vadd.f32 %v4221, %v4011
        %v4848 = vadd.f32 %v4226, %v4012
        %v4849 = vadd.f32 %v4231, %v4013
        %v4850 = vadd.f32 %v4236, %v4014
        %v4851 = vadd.f32 %v4241, %v4015
        %v4852 = vadd.f32 %v4246, %v4016
        %v4853 = vadd.f32 %v4251, %v4017
        %v4854 = vadd.f32 %v4256, %v4018
        %v4855 = vadd.f32 %v4261, %v4019
        %v4856 = vadd.f32 %v4266, %v4020
        %v4857 = vadd.f32 %v4271, %v4021
        %v4858 = vadd.f32 %v4276, %v4022
        %v4859 = vadd.f32 %v4281, %v4023
        %v4860 = vadd.f32 %v4286, %v4024
        %v4861 = vadd.f32 %v4291, %v4025
        %v4862 = vadd.f32 %v4296, %v4026
        %v4863 = vadd.f32 %v4301, %v4027
        %v4864 = vadd.f32 %v4306, %v4028
        %v4865 = vadd.f32 %v4311, %v4029
        %v4866 = vadd.f32 %v4316, %v4030
        %v4867 = vadd.f32 %v4321, %v4031
        %v4868 = vadd.f32 %v4326, %v4032
        %v4869 = vadd.f32 %v4331, %v4033
        %v4870 = vadd.f32 %v4336, %v4034
        %v4871 = vadd.f32 %v4341, %v4035
        %v4872 = vadd.f32 %v4346, %v4036
        %v4873 = vadd.f32 %v4351, %v4037
        %v4874 = vadd.f32 %v4356, %v4038
        %v4875 = vadd.f32 %v4361, %v4039
        %v4876 = vadd.f32 %v4366, %v4040
        %v4877 = vadd.f32 %v4371, %v4041
        %v4878 = vadd.f32 %v4376, %v4042
        %v4879 = vadd.f32 %v4381, %v4043
        %v4880 = vadd.f32 %v4386, %v4044
        %v4881 = vadd.f32 %v4391, %v4045
        %v4882 = vadd.f32 %v4396, %v4046
        %v4883 = vadd.f32 %v4401, %v4047
        %v4884 = vadd.f32 %v4406, %v4048
        %v4885 = vadd.f32 %v4411, %v4049
        %v4886 = vadd.f32 %v4416, %v4050
        %v4887 = vadd.f32 %v4421, %v4051
        %v4888 = vadd.f32 %v4426, %v4052
        %v4889 = vadd.f32 %v4431, %v4053
        %v4890 = vadd.f32 %v4436, %v4054
        %v4891 = vadd.f32 %v4441, %v4055
        %v4892 = vadd.f32 %v4446, %v4056
        %v4893 = vadd.f32 %v4451, %v4057
        %v4894 = vadd.f32 %v4456, %v4058
        %v4895 = vadd.f32 %v4461, %v4059
        %v4896 = vadd.f32 %v4466, %v4060
        %v4897 = vadd.f32 %v4471, %v4061
        %v4898 = vadd.f32 %v4476, %v4062
        %v4899 = vadd.f32 %v4481, %v4063
        %v4900 = vadd.f32 %v4486, %v4064
        %v4901 = vadd.f32 %v4491, %v4065
        %v4902 = vadd.f32 %v4496, %v4066
        %v4903 = vadd.f32 %v4501, %v4067
        %v4904 = vadd.f32 %v4506, %v4068
        %v4905 = vadd.f32 %v4511, %v4069
        %v4906 = vadd.f32 %v4516, %v4070
        %v4907 = vadd.f32 %v4521, %v4071
        %v4908 = vadd.f32 %v4526, %v4072
        %v4909 = vadd.f32 %v4531, %v4073
        %v4910 = vadd.f32 %v4536, %v4074
        %v4911 = vadd.f32 %v4541, %v4075
        %v4912 = vadd.f32 %v4546, %v4076
        %v4913 = vadd.f32 %v4551, %v4077
        %v4914 = vadd.f32 %v4556, %v4078
        %v4915 = vadd.f32 %v4561, %v4079
        %v4916 = vadd.f32 %v4566, %v4080
        %v4917 = vadd.f32 %v4571, %v4081
        %v4918 = vadd.f32 %v4576, %v4082
        %v4919 = vadd.f32 %v4581, %v4083
        %v4920 = vadd.f32 %v4586, %v4084
        %v4921 = vadd.f32 %v4591, %v4085
        %v4922 = vadd.f32 %v4596, %v4086
        %v4923 = vadd.f32 %v4601, %v4087
        %v4924 = vadd.f32 %v4606, %v4088
        %v4925 = vadd.f32 %v4611, %v4089
        %v4926 = vadd.f32 %v4616, %v4090
        %v4927 = vadd.f32 %v4621, %v4091
        %v4928 = vadd.f32 %v4626, %v4092
        %v4929 = vadd.f32 %v4631, %v4093
        %v4930 = vadd.f32 %v4636, %v4094
        %v4931 = vadd.f32 %v4641, %v4095
        %v4932 = vadd.f32 %v4646, %v4096
        %v4933 = vadd.f32 %v4651, %v4097
        %v4934 = vadd.f32 %v4656, %v4098
        %v4935 = vadd.f32 %v4661, %v4099
        %v4936 = vadd.f32 %v4666, %v4100
        %v4937 = vadd.f32 %v4671, %v4101
        %v4938 = vadd.f32 %v4676, %v4102
        %v4939 = vadd.f32 %v4681, %v4103
        %v4940 = vadd.f32 %v4686, %v4104
        %v4941 = vadd.f32 %v4691, %v4105
        %v4942 = vadd.f32 %v4696, %v4106
        %v4943 = vadd.f32 %v4701, %v4107
        %v4944 = vadd.f32 %v4706, %v4108
        %v4945 = vadd.f32 %v4711, %v4109
        %v4946 = vadd.f32 %v4716, %v4110
        %v4947 = vadd.f32 %v4721, %v4111
        %v4948 = vadd.f32 %v4726, %v4112
        %v4949 = vadd.f32 %v4731, %v4113
        %v4950 = vadd.f32 %v4736, %v4114
        %v4951 = vadd.f32 %v4741, %v4115
        %v4952 = vadd.f32 %v4746, %v4116
        %v4953 = vadd.f32 %v4751, %v4117
        %v4954 = vadd.f32 %v4756, %v4118
        %v4955 = vadd.f32 %v4761, %v4119
        %v4956 = vadd.f32 %v4766, %v4120
        %v4957 = vadd.f32 %v4771, %v4121
        %v4958 = vadd.f32 %v4776, %v4122
        %v4959 = vadd.f32 %v4781, %v4123
        %v4960 = vadd.f32 %v4786, %v4124
        %v4961 = vadd.f32 %v4791, %v4125
        %v4962 = vadd.f32 %v4796, %v4126
        %v4963 = vadd.f32 %v4801, %v4127
        %v4964 = vadd.f32 %v4806, %v4128
        %v4965 = vadd.f32 %v4811, %v4129
        %v4966 = vadd.f32 %v4816, %v4130
        %v4967 = vadd.f32 %v4821, %v4131
        %v4968 = vadd.f32 %v4826, %v4132
        %v4969 = vadd.f32 %v4831, %v4133
        %v4970 = vadd.f32 %v4836, %v4134
        %v4971 = vadd.f32 %v4841, %v4135
        %v4972 = vld [vmem:[%s2] sm:$0x1]
        %v4974 = vlaneseq
        %v4975 = vshrl.u32 %v4974, 7
        %v4976 = vsub.s32 0, %v4975
        %v4977 = vrot.slane %v4972, %v4976
        %v4979 = vadd.f32 %v4844, %v4977
        %v4980 = vadd.f32 %v4845, %v4977
        %v4981 = vadd.f32 %v4846, %v4977
        %v4982 = vadd.f32 %v4847, %v4977
        %v4983 = vadd.f32 %v4848, %v4977
        %v4984 = vadd.f32 %v4849, %v4977
        %v4985 = vadd.f32 %v4850, %v4977
        %v4986 = vadd.f32 %v4851, %v4977
        %v4987 = vadd.f32 %v4852, %v4977
        %v4988 = vadd.f32 %v4853, %v4977
        %v4989 = vadd.f32 %v4854, %v4977
        %v4990 = vadd.f32 %v4855, %v4977
        %v4991 = vadd.f32 %v4856, %v4977
        %v4992 = vadd.f32 %v4857, %v4977
        %v4993 = vadd.f32 %v4858, %v4977
        %v4994 = vadd.f32 %v4859, %v4977
        %v4995 = vadd.f32 %v4860, %v4977
        %v4996 = vadd.f32 %v4861, %v4977
        %v4997 = vadd.f32 %v4862, %v4977
        %v4998 = vadd.f32 %v4863, %v4977
        %v4999 = vadd.f32 %v4864, %v4977
        %v5000 = vadd.f32 %v4865, %v4977
        %v5001 = vadd.f32 %v4866, %v4977
        %v5002 = vadd.f32 %v4867, %v4977
        %v5003 = vadd.f32 %v4868, %v4977
        %v5004 = vadd.f32 %v4869, %v4977
        %v5005 = vadd.f32 %v4870, %v4977
        %v5006 = vadd.f32 %v4871, %v4977
        %v5007 = vadd.f32 %v4872, %v4977
        %v5008 = vadd.f32 %v4873, %v4977
        %v5009 = vadd.f32 %v4874, %v4977
        %v5010 = vadd.f32 %v4875, %v4977
        %v5011 = vadd.f32 %v4876, %v4977
        %v5012 = vadd.f32 %v4877, %v4977
        %v5013 = vadd.f32 %v4878, %v4977
        %v5014 = vadd.f32 %v4879, %v4977
        %v5015 = vadd.f32 %v4880, %v4977
        %v5016 = vadd.f32 %v4881, %v4977
        %v5017 = vadd.f32 %v4882, %v4977
        %v5018 = vadd.f32 %v4883, %v4977
        %v5019 = vadd.f32 %v4884, %v4977
        %v5020 = vadd.f32 %v4885, %v4977
        %v5021 = vadd.f32 %v4886, %v4977
        %v5022 = vadd.f32 %v4887, %v4977
        %v5023 = vadd.f32 %v4888, %v4977
        %v5024 = vadd.f32 %v4889, %v4977
        %v5025 = vadd.f32 %v4890, %v4977
        %v5026 = vadd.f32 %v4891, %v4977
        %v5027 = vadd.f32 %v4892, %v4977
        %v5028 = vadd.f32 %v4893, %v4977
        %v5029 = vadd.f32 %v4894, %v4977
        %v5030 = vadd.f32 %v4895, %v4977
        %v5031 = vadd.f32 %v4896, %v4977
        %v5032 = vadd.f32 %v4897, %v4977
        %v5033 = vadd.f32 %v4898, %v4977
        %v5034 = vadd.f32 %v4899, %v4977
        %v5035 = vadd.f32 %v4900, %v4977
        %v5036 = vadd.f32 %v4901, %v4977
        %v5037 = vadd.f32 %v4902, %v4977
        %v5038 = vadd.f32 %v4903, %v4977
        %v5039 = vadd.f32 %v4904, %v4977
        %v5040 = vadd.f32 %v4905, %v4977
        %v5041 = vadd.f32 %v4906, %v4977
        %v5042 = vadd.f32 %v4907, %v4977
        %v5043 = vadd.f32 %v4908, %v4977
        %v5044 = vadd.f32 %v4909, %v4977
        %v5045 = vadd.f32 %v4910, %v4977
        %v5046 = vadd.f32 %v4911, %v4977
        %v5047 = vadd.f32 %v4912, %v4977
        %v5048 = vadd.f32 %v4913, %v4977
        %v5049 = vadd.f32 %v4914, %v4977
        %v5050 = vadd.f32 %v4915, %v4977
        %v5051 = vadd.f32 %v4916, %v4977
        %v5052 = vadd.f32 %v4917, %v4977
        %v5053 = vadd.f32 %v4918, %v4977
        %v5054 = vadd.f32 %v4919, %v4977
        %v5055 = vadd.f32 %v4920, %v4977
        %v5056 = vadd.f32 %v4921, %v4977
        %v5057 = vadd.f32 %v4922, %v4977
        %v5058 = vadd.f32 %v4923, %v4977
        %v5059 = vadd.f32 %v4924, %v4977
        %v5060 = vadd.f32 %v4925, %v4977
        %v5061 = vadd.f32 %v4926, %v4977
        %v5062 = vadd.f32 %v4927, %v4977
        %v5063 = vadd.f32 %v4928, %v4977
        %v5064 = vadd.f32 %v4929, %v4977
        %v5065 = vadd.f32 %v4930, %v4977
        %v5066 = vadd.f32 %v4931, %v4977
        %v5067 = vadd.f32 %v4932, %v4977
        %v5068 = vadd.f32 %v4933, %v4977
        %v5069 = vadd.f32 %v4934, %v4977
        %v5070 = vadd.f32 %v4935, %v4977
        %v5071 = vadd.f32 %v4936, %v4977
        %v5072 = vadd.f32 %v4937, %v4977
        %v5073 = vadd.f32 %v4938, %v4977
        %v5074 = vadd.f32 %v4939, %v4977
        %v5075 = vadd.f32 %v4940, %v4977
        %v5076 = vadd.f32 %v4941, %v4977
        %v5077 = vadd.f32 %v4942, %v4977
        %v5078 = vadd.f32 %v4943, %v4977
        %v5079 = vadd.f32 %v4944, %v4977
        %v5080 = vadd.f32 %v4945, %v4977
        %v5081 = vadd.f32 %v4946, %v4977
        %v5082 = vadd.f32 %v4947, %v4977
        %v5083 = vadd.f32 %v4948, %v4977
        %v5084 = vadd.f32 %v4949, %v4977
        %v5085 = vadd.f32 %v4950, %v4977
        %v5086 = vadd.f32 %v4951, %v4977
        %v5087 = vadd.f32 %v4952, %v4977
        %v5088 = vadd.f32 %v4953, %v4977
        %v5089 = vadd.f32 %v4954, %v4977
        %v5090 = vadd.f32 %v4955, %v4977
        %v5091 = vadd.f32 %v4956, %v4977
        %v5092 = vadd.f32 %v4957, %v4977
        %v5093 = vadd.f32 %v4958, %v4977
        %v5094 = vadd.f32 %v4959, %v4977
        %v5095 = vadd.f32 %v4960, %v4977
        %v5096 = vadd.f32 %v4961, %v4977
        %v5097 = vadd.f32 %v4962, %v4977
        %v5098 = vadd.f32 %v4963, %v4977
        %v5099 = vadd.f32 %v4964, %v4977
        %v5100 = vadd.f32 %v4965, %v4977
        %v5101 = vadd.f32 %v4966, %v4977
        %v5102 = vadd.f32 %v4967, %v4977
        %v5103 = vadd.f32 %v4968, %v4977
        %v5104 = vadd.f32 %v4969, %v4977
        %v5105 = vadd.f32 %v4970, %v4977
        %v5106 = vadd.f32 %v4971, %v4977
        %v5107 = vsel %vm3496, 0.0, %v5106
        %v5108 = vsel %vm3498, 0.0, %v4980
        %v5109 = vsel %vm3500, 0.0, %v4982
        %v5110 = vsel %vm3502, 0.0, %v4984
        %v5111 = vsel %vm3504, 0.0, %v4986
        %v5112 = vsel %vm3506, 0.0, %v4988
        %v5113 = vsel %vm3508, 0.0, %v4990
        %v5114 = vsel %vm3510, 0.0, %v4992
        %v5115 = vsel %vm3512, 0.0, %v4994
        %v5116 = vsel %vm3514, 0.0, %v4996
        %v5117 = vsel %vm3516, 0.0, %v4998
        %v5118 = vsel %vm3518, 0.0, %v5000
        %v5119 = vsel %vm3520, 0.0, %v5002
        %v5120 = vsel %vm3522, 0.0, %v5004
        %v5121 = vsel %vm3524, 0.0, %v5006
        %v5122 = vsel %vm3526, 0.0, %v5008
        %v5123 = vsel %vm3528, 0.0, %v5010
        %v5124 = vsel %vm3530, 0.0, %v5012
        %v5125 = vsel %vm3532, 0.0, %v5014
        %v5126 = vsel %vm3534, 0.0, %v5016
        %v5127 = vsel %vm3536, 0.0, %v5018
        %v5128 = vsel %vm3538, 0.0, %v5020
        %v5129 = vsel %vm3540, 0.0, %v5022
        %v5130 = vsel %vm3542, 0.0, %v5024
        %v5131 = vsel %vm3544, 0.0, %v5026
        %v5132 = vsel %vm3546, 0.0, %v5028
        %v5133 = vsel %vm3548, 0.0, %v5030
        %v5134 = vsel %vm3550, 0.0, %v5032
        %v5135 = vsel %vm3552, 0.0, %v5034
        %v5136 = vsel %vm3554, 0.0, %v5036
        %v5137 = vsel %vm3556, 0.0, %v5038
        %v5138 = vsel %vm3558, 0.0, %v5040
        %v5139 = vsel %vm3560, 0.0, %v5042
        %v5140 = vsel %vm3562, 0.0, %v5044
        %v5141 = vsel %vm3564, 0.0, %v5046
        %v5142 = vsel %vm3566, 0.0, %v5048
        %v5143 = vsel %vm3568, 0.0, %v5050
        %v5144 = vsel %vm3570, 0.0, %v5052
        %v5145 = vsel %vm3572, 0.0, %v5054
        %v5146 = vsel %vm3574, 0.0, %v5056
        %v5147 = vsel %vm3576, 0.0, %v5058
        %v5148 = vsel %vm3578, 0.0, %v5060
        %v5149 = vsel %vm3580, 0.0, %v5062
        %v5150 = vsel %vm3582, 0.0, %v5064
        %v5151 = vsel %vm3584, 0.0, %v5066
        %v5152 = vsel %vm3586, 0.0, %v5068
        %v5153 = vsel %vm3588, 0.0, %v5070
        %v5154 = vsel %vm3590, 0.0, %v5072
        %v5155 = vsel %vm3592, 0.0, %v5074
        %v5156 = vsel %vm3594, 0.0, %v5076
        %v5157 = vsel %vm3596, 0.0, %v5078
        %v5158 = vsel %vm3598, 0.0, %v5080
        %v5159 = vsel %vm3600, 0.0, %v5082
        %v5160 = vsel %vm3602, 0.0, %v5084
        %v5161 = vsel %vm3604, 0.0, %v5086
        %v5162 = vsel %vm3606, 0.0, %v5088
        %v5163 = vsel %vm3608, 0.0, %v5090
        %v5164 = vsel %vm3610, 0.0, %v5092
        %v5165 = vsel %vm3612, 0.0, %v5094
        %v5166 = vsel %vm3614, 0.0, %v5096
        %v5167 = vsel %vm3616, 0.0, %v5098
        %v5168 = vsel %vm3618, 0.0, %v5100
        %v5169 = vsel %vm3620, 0.0, %v5102
        %v5170 = vsel %vm3622, 0.0, %v5104
        %v5171 = vsel %vm3880, 0.0, %v4980
        %v5172 = vsel %vm3882, 0.0, %v4982
        %v5173 = vsel %vm3884, 0.0, %v4984
        %v5174 = vsel %vm3886, 0.0, %v4986
        %v5175 = vsel %vm3888, 0.0, %v4988
        %v5176 = vsel %vm3890, 0.0, %v4990
        %v5177 = vsel %vm3892, 0.0, %v4992
        %v5178 = vsel %vm3894, 0.0, %v4994
        %v5179 = vsel %vm3896, 0.0, %v4996
        %v5180 = vsel %vm3898, 0.0, %v4998
        %v5181 = vsel %vm3900, 0.0, %v5000
        %v5182 = vsel %vm3902, 0.0, %v5002
        %v5183 = vsel %vm3904, 0.0, %v5004
        %v5184 = vsel %vm3906, 0.0, %v5006
        %v5185 = vsel %vm3908, 0.0, %v5008
        %v5186 = vsel %vm3910, 0.0, %v5010
        %v5187 = vsel %vm3912, 0.0, %v5012
        %v5188 = vsel %vm3914, 0.0, %v5014
        %v5189 = vsel %vm3916, 0.0, %v5016
        %v5190 = vsel %vm3918, 0.0, %v5018
        %v5191 = vsel %vm3920, 0.0, %v5020
        %v5192 = vsel %vm3922, 0.0, %v5022
        %v5193 = vsel %vm3924, 0.0, %v5024
        %v5194 = vsel %vm3926, 0.0, %v5026
        %v5195 = vsel %vm3928, 0.0, %v5028
        %v5196 = vsel %vm3930, 0.0, %v5030
        %v5197 = vsel %vm3932, 0.0, %v5032
        %v5198 = vsel %vm3934, 0.0, %v5034
        %v5199 = vsel %vm3936, 0.0, %v5036
        %v5200 = vsel %vm3938, 0.0, %v5038
        %v5201 = vsel %vm3940, 0.0, %v5040
        %v5202 = vsel %vm3942, 0.0, %v5042
        %v5203 = vsel %vm3944, 0.0, %v5044
        %v5204 = vsel %vm3946, 0.0, %v5046
        %v5205 = vsel %vm3948, 0.0, %v5048
        %v5206 = vsel %vm3950, 0.0, %v5050
        %v5207 = vsel %vm3952, 0.0, %v5052
        %v5208 = vsel %vm3954, 0.0, %v5054
        %v5209 = vsel %vm3956, 0.0, %v5056
        %v5210 = vsel %vm3958, 0.0, %v5058
        %v5211 = vsel %vm3960, 0.0, %v5060
        %v5212 = vsel %vm3962, 0.0, %v5062
        %v5213 = vsel %vm3964, 0.0, %v5064
        %v5214 = vsel %vm3966, 0.0, %v5066
        %v5215 = vsel %vm3968, 0.0, %v5068
        %v5216 = vsel %vm3970, 0.0, %v5070
        %v5217 = vsel %vm3972, 0.0, %v5072
        %v5218 = vsel %vm3974, 0.0, %v5074
        %v5219 = vsel %vm3976, 0.0, %v5076
        %v5220 = vsel %vm3978, 0.0, %v5078
        %v5221 = vsel %vm3980, 0.0, %v5080
        %v5222 = vsel %vm3982, 0.0, %v5082
        %v5223 = vsel %vm3984, 0.0, %v5084
        %v5224 = vsel %vm3986, 0.0, %v5086
        %v5225 = vsel %vm3988, 0.0, %v5088
        %v5226 = vsel %vm3990, 0.0, %v5090
        %v5227 = vsel %vm3992, 0.0, %v5092
        %v5228 = vsel %vm3994, 0.0, %v5094
        %v5229 = vsel %vm3996, 0.0, %v5096
        %v5230 = vsel %vm3998, 0.0, %v5098
        %v5231 = vsel %vm4000, 0.0, %v5100
        %v5232 = vsel %vm4002, 0.0, %v5102
        %v5233 = vsel %vm4004, 0.0, %v5104
        %v5234 = vsel %vm4006, 0.0, %v5106
        %v5235 = vsel %vm3304, 1, 0
        %v5236 = vsel %vm3305, 1, 0
        %v5237 = vsel %vm3306, 1, 0
        %v5238 = vsel %vm3307, 1, 0
        %v5239 = vsel %vm3308, 1, 0
        %v5240 = vsel %vm3309, 1, 0
        %v5241 = vsel %vm3310, 1, 0
        %v5242 = vsel %vm3311, 1, 0
        %v5243 = vsel %vm3312, 1, 0
        %v5244 = vsel %vm3313, 1, 0
        %v5245 = vsel %vm3314, 1, 0
        %v5246 = vsel %vm3315, 1, 0
        %v5247 = vsel %vm3316, 1, 0
        %v5248 = vsel %vm3317, 1, 0
        %v5249 = vsel %vm3318, 1, 0
        %v5250 = vsel %vm3319, 1, 0
        %v5251 = vsel %vm3320, 1, 0
        %v5252 = vsel %vm3321, 1, 0
        %v5253 = vsel %vm3322, 1, 0
        %v5254 = vsel %vm3323, 1, 0
        %v5255 = vsel %vm3324, 1, 0
        %v5256 = vsel %vm3325, 1, 0
        %v5257 = vsel %vm3326, 1, 0
        %v5258 = vsel %vm3327, 1, 0
        %v5259 = vsel %vm3328, 1, 0
        %v5260 = vsel %vm3329, 1, 0
        %v5261 = vsel %vm3330, 1, 0
        %v5262 = vsel %vm3331, 1, 0
        %v5263 = vsel %vm3332, 1, 0
        %v5264 = vsel %vm3333, 1, 0
        %v5265 = vsel %vm3334, 1, 0
        %v5266 = vsel %vm3335, 1, 0
        %v5267 = vsel %vm3336, 1, 0
        %v5268 = vsel %vm3337, 1, 0
        %v5269 = vsel %vm3338, 1, 0
        %v5270 = vsel %vm3339, 1, 0
        %v5271 = vsel %vm3340, 1, 0
        %v5272 = vsel %vm3341, 1, 0
        %v5273 = vsel %vm3342, 1, 0
        %v5274 = vsel %vm3343, 1, 0
        %v5275 = vsel %vm3344, 1, 0
        %v5276 = vsel %vm3345, 1, 0
        %v5277 = vsel %vm3346, 1, 0
        %v5278 = vsel %vm3347, 1, 0
        %v5279 = vsel %vm3348, 1, 0
        %v5280 = vsel %vm3349, 1, 0
        %v5281 = vsel %vm3350, 1, 0
        %v5282 = vsel %vm3351, 1, 0
        %v5283 = vsel %vm3352, 1, 0
        %v5284 = vsel %vm3353, 1, 0
        %v5285 = vsel %vm3354, 1, 0
        %v5286 = vsel %vm3355, 1, 0
        %v5287 = vsel %vm3356, 1, 0
        %v5288 = vsel %vm3357, 1, 0
        %v5289 = vsel %vm3358, 1, 0
        %v5290 = vsel %vm3359, 1, 0
        %v5291 = vsel %vm3360, 1, 0
        %v5292 = vsel %vm3361, 1, 0
        %v5293 = vsel %vm3362, 1, 0
        %v5294 = vsel %vm3363, 1, 0
        %v5295 = vsel %vm3364, 1, 0
        %v5296 = vsel %vm3365, 1, 0
        %v5297 = vsel %vm3366, 1, 0
        %v5298 = vsel %vm3367, 1, 0
        %vm5299 = vcmp.eq.s32.totalorder %v5235, 1
        %vm5300 = vcmp.eq.s32.totalorder %v5236, 1
        %vm5301 = vcmp.eq.s32.totalorder %v5237, 1
        %vm5302 = vcmp.eq.s32.totalorder %v5238, 1
        %vm5303 = vcmp.eq.s32.totalorder %v5239, 1
        %vm5304 = vcmp.eq.s32.totalorder %v5240, 1
        %vm5305 = vcmp.eq.s32.totalorder %v5241, 1
        %vm5306 = vcmp.eq.s32.totalorder %v5242, 1
        %vm5307 = vcmp.eq.s32.totalorder %v5243, 1
        %vm5308 = vcmp.eq.s32.totalorder %v5244, 1
        %vm5309 = vcmp.eq.s32.totalorder %v5245, 1
        %vm5310 = vcmp.eq.s32.totalorder %v5246, 1
        %vm5311 = vcmp.eq.s32.totalorder %v5247, 1
        %vm5312 = vcmp.eq.s32.totalorder %v5248, 1
        %vm5313 = vcmp.eq.s32.totalorder %v5249, 1
        %vm5314 = vcmp.eq.s32.totalorder %v5250, 1
        %vm5315 = vcmp.eq.s32.totalorder %v5251, 1
        %vm5316 = vcmp.eq.s32.totalorder %v5252, 1
        %vm5317 = vcmp.eq.s32.totalorder %v5253, 1
        %vm5318 = vcmp.eq.s32.totalorder %v5254, 1
        %vm5319 = vcmp.eq.s32.totalorder %v5255, 1
        %vm5320 = vcmp.eq.s32.totalorder %v5256, 1
        %vm5321 = vcmp.eq.s32.totalorder %v5257, 1
        %vm5322 = vcmp.eq.s32.totalorder %v5258, 1
        %vm5323 = vcmp.eq.s32.totalorder %v5259, 1
        %vm5324 = vcmp.eq.s32.totalorder %v5260, 1
        %vm5325 = vcmp.eq.s32.totalorder %v5261, 1
        %vm5326 = vcmp.eq.s32.totalorder %v5262, 1
        %vm5327 = vcmp.eq.s32.totalorder %v5263, 1
        %vm5328 = vcmp.eq.s32.totalorder %v5264, 1
        %vm5329 = vcmp.eq.s32.totalorder %v5265, 1
        %vm5330 = vcmp.eq.s32.totalorder %v5266, 1
        %vm5331 = vcmp.eq.s32.totalorder %v5267, 1
        %vm5332 = vcmp.eq.s32.totalorder %v5268, 1
        %vm5333 = vcmp.eq.s32.totalorder %v5269, 1
        %vm5334 = vcmp.eq.s32.totalorder %v5270, 1
        %vm5335 = vcmp.eq.s32.totalorder %v5271, 1
        %vm5336 = vcmp.eq.s32.totalorder %v5272, 1
        %vm5337 = vcmp.eq.s32.totalorder %v5273, 1
        %vm5338 = vcmp.eq.s32.totalorder %v5274, 1
        %vm5339 = vcmp.eq.s32.totalorder %v5275, 1
        %vm5340 = vcmp.eq.s32.totalorder %v5276, 1
        %vm5341 = vcmp.eq.s32.totalorder %v5277, 1
        %vm5342 = vcmp.eq.s32.totalorder %v5278, 1
        %vm5343 = vcmp.eq.s32.totalorder %v5279, 1
        %vm5344 = vcmp.eq.s32.totalorder %v5280, 1
        %vm5345 = vcmp.eq.s32.totalorder %v5281, 1
        %vm5346 = vcmp.eq.s32.totalorder %v5282, 1
        %vm5347 = vcmp.eq.s32.totalorder %v5283, 1
        %vm5348 = vcmp.eq.s32.totalorder %v5284, 1
        %vm5349 = vcmp.eq.s32.totalorder %v5285, 1
        %vm5350 = vcmp.eq.s32.totalorder %v5286, 1
        %vm5351 = vcmp.eq.s32.totalorder %v5287, 1
        %vm5352 = vcmp.eq.s32.totalorder %v5288, 1
        %vm5353 = vcmp.eq.s32.totalorder %v5289, 1
        %vm5354 = vcmp.eq.s32.totalorder %v5290, 1
        %vm5355 = vcmp.eq.s32.totalorder %v5291, 1
        %vm5356 = vcmp.eq.s32.totalorder %v5292, 1
        %vm5357 = vcmp.eq.s32.totalorder %v5293, 1
        %vm5358 = vcmp.eq.s32.totalorder %v5294, 1
        %vm5359 = vcmp.eq.s32.totalorder %v5295, 1
        %vm5360 = vcmp.eq.s32.totalorder %v5296, 1
        %vm5361 = vcmp.eq.s32.totalorder %v5297, 1
        %vm5362 = vcmp.eq.s32.totalorder %v5298, 1
        %v5363 = vsel %vm5299, 0.0, %v4981
        %v5364 = vsel %vm5300, 0.0, %v4983
        %v5365 = vsel %vm5301, 0.0, %v4985
        %v5366 = vsel %vm5302, 0.0, %v4987
        %v5367 = vsel %vm5303, 0.0, %v4989
        %v5368 = vsel %vm5304, 0.0, %v4991
        %v5369 = vsel %vm5305, 0.0, %v4993
        %v5370 = vsel %vm5306, 0.0, %v4995
        %v5371 = vsel %vm5307, 0.0, %v4997
        %v5372 = vsel %vm5308, 0.0, %v4999
        %v5373 = vsel %vm5309, 0.0, %v5001
        %v5374 = vsel %vm5310, 0.0, %v5003
        %v5375 = vsel %vm5311, 0.0, %v5005
        %v5376 = vsel %vm5312, 0.0, %v5007
        %v5377 = vsel %vm5313, 0.0, %v5009
        %v5378 = vsel %vm5314, 0.0, %v5011
        %v5379 = vsel %vm5315, 0.0, %v5013
        %v5380 = vsel %vm5316, 0.0, %v5015
        %v5381 = vsel %vm5317, 0.0, %v5017
        %v5382 = vsel %vm5318, 0.0, %v5019
        %v5383 = vsel %vm5319, 0.0, %v5021
        %v5384 = vsel %vm5320, 0.0, %v5023
        %v5385 = vsel %vm5321, 0.0, %v5025
        %v5386 = vsel %vm5322, 0.0, %v5027
        %v5387 = vsel %vm5323, 0.0, %v5029
        %v5388 = vsel %vm5324, 0.0, %v5031
        %v5389 = vsel %vm5325, 0.0, %v5033
        %v5390 = vsel %vm5326, 0.0, %v5035
        %v5391 = vsel %vm5327, 0.0, %v5037
        %v5392 = vsel %vm5328, 0.0, %v5039
        %v5393 = vsel %vm5329, 0.0, %v5041
        %v5394 = vsel %vm5330, 0.0, %v5043
        %v5395 = vsel %vm5331, 0.0, %v5045
        %v5396 = vsel %vm5332, 0.0, %v5047
        %v5397 = vsel %vm5333, 0.0, %v5049
        %v5398 = vsel %vm5334, 0.0, %v5051
        %v5399 = vsel %vm5335, 0.0, %v5053
        %v5400 = vsel %vm5336, 0.0, %v5055
        %v5401 = vsel %vm5337, 0.0, %v5057
        %v5402 = vsel %vm5338, 0.0, %v5059
        %v5403 = vsel %vm5339, 0.0, %v5061
        %v5404 = vsel %vm5340, 0.0, %v5063
        %v5405 = vsel %vm5341, 0.0, %v5065
        %v5406 = vsel %vm5342, 0.0, %v5067
        %v5407 = vsel %vm5343, 0.0, %v5069
        %v5408 = vsel %vm5344, 0.0, %v5071
        %v5409 = vsel %vm5345, 0.0, %v5073
        %v5410 = vsel %vm5346, 0.0, %v5075
        %v5411 = vsel %vm5347, 0.0, %v5077
        %v5412 = vsel %vm5348, 0.0, %v5079
        %v5413 = vsel %vm5349, 0.0, %v5081
        %v5414 = vsel %vm5350, 0.0, %v5083
        %v5415 = vsel %vm5351, 0.0, %v5085
        %v5416 = vsel %vm5352, 0.0, %v5087
        %v5417 = vsel %vm5353, 0.0, %v5089
        %v5418 = vsel %vm5354, 0.0, %v5091
        %v5419 = vsel %vm5355, 0.0, %v5093
        %v5420 = vsel %vm5356, 0.0, %v5095
        %v5421 = vsel %vm5357, 0.0, %v5097
        %v5422 = vsel %vm5358, 0.0, %v5099
        %v5423 = vsel %vm5359, 0.0, %v5101
        %v5424 = vsel %vm5360, 0.0, %v5103
        %v5425 = vsel %vm5361, 0.0, %v5105
        %v5426 = vsel %vm5362, 0.0, %v4979
        %v5427 = vmax.f32 %v4979, %v5107
        %v5428 = vmax.f32 %v4981, %v5108
        %v5429 = vmax.f32 %v4983, %v5109
        %v5430 = vmax.f32 %v4985, %v5110
        %v5431 = vmax.f32 %v4987, %v5111
        %v5432 = vmax.f32 %v4989, %v5112
        %v5433 = vmax.f32 %v4991, %v5113
        %v5434 = vmax.f32 %v4993, %v5114
        %v5435 = vmax.f32 %v4995, %v5115
        %v5436 = vmax.f32 %v4997, %v5116
        %v5437 = vmax.f32 %v4999, %v5117
        %v5438 = vmax.f32 %v5001, %v5118
        %v5439 = vmax.f32 %v5003, %v5119
        %v5440 = vmax.f32 %v5005, %v5120
        %v5441 = vmax.f32 %v5007, %v5121
        %v5442 = vmax.f32 %v5009, %v5122
        %v5443 = vmax.f32 %v5011, %v5123
        %v5444 = vmax.f32 %v5013, %v5124
        %v5445 = vmax.f32 %v5015, %v5125
        %v5446 = vmax.f32 %v5017, %v5126
        %v5447 = vmax.f32 %v5019, %v5127
        %v5448 = vmax.f32 %v5021, %v5128
        %v5449 = vmax.f32 %v5023, %v5129
        %v5450 = vmax.f32 %v5025, %v5130
        %v5451 = vmax.f32 %v5027, %v5131
        %v5452 = vmax.f32 %v5029, %v5132
        %v5453 = vmax.f32 %v5031, %v5133
        %v5454 = vmax.f32 %v5033, %v5134
        %v5455 = vmax.f32 %v5035, %v5135
        %v5456 = vmax.f32 %v5037, %v5136
        %v5457 = vmax.f32 %v5039, %v5137
        %v5458 = vmax.f32 %v5041, %v5138
        %v5459 = vmax.f32 %v5043, %v5139
        %v5460 = vmax.f32 %v5045, %v5140
        %v5461 = vmax.f32 %v5047, %v5141
        %v5462 = vmax.f32 %v5049, %v5142
        %v5463 = vmax.f32 %v5051, %v5143
        %v5464 = vmax.f32 %v5053, %v5144
        %v5465 = vmax.f32 %v5055, %v5145
        %v5466 = vmax.f32 %v5057, %v5146
        %v5467 = vmax.f32 %v5059, %v5147
        %v5468 = vmax.f32 %v5061, %v5148
        %v5469 = vmax.f32 %v5063, %v5149
        %v5470 = vmax.f32 %v5065, %v5150
        %v5471 = vmax.f32 %v5067, %v5151
        %v5472 = vmax.f32 %v5069, %v5152
        %v5473 = vmax.f32 %v5071, %v5153
        %v5474 = vmax.f32 %v5073, %v5154
        %v5475 = vmax.f32 %v5075, %v5155
        %v5476 = vmax.f32 %v5077, %v5156
        %v5477 = vmax.f32 %v5079, %v5157
        %v5478 = vmax.f32 %v5081, %v5158
        %v5479 = vmax.f32 %v5083, %v5159
        %v5480 = vmax.f32 %v5085, %v5160
        %v5481 = vmax.f32 %v5087, %v5161
        %v5482 = vmax.f32 %v5089, %v5162
        %v5483 = vmax.f32 %v5091, %v5163
        %v5484 = vmax.f32 %v5093, %v5164
        %v5485 = vmax.f32 %v5095, %v5165
        %v5486 = vmax.f32 %v5097, %v5166
        %v5487 = vmax.f32 %v5099, %v5167
        %v5488 = vmax.f32 %v5101, %v5168
        %v5489 = vmax.f32 %v5103, %v5169
        %v5490 = vmax.f32 %v5105, %v5170
        %v5491 = vmax.f32 %v5171, %v5363
        %v5492 = vmax.f32 %v5172, %v5364
        %v5493 = vmax.f32 %v5173, %v5365
        %v5494 = vmax.f32 %v5174, %v5366
        %v5495 = vmax.f32 %v5175, %v5367
        %v5496 = vmax.f32 %v5176, %v5368
        %v5497 = vmax.f32 %v5177, %v5369
        %v5498 = vmax.f32 %v5178, %v5370
        %v5499 = vmax.f32 %v5179, %v5371
        %v5500 = vmax.f32 %v5180, %v5372
        %v5501 = vmax.f32 %v5181, %v5373
        %v5502 = vmax.f32 %v5182, %v5374
        %v5503 = vmax.f32 %v5183, %v5375
        %v5504 = vmax.f32 %v5184, %v5376
        %v5505 = vmax.f32 %v5185, %v5377
        %v5506 = vmax.f32 %v5186, %v5378
        %v5507 = vmax.f32 %v5187, %v5379
        %v5508 = vmax.f32 %v5188, %v5380
        %v5509 = vmax.f32 %v5189, %v5381
        %v5510 = vmax.f32 %v5190, %v5382
        %v5511 = vmax.f32 %v5191, %v5383
        %v5512 = vmax.f32 %v5192, %v5384
        %v5513 = vmax.f32 %v5193, %v5385
        %v5514 = vmax.f32 %v5194, %v5386
        %v5515 = vmax.f32 %v5195, %v5387
        %v5516 = vmax.f32 %v5196, %v5388
        %v5517 = vmax.f32 %v5197, %v5389
        %v5518 = vmax.f32 %v5198, %v5390
        %v5519 = vmax.f32 %v5199, %v5391
        %v5520 = vmax.f32 %v5200, %v5392
        %v5521 = vmax.f32 %v5201, %v5393
        %v5522 = vmax.f32 %v5202, %v5394
        %v5523 = vmax.f32 %v5203, %v5395
        %v5524 = vmax.f32 %v5204, %v5396
        %v5525 = vmax.f32 %v5205, %v5397
        %v5526 = vmax.f32 %v5206, %v5398
        %v5527 = vmax.f32 %v5207, %v5399
        %v5528 = vmax.f32 %v5208, %v5400
        %v5529 = vmax.f32 %v5209, %v5401
        %v5530 = vmax.f32 %v5210, %v5402
        %v5531 = vmax.f32 %v5211, %v5403
        %v5532 = vmax.f32 %v5212, %v5404
        %v5533 = vmax.f32 %v5213, %v5405
        %v5534 = vmax.f32 %v5214, %v5406
        %v5535 = vmax.f32 %v5215, %v5407
        %v5536 = vmax.f32 %v5216, %v5408
        %v5537 = vmax.f32 %v5217, %v5409
        %v5538 = vmax.f32 %v5218, %v5410
        %v5539 = vmax.f32 %v5219, %v5411
        %v5540 = vmax.f32 %v5220, %v5412
        %v5541 = vmax.f32 %v5221, %v5413
        %v5542 = vmax.f32 %v5222, %v5414
        %v5543 = vmax.f32 %v5223, %v5415
        %v5544 = vmax.f32 %v5224, %v5416
        %v5545 = vmax.f32 %v5225, %v5417
        %v5546 = vmax.f32 %v5226, %v5418
        %v5547 = vmax.f32 %v5227, %v5419
        %v5548 = vmax.f32 %v5228, %v5420
        %v5549 = vmax.f32 %v5229, %v5421
        %v5550 = vmax.f32 %v5230, %v5422
        %v5551 = vmax.f32 %v5231, %v5423
        %v5552 = vmax.f32 %v5232, %v5424
        %v5553 = vmax.f32 %v5233, %v5425
        %v5554 = vmax.f32 %v5234, %v5426
        %v5555 = vmax.f32 %v5427, %v5491
        %v5556 = vmax.f32 %v5428, %v5492
        %v5557 = vmax.f32 %v5429, %v5493
        %v5558 = vmax.f32 %v5430, %v5494
        %v5559 = vmax.f32 %v5431, %v5495
        %v5560 = vmax.f32 %v5432, %v5496
        %v5561 = vmax.f32 %v5433, %v5497
        %v5562 = vmax.f32 %v5434, %v5498
        %v5563 = vmax.f32 %v5435, %v5499
        %v5564 = vmax.f32 %v5436, %v5500
        %v5565 = vmax.f32 %v5437, %v5501
        %v5566 = vmax.f32 %v5438, %v5502
        %v5567 = vmax.f32 %v5439, %v5503
        %v5568 = vmax.f32 %v5440, %v5504
        %v5569 = vmax.f32 %v5441, %v5505
        %v5570 = vmax.f32 %v5442, %v5506
        %v5571 = vmax.f32 %v5443, %v5507
        %v5572 = vmax.f32 %v5444, %v5508
        %v5573 = vmax.f32 %v5445, %v5509
        %v5574 = vmax.f32 %v5446, %v5510
        %v5575 = vmax.f32 %v5447, %v5511
        %v5576 = vmax.f32 %v5448, %v5512
        %v5577 = vmax.f32 %v5449, %v5513
        %v5578 = vmax.f32 %v5450, %v5514
        %v5579 = vmax.f32 %v5451, %v5515
        %v5580 = vmax.f32 %v5452, %v5516
        %v5581 = vmax.f32 %v5453, %v5517
        %v5582 = vmax.f32 %v5454, %v5518
        %v5583 = vmax.f32 %v5455, %v5519
        %v5584 = vmax.f32 %v5456, %v5520
        %v5585 = vmax.f32 %v5457, %v5521
        %v5586 = vmax.f32 %v5458, %v5522
        %v5587 = vmax.f32 %v5459, %v5523
        %v5588 = vmax.f32 %v5460, %v5524
        %v5589 = vmax.f32 %v5461, %v5525
        %v5590 = vmax.f32 %v5462, %v5526
        %v5591 = vmax.f32 %v5463, %v5527
        %v5592 = vmax.f32 %v5464, %v5528
        %v5593 = vmax.f32 %v5465, %v5529
        %v5594 = vmax.f32 %v5466, %v5530
        %v5595 = vmax.f32 %v5467, %v5531
        %v5596 = vmax.f32 %v5468, %v5532
        %v5597 = vmax.f32 %v5469, %v5533
        %v5598 = vmax.f32 %v5470, %v5534
        %v5599 = vmax.f32 %v5471, %v5535
        %v5600 = vmax.f32 %v5472, %v5536
        %v5601 = vmax.f32 %v5473, %v5537
        %v5602 = vmax.f32 %v5474, %v5538
        %v5603 = vmax.f32 %v5475, %v5539
        %v5604 = vmax.f32 %v5476, %v5540
        %v5605 = vmax.f32 %v5477, %v5541
        %v5606 = vmax.f32 %v5478, %v5542
        %v5607 = vmax.f32 %v5479, %v5543
        %v5608 = vmax.f32 %v5480, %v5544
        %v5609 = vmax.f32 %v5481, %v5545
        %v5610 = vmax.f32 %v5482, %v5546
        %v5611 = vmax.f32 %v5483, %v5547
        %v5612 = vmax.f32 %v5484, %v5548
        %v5613 = vmax.f32 %v5485, %v5549
        %v5614 = vmax.f32 %v5486, %v5550
        %v5615 = vmax.f32 %v5487, %v5551
        %v5616 = vmax.f32 %v5488, %v5552
        %v5617 = vmax.f32 %v5489, %v5553
        %v5618 = vmax.f32 %v5490, %v5554
        %v5619 = vmax.f32 %v5555, 0.0
        %v5620 = vmax.f32 %v5556, 0.0
        %v5621 = vmax.f32 %v5557, 0.0
        %v5622 = vmax.f32 %v5558, 0.0
        %v5623 = vmax.f32 %v5559, 0.0
        %v5624 = vmax.f32 %v5560, 0.0
        %v5625 = vmax.f32 %v5561, 0.0
        %v5626 = vmax.f32 %v5562, 0.0
        %v5627 = vmax.f32 %v5563, 0.0
        %v5628 = vmax.f32 %v5564, 0.0
        %v5629 = vmax.f32 %v5565, 0.0
        %v5630 = vmax.f32 %v5566, 0.0
        %v5631 = vmax.f32 %v5567, 0.0
        %v5632 = vmax.f32 %v5568, 0.0
        %v5633 = vmax.f32 %v5569, 0.0
        %v5634 = vmax.f32 %v5570, 0.0
        %v5635 = vmax.f32 %v5571, 0.0
        %v5636 = vmax.f32 %v5572, 0.0
        %v5637 = vmax.f32 %v5573, 0.0
        %v5638 = vmax.f32 %v5574, 0.0
        %v5639 = vmax.f32 %v5575, 0.0
        %v5640 = vmax.f32 %v5576, 0.0
        %v5641 = vmax.f32 %v5577, 0.0
        %v5642 = vmax.f32 %v5578, 0.0
        %v5643 = vmax.f32 %v5579, 0.0
        %v5644 = vmax.f32 %v5580, 0.0
        %v5645 = vmax.f32 %v5581, 0.0
        %v5646 = vmax.f32 %v5582, 0.0
        %v5647 = vmax.f32 %v5583, 0.0
        %v5648 = vmax.f32 %v5584, 0.0
        %v5649 = vmax.f32 %v5585, 0.0
        %v5650 = vmax.f32 %v5586, 0.0
        %v5651 = vmax.f32 %v5587, 0.0
        %v5652 = vmax.f32 %v5588, 0.0
        %v5653 = vmax.f32 %v5589, 0.0
        %v5654 = vmax.f32 %v5590, 0.0
        %v5655 = vmax.f32 %v5591, 0.0
        %v5656 = vmax.f32 %v5592, 0.0
        %v5657 = vmax.f32 %v5593, 0.0
        %v5658 = vmax.f32 %v5594, 0.0
        %v5659 = vmax.f32 %v5595, 0.0
        %v5660 = vmax.f32 %v5596, 0.0
        %v5661 = vmax.f32 %v5597, 0.0
        %v5662 = vmax.f32 %v5598, 0.0
        %v5663 = vmax.f32 %v5599, 0.0
        %v5664 = vmax.f32 %v5600, 0.0
        %v5665 = vmax.f32 %v5601, 0.0
        %v5666 = vmax.f32 %v5602, 0.0
        %v5667 = vmax.f32 %v5603, 0.0
        %v5668 = vmax.f32 %v5604, 0.0
        %v5669 = vmax.f32 %v5605, 0.0
        %v5670 = vmax.f32 %v5606, 0.0
        %v5671 = vmax.f32 %v5607, 0.0
        %v5672 = vmax.f32 %v5608, 0.0
        %v5673 = vmax.f32 %v5609, 0.0
        %v5674 = vmax.f32 %v5610, 0.0
        %v5675 = vmax.f32 %v5611, 0.0
        %v5676 = vmax.f32 %v5612, 0.0
        %v5677 = vmax.f32 %v5613, 0.0
        %v5678 = vmax.f32 %v5614, 0.0
        %v5679 = vmax.f32 %v5615, 0.0
        %v5680 = vmax.f32 %v5616, 0.0
        %v5681 = vmax.f32 %v5617, 0.0
        %v5682 = vmax.f32 %v5618, 0.0
        %v5683 = vld [vmem:[%s3] sm:$0xff]
        %v5684 = vld [vmem:[%s3 + $0x8] sm:$0xff]
        %v5685 = vld [vmem:[%s3 + $0x10] sm:$0xff]
        %v5686 = vld [vmem:[%s3 + $0x18] sm:$0xff]
        %vm5687 = vcmask 261120
        %v5689 = vsel %vm5687, %v5619, 0
        %v5692 = vsel %vm5687, %v5620, 0
        %v5695 = vsel %vm5687, %v5621, 0
        %v5698 = vsel %vm5687, %v5622, 0
        %v5701 = vsel %vm5687, %v5623, 0
        %v5704 = vsel %vm5687, %v5624, 0
        %v5707 = vsel %vm5687, %v5625, 0
        %v5710 = vsel %vm5687, %v5626, 0
        %v5713 = vsel %vm5687, %v5627, 0
        %v5716 = vsel %vm5687, %v5628, 0
        %v5719 = vsel %vm5687, %v5629, 0
        %v5722 = vsel %vm5687, %v5630, 0
        %v5725 = vsel %vm5687, %v5631, 0
        %v5728 = vsel %vm5687, %v5632, 0
        %v5731 = vsel %vm5687, %v5633, 0
        %v5734 = vsel %vm5687, %v5634, 0
        %v5737 = vsel %vm5687, %v5635, 0
        %v5740 = vsel %vm5687, %v5636, 0
        %v5743 = vsel %vm5687, %v5637, 0
        %v5746 = vsel %vm5687, %v5638, 0
        %v5749 = vsel %vm5687, %v5639, 0
        %v5752 = vsel %vm5687, %v5640, 0
        %v5755 = vsel %vm5687, %v5641, 0
        %v5758 = vsel %vm5687, %v5642, 0
        %v5761 = vsel %vm5687, %v5643, 0
        %v5764 = vsel %vm5687, %v5644, 0
        %v5767 = vsel %vm5687, %v5645, 0
        %v5770 = vsel %vm5687, %v5646, 0
        %v5773 = vsel %vm5687, %v5647, 0
        %v5776 = vsel %vm5687, %v5648, 0
        %v5779 = vsel %vm5687, %v5649, 0
        %v5782 = vsel %vm5687, %v5650, 0
        %v5785 = vsel %vm5687, %v5651, 0
        %v5788 = vsel %vm5687, %v5652, 0
        %v5791 = vsel %vm5687, %v5653, 0
        %v5794 = vsel %vm5687, %v5654, 0
        %v5797 = vsel %vm5687, %v5655, 0
        %v5800 = vsel %vm5687, %v5656, 0
        %v5803 = vsel %vm5687, %v5657, 0
        %v5806 = vsel %vm5687, %v5658, 0
        %v5809 = vsel %vm5687, %v5659, 0
        %v5812 = vsel %vm5687, %v5660, 0
        %v5815 = vsel %vm5687, %v5661, 0
        %v5818 = vsel %vm5687, %v5662, 0
        %v5821 = vsel %vm5687, %v5663, 0
        %v5824 = vsel %vm5687, %v5664, 0
        %v5827 = vsel %vm5687, %v5665, 0
        %v5830 = vsel %vm5687, %v5666, 0
        %v5833 = vsel %vm5687, %v5667, 0
        %v5836 = vsel %vm5687, %v5668, 0
        %v5839 = vsel %vm5687, %v5669, 0
        %v5842 = vsel %vm5687, %v5670, 0
        %v5845 = vsel %vm5687, %v5671, 0
        %v5848 = vsel %vm5687, %v5672, 0
        %v5851 = vsel %vm5687, %v5673, 0
        %v5854 = vsel %vm5687, %v5674, 0
        %v5857 = vsel %vm5687, %v5675, 0
        %v5860 = vsel %vm5687, %v5676, 0
        %v5863 = vsel %vm5687, %v5677, 0
        %v5866 = vsel %vm5687, %v5678, 0
        %v5869 = vsel %vm5687, %v5679, 0
        %v5872 = vsel %vm5687, %v5680, 0
        %v5875 = vsel %vm5687, %v5681, 0
        %v5878 = vsel %vm5687, %v5682, 0
        %5880 = vmatprep.subr.mxu0 0.0
        %5881 = vmatpush1.msra.mxu0 %v5683
        %5882 = vmatprep.subr.mxu0 0.0
        %5883 = vmatpush1.msra.mxu0 %v5684
        %5884 = vmatprep.subr.mxu0 0.0
        %5885 = vmatpush1.msra.mxu0 %v5685
        %5886 = vmatprep.subr.mxu0 0.0
        %5887 = vmatpush1.msra.mxu0 %v5686
        %5888 = vmatprep.subr.mxu0 0.0
        %5889 = vmatpush1.msra.mxu0 0.0
        %5890 = vmatprep.subr.mxu0 0.0
        %5891 = vmatpush1.msra.mxu0 0.0
        %5892 = vmatprep.subr.mxu0 0.0
        %5893 = vmatpush1.msra.mxu0 0.0
        %5894 = vmatprep.subr.mxu0 0.0
        %5895 = vmatpush1.msra.mxu0 0.0
        %5896 = vmatprep.subr.mxu0 0.0
        %5897 = vmatpush1.msra.mxu0 0.0
        %5898 = vmatprep.subr.mxu0 0.0
        %5899 = vmatpush1.msra.mxu0 0.0
        %5900 = vmatprep.subr.mxu0 0.0
        %5901 = vmatpush1.msra.mxu0 0.0
        %5902 = vmatprep.subr.mxu0 0.0
        %5903 = vmatpush1.msra.mxu0 0.0
        %5904 = vmatprep.subr.mxu0 0.0
        %5905 = vmatpush1.msra.mxu0 0.0
        %5906 = vmatprep.subr.mxu0 0.0
        %5907 = vmatpush1.msra.mxu0 0.0
        %5908 = vmatprep.subr.mxu0 0.0
        %5909 = vmatpush1.msra.mxu0 0.0
        %5910 = vmatprep.subr.mxu0 0.0
        %5911 = vmatpush1.msra.mxu0 0.0
        %5912 = vmatprep.subr.mxu0 0.0
        %5913 = vmatpush1.msra.mxu0 0.0
        %5914 = vmatprep.subr.mxu0 0.0
        %5915 = vmatpush1.msra.mxu0 0.0
        %5916 = vmatprep.subr.mxu0 0.0
        %5917 = vmatpush1.msra.mxu0 0.0
        %5918 = vmatprep.subr.mxu0 0.0
        %5919 = vmatpush1.msra.mxu0 0.0
        %5920 = vmatprep.subr.mxu0 0.0
        %5921 = vmatpush1.msra.mxu0 0.0
        %5922 = vmatprep.subr.mxu0 0.0
        %5923 = vmatpush1.msra.mxu0 0.0
        %5924 = vmatprep.subr.mxu0 0.0
        %5925 = vmatpush1.msra.mxu0 0.0
        %5926 = vmatprep.subr.mxu0 0.0
        %5927 = vmatpush1.msra.mxu0 0.0
        %5928 = vmatprep.subr.mxu0 0.0
        %5929 = vmatpush1.msra.mxu0 0.0
        %5930 = vmatprep.subr.mxu0 0.0
        %5931 = vmatpush1.msra.mxu0 0.0
        %5932 = vmatprep.subr.mxu0 0.0
        %5933 = vmatpush1.msra.mxu0 0.0
        %5934 = vmatprep.subr.mxu0 0.0
        %5935 = vmatpush1.msra.mxu0 0.0
        %5936 = vmatprep.subr.mxu0 0.0
        %5937 = vmatpush1.msra.mxu0 0.0
        %5938 = vmatprep.subr.mxu0 0.0
        %5939 = vmatpush1.msra.mxu0 0.0
        %5940 = vmatprep.subr.mxu0 0.0
        %5941 = vmatpush1.msra.mxu0 0.0
        %5942 = vmatprep.subr.mxu0 0.0
        %5943 = vmatpush1.msra.mxu0 0.0
        %5944 = vmatprep.mubr.f32.mxu0 0.0
        %5945 = vmatmul.mubr.f32.gmra.mrb[0].mxu0 %v5689
        %v5946 = vpop.f32.mrb[0].mxu0
        %v5947 = vadd.f32 0.0, %v5946
        %v5948 = vpop.f32.mrb[0].mxu0
        %5949 = vmatprep.mubr.f32.mxu0 0.0
        %5950 = vmatmul.mubr.f32.gmra.mrb[0].mxu0 %v5692
        %v5951 = vpop.f32.mrb[0].mxu0
        %v5952 = vadd.f32 0.0, %v5951
        %v5953 = vpop.f32.mrb[0].mxu0
        %5954 = vmatprep.mubr.f32.mxu0 0.0
        %5955 = vmatmul.mubr.f32.gmra.mrb[0].mxu0 %v5695
        %v5956 = vpop.f32.mrb[0].mxu0
        %v5957 = vadd.f32 0.0, %v5956
        %v5958 = vpop.f32.mrb[0].mxu0
        %5959 = vmatprep.mubr.f32.mxu0 0.0
        %5960 = vmatmul.mubr.f32.gmra.mrb[0].mxu0 %v5698
        %v5961 = vpop.f32.mrb[0].mxu0
        %v5962 = vadd.f32 0.0, %v5961
        %v5963 = vpop.f32.mrb[0].mxu0
        %5964 = vmatprep.mubr.f32.mxu0 0.0
        %5965 = vmatmul.mubr.f32.gmra.mrb[0].mxu0 %v5701
        %v5966 = vpop.f32.mrb[0].mxu0
        %v5967 = vadd.f32 0.0, %v5966
        %v5968 = vpop.f32.mrb[0].mxu0
        %5969 = vmatprep.mubr.f32.mxu0 0.0
        %5970 = vmatmul.mubr.f32.gmra.mrb[0].mxu0 %v5704
        %v5971 = vpop.f32.mrb[0].mxu0
        %v5972 = vadd.f32 0.0, %v5971
        %v5973 = vpop.f32.mrb[0].mxu0
        %5974 = vmatprep.mubr.f32.mxu0 0.0
        %5975 = vmatmul.mubr.f32.gmra.mrb[0].mxu0 %v5707
        %v5976 = vpop.f32.mrb[0].mxu0
        %v5977 = vadd.f32 0.0, %v5976
        %v5978 = vpop.f32.mrb[0].mxu0
        %5979 = vmatprep.mubr.f32.mxu0 0.0
        %5980 = vmatmul.mubr.f32.gmra.mrb[0].mxu0 %v5710
        %v5981 = vpop.f32.mrb[0].mxu0
        %v5982 = vadd.f32 0.0, %v5981
        %v5983 = vpop.f32.mrb[0].mxu0
        %5984 = vmatprep.mubr.f32.mxu0 0.0
        %5985 = vmatmul.mubr.f32.gmra.mrb[0].mxu0 %v5713
        %v5986 = vpop.f32.mrb[0].mxu0
        %v5987 = vadd.f32 0.0, %v5986
        %v5988 = vpop.f32.mrb[0].mxu0
        %5989 = vmatprep.mubr.f32.mxu0 0.0
        %5990 = vmatmul.mubr.f32.gmra.mrb[0].mxu0 %v5716
        %v5991 = vpop.f32.mrb[0].mxu0
        %v5992 = vadd.f32 0.0, %v5991
        %v5993 = vpop.f32.mrb[0].mxu0
        %5994 = vmatprep.mubr.f32.mxu0 0.0
        %5995 = vmatmul.mubr.f32.gmra.mrb[0].mxu0 %v5719
        %v5996 = vpop.f32.mrb[0].mxu0
        %v5997 = vadd.f32 0.0, %v5996
        %v5998 = vpop.f32.mrb[0].mxu0
        %5999 = vmatprep.mubr.f32.mxu0 0.0
        %6000 = vmatmul.mubr.f32.gmra.mrb[0].mxu0 %v5722
        %v6001 = vpop.f32.mrb[0].mxu0
        %v6002 = vadd.f32 0.0, %v6001
        %v6003 = vpop.f32.mrb[0].mxu0
        %6004 = vmatprep.mubr.f32.mxu0 0.0
        %6005 = vmatmul.mubr.f32.gmra.mrb[0].mxu0 %v5725
        %v6006 = vpop.f32.mrb[0].mxu0
        %v6007 = vadd.f32 0.0, %v6006
        %v6008 = vpop.f32.mrb[0].mxu0
        %6009 = vmatprep.mubr.f32.mxu0 0.0
        %6010 = vmatmul.mubr.f32.gmra.mrb[0].mxu0 %v5728
        %v6011 = vpop.f32.mrb[0].mxu0
        %v6012 = vadd.f32 0.0, %v6011
        %v6013 = vpop.f32.mrb[0].mxu0
        %6014 = vmatprep.mubr.f32.mxu0 0.0
        %6015 = vmatmul.mubr.f32.gmra.mrb[0].mxu0 %v5731
        %v6016 = vpop.f32.mrb[0].mxu0
        %v6017 = vadd.f32 0.0, %v6016
        %v6018 = vpop.f32.mrb[0].mxu0
        %6019 = vmatprep.mubr.f32.mxu0 0.0
        %6020 = vmatmul.mubr.f32.gmra.mrb[0].mxu0 %v5734
        %v6021 = vpop.f32.mrb[0].mxu0
        %v6022 = vadd.f32 0.0, %v6021
        %v6023 = vpop.f32.mrb[0].mxu0
        %6024 = vmatprep.mubr.f32.mxu0 0.0
        %6025 = vmatmul.mubr.f32.gmra.mrb[0].mxu0 %v5737
        %v6026 = vpop.f32.mrb[0].mxu0
        %v6027 = vadd.f32 0.0, %v6026
        %v6028 = vpop.f32.mrb[0].mxu0
        %6029 = vmatprep.mubr.f32.mxu0 0.0
        %6030 = vmatmul.mubr.f32.gmra.mrb[0].mxu0 %v5740
        %v6031 = vpop.f32.mrb[0].mxu0
        %v6032 = vadd.f32 0.0, %v6031
        %v6033 = vpop.f32.mrb[0].mxu0
        %6034 = vmatprep.mubr.f32.mxu0 0.0
        %6035 = vmatmul.mubr.f32.gmra.mrb[0].mxu0 %v5743
        %v6036 = vpop.f32.mrb[0].mxu0
        %v6037 = vadd.f32 0.0, %v6036
        %v6038 = vpop.f32.mrb[0].mxu0
        %6039 = vmatprep.mubr.f32.mxu0 0.0
        %6040 = vmatmul.mubr.f32.gmra.mrb[0].mxu0 %v5746
        %v6041 = vpop.f32.mrb[0].mxu0
        %v6042 = vadd.f32 0.0, %v6041
        %v6043 = vpop.f32.mrb[0].mxu0
        %6044 = vmatprep.mubr.f32.mxu0 0.0
        %6045 = vmatmul.mubr.f32.gmra.mrb[0].mxu0 %v5749
        %v6046 = vpop.f32.mrb[0].mxu0
        %v6047 = vadd.f32 0.0, %v6046
        %v6048 = vpop.f32.mrb[0].mxu0
        %6049 = vmatprep.mubr.f32.mxu0 0.0
        %6050 = vmatmul.mubr.f32.gmra.mrb[0].mxu0 %v5752
        %v6051 = vpop.f32.mrb[0].mxu0
        %v6052 = vadd.f32 0.0, %v6051
        %v6053 = vpop.f32.mrb[0].mxu0
        %6054 = vmatprep.mubr.f32.mxu0 0.0
        %6055 = vmatmul.mubr.f32.gmra.mrb[0].mxu0 %v5755
        %v6056 = vpop.f32.mrb[0].mxu0
        %v6057 = vadd.f32 0.0, %v6056
        %v6058 = vpop.f32.mrb[0].mxu0
        %6059 = vmatprep.mubr.f32.mxu0 0.0
        %6060 = vmatmul.mubr.f32.gmra.mrb[0].mxu0 %v5758
        %v6061 = vpop.f32.mrb[0].mxu0
        %v6062 = vadd.f32 0.0, %v6061
        %v6063 = vpop.f32.mrb[0].mxu0
        %6064 = vmatprep.mubr.f32.mxu0 0.0
        %6065 = vmatmul.mubr.f32.gmra.mrb[0].mxu0 %v5761
        %v6066 = vpop.f32.mrb[0].mxu0
        %v6067 = vadd.f32 0.0, %v6066
        %v6068 = vpop.f32.mrb[0].mxu0
        %6069 = vmatprep.mubr.f32.mxu0 0.0
        %6070 = vmatmul.mubr.f32.gmra.mrb[0].mxu0 %v5764
        %v6071 = vpop.f32.mrb[0].mxu0
        %v6072 = vadd.f32 0.0, %v6071
        %v6073 = vpop.f32.mrb[0].mxu0
        %6074 = vmatprep.mubr.f32.mxu0 0.0
        %6075 = vmatmul.mubr.f32.gmra.mrb[0].mxu0 %v5767
        %v6076 = vpop.f32.mrb[0].mxu0
        %v6077 = vadd.f32 0.0, %v6076
        %v6078 = vpop.f32.mrb[0].mxu0
        %6079 = vmatprep.mubr.f32.mxu0 0.0
        %6080 = vmatmul.mubr.f32.gmra.mrb[0].mxu0 %v5770
        %v6081 = vpop.f32.mrb[0].mxu0
        %v6082 = vadd.f32 0.0, %v6081
        %v6083 = vpop.f32.mrb[0].mxu0
        %6084 = vmatprep.mubr.f32.mxu0 0.0
        %6085 = vmatmul.mubr.f32.gmra.mrb[0].mxu0 %v5773
        %v6086 = vpop.f32.mrb[0].mxu0
        %v6087 = vadd.f32 0.0, %v6086
        %v6088 = vpop.f32.mrb[0].mxu0
        %6089 = vmatprep.mubr.f32.mxu0 0.0
        %6090 = vmatmul.mubr.f32.gmra.mrb[0].mxu0 %v5776
        %v6091 = vpop.f32.mrb[0].mxu0
        %v6092 = vadd.f32 0.0, %v6091
        %v6093 = vpop.f32.mrb[0].mxu0
        %6094 = vmatprep.mubr.f32.mxu0 0.0
        %6095 = vmatmul.mubr.f32.gmra.mrb[0].mxu0 %v5779
        %v6096 = vpop.f32.mrb[0].mxu0
        %v6097 = vadd.f32 0.0, %v6096
        %v6098 = vpop.f32.mrb[0].mxu0
        %6099 = vmatprep.mubr.f32.mxu0 0.0
        %6100 = vmatmul.mubr.f32.gmra.mrb[0].mxu0 %v5782
        %v6101 = vpop.f32.mrb[0].mxu0
        %v6102 = vadd.f32 0.0, %v6101
        %v6103 = vpop.f32.mrb[0].mxu0
        %6104 = vmatprep.mubr.f32.mxu0 0.0
        %6105 = vmatmul.mubr.f32.gmra.mrb[0].mxu0 %v5785
        %v6106 = vpop.f32.mrb[0].mxu0
        %v6107 = vadd.f32 0.0, %v6106
        %v6108 = vpop.f32.mrb[0].mxu0
        %6109 = vmatprep.mubr.f32.mxu0 0.0
        %6110 = vmatmul.mubr.f32.gmra.mrb[0].mxu0 %v5788
        %v6111 = vpop.f32.mrb[0].mxu0
        %v6112 = vadd.f32 0.0, %v6111
        %v6113 = vpop.f32.mrb[0].mxu0
        %6114 = vmatprep.mubr.f32.mxu0 0.0
        %6115 = vmatmul.mubr.f32.gmra.mrb[0].mxu0 %v5791
        %v6116 = vpop.f32.mrb[0].mxu0
        %v6117 = vadd.f32 0.0, %v6116
        %v6118 = vpop.f32.mrb[0].mxu0
        %6119 = vmatprep.mubr.f32.mxu0 0.0
        %6120 = vmatmul.mubr.f32.gmra.mrb[0].mxu0 %v5794
        %v6121 = vpop.f32.mrb[0].mxu0
        %v6122 = vadd.f32 0.0, %v6121
        %v6123 = vpop.f32.mrb[0].mxu0
        %6124 = vmatprep.mubr.f32.mxu0 0.0
        %6125 = vmatmul.mubr.f32.gmra.mrb[0].mxu0 %v5797
        %v6126 = vpop.f32.mrb[0].mxu0
        %v6127 = vadd.f32 0.0, %v6126
        %v6128 = vpop.f32.mrb[0].mxu0
        %6129 = vmatprep.mubr.f32.mxu0 0.0
        %6130 = vmatmul.mubr.f32.gmra.mrb[0].mxu0 %v5800
        %v6131 = vpop.f32.mrb[0].mxu0
        %v6132 = vadd.f32 0.0, %v6131
        %v6133 = vpop.f32.mrb[0].mxu0
        %6134 = vmatprep.mubr.f32.mxu0 0.0
        %6135 = vmatmul.mubr.f32.gmra.mrb[0].mxu0 %v5803
        %v6136 = vpop.f32.mrb[0].mxu0
        %v6137 = vadd.f32 0.0, %v6136
        %v6138 = vpop.f32.mrb[0].mxu0
        %6139 = vmatprep.mubr.f32.mxu0 0.0
        %6140 = vmatmul.mubr.f32.gmra.mrb[0].mxu0 %v5806
        %v6141 = vpop.f32.mrb[0].mxu0
        %v6142 = vadd.f32 0.0, %v6141
        %v6143 = vpop.f32.mrb[0].mxu0
        %6144 = vmatprep.mubr.f32.mxu0 0.0
        %6145 = vmatmul.mubr.f32.gmra.mrb[0].mxu0 %v5809
        %v6146 = vpop.f32.mrb[0].mxu0
        %v6147 = vadd.f32 0.0, %v6146
        %v6148 = vpop.f32.mrb[0].mxu0
        %6149 = vmatprep.mubr.f32.mxu0 0.0
        %6150 = vmatmul.mubr.f32.gmra.mrb[0].mxu0 %v5812
        %v6151 = vpop.f32.mrb[0].mxu0
        %v6152 = vadd.f32 0.0, %v6151
        %v6153 = vpop.f32.mrb[0].mxu0
        %6154 = vmatprep.mubr.f32.mxu0 0.0
        %6155 = vmatmul.mubr.f32.gmra.mrb[0].mxu0 %v5815
        %v6156 = vpop.f32.mrb[0].mxu0
        %v6157 = vadd.f32 0.0, %v6156
        %v6158 = vpop.f32.mrb[0].mxu0
        %6159 = vmatprep.mubr.f32.mxu0 0.0
        %6160 = vmatmul.mubr.f32.gmra.mrb[0].mxu0 %v5818
        %v6161 = vpop.f32.mrb[0].mxu0
        %v6162 = vadd.f32 0.0, %v6161
        %v6163 = vpop.f32.mrb[0].mxu0
        %6164 = vmatprep.mubr.f32.mxu0 0.0
        %6165 = vmatmul.mubr.f32.gmra.mrb[0].mxu0 %v5821
        %v6166 = vpop.f32.mrb[0].mxu0
        %v6167 = vadd.f32 0.0, %v6166
        %v6168 = vpop.f32.mrb[0].mxu0
        %6169 = vmatprep.mubr.f32.mxu0 0.0
        %6170 = vmatmul.mubr.f32.gmra.mrb[0].mxu0 %v5824
        %v6171 = vpop.f32.mrb[0].mxu0
        %v6172 = vadd.f32 0.0, %v6171
        %v6173 = vpop.f32.mrb[0].mxu0
        %6174 = vmatprep.mubr.f32.mxu0 0.0
        %6175 = vmatmul.mubr.f32.gmra.mrb[0].mxu0 %v5827
        %v6176 = vpop.f32.mrb[0].mxu0
        %v6177 = vadd.f32 0.0, %v6176
        %v6178 = vpop.f32.mrb[0].mxu0
        %6179 = vmatprep.mubr.f32.mxu0 0.0
        %6180 = vmatmul.mubr.f32.gmra.mrb[0].mxu0 %v5830
        %v6181 = vpop.f32.mrb[0].mxu0
        %v6182 = vadd.f32 0.0, %v6181
        %v6183 = vpop.f32.mrb[0].mxu0
        %6184 = vmatprep.mubr.f32.mxu0 0.0
        %6185 = vmatmul.mubr.f32.gmra.mrb[0].mxu0 %v5833
        %v6186 = vpop.f32.mrb[0].mxu0
        %v6187 = vadd.f32 0.0, %v6186
        %v6188 = vpop.f32.mrb[0].mxu0
        %6189 = vmatprep.mubr.f32.mxu0 0.0
        %6190 = vmatmul.mubr.f32.gmra.mrb[0].mxu0 %v5836
        %v6191 = vpop.f32.mrb[0].mxu0
        %v6192 = vadd.f32 0.0, %v6191
        %v6193 = vpop.f32.mrb[0].mxu0
        %6194 = vmatprep.mubr.f32.mxu0 0.0
        %6195 = vmatmul.mubr.f32.gmra.mrb[0].mxu0 %v5839
        %v6196 = vpop.f32.mrb[0].mxu0
        %v6197 = vadd.f32 0.0, %v6196
        %v6198 = vpop.f32.mrb[0].mxu0
        %6199 = vmatprep.mubr.f32.mxu0 0.0
        %6200 = vmatmul.mubr.f32.gmra.mrb[0].mxu0 %v5842
        %v6201 = vpop.f32.mrb[0].mxu0
        %v6202 = vadd.f32 0.0, %v6201
        %v6203 = vpop.f32.mrb[0].mxu0
        %6204 = vmatprep.mubr.f32.mxu0 0.0
        %6205 = vmatmul.mubr.f32.gmra.mrb[0].mxu0 %v5845
        %v6206 = vpop.f32.mrb[0].mxu0
        %v6207 = vadd.f32 0.0, %v6206
        %v6208 = vpop.f32.mrb[0].mxu0
        %6209 = vmatprep.mubr.f32.mxu0 0.0
        %6210 = vmatmul.mubr.f32.gmra.mrb[0].mxu0 %v5848
        %v6211 = vpop.f32.mrb[0].mxu0
        %v6212 = vadd.f32 0.0, %v6211
        %v6213 = vpop.f32.mrb[0].mxu0
        %6214 = vmatprep.mubr.f32.mxu0 0.0
        %6215 = vmatmul.mubr.f32.gmra.mrb[0].mxu0 %v5851
        %v6216 = vpop.f32.mrb[0].mxu0
        %v6217 = vadd.f32 0.0, %v6216
        %v6218 = vpop.f32.mrb[0].mxu0
        %6219 = vmatprep.mubr.f32.mxu0 0.0
        %6220 = vmatmul.mubr.f32.gmra.mrb[0].mxu0 %v5854
        %v6221 = vpop.f32.mrb[0].mxu0
        %v6222 = vadd.f32 0.0, %v6221
        %v6223 = vpop.f32.mrb[0].mxu0
        %6224 = vmatprep.mubr.f32.mxu0 0.0
        %6225 = vmatmul.mubr.f32.gmra.mrb[0].mxu0 %v5857
        %v6226 = vpop.f32.mrb[0].mxu0
        %v6227 = vadd.f32 0.0, %v6226
        %v6228 = vpop.f32.mrb[0].mxu0
        %6229 = vmatprep.mubr.f32.mxu0 0.0
        %6230 = vmatmul.mubr.f32.gmra.mrb[0].mxu0 %v5860
        %v6231 = vpop.f32.mrb[0].mxu0
        %v6232 = vadd.f32 0.0, %v6231
        %v6233 = vpop.f32.mrb[0].mxu0
        %6234 = vmatprep.mubr.f32.mxu0 0.0
        %6235 = vmatmul.mubr.f32.gmra.mrb[0].mxu0 %v5863
        %v6236 = vpop.f32.mrb[0].mxu0
        %v6237 = vadd.f32 0.0, %v6236
        %v6238 = vpop.f32.mrb[0].mxu0
        %6239 = vmatprep.mubr.f32.mxu0 0.0
        %6240 = vmatmul.mubr.f32.gmra.mrb[0].mxu0 %v5866
        %v6241 = vpop.f32.mrb[0].mxu0
        %v6242 = vadd.f32 0.0, %v6241
        %v6243 = vpop.f32.mrb[0].mxu0
        %6244 = vmatprep.mubr.f32.mxu0 0.0
        %6245 = vmatmul.mubr.f32.gmra.mrb[0].mxu0 %v5869
        %v6246 = vpop.f32.mrb[0].mxu0
        %v6247 = vadd.f32 0.0, %v6246
        %v6248 = vpop.f32.mrb[0].mxu0
        %6249 = vmatprep.mubr.f32.mxu0 0.0
        %6250 = vmatmul.mubr.f32.gmra.mrb[0].mxu0 %v5872
        %v6251 = vpop.f32.mrb[0].mxu0
        %v6252 = vadd.f32 0.0, %v6251
        %v6253 = vpop.f32.mrb[0].mxu0
        %6254 = vmatprep.mubr.f32.mxu0 0.0
        %6255 = vmatmul.mubr.f32.gmra.mrb[0].mxu0 %v5875
        %v6256 = vpop.f32.mrb[0].mxu0
        %v6257 = vadd.f32 0.0, %v6256
        %v6258 = vpop.f32.mrb[0].mxu0
        %6259 = vmatprep.mubr.f32.mxu0 0.0
        %6260 = vmatmul.mubr.f32.gmra.mrb[0].mxu0 %v5878
        %v6261 = vpop.f32.mrb[0].mxu0
        %v6262 = vadd.f32 0.0, %v6261
        %v6263 = vpop.f32.mrb[0].mxu0
        %6264 = vdwg.mxu0
        %s6265 = scalar_lea.vmem %s3, 32
        %v6266 = vld [vmem:[%s6265] sm:$0xff]
        %v6267 = vld [vmem:[%s6265 + $0x8] sm:$0xff]
        %v6268 = vld [vmem:[%s6265 + $0x10] sm:$0xff]
        %v6269 = vld [vmem:[%s6265 + $0x18] sm:$0xff]
        %s6270 = scalar_lea.vmem %s3, 64
        %v6271 = vld [vmem:[%s6270] sm:$0xff]
        %v6272 = vld [vmem:[%s6270 + $0x8] sm:$0xff]
        %v6273 = vld [vmem:[%s6270 + $0x10] sm:$0xff]
        %v6274 = vld [vmem:[%s6270 + $0x18] sm:$0xff]
        %6275 = vmatprep.subr.mxu0 0.0
        %6276 = vmatpush1.msra.mxu0 %v6271
        %6277 = vmatprep.subr.mxu0 0.0
        %6278 = vmatpush1.msra.mxu0 %v6272
        %6279 = vmatprep.subr.mxu0 0.0
        %6280 = vmatpush1.msra.mxu0 %v6273
        %6281 = vmatprep.subr.mxu0 0.0
        %6282 = vmatpush1.msra.mxu0 %v6274
        %6283 = vmatprep.subr.mxu0 0.0
        %6284 = vmatpush1.msra.mxu0 0.0
        %6285 = vmatprep.subr.mxu0 0.0
        %6286 = vmatpush1.msra.mxu0 0.0
        %6287 = vmatprep.subr.mxu0 0.0
        %6288 = vmatpush1.msra.mxu0 0.0
        %6289 = vmatprep.subr.mxu0 0.0
        %6290 = vmatpush1.msra.mxu0 0.0
        %6291 = vmatprep.subr.mxu0 0.0
        %6292 = vmatpush1.msra.mxu0 0.0
        %6293 = vmatprep.subr.mxu0 0.0
        %6294 = vmatpush1.msra.mxu0 0.0
        %6295 = vmatprep.subr.mxu0 0.0
        %6296 = vmatpush1.msra.mxu0 0.0
        %6297 = vmatprep.subr.mxu0 0.0
        %6298 = vmatpush1.msra.mxu0 0.0
        %6299 = vmatprep.subr.mxu0 0.0
        %6300 = vmatpush1.msra.mxu0 0.0
        %6301 = vmatprep.subr.mxu0 0.0
        %6302 = vmatpush1.msra.mxu0 0.0
        %6303 = vmatprep.subr.mxu0 0.0
        %6304 = vmatpush1.msra.mxu0 0.0
        %6305 = vmatprep.subr.mxu0 0.0
        %6306 = vmatpush1.msra.mxu0 0.0
        %6307 = vmatprep.subr.mxu0 0.0
        %6308 = vmatpush1.msra.mxu0 0.0
        %6309 = vmatprep.subr.mxu0 0.0
        %6310 = vmatpush1.msra.mxu0 0.0
        %6311 = vmatprep.subr.mxu0 0.0
        %6312 = vmatpush1.msra.mxu0 0.0
        %6313 = vmatprep.subr.mxu0 0.0
        %6314 = vmatpush1.msra.mxu0 0.0
        %6315 = vmatprep.subr.mxu0 0.0
        %6316 = vmatpush1.msra.mxu0 0.0
        %6317 = vmatprep.subr.mxu0 0.0
        %6318 = vmatpush1.msra.mxu0 0.0
        %6319 = vmatprep.subr.mxu0 0.0
        %6320 = vmatpush1.msra.mxu0 0.0
        %6321 = vmatprep.subr.mxu0 0.0
        %6322 = vmatpush1.msra.mxu0 0.0
        %6323 = vmatprep.subr.mxu0 0.0
        %6324 = vmatpush1.msra.mxu0 0.0
        %6325 = vmatprep.subr.mxu0 0.0
        %6326 = vmatpush1.msra.mxu0 0.0
        %6327 = vmatprep.subr.mxu0 0.0
        %6328 = vmatpush1.msra.mxu0 0.0
        %6329 = vmatprep.subr.mxu0 0.0
        %6330 = vmatpush1.msra.mxu0 0.0
        %6331 = vmatprep.subr.mxu0 0.0
        %6332 = vmatpush1.msra.mxu0 0.0
        %6333 = vmatprep.subr.mxu0 0.0
        %6334 = vmatpush1.msra.mxu0 0.0
        %6335 = vmatprep.subr.mxu0 0.0
        %6336 = vmatpush1.msra.mxu0 0.0
        %6337 = vmatprep.subr.mxu0 0.0
        %6338 = vmatpush1.msra.mxu0 0.0
        %6339 = vmatprep.mubr.f32.mxu0 0.0
        %6340 = vmatmul.mubr.f32.gmra.mrb[0].mxu0 %v5689
        %v6341 = vpop.f32.mrb[0].mxu0
        %v6342 = vadd.f32 0.0, %v6341
        %v6343 = vpop.f32.mrb[0].mxu0
        %6344 = vmatprep.mubr.f32.mxu0 0.0
        %6345 = vmatmul.mubr.f32.gmra.mrb[0].mxu0 %v5692
        %v6346 = vpop.f32.mrb[0].mxu0
        %v6347 = vadd.f32 0.0, %v6346
        %v6348 = vpop.f32.mrb[0].mxu0
        %6349 = vmatprep.mubr.f32.mxu0 0.0
        %6350 = vmatmul.mubr.f32.gmra.mrb[0].mxu0 %v5695
        %v6351 = vpop.f32.mrb[0].mxu0
        %v6352 = vadd.f32 0.0, %v6351
        %v6353 = vpop.f32.mrb[0].mxu0
        %6354 = vmatprep.mubr.f32.mxu0 0.0
        %6355 = vmatmul.mubr.f32.gmra.mrb[0].mxu0 %v5698
        %v6356 = vpop.f32.mrb[0].mxu0
        %v6357 = vadd.f32 0.0, %v6356
        %v6358 = vpop.f32.mrb[0].mxu0
        %6359 = vmatprep.mubr.f32.mxu0 0.0
        %6360 = vmatmul.mubr.f32.gmra.mrb[0].mxu0 %v5701
        %v6361 = vpop.f32.mrb[0].mxu0
        %v6362 = vadd.f32 0.0, %v6361
        %v6363 = vpop.f32.mrb[0].mxu0
        %6364 = vmatprep.mubr.f32.mxu0 0.0
        %6365 = vmatmul.mubr.f32.gmra.mrb[0].mxu0 %v5704
        %v6366 = vpop.f32.mrb[0].mxu0
        %v6367 = vadd.f32 0.0, %v6366
        %v6368 = vpop.f32.mrb[0].mxu0
        %6369 = vmatprep.mubr.f32.mxu0 0.0
        %6370 = vmatmul.mubr.f32.gmra.mrb[0].mxu0 %v5707
        %v6371 = vpop.f32.mrb[0].mxu0
        %v6372 = vadd.f32 0.0, %v6371
        %v6373 = vpop.f32.mrb[0].mxu0
        %6374 = vmatprep.mubr.f32.mxu0 0.0
        %6375 = vmatmul.mubr.f32.gmra.mrb[0].mxu0 %v5710
        %v6376 = vpop.f32.mrb[0].mxu0
        %v6377 = vadd.f32 0.0, %v6376
        %v6378 = vpop.f32.mrb[0].mxu0
        %6379 = vmatprep.mubr.f32.mxu0 0.0
        %6380 = vmatmul.mubr.f32.gmra.mrb[0].mxu0 %v5713
        %v6381 = vpop.f32.mrb[0].mxu0
        %v6382 = vadd.f32 0.0, %v6381
        %v6383 = vpop.f32.mrb[0].mxu0
        %6384 = vmatprep.mubr.f32.mxu0 0.0
        %6385 = vmatmul.mubr.f32.gmra.mrb[0].mxu0 %v5716
        %v6386 = vpop.f32.mrb[0].mxu0
        %v6387 = vadd.f32 0.0, %v6386
        %v6388 = vpop.f32.mrb[0].mxu0
        %6389 = vmatprep.mubr.f32.mxu0 0.0
        %6390 = vmatmul.mubr.f32.gmra.mrb[0].mxu0 %v5719
        %v6391 = vpop.f32.mrb[0].mxu0
        %v6392 = vadd.f32 0.0, %v6391
        %v6393 = vpop.f32.mrb[0].mxu0
        %6394 = vmatprep.mubr.f32.mxu0 0.0
        %6395 = vmatmul.mubr.f32.gmra.mrb[0].mxu0 %v5722
        %v6396 = vpop.f32.mrb[0].mxu0
        %v6397 = vadd.f32 0.0, %v6396
        %v6398 = vpop.f32.mrb[0].mxu0
        %6399 = vmatprep.mubr.f32.mxu0 0.0
        %6400 = vmatmul.mubr.f32.gmra.mrb[0].mxu0 %v5725
        %v6401 = vpop.f32.mrb[0].mxu0
        %v6402 = vadd.f32 0.0, %v6401
        %v6403 = vpop.f32.mrb[0].mxu0
        %6404 = vmatprep.mubr.f32.mxu0 0.0
        %6405 = vmatmul.mubr.f32.gmra.mrb[0].mxu0 %v5728
        %v6406 = vpop.f32.mrb[0].mxu0
        %v6407 = vadd.f32 0.0, %v6406
        %v6408 = vpop.f32.mrb[0].mxu0
        %6409 = vmatprep.mubr.f32.mxu0 0.0
        %6410 = vmatmul.mubr.f32.gmra.mrb[0].mxu0 %v5731
        %v6411 = vpop.f32.mrb[0].mxu0
        %v6412 = vadd.f32 0.0, %v6411
        %v6413 = vpop.f32.mrb[0].mxu0
        %6414 = vmatprep.mubr.f32.mxu0 0.0
        %6415 = vmatmul.mubr.f32.gmra.mrb[0].mxu0 %v5734
        %v6416 = vpop.f32.mrb[0].mxu0
        %v6417 = vadd.f32 0.0, %v6416
        %v6418 = vpop.f32.mrb[0].mxu0
        %6419 = vmatprep.mubr.f32.mxu0 0.0
        %6420 = vmatmul.mubr.f32.gmra.mrb[0].mxu0 %v5737
        %v6421 = vpop.f32.mrb[0].mxu0
        %v6422 = vadd.f32 0.0, %v6421
        %v6423 = vpop.f32.mrb[0].mxu0
        %6424 = vmatprep.mubr.f32.mxu0 0.0
        %6425 = vmatmul.mubr.f32.gmra.mrb[0].mxu0 %v5740
        %v6426 = vpop.f32.mrb[0].mxu0
        %v6427 = vadd.f32 0.0, %v6426
        %v6428 = vpop.f32.mrb[0].mxu0
        %6429 = vmatprep.mubr.f32.mxu0 0.0
        %6430 = vmatmul.mubr.f32.gmra.mrb[0].mxu0 %v5743
        %v6431 = vpop.f32.mrb[0].mxu0
        %v6432 = vadd.f32 0.0, %v6431
        %v6433 = vpop.f32.mrb[0].mxu0
        %6434 = vmatprep.mubr.f32.mxu0 0.0
        %6435 = vmatmul.mubr.f32.gmra.mrb[0].mxu0 %v5746
        %v6436 = vpop.f32.mrb[0].mxu0
        %v6437 = vadd.f32 0.0, %v6436
        %v6438 = vpop.f32.mrb[0].mxu0
        %6439 = vmatprep.mubr.f32.mxu0 0.0
        %6440 = vmatmul.mubr.f32.gmra.mrb[0].mxu0 %v5749
        %v6441 = vpop.f32.mrb[0].mxu0
        %v6442 = vadd.f32 0.0, %v6441
        %v6443 = vpop.f32.mrb[0].mxu0
        %6444 = vmatprep.mubr.f32.mxu0 0.0
        %6445 = vmatmul.mubr.f32.gmra.mrb[0].mxu0 %v5752
        %v6446 = vpop.f32.mrb[0].mxu0
        %v6447 = vadd.f32 0.0, %v6446
        %v6448 = vpop.f32.mrb[0].mxu0
        %6449 = vmatprep.mubr.f32.mxu0 0.0
        %6450 = vmatmul.mubr.f32.gmra.mrb[0].mxu0 %v5755
        %v6451 = vpop.f32.mrb[0].mxu0
        %v6452 = vadd.f32 0.0, %v6451
        %v6453 = vpop.f32.mrb[0].mxu0
        %6454 = vmatprep.mubr.f32.mxu0 0.0
        %6455 = vmatmul.mubr.f32.gmra.mrb[0].mxu0 %v5758
        %v6456 = vpop.f32.mrb[0].mxu0
        %v6457 = vadd.f32 0.0, %v6456
        %v6458 = vpop.f32.mrb[0].mxu0
        %6459 = vmatprep.mubr.f32.mxu0 0.0
        %6460 = vmatmul.mubr.f32.gmra.mrb[0].mxu0 %v5761
        %v6461 = vpop.f32.mrb[0].mxu0
        %v6462 = vadd.f32 0.0, %v6461
        %v6463 = vpop.f32.mrb[0].mxu0
        %6464 = vmatprep.mubr.f32.mxu0 0.0
        %6465 = vmatmul.mubr.f32.gmra.mrb[0].mxu0 %v5764
        %v6466 = vpop.f32.mrb[0].mxu0
        %v6467 = vadd.f32 0.0, %v6466
        %v6468 = vpop.f32.mrb[0].mxu0
        %6469 = vmatprep.mubr.f32.mxu0 0.0
        %6470 = vmatmul.mubr.f32.gmra.mrb[0].mxu0 %v5767
        %v6471 = vpop.f32.mrb[0].mxu0
        %v6472 = vadd.f32 0.0, %v6471
        %v6473 = vpop.f32.mrb[0].mxu0
        %6474 = vmatprep.mubr.f32.mxu0 0.0
        %6475 = vmatmul.mubr.f32.gmra.mrb[0].mxu0 %v5770
        %v6476 = vpop.f32.mrb[0].mxu0
        %v6477 = vadd.f32 0.0, %v6476
        %v6478 = vpop.f32.mrb[0].mxu0
        %6479 = vmatprep.mubr.f32.mxu0 0.0
        %6480 = vmatmul.mubr.f32.gmra.mrb[0].mxu0 %v5773
        %v6481 = vpop.f32.mrb[0].mxu0
        %v6482 = vadd.f32 0.0, %v6481
        %v6483 = vpop.f32.mrb[0].mxu0
        %6484 = vmatprep.mubr.f32.mxu0 0.0
        %6485 = vmatmul.mubr.f32.gmra.mrb[0].mxu0 %v5776
        %v6486 = vpop.f32.mrb[0].mxu0
        %v6487 = vadd.f32 0.0, %v6486
        %v6488 = vpop.f32.mrb[0].mxu0
        %6489 = vmatprep.mubr.f32.mxu0 0.0
        %6490 = vmatmul.mubr.f32.gmra.mrb[0].mxu0 %v5779
        %v6491 = vpop.f32.mrb[0].mxu0
        %v6492 = vadd.f32 0.0, %v6491
        %v6493 = vpop.f32.mrb[0].mxu0
        %6494 = vmatprep.mubr.f32.mxu0 0.0
        %6495 = vmatmul.mubr.f32.gmra.mrb[0].mxu0 %v5782
        %v6496 = vpop.f32.mrb[0].mxu0
        %v6497 = vadd.f32 0.0, %v6496
        %v6498 = vpop.f32.mrb[0].mxu0
        %6499 = vmatprep.mubr.f32.mxu0 0.0
        %6500 = vmatmul.mubr.f32.gmra.mrb[0].mxu0 %v5785
        %v6501 = vpop.f32.mrb[0].mxu0
        %v6502 = vadd.f32 0.0, %v6501
        %v6503 = vpop.f32.mrb[0].mxu0
        %6504 = vmatprep.mubr.f32.mxu0 0.0
        %6505 = vmatmul.mubr.f32.gmra.mrb[0].mxu0 %v5788
        %v6506 = vpop.f32.mrb[0].mxu0
        %v6507 = vadd.f32 0.0, %v6506
        %v6508 = vpop.f32.mrb[0].mxu0
        %6509 = vmatprep.mubr.f32.mxu0 0.0
        %6510 = vmatmul.mubr.f32.gmra.mrb[0].mxu0 %v5791
        %v6511 = vpop.f32.mrb[0].mxu0
        %v6512 = vadd.f32 0.0, %v6511
        %v6513 = vpop.f32.mrb[0].mxu0
        %6514 = vmatprep.mubr.f32.mxu0 0.0
        %6515 = vmatmul.mubr.f32.gmra.mrb[0].mxu0 %v5794
        %v6516 = vpop.f32.mrb[0].mxu0
        %v6517 = vadd.f32 0.0, %v6516
        %v6518 = vpop.f32.mrb[0].mxu0
        %6519 = vmatprep.mubr.f32.mxu0 0.0
        %6520 = vmatmul.mubr.f32.gmra.mrb[0].mxu0 %v5797
        %v6521 = vpop.f32.mrb[0].mxu0
        %v6522 = vadd.f32 0.0, %v6521
        %v6523 = vpop.f32.mrb[0].mxu0
        %6524 = vmatprep.mubr.f32.mxu0 0.0
        %6525 = vmatmul.mubr.f32.gmra.mrb[0].mxu0 %v5800
        %v6526 = vpop.f32.mrb[0].mxu0
        %v6527 = vadd.f32 0.0, %v6526
        %v6528 = vpop.f32.mrb[0].mxu0
        %6529 = vmatprep.mubr.f32.mxu0 0.0
        %6530 = vmatmul.mubr.f32.gmra.mrb[0].mxu0 %v5803
        %v6531 = vpop.f32.mrb[0].mxu0
        %v6532 = vadd.f32 0.0, %v6531
        %v6533 = vpop.f32.mrb[0].mxu0
        %6534 = vmatprep.mubr.f32.mxu0 0.0
        %6535 = vmatmul.mubr.f32.gmra.mrb[0].mxu0 %v5806
        %v6536 = vpop.f32.mrb[0].mxu0
        %v6537 = vadd.f32 0.0, %v6536
        %v6538 = vpop.f32.mrb[0].mxu0
        %6539 = vmatprep.mubr.f32.mxu0 0.0
        %6540 = vmatmul.mubr.f32.gmra.mrb[0].mxu0 %v5809
        %v6541 = vpop.f32.mrb[0].mxu0
        %v6542 = vadd.f32 0.0, %v6541
        %v6543 = vpop.f32.mrb[0].mxu0
        %6544 = vmatprep.mubr.f32.mxu0 0.0
        %6545 = vmatmul.mubr.f32.gmra.mrb[0].mxu0 %v5812
        %v6546 = vpop.f32.mrb[0].mxu0
        %v6547 = vadd.f32 0.0, %v6546
        %v6548 = vpop.f32.mrb[0].mxu0
        %6549 = vmatprep.mubr.f32.mxu0 0.0
        %6550 = vmatmul.mubr.f32.gmra.mrb[0].mxu0 %v5815
        %v6551 = vpop.f32.mrb[0].mxu0
        %v6552 = vadd.f32 0.0, %v6551
        %v6553 = vpop.f32.mrb[0].mxu0
        %6554 = vmatprep.mubr.f32.mxu0 0.0
        %6555 = vmatmul.mubr.f32.gmra.mrb[0].mxu0 %v5818
        %v6556 = vpop.f32.mrb[0].mxu0
        %v6557 = vadd.f32 0.0, %v6556
        %v6558 = vpop.f32.mrb[0].mxu0
        %6559 = vmatprep.mubr.f32.mxu0 0.0
        %6560 = vmatmul.mubr.f32.gmra.mrb[0].mxu0 %v5821
        %v6561 = vpop.f32.mrb[0].mxu0
        %v6562 = vadd.f32 0.0, %v6561
        %v6563 = vpop.f32.mrb[0].mxu0
        %6564 = vmatprep.mubr.f32.mxu0 0.0
        %6565 = vmatmul.mubr.f32.gmra.mrb[0].mxu0 %v5824
        %v6566 = vpop.f32.mrb[0].mxu0
        %v6567 = vadd.f32 0.0, %v6566
        %v6568 = vpop.f32.mrb[0].mxu0
        %6569 = vmatprep.mubr.f32.mxu0 0.0
        %6570 = vmatmul.mubr.f32.gmra.mrb[0].mxu0 %v5827
        %v6571 = vpop.f32.mrb[0].mxu0
        %v6572 = vadd.f32 0.0, %v6571
        %v6573 = vpop.f32.mrb[0].mxu0
        %6574 = vmatprep.mubr.f32.mxu0 0.0
        %6575 = vmatmul.mubr.f32.gmra.mrb[0].mxu0 %v5830
        %v6576 = vpop.f32.mrb[0].mxu0
        %v6577 = vadd.f32 0.0, %v6576
        %v6578 = vpop.f32.mrb[0].mxu0
        %6579 = vmatprep.mubr.f32.mxu0 0.0
        %6580 = vmatmul.mubr.f32.gmra.mrb[0].mxu0 %v5833
        %v6581 = vpop.f32.mrb[0].mxu0
        %v6582 = vadd.f32 0.0, %v6581
        %v6583 = vpop.f32.mrb[0].mxu0
        %6584 = vmatprep.mubr.f32.mxu0 0.0
        %6585 = vmatmul.mubr.f32.gmra.mrb[0].mxu0 %v5836
        %v6586 = vpop.f32.mrb[0].mxu0
        %v6587 = vadd.f32 0.0, %v6586
        %v6588 = vpop.f32.mrb[0].mxu0
        %6589 = vmatprep.mubr.f32.mxu0 0.0
        %6590 = vmatmul.mubr.f32.gmra.mrb[0].mxu0 %v5839
        %v6591 = vpop.f32.mrb[0].mxu0
        %v6592 = vadd.f32 0.0, %v6591
        %v6593 = vpop.f32.mrb[0].mxu0
        %6594 = vmatprep.mubr.f32.mxu0 0.0
        %6595 = vmatmul.mubr.f32.gmra.mrb[0].mxu0 %v5842
        %v6596 = vpop.f32.mrb[0].mxu0
        %v6597 = vadd.f32 0.0, %v6596
        %v6598 = vpop.f32.mrb[0].mxu0
        %6599 = vmatprep.mubr.f32.mxu0 0.0
        %6600 = vmatmul.mubr.f32.gmra.mrb[0].mxu0 %v5845
        %v6601 = vpop.f32.mrb[0].mxu0
        %v6602 = vadd.f32 0.0, %v6601
        %v6603 = vpop.f32.mrb[0].mxu0
        %6604 = vmatprep.mubr.f32.mxu0 0.0
        %6605 = vmatmul.mubr.f32.gmra.mrb[0].mxu0 %v5848
        %v6606 = vpop.f32.mrb[0].mxu0
        %v6607 = vadd.f32 0.0, %v6606
        %v6608 = vpop.f32.mrb[0].mxu0
        %6609 = vmatprep.mubr.f32.mxu0 0.0
        %6610 = vmatmul.mubr.f32.gmra.mrb[0].mxu0 %v5851
        %v6611 = vpop.f32.mrb[0].mxu0
        %v6612 = vadd.f32 0.0, %v6611
        %v6613 = vpop.f32.mrb[0].mxu0
        %6614 = vmatprep.mubr.f32.mxu0 0.0
        %6615 = vmatmul.mubr.f32.gmra.mrb[0].mxu0 %v5854
        %v6616 = vpop.f32.mrb[0].mxu0
        %v6617 = vadd.f32 0.0, %v6616
        %v6618 = vpop.f32.mrb[0].mxu0
        %6619 = vmatprep.mubr.f32.mxu0 0.0
        %6620 = vmatmul.mubr.f32.gmra.mrb[0].mxu0 %v5857
        %v6621 = vpop.f32.mrb[0].mxu0
        %v6622 = vadd.f32 0.0, %v6621
        %v6623 = vpop.f32.mrb[0].mxu0
        %6624 = vmatprep.mubr.f32.mxu0 0.0
        %6625 = vmatmul.mubr.f32.gmra.mrb[0].mxu0 %v5860
        %v6626 = vpop.f32.mrb[0].mxu0
        %v6627 = vadd.f32 0.0, %v6626
        %v6628 = vpop.f32.mrb[0].mxu0
        %6629 = vmatprep.mubr.f32.mxu0 0.0
        %6630 = vmatmul.mubr.f32.gmra.mrb[0].mxu0 %v5863
        %v6631 = vpop.f32.mrb[0].mxu0
        %v6632 = vadd.f32 0.0, %v6631
        %v6633 = vpop.f32.mrb[0].mxu0
        %6634 = vmatprep.mubr.f32.mxu0 0.0
        %6635 = vmatmul.mubr.f32.gmra.mrb[0].mxu0 %v5866
        %v6636 = vpop.f32.mrb[0].mxu0
        %v6637 = vadd.f32 0.0, %v6636
        %v6638 = vpop.f32.mrb[0].mxu0
        %6639 = vmatprep.mubr.f32.mxu0 0.0
        %6640 = vmatmul.mubr.f32.gmra.mrb[0].mxu0 %v5869
        %v6641 = vpop.f32.mrb[0].mxu0
        %v6642 = vadd.f32 0.0, %v6641
        %v6643 = vpop.f32.mrb[0].mxu0
        %6644 = vmatprep.mubr.f32.mxu0 0.0
        %6645 = vmatmul.mubr.f32.gmra.mrb[0].mxu0 %v5872
        %v6646 = vpop.f32.mrb[0].mxu0
        %v6647 = vadd.f32 0.0, %v6646
        %v6648 = vpop.f32.mrb[0].mxu0
        %6649 = vmatprep.mubr.f32.mxu0 0.0
        %6650 = vmatmul.mubr.f32.gmra.mrb[0].mxu0 %v5875
        %v6651 = vpop.f32.mrb[0].mxu0
        %v6652 = vadd.f32 0.0, %v6651
        %v6653 = vpop.f32.mrb[0].mxu0
        %6654 = vmatprep.mubr.f32.mxu0 0.0
        %6655 = vmatmul.mubr.f32.gmra.mrb[0].mxu0 %v5878
        %v6656 = vpop.f32.mrb[0].mxu0
        %v6657 = vadd.f32 0.0, %v6656
        %v6658 = vpop.f32.mrb[0].mxu0
        %6659 = vdwg.mxu0
        %vm6660 = vcmp.ge.s32.totalorder %v2920, 504
        %vm6661 = vcmp.ge.s32.totalorder %v2921, 504
        %vm6662 = vcmp.ge.s32.totalorder %v2922, 504
        %vm6663 = vcmp.ge.s32.totalorder %v2923, 504
        %vm6664 = vcmp.ge.s32.totalorder %v2924, 504
        %vm6665 = vcmp.ge.s32.totalorder %v2925, 504
        %vm6666 = vcmp.ge.s32.totalorder %v2926, 504
        %vm6667 = vcmp.ge.s32.totalorder %v2927, 504
        %vm6668 = vcmp.ge.s32.totalorder %v2928, 504
        %vm6669 = vcmp.ge.s32.totalorder %v2929, 504
        %vm6670 = vcmp.ge.s32.totalorder %v2930, 504
        %vm6671 = vcmp.ge.s32.totalorder %v2931, 504
        %vm6672 = vcmp.ge.s32.totalorder %v2932, 504
        %vm6673 = vcmp.ge.s32.totalorder %v2933, 504
        %vm6674 = vcmp.ge.s32.totalorder %v2934, 504
        %vm6675 = vcmp.ge.s32.totalorder %v2935, 504
        %vm6676 = vcmp.ge.s32.totalorder %v2936, 504
        %vm6677 = vcmp.ge.s32.totalorder %v2937, 504
        %vm6678 = vcmp.ge.s32.totalorder %v2938, 504
        %vm6679 = vcmp.ge.s32.totalorder %v2939, 504
        %vm6680 = vcmp.ge.s32.totalorder %v2940, 504
        %vm6681 = vcmp.ge.s32.totalorder %v2941, 504
        %vm6682 = vcmp.ge.s32.totalorder %v2942, 504
        %vm6683 = vcmp.ge.s32.totalorder %v2943, 504
        %vm6684 = vcmp.ge.s32.totalorder %v2944, 504
        %vm6685 = vcmp.ge.s32.totalorder %v2945, 504
        %vm6686 = vcmp.ge.s32.totalorder %v2946, 504
        %vm6687 = vcmp.ge.s32.totalorder %v2947, 504
        %vm6688 = vcmp.ge.s32.totalorder %v2948, 504
        %vm6689 = vcmp.ge.s32.totalorder %v2949, 504
        %vm6690 = vcmp.ge.s32.totalorder %v2950, 504
        %vm6691 = vcmp.ge.s32.totalorder %v2951, 504
        %vm6692 = vcmp.ge.s32.totalorder %v2952, 504
        %vm6693 = vcmp.ge.s32.totalorder %v2953, 504
        %vm6694 = vcmp.ge.s32.totalorder %v2954, 504
        %vm6695 = vcmp.ge.s32.totalorder %v2955, 504
        %vm6696 = vcmp.ge.s32.totalorder %v2956, 504
        %vm6697 = vcmp.ge.s32.totalorder %v2957, 504
        %vm6698 = vcmp.ge.s32.totalorder %v2958, 504
        %vm6699 = vcmp.ge.s32.totalorder %v2959, 504
        %vm6700 = vcmp.ge.s32.totalorder %v2960, 504
        %vm6701 = vcmp.ge.s32.totalorder %v2961, 504
        %vm6702 = vcmp.ge.s32.totalorder %v2962, 504
        %vm6703 = vcmp.ge.s32.totalorder %v2963, 504
        %vm6704 = vcmp.ge.s32.totalorder %v2964, 504
        %vm6705 = vcmp.ge.s32.totalorder %v2965, 504
        %vm6706 = vcmp.ge.s32.totalorder %v2966, 504
        %vm6707 = vcmp.ge.s32.totalorder %v2967, 504
        %vm6708 = vcmp.ge.s32.totalorder %v2968, 504
        %vm6709 = vcmp.ge.s32.totalorder %v2969, 504
        %vm6710 = vcmp.ge.s32.totalorder %v2970, 504
        %vm6711 = vcmp.ge.s32.totalorder %v2971, 504
        %vm6712 = vcmp.ge.s32.totalorder %v2972, 504
        %vm6713 = vcmp.ge.s32.totalorder %v2973, 504
        %vm6714 = vcmp.ge.s32.totalorder %v2974, 504
        %vm6715 = vcmp.ge.s32.totalorder %v2975, 504
        %vm6716 = vcmp.ge.s32.totalorder %v2976, 504
        %vm6717 = vcmp.ge.s32.totalorder %v2977, 504
        %vm6718 = vcmp.ge.s32.totalorder %v2978, 504
        %vm6719 = vcmp.ge.s32.totalorder %v2979, 504
        %vm6720 = vcmp.ge.s32.totalorder %v2980, 504
        %vm6721 = vcmp.ge.s32.totalorder %v2981, 504
        %vm6722 = vcmp.ge.s32.totalorder %v2982, 504
        %vm6723 = vcmp.ge.s32.totalorder %v2983, 504
        %vm6724 = vcmp.ge.s32.totalorder %v2920, 496
        %vm6725 = vcmp.ge.s32.totalorder %v2922, 496
        %vm6726 = vcmp.ge.s32.totalorder %v2924, 496
        %vm6727 = vcmp.ge.s32.totalorder %v2926, 496
        %vm6728 = vcmp.ge.s32.totalorder %v2928, 496
        %vm6729 = vcmp.ge.s32.totalorder %v2930, 496
        %vm6730 = vcmp.ge.s32.totalorder %v2932, 496
        %vm6731 = vcmp.ge.s32.totalorder %v2934, 496
        %vm6732 = vcmp.ge.s32.totalorder %v2936, 496
        %vm6733 = vcmp.ge.s32.totalorder %v2938, 496
        %vm6734 = vcmp.ge.s32.totalorder %v2940, 496
        %vm6735 = vcmp.ge.s32.totalorder %v2942, 496
        %vm6736 = vcmp.ge.s32.totalorder %v2944, 496
        %vm6737 = vcmp.ge.s32.totalorder %v2946, 496
        %vm6738 = vcmp.ge.s32.totalorder %v2948, 496
        %vm6739 = vcmp.ge.s32.totalorder %v2950, 496
        %vm6740 = vcmp.ge.s32.totalorder %v2952, 496
        %vm6741 = vcmp.ge.s32.totalorder %v2954, 496
        %vm6742 = vcmp.ge.s32.totalorder %v2956, 496
        %vm6743 = vcmp.ge.s32.totalorder %v2958, 496
        %vm6744 = vcmp.ge.s32.totalorder %v2960, 496
        %vm6745 = vcmp.ge.s32.totalorder %v2962, 496
        %vm6746 = vcmp.ge.s32.totalorder %v2964, 496
        %vm6747 = vcmp.ge.s32.totalorder %v2966, 496
        %vm6748 = vcmp.ge.s32.totalorder %v2968, 496
        %vm6749 = vcmp.ge.s32.totalorder %v2970, 496
        %vm6750 = vcmp.ge.s32.totalorder %v2972, 496
        %vm6751 = vcmp.ge.s32.totalorder %v2974, 496
        %vm6752 = vcmp.ge.s32.totalorder %v2976, 496
        %vm6753 = vcmp.ge.s32.totalorder %v2978, 496
        %vm6754 = vcmp.ge.s32.totalorder %v2980, 496
        %vm6755 = vcmp.ge.s32.totalorder %v2982, 496
        %v6756 = vsel %vm3496, 0.0, %v6262
        %v6757 = vsel %vm3497, 0.0, %v5947
        %v6758 = vsel %vm3498, 0.0, %v5952
        %v6759 = vsel %vm3499, 0.0, %v5957
        %v6760 = vsel %vm3500, 0.0, %v5962
        %v6761 = vsel %vm3501, 0.0, %v5967
        %v6762 = vsel %vm3502, 0.0, %v5972
        %v6763 = vsel %vm3503, 0.0, %v5977
        %v6764 = vsel %vm3504, 0.0, %v5982
        %v6765 = vsel %vm3505, 0.0, %v5987
        %v6766 = vsel %vm3506, 0.0, %v5992
        %v6767 = vsel %vm3507, 0.0, %v5997
        %v6768 = vsel %vm3508, 0.0, %v6002
        %v6769 = vsel %vm3509, 0.0, %v6007
        %v6770 = vsel %vm3510, 0.0, %v6012
        %v6771 = vsel %vm3511, 0.0, %v6017
        %v6772 = vsel %vm3512, 0.0, %v6022
        %v6773 = vsel %vm3513, 0.0, %v6027
        %v6774 = vsel %vm3514, 0.0, %v6032
        %v6775 = vsel %vm3515, 0.0, %v6037
        %v6776 = vsel %vm3516, 0.0, %v6042
        %v6777 = vsel %vm3517, 0.0, %v6047
        %v6778 = vsel %vm3518, 0.0, %v6052
        %v6779 = vsel %vm3519, 0.0, %v6057
        %v6780 = vsel %vm3520, 0.0, %v6062
        %v6781 = vsel %vm3521, 0.0, %v6067
        %v6782 = vsel %vm3522, 0.0, %v6072
        %v6783 = vsel %vm3523, 0.0, %v6077
        %v6784 = vsel %vm3524, 0.0, %v6082
        %v6785 = vsel %vm3525, 0.0, %v6087
        %v6786 = vsel %vm3526, 0.0, %v6092
        %v6787 = vsel %vm3527, 0.0, %v6097
        %v6788 = vsel %vm3528, 0.0, %v6102
        %v6789 = vsel %vm3529, 0.0, %v6107
        %v6790 = vsel %vm3530, 0.0, %v6112
        %v6791 = vsel %vm3531, 0.0, %v6117
        %v6792 = vsel %vm3532, 0.0, %v6122
        %v6793 = vsel %vm3533, 0.0, %v6127
        %v6794 = vsel %vm3534, 0.0, %v6132
        %v6795 = vsel %vm3535, 0.0, %v6137
        %v6796 = vsel %vm3536, 0.0, %v6142
        %v6797 = vsel %vm3537, 0.0, %v6147
        %v6798 = vsel %vm3538, 0.0, %v6152
        %v6799 = vsel %vm3539, 0.0, %v6157
        %v6800 = vsel %vm3540, 0.0, %v6162
        %v6801 = vsel %vm3541, 0.0, %v6167
        %v6802 = vsel %vm3542, 0.0, %v6172
        %v6803 = vsel %vm3543, 0.0, %v6177
        %v6804 = vsel %vm3544, 0.0, %v6182
        %v6805 = vsel %vm3545, 0.0, %v6187
        %v6806 = vsel %vm3546, 0.0, %v6192
        %v6807 = vsel %vm3547, 0.0, %v6197
        %v6808 = vsel %vm3548, 0.0, %v6202
        %v6809 = vsel %vm3549, 0.0, %v6207
        %v6810 = vsel %vm3550, 0.0, %v6212
        %v6811 = vsel %vm3551, 0.0, %v6217
        %v6812 = vsel %vm3552, 0.0, %v6222
        %v6813 = vsel %vm3553, 0.0, %v6227
        %v6814 = vsel %vm3554, 0.0, %v6232
        %v6815 = vsel %vm3555, 0.0, %v6237
        %v6816 = vsel %vm3556, 0.0, %v6242
        %v6817 = vsel %vm3557, 0.0, %v6247
        %v6818 = vsel %vm3558, 0.0, %v6252
        %v6819 = vsel %vm3559, 0.0, %v6257
        %v6820 = vsel %vm6660, 1, 0
        %v6821 = vsel %vm6661, 1, 0
        %v6822 = vsel %vm6662, 1, 0
        %v6823 = vsel %vm6663, 1, 0
        %v6824 = vsel %vm6664, 1, 0
        %v6825 = vsel %vm6665, 1, 0
        %v6826 = vsel %vm6666, 1, 0
        %v6827 = vsel %vm6667, 1, 0
        %v6828 = vsel %vm6668, 1, 0
        %v6829 = vsel %vm6669, 1, 0
        %v6830 = vsel %vm6670, 1, 0
        %v6831 = vsel %vm6671, 1, 0
        %v6832 = vsel %vm6672, 1, 0
        %v6833 = vsel %vm6673, 1, 0
        %v6834 = vsel %vm6674, 1, 0
        %v6835 = vsel %vm6675, 1, 0
        %v6836 = vsel %vm6676, 1, 0
        %v6837 = vsel %vm6677, 1, 0
        %v6838 = vsel %vm6678, 1, 0
        %v6839 = vsel %vm6679, 1, 0
        %v6840 = vsel %vm6680, 1, 0
        %v6841 = vsel %vm6681, 1, 0
        %v6842 = vsel %vm6682, 1, 0
        %v6843 = vsel %vm6683, 1, 0
        %v6844 = vsel %vm6684, 1, 0
        %v6845 = vsel %vm6685, 1, 0
        %v6846 = vsel %vm6686, 1, 0
        %v6847 = vsel %vm6687, 1, 0
        %v6848 = vsel %vm6688, 1, 0
        %v6849 = vsel %vm6689, 1, 0
        %v6850 = vsel %vm6690, 1, 0
        %v6851 = vsel %vm6691, 1, 0
        %v6852 = vsel %vm6692, 1, 0
        %v6853 = vsel %vm6693, 1, 0
        %v6854 = vsel %vm6694, 1, 0
        %v6855 = vsel %vm6695, 1, 0
        %v6856 = vsel %vm6696, 1, 0
        %v6857 = vsel %vm6697, 1, 0
        %v6858 = vsel %vm6698, 1, 0
        %v6859 = vsel %vm6699, 1, 0
        %v6860 = vsel %vm6700, 1, 0
        %v6861 = vsel %vm6701, 1, 0
        %v6862 = vsel %vm6702, 1, 0
        %v6863 = vsel %vm6703, 1, 0
        %v6864 = vsel %vm6704, 1, 0
        %v6865 = vsel %vm6705, 1, 0
        %v6866 = vsel %vm6706, 1, 0
        %v6867 = vsel %vm6707, 1, 0
        %v6868 = vsel %vm6708, 1, 0
        %v6869 = vsel %vm6709, 1, 0
        %v6870 = vsel %vm6710, 1, 0
        %v6871 = vsel %vm6711, 1, 0
        %v6872 = vsel %vm6712, 1, 0
        %v6873 = vsel %vm6713, 1, 0
        %v6874 = vsel %vm6714, 1, 0
        %v6875 = vsel %vm6715, 1, 0
        %v6876 = vsel %vm6716, 1, 0
        %v6877 = vsel %vm6717, 1, 0
        %v6878 = vsel %vm6718, 1, 0
        %v6879 = vsel %vm6719, 1, 0
        %v6880 = vsel %vm6720, 1, 0
        %v6881 = vsel %vm6721, 1, 0
        %v6882 = vsel %vm6722, 1, 0
        %v6883 = vsel %vm6723, 1, 0
        %vm6884 = vcmp.eq.s32.totalorder %v6820, 1
        %vm6885 = vcmp.eq.s32.totalorder %v6821, 1
        %vm6886 = vcmp.eq.s32.totalorder %v6822, 1
        %vm6887 = vcmp.eq.s32.totalorder %v6823, 1
        %vm6888 = vcmp.eq.s32.totalorder %v6824, 1
        %vm6889 = vcmp.eq.s32.totalorder %v6825, 1
        %vm6890 = vcmp.eq.s32.totalorder %v6826, 1
        %vm6891 = vcmp.eq.s32.totalorder %v6827, 1
        %vm6892 = vcmp.eq.s32.totalorder %v6828, 1
        %vm6893 = vcmp.eq.s32.totalorder %v6829, 1
        %vm6894 = vcmp.eq.s32.totalorder %v6830, 1
        %vm6895 = vcmp.eq.s32.totalorder %v6831, 1
        %vm6896 = vcmp.eq.s32.totalorder %v6832, 1
        %vm6897 = vcmp.eq.s32.totalorder %v6833, 1
        %vm6898 = vcmp.eq.s32.totalorder %v6834, 1
        %vm6899 = vcmp.eq.s32.totalorder %v6835, 1
        %vm6900 = vcmp.eq.s32.totalorder %v6836, 1
        %vm6901 = vcmp.eq.s32.totalorder %v6837, 1
        %vm6902 = vcmp.eq.s32.totalorder %v6838, 1
        %vm6903 = vcmp.eq.s32.totalorder %v6839, 1
        %vm6904 = vcmp.eq.s32.totalorder %v6840, 1
        %vm6905 = vcmp.eq.s32.totalorder %v6841, 1
        %vm6906 = vcmp.eq.s32.totalorder %v6842, 1
        %vm6907 = vcmp.eq.s32.totalorder %v6843, 1
        %vm6908 = vcmp.eq.s32.totalorder %v6844, 1
        %vm6909 = vcmp.eq.s32.totalorder %v6845, 1
        %vm6910 = vcmp.eq.s32.totalorder %v6846, 1
        %vm6911 = vcmp.eq.s32.totalorder %v6847, 1
        %vm6912 = vcmp.eq.s32.totalorder %v6848, 1
        %vm6913 = vcmp.eq.s32.totalorder %v6849, 1
        %vm6914 = vcmp.eq.s32.totalorder %v6850, 1
        %vm6915 = vcmp.eq.s32.totalorder %v6851, 1
        %vm6916 = vcmp.eq.s32.totalorder %v6852, 1
        %vm6917 = vcmp.eq.s32.totalorder %v6853, 1
        %vm6918 = vcmp.eq.s32.totalorder %v6854, 1
        %vm6919 = vcmp.eq.s32.totalorder %v6855, 1
        %vm6920 = vcmp.eq.s32.totalorder %v6856, 1
        %vm6921 = vcmp.eq.s32.totalorder %v6857, 1
        %vm6922 = vcmp.eq.s32.totalorder %v6858, 1
        %vm6923 = vcmp.eq.s32.totalorder %v6859, 1
        %vm6924 = vcmp.eq.s32.totalorder %v6860, 1
        %vm6925 = vcmp.eq.s32.totalorder %v6861, 1
        %vm6926 = vcmp.eq.s32.totalorder %v6862, 1
        %vm6927 = vcmp.eq.s32.totalorder %v6863, 1
        %vm6928 = vcmp.eq.s32.totalorder %v6864, 1
        %vm6929 = vcmp.eq.s32.totalorder %v6865, 1
        %vm6930 = vcmp.eq.s32.totalorder %v6866, 1
        %vm6931 = vcmp.eq.s32.totalorder %v6867, 1
        %vm6932 = vcmp.eq.s32.totalorder %v6868, 1
        %vm6933 = vcmp.eq.s32.totalorder %v6869, 1
        %vm6934 = vcmp.eq.s32.totalorder %v6870, 1
        %vm6935 = vcmp.eq.s32.totalorder %v6871, 1
        %vm6936 = vcmp.eq.s32.totalorder %v6872, 1
        %vm6937 = vcmp.eq.s32.totalorder %v6873, 1
        %vm6938 = vcmp.eq.s32.totalorder %v6874, 1
        %vm6939 = vcmp.eq.s32.totalorder %v6875, 1
        %vm6940 = vcmp.eq.s32.totalorder %v6876, 1
        %vm6941 = vcmp.eq.s32.totalorder %v6877, 1
        %vm6942 = vcmp.eq.s32.totalorder %v6878, 1
        %vm6943 = vcmp.eq.s32.totalorder %v6879, 1
        %vm6944 = vcmp.eq.s32.totalorder %v6880, 1
        %vm6945 = vcmp.eq.s32.totalorder %v6881, 1
        %vm6946 = vcmp.eq.s32.totalorder %v6882, 1
        %vm6947 = vcmp.eq.s32.totalorder %v6883, 1
        %v6948 = vsel %vm6884, 0.0, %v6347
        %v6949 = vsel %vm6885, 0.0, %v6352
        %v6950 = vsel %vm6886, 0.0, %v6357
        %v6951 = vsel %vm6887, 0.0, %v6362
        %v6952 = vsel %vm6888, 0.0, %v6367
        %v6953 = vsel %vm6889, 0.0, %v6372
        %v6954 = vsel %vm6890, 0.0, %v6377
        %v6955 = vsel %vm6891, 0.0, %v6382
        %v6956 = vsel %vm6892, 0.0, %v6387
        %v6957 = vsel %vm6893, 0.0, %v6392
        %v6958 = vsel %vm6894, 0.0, %v6397
        %v6959 = vsel %vm6895, 0.0, %v6402
        %v6960 = vsel %vm6896, 0.0, %v6407
        %v6961 = vsel %vm6897, 0.0, %v6412
        %v6962 = vsel %vm6898, 0.0, %v6417
        %v6963 = vsel %vm6899, 0.0, %v6422
        %v6964 = vsel %vm6900, 0.0, %v6427
        %v6965 = vsel %vm6901, 0.0, %v6432
        %v6966 = vsel %vm6902, 0.0, %v6437
        %v6967 = vsel %vm6903, 0.0, %v6442
        %v6968 = vsel %vm6904, 0.0, %v6447
        %v6969 = vsel %vm6905, 0.0, %v6452
        %v6970 = vsel %vm6906, 0.0, %v6457
        %v6971 = vsel %vm6907, 0.0, %v6462
        %v6972 = vsel %vm6908, 0.0, %v6467
        %v6973 = vsel %vm6909, 0.0, %v6472
        %v6974 = vsel %vm6910, 0.0, %v6477
        %v6975 = vsel %vm6911, 0.0, %v6482
        %v6976 = vsel %vm6912, 0.0, %v6487
        %v6977 = vsel %vm6913, 0.0, %v6492
        %v6978 = vsel %vm6914, 0.0, %v6497
        %v6979 = vsel %vm6915, 0.0, %v6502
        %v6980 = vsel %vm6916, 0.0, %v6507
        %v6981 = vsel %vm6917, 0.0, %v6512
        %v6982 = vsel %vm6918, 0.0, %v6517
        %v6983 = vsel %vm6919, 0.0, %v6522
        %v6984 = vsel %vm6920, 0.0, %v6527
        %v6985 = vsel %vm6921, 0.0, %v6532
        %v6986 = vsel %vm6922, 0.0, %v6537
        %v6987 = vsel %vm6923, 0.0, %v6542
        %v6988 = vsel %vm6924, 0.0, %v6547
        %v6989 = vsel %vm6925, 0.0, %v6552
        %v6990 = vsel %vm6926, 0.0, %v6557
        %v6991 = vsel %vm6927, 0.0, %v6562
        %v6992 = vsel %vm6928, 0.0, %v6567
        %v6993 = vsel %vm6929, 0.0, %v6572
        %v6994 = vsel %vm6930, 0.0, %v6577
        %v6995 = vsel %vm6931, 0.0, %v6582
        %v6996 = vsel %vm6932, 0.0, %v6587
        %v6997 = vsel %vm6933, 0.0, %v6592
        %v6998 = vsel %vm6934, 0.0, %v6597
        %v6999 = vsel %vm6935, 0.0, %v6602
        %v7000 = vsel %vm6936, 0.0, %v6607
        %v7001 = vsel %vm6937, 0.0, %v6612
        %v7002 = vsel %vm6938, 0.0, %v6617
        %v7003 = vsel %vm6939, 0.0, %v6622
        %v7004 = vsel %vm6940, 0.0, %v6627
        %v7005 = vsel %vm6941, 0.0, %v6632
        %v7006 = vsel %vm6942, 0.0, %v6637
        %v7007 = vsel %vm6943, 0.0, %v6642
        %v7008 = vsel %vm6944, 0.0, %v6647
        %v7009 = vsel %vm6945, 0.0, %v6652
        %v7010 = vsel %vm6946, 0.0, %v6657
        %v7011 = vsel %vm6947, 0.0, %v6342
        %7012 = vmatprep.subr.mxu0 0.0
        %7013 = vmatpush1.msra.mxu0 %v6266
        %7014 = vmatprep.subr.mxu0 0.0
        %7015 = vmatpush1.msra.mxu0 %v6267
        %7016 = vmatprep.subr.mxu0 0.0
        %7017 = vmatpush1.msra.mxu0 %v6268
        %7018 = vmatprep.subr.mxu0 0.0
        %7019 = vmatpush1.msra.mxu0 %v6269
        %7020 = vmatprep.subr.mxu0 0.0
        %7021 = vmatpush1.msra.mxu0 0.0
        %7022 = vmatprep.subr.mxu0 0.0
        %7023 = vmatpush1.msra.mxu0 0.0
        %7024 = vmatprep.subr.mxu0 0.0
        %7025 = vmatpush1.msra.mxu0 0.0
        %7026 = vmatprep.subr.mxu0 0.0
        %7027 = vmatpush1.msra.mxu0 0.0
        %7028 = vmatprep.subr.mxu0 0.0
        %7029 = vmatpush1.msra.mxu0 0.0
        %7030 = vmatprep.subr.mxu0 0.0
        %7031 = vmatpush1.msra.mxu0 0.0
        %7032 = vmatprep.subr.mxu0 0.0
        %7033 = vmatpush1.msra.mxu0 0.0
        %7034 = vmatprep.subr.mxu0 0.0
        %7035 = vmatpush1.msra.mxu0 0.0
        %7036 = vmatprep.subr.mxu0 0.0
        %7037 = vmatpush1.msra.mxu0 0.0
        %7038 = vmatprep.subr.mxu0 0.0
        %7039 = vmatpush1.msra.mxu0 0.0
        %7040 = vmatprep.subr.mxu0 0.0
        %7041 = vmatpush1.msra.mxu0 0.0
        %7042 = vmatprep.subr.mxu0 0.0
        %7043 = vmatpush1.msra.mxu0 0.0
        %7044 = vmatprep.subr.mxu0 0.0
        %7045 = vmatpush1.msra.mxu0 0.0
        %7046 = vmatprep.subr.mxu0 0.0
        %7047 = vmatpush1.msra.mxu0 0.0
        %7048 = vmatprep.subr.mxu0 0.0
        %7049 = vmatpush1.msra.mxu0 0.0
        %7050 = vmatprep.subr.mxu0 0.0
        %7051 = vmatpush1.msra.mxu0 0.0
        %7052 = vmatprep.subr.mxu0 0.0
        %7053 = vmatpush1.msra.mxu0 0.0
        %7054 = vmatprep.subr.mxu0 0.0
        %7055 = vmatpush1.msra.mxu0 0.0
        %7056 = vmatprep.subr.mxu0 0.0
        %7057 = vmatpush1.msra.mxu0 0.0
        %7058 = vmatprep.subr.mxu0 0.0
        %7059 = vmatpush1.msra.mxu0 0.0
        %7060 = vmatprep.subr.mxu0 0.0
        %7061 = vmatpush1.msra.mxu0 0.0
        %7062 = vmatprep.subr.mxu0 0.0
        %7063 = vmatpush1.msra.mxu0 0.0
        %7064 = vmatprep.subr.mxu0 0.0
        %7065 = vmatpush1.msra.mxu0 0.0
        %7066 = vmatprep.subr.mxu0 0.0
        %7067 = vmatpush1.msra.mxu0 0.0
        %7068 = vmatprep.subr.mxu0 0.0
        %7069 = vmatpush1.msra.mxu0 0.0
        %7070 = vmatprep.subr.mxu0 0.0
        %7071 = vmatpush1.msra.mxu0 0.0
        %7072 = vmatprep.subr.mxu0 0.0
        %7073 = vmatpush1.msra.mxu0 0.0
        %7074 = vmatprep.subr.mxu0 0.0
        %7075 = vmatpush1.msra.mxu0 0.0
        %7076 = vmatprep.mubr.f32.mxu0 0.0
        %7077 = vmatmul.mubr.f32.gmra.mrb[0].mxu0 %v5689
        %v7078 = vpop.f32.mrb[0].mxu0
        %v7079 = vadd.f32 %v6756, %v7078
        %v7080 = vpop.f32.mrb[0].mxu0
        %7081 = vmatprep.mubr.f32.mxu0 0.0
        %7082 = vmatmul.mubr.f32.gmra.mrb[0].mxu0 %v5692
        %v7083 = vpop.f32.mrb[0].mxu0
        %v7084 = vadd.f32 %v6757, %v7083
        %v7085 = vpop.f32.mrb[0].mxu0
        %7086 = vmatprep.mubr.f32.mxu0 0.0
        %7087 = vmatmul.mubr.f32.gmra.mrb[0].mxu0 %v5695
        %v7088 = vpop.f32.mrb[0].mxu0
        %v7089 = vadd.f32 %v6758, %v7088
        %v7090 = vpop.f32.mrb[0].mxu0
        %7091 = vmatprep.mubr.f32.mxu0 0.0
        %7092 = vmatmul.mubr.f32.gmra.mrb[0].mxu0 %v5698
        %v7093 = vpop.f32.mrb[0].mxu0
        %v7094 = vadd.f32 %v6759, %v7093
        %v7095 = vpop.f32.mrb[0].mxu0
        %7096 = vmatprep.mubr.f32.mxu0 0.0
        %7097 = vmatmul.mubr.f32.gmra.mrb[0].mxu0 %v5701
        %v7098 = vpop.f32.mrb[0].mxu0
        %v7099 = vadd.f32 %v6760, %v7098
        %v7100 = vpop.f32.mrb[0].mxu0
        %7101 = vmatprep.mubr.f32.mxu0 0.0
        %7102 = vmatmul.mubr.f32.gmra.mrb[0].mxu0 %v5704
        %v7103 = vpop.f32.mrb[0].mxu0
        %v7104 = vadd.f32 %v6761, %v7103
        %v7105 = vpop.f32.mrb[0].mxu0
        %7106 = vmatprep.mubr.f32.mxu0 0.0
        %7107 = vmatmul.mubr.f32.gmra.mrb[0].mxu0 %v5707
        %v7108 = vpop.f32.mrb[0].mxu0
        %v7109 = vadd.f32 %v6762, %v7108
        %v7110 = vpop.f32.mrb[0].mxu0
        %7111 = vmatprep.mubr.f32.mxu0 0.0
        %7112 = vmatmul.mubr.f32.gmra.mrb[0].mxu0 %v5710
        %v7113 = vpop.f32.mrb[0].mxu0
        %v7114 = vadd.f32 %v6763, %v7113
        %v7115 = vpop.f32.mrb[0].mxu0
        %7116 = vmatprep.mubr.f32.mxu0 0.0
        %7117 = vmatmul.mubr.f32.gmra.mrb[0].mxu0 %v5713
        %v7118 = vpop.f32.mrb[0].mxu0
        %v7119 = vadd.f32 %v6764, %v7118
        %v7120 = vpop.f32.mrb[0].mxu0
        %7121 = vmatprep.mubr.f32.mxu0 0.0
        %7122 = vmatmul.mubr.f32.gmra.mrb[0].mxu0 %v5716
        %v7123 = vpop.f32.mrb[0].mxu0
        %v7124 = vadd.f32 %v6765, %v7123
        %v7125 = vpop.f32.mrb[0].mxu0
        %7126 = vmatprep.mubr.f32.mxu0 0.0
        %7127 = vmatmul.mubr.f32.gmra.mrb[0].mxu0 %v5719
        %v7128 = vpop.f32.mrb[0].mxu0
        %v7129 = vadd.f32 %v6766, %v7128
        %v7130 = vpop.f32.mrb[0].mxu0
        %7131 = vmatprep.mubr.f32.mxu0 0.0
        %7132 = vmatmul.mubr.f32.gmra.mrb[0].mxu0 %v5722
        %v7133 = vpop.f32.mrb[0].mxu0
        %v7134 = vadd.f32 %v6767, %v7133
        %v7135 = vpop.f32.mrb[0].mxu0
        %7136 = vmatprep.mubr.f32.mxu0 0.0
        %7137 = vmatmul.mubr.f32.gmra.mrb[0].mxu0 %v5725
        %v7138 = vpop.f32.mrb[0].mxu0
        %v7139 = vadd.f32 %v6768, %v7138
        %v7140 = vpop.f32.mrb[0].mxu0
        %7141 = vmatprep.mubr.f32.mxu0 0.0
        %7142 = vmatmul.mubr.f32.gmra.mrb[0].mxu0 %v5728
        %v7143 = vpop.f32.mrb[0].mxu0
        %v7144 = vadd.f32 %v6769, %v7143
        %v7145 = vpop.f32.mrb[0].mxu0
        %7146 = vmatprep.mubr.f32.mxu0 0.0
        %7147 = vmatmul.mubr.f32.gmra.mrb[0].mxu0 %v5731
        %v7148 = vpop.f32.mrb[0].mxu0
        %v7149 = vadd.f32 %v6770, %v7148
        %v7150 = vpop.f32.mrb[0].mxu0
        %7151 = vmatprep.mubr.f32.mxu0 0.0
        %7152 = vmatmul.mubr.f32.gmra.mrb[0].mxu0 %v5734
        %v7153 = vpop.f32.mrb[0].mxu0
        %v7154 = vadd.f32 %v6771, %v7153
        %v7155 = vpop.f32.mrb[0].mxu0
        %7156 = vmatprep.mubr.f32.mxu0 0.0
        %7157 = vmatmul.mubr.f32.gmra.mrb[0].mxu0 %v5737
        %v7158 = vpop.f32.mrb[0].mxu0
        %v7159 = vadd.f32 %v6772, %v7158
        %v7160 = vpop.f32.mrb[0].mxu0
        %7161 = vmatprep.mubr.f32.mxu0 0.0
        %7162 = vmatmul.mubr.f32.gmra.mrb[0].mxu0 %v5740
        %v7163 = vpop.f32.mrb[0].mxu0
        %v7164 = vadd.f32 %v6773, %v7163
        %v7165 = vpop.f32.mrb[0].mxu0
        %7166 = vmatprep.mubr.f32.mxu0 0.0
        %7167 = vmatmul.mubr.f32.gmra.mrb[0].mxu0 %v5743
        %v7168 = vpop.f32.mrb[0].mxu0
        %v7169 = vadd.f32 %v6774, %v7168
        %v7170 = vpop.f32.mrb[0].mxu0
        %7171 = vmatprep.mubr.f32.mxu0 0.0
        %7172 = vmatmul.mubr.f32.gmra.mrb[0].mxu0 %v5746
        %v7173 = vpop.f32.mrb[0].mxu0
        %v7174 = vadd.f32 %v6775, %v7173
        %v7175 = vpop.f32.mrb[0].mxu0
        %7176 = vmatprep.mubr.f32.mxu0 0.0
        %7177 = vmatmul.mubr.f32.gmra.mrb[0].mxu0 %v5749
        %v7178 = vpop.f32.mrb[0].mxu0
        %v7179 = vadd.f32 %v6776, %v7178
        %v7180 = vpop.f32.mrb[0].mxu0
        %7181 = vmatprep.mubr.f32.mxu0 0.0
        %7182 = vmatmul.mubr.f32.gmra.mrb[0].mxu0 %v5752
        %v7183 = vpop.f32.mrb[0].mxu0
        %v7184 = vadd.f32 %v6777, %v7183
        %v7185 = vpop.f32.mrb[0].mxu0
        %7186 = vmatprep.mubr.f32.mxu0 0.0
        %7187 = vmatmul.mubr.f32.gmra.mrb[0].mxu0 %v5755
        %v7188 = vpop.f32.mrb[0].mxu0
        %v7189 = vadd.f32 %v6778, %v7188
        %v7190 = vpop.f32.mrb[0].mxu0
        %7191 = vmatprep.mubr.f32.mxu0 0.0
        %7192 = vmatmul.mubr.f32.gmra.mrb[0].mxu0 %v5758
        %v7193 = vpop.f32.mrb[0].mxu0
        %v7194 = vadd.f32 %v6779, %v7193
        %v7195 = vpop.f32.mrb[0].mxu0
        %7196 = vmatprep.mubr.f32.mxu0 0.0
        %7197 = vmatmul.mubr.f32.gmra.mrb[0].mxu0 %v5761
        %v7198 = vpop.f32.mrb[0].mxu0
        %v7199 = vadd.f32 %v6780, %v7198
        %v7200 = vpop.f32.mrb[0].mxu0
        %7201 = vmatprep.mubr.f32.mxu0 0.0
        %7202 = vmatmul.mubr.f32.gmra.mrb[0].mxu0 %v5764
        %v7203 = vpop.f32.mrb[0].mxu0
        %v7204 = vadd.f32 %v6781, %v7203
        %v7205 = vpop.f32.mrb[0].mxu0
        %7206 = vmatprep.mubr.f32.mxu0 0.0
        %7207 = vmatmul.mubr.f32.gmra.mrb[0].mxu0 %v5767
        %v7208 = vpop.f32.mrb[0].mxu0
        %v7209 = vadd.f32 %v6782, %v7208
        %v7210 = vpop.f32.mrb[0].mxu0
        %7211 = vmatprep.mubr.f32.mxu0 0.0
        %7212 = vmatmul.mubr.f32.gmra.mrb[0].mxu0 %v5770
        %v7213 = vpop.f32.mrb[0].mxu0
        %v7214 = vadd.f32 %v6783, %v7213
        %v7215 = vpop.f32.mrb[0].mxu0
        %7216 = vmatprep.mubr.f32.mxu0 0.0
        %7217 = vmatmul.mubr.f32.gmra.mrb[0].mxu0 %v5773
        %v7218 = vpop.f32.mrb[0].mxu0
        %v7219 = vadd.f32 %v6784, %v7218
        %v7220 = vpop.f32.mrb[0].mxu0
        %7221 = vmatprep.mubr.f32.mxu0 0.0
        %7222 = vmatmul.mubr.f32.gmra.mrb[0].mxu0 %v5776
        %v7223 = vpop.f32.mrb[0].mxu0
        %v7224 = vadd.f32 %v6785, %v7223
        %v7225 = vpop.f32.mrb[0].mxu0
        %7226 = vmatprep.mubr.f32.mxu0 0.0
        %7227 = vmatmul.mubr.f32.gmra.mrb[0].mxu0 %v5779
        %v7228 = vpop.f32.mrb[0].mxu0
        %v7229 = vadd.f32 %v6786, %v7228
        %v7230 = vpop.f32.mrb[0].mxu0
        %7231 = vmatprep.mubr.f32.mxu0 0.0
        %7232 = vmatmul.mubr.f32.gmra.mrb[0].mxu0 %v5782
        %v7233 = vpop.f32.mrb[0].mxu0
        %v7234 = vadd.f32 %v6787, %v7233
        %v7235 = vpop.f32.mrb[0].mxu0
        %7236 = vmatprep.mubr.f32.mxu0 0.0
        %7237 = vmatmul.mubr.f32.gmra.mrb[0].mxu0 %v5785
        %v7238 = vpop.f32.mrb[0].mxu0
        %v7239 = vadd.f32 %v6788, %v7238
        %v7240 = vpop.f32.mrb[0].mxu0
        %7241 = vmatprep.mubr.f32.mxu0 0.0
        %7242 = vmatmul.mubr.f32.gmra.mrb[0].mxu0 %v5788
        %v7243 = vpop.f32.mrb[0].mxu0
        %v7244 = vadd.f32 %v6789, %v7243
        %v7245 = vpop.f32.mrb[0].mxu0
        %7246 = vmatprep.mubr.f32.mxu0 0.0
        %7247 = vmatmul.mubr.f32.gmra.mrb[0].mxu0 %v5791
        %v7248 = vpop.f32.mrb[0].mxu0
        %v7249 = vadd.f32 %v6790, %v7248
        %v7250 = vpop.f32.mrb[0].mxu0
        %7251 = vmatprep.mubr.f32.mxu0 0.0
        %7252 = vmatmul.mubr.f32.gmra.mrb[0].mxu0 %v5794
        %v7253 = vpop.f32.mrb[0].mxu0
        %v7254 = vadd.f32 %v6791, %v7253
        %v7255 = vpop.f32.mrb[0].mxu0
        %7256 = vmatprep.mubr.f32.mxu0 0.0
        %7257 = vmatmul.mubr.f32.gmra.mrb[0].mxu0 %v5797
        %v7258 = vpop.f32.mrb[0].mxu0
        %v7259 = vadd.f32 %v6792, %v7258
        %v7260 = vpop.f32.mrb[0].mxu0
        %7261 = vmatprep.mubr.f32.mxu0 0.0
        %7262 = vmatmul.mubr.f32.gmra.mrb[0].mxu0 %v5800
        %v7263 = vpop.f32.mrb[0].mxu0
        %v7264 = vadd.f32 %v6793, %v7263
        %v7265 = vpop.f32.mrb[0].mxu0
        %7266 = vmatprep.mubr.f32.mxu0 0.0
        %7267 = vmatmul.mubr.f32.gmra.mrb[0].mxu0 %v5803
        %v7268 = vpop.f32.mrb[0].mxu0
        %v7269 = vadd.f32 %v6794, %v7268
        %v7270 = vpop.f32.mrb[0].mxu0
        %7271 = vmatprep.mubr.f32.mxu0 0.0
        %7272 = vmatmul.mubr.f32.gmra.mrb[0].mxu0 %v5806
        %v7273 = vpop.f32.mrb[0].mxu0
        %v7274 = vadd.f32 %v6795, %v7273
        %v7275 = vpop.f32.mrb[0].mxu0
        %7276 = vmatprep.mubr.f32.mxu0 0.0
        %7277 = vmatmul.mubr.f32.gmra.mrb[0].mxu0 %v5809
        %v7278 = vpop.f32.mrb[0].mxu0
        %v7279 = vadd.f32 %v6796, %v7278
        %v7280 = vpop.f32.mrb[0].mxu0
        %7281 = vmatprep.mubr.f32.mxu0 0.0
        %7282 = vmatmul.mubr.f32.gmra.mrb[0].mxu0 %v5812
        %v7283 = vpop.f32.mrb[0].mxu0
        %v7284 = vadd.f32 %v6797, %v7283
        %v7285 = vpop.f32.mrb[0].mxu0
        %7286 = vmatprep.mubr.f32.mxu0 0.0
        %7287 = vmatmul.mubr.f32.gmra.mrb[0].mxu0 %v5815
        %v7288 = vpop.f32.mrb[0].mxu0
        %v7289 = vadd.f32 %v6798, %v7288
        %v7290 = vpop.f32.mrb[0].mxu0
        %7291 = vmatprep.mubr.f32.mxu0 0.0
        %7292 = vmatmul.mubr.f32.gmra.mrb[0].mxu0 %v5818
        %v7293 = vpop.f32.mrb[0].mxu0
        %v7294 = vadd.f32 %v6799, %v7293
        %v7295 = vpop.f32.mrb[0].mxu0
        %7296 = vmatprep.mubr.f32.mxu0 0.0
        %7297 = vmatmul.mubr.f32.gmra.mrb[0].mxu0 %v5821
        %v7298 = vpop.f32.mrb[0].mxu0
        %v7299 = vadd.f32 %v6800, %v7298
        %v7300 = vpop.f32.mrb[0].mxu0
        %7301 = vmatprep.mubr.f32.mxu0 0.0
        %7302 = vmatmul.mubr.f32.gmra.mrb[0].mxu0 %v5824
        %v7303 = vpop.f32.mrb[0].mxu0
        %v7304 = vadd.f32 %v6801, %v7303
        %v7305 = vpop.f32.mrb[0].mxu0
        %7306 = vmatprep.mubr.f32.mxu0 0.0
        %7307 = vmatmul.mubr.f32.gmra.mrb[0].mxu0 %v5827
        %v7308 = vpop.f32.mrb[0].mxu0
        %v7309 = vadd.f32 %v6802, %v7308
        %v7310 = vpop.f32.mrb[0].mxu0
        %7311 = vmatprep.mubr.f32.mxu0 0.0
        %7312 = vmatmul.mubr.f32.gmra.mrb[0].mxu0 %v5830
        %v7313 = vpop.f32.mrb[0].mxu0
        %v7314 = vadd.f32 %v6803, %v7313
        %v7315 = vpop.f32.mrb[0].mxu0
        %7316 = vmatprep.mubr.f32.mxu0 0.0
        %7317 = vmatmul.mubr.f32.gmra.mrb[0].mxu0 %v5833
        %v7318 = vpop.f32.mrb[0].mxu0
        %v7319 = vadd.f32 %v6804, %v7318
        %v7320 = vpop.f32.mrb[0].mxu0
        %7321 = vmatprep.mubr.f32.mxu0 0.0
        %7322 = vmatmul.mubr.f32.gmra.mrb[0].mxu0 %v5836
        %v7323 = vpop.f32.mrb[0].mxu0
        %v7324 = vadd.f32 %v6805, %v7323
        %v7325 = vpop.f32.mrb[0].mxu0
        %7326 = vmatprep.mubr.f32.mxu0 0.0
        %7327 = vmatmul.mubr.f32.gmra.mrb[0].mxu0 %v5839
        %v7328 = vpop.f32.mrb[0].mxu0
        %v7329 = vadd.f32 %v6806, %v7328
        %v7330 = vpop.f32.mrb[0].mxu0
        %7331 = vmatprep.mubr.f32.mxu0 0.0
        %7332 = vmatmul.mubr.f32.gmra.mrb[0].mxu0 %v5842
        %v7333 = vpop.f32.mrb[0].mxu0
        %v7334 = vadd.f32 %v6807, %v7333
        %v7335 = vpop.f32.mrb[0].mxu0
        %7336 = vmatprep.mubr.f32.mxu0 0.0
        %7337 = vmatmul.mubr.f32.gmra.mrb[0].mxu0 %v5845
        %v7338 = vpop.f32.mrb[0].mxu0
        %v7339 = vadd.f32 %v6808, %v7338
        %v7340 = vpop.f32.mrb[0].mxu0
        %7341 = vmatprep.mubr.f32.mxu0 0.0
        %7342 = vmatmul.mubr.f32.gmra.mrb[0].mxu0 %v5848
        %v7343 = vpop.f32.mrb[0].mxu0
        %v7344 = vadd.f32 %v6809, %v7343
        %v7345 = vpop.f32.mrb[0].mxu0
        %7346 = vmatprep.mubr.f32.mxu0 0.0
        %7347 = vmatmul.mubr.f32.gmra.mrb[0].mxu0 %v5851
        %v7348 = vpop.f32.mrb[0].mxu0
        %v7349 = vadd.f32 %v6810, %v7348
        %v7350 = vpop.f32.mrb[0].mxu0
        %7351 = vmatprep.mubr.f32.mxu0 0.0
        %7352 = vmatmul.mubr.f32.gmra.mrb[0].mxu0 %v5854
        %v7353 = vpop.f32.mrb[0].mxu0
        %v7354 = vadd.f32 %v6811, %v7353
        %v7355 = vpop.f32.mrb[0].mxu0
        %7356 = vmatprep.mubr.f32.mxu0 0.0
        %7357 = vmatmul.mubr.f32.gmra.mrb[0].mxu0 %v5857
        %v7358 = vpop.f32.mrb[0].mxu0
        %v7359 = vadd.f32 %v6812, %v7358
        %v7360 = vpop.f32.mrb[0].mxu0
        %7361 = vmatprep.mubr.f32.mxu0 0.0
        %7362 = vmatmul.mubr.f32.gmra.mrb[0].mxu0 %v5860
        %v7363 = vpop.f32.mrb[0].mxu0
        %v7364 = vadd.f32 %v6813, %v7363
        %v7365 = vpop.f32.mrb[0].mxu0
        %7366 = vmatprep.mubr.f32.mxu0 0.0
        %7367 = vmatmul.mubr.f32.gmra.mrb[0].mxu0 %v5863
        %v7368 = vpop.f32.mrb[0].mxu0
        %v7369 = vadd.f32 %v6814, %v7368
        %v7370 = vpop.f32.mrb[0].mxu0
        %7371 = vmatprep.mubr.f32.mxu0 0.0
        %7372 = vmatmul.mubr.f32.gmra.mrb[0].mxu0 %v5866
        %v7373 = vpop.f32.mrb[0].mxu0
        %v7374 = vadd.f32 %v6815, %v7373
        %v7375 = vpop.f32.mrb[0].mxu0
        %7376 = vmatprep.mubr.f32.mxu0 0.0
        %7377 = vmatmul.mubr.f32.gmra.mrb[0].mxu0 %v5869
        %v7378 = vpop.f32.mrb[0].mxu0
        %v7379 = vadd.f32 %v6816, %v7378
        %v7380 = vpop.f32.mrb[0].mxu0
        %7381 = vmatprep.mubr.f32.mxu0 0.0
        %7382 = vmatmul.mubr.f32.gmra.mrb[0].mxu0 %v5872
        %v7383 = vpop.f32.mrb[0].mxu0
        %v7384 = vadd.f32 %v6817, %v7383
        %v7385 = vpop.f32.mrb[0].mxu0
        %7386 = vmatprep.mubr.f32.mxu0 0.0
        %7387 = vmatmul.mubr.f32.gmra.mrb[0].mxu0 %v5875
        %v7388 = vpop.f32.mrb[0].mxu0
        %v7389 = vadd.f32 %v6818, %v7388
        %v7390 = vpop.f32.mrb[0].mxu0
        %7391 = vmatprep.mubr.f32.mxu0 0.0
        %7392 = vmatmul.mubr.f32.gmra.mrb[0].mxu0 %v5878
        %v7393 = vpop.f32.mrb[0].mxu0
        %v7394 = vadd.f32 %v6819, %v7393
        %v7395 = vpop.f32.mrb[0].mxu0
        %7396 = vdwg.mxu0
        %v7397 = vadd.f32 %v7079, %v6948
        %v7398 = vadd.f32 %v7084, %v6949
        %v7399 = vadd.f32 %v7089, %v6950
        %v7400 = vadd.f32 %v7094, %v6951
        %v7401 = vadd.f32 %v7099, %v6952
        %v7402 = vadd.f32 %v7104, %v6953
        %v7403 = vadd.f32 %v7109, %v6954
        %v7404 = vadd.f32 %v7114, %v6955
        %v7405 = vadd.f32 %v7119, %v6956
        %v7406 = vadd.f32 %v7124, %v6957
        %v7407 = vadd.f32 %v7129, %v6958
        %v7408 = vadd.f32 %v7134, %v6959
        %v7409 = vadd.f32 %v7139, %v6960
        %v7410 = vadd.f32 %v7144, %v6961
        %v7411 = vadd.f32 %v7149, %v6962
        %v7412 = vadd.f32 %v7154, %v6963
        %v7413 = vadd.f32 %v7159, %v6964
        %v7414 = vadd.f32 %v7164, %v6965
        %v7415 = vadd.f32 %v7169, %v6966
        %v7416 = vadd.f32 %v7174, %v6967
        %v7417 = vadd.f32 %v7179, %v6968
        %v7418 = vadd.f32 %v7184, %v6969
        %v7419 = vadd.f32 %v7189, %v6970
        %v7420 = vadd.f32 %v7194, %v6971
        %v7421 = vadd.f32 %v7199, %v6972
        %v7422 = vadd.f32 %v7204, %v6973
        %v7423 = vadd.f32 %v7209, %v6974
        %v7424 = vadd.f32 %v7214, %v6975
        %v7425 = vadd.f32 %v7219, %v6976
        %v7426 = vadd.f32 %v7224, %v6977
        %v7427 = vadd.f32 %v7229, %v6978
        %v7428 = vadd.f32 %v7234, %v6979
        %v7429 = vadd.f32 %v7239, %v6980
        %v7430 = vadd.f32 %v7244, %v6981
        %v7431 = vadd.f32 %v7249, %v6982
        %v7432 = vadd.f32 %v7254, %v6983
        %v7433 = vadd.f32 %v7259, %v6984
        %v7434 = vadd.f32 %v7264, %v6985
        %v7435 = vadd.f32 %v7269, %v6986
        %v7436 = vadd.f32 %v7274, %v6987
        %v7437 = vadd.f32 %v7279, %v6988
        %v7438 = vadd.f32 %v7284, %v6989
        %v7439 = vadd.f32 %v7289, %v6990
        %v7440 = vadd.f32 %v7294, %v6991
        %v7441 = vadd.f32 %v7299, %v6992
        %v7442 = vadd.f32 %v7304, %v6993
        %v7443 = vadd.f32 %v7309, %v6994
        %v7444 = vadd.f32 %v7314, %v6995
        %v7445 = vadd.f32 %v7319, %v6996
        %v7446 = vadd.f32 %v7324, %v6997
        %v7447 = vadd.f32 %v7329, %v6998
        %v7448 = vadd.f32 %v7334, %v6999
        %v7449 = vadd.f32 %v7339, %v7000
        %v7450 = vadd.f32 %v7344, %v7001
        %v7451 = vadd.f32 %v7349, %v7002
        %v7452 = vadd.f32 %v7354, %v7003
        %v7453 = vadd.f32 %v7359, %v7004
        %v7454 = vadd.f32 %v7364, %v7005
        %v7455 = vadd.f32 %v7369, %v7006
        %v7456 = vadd.f32 %v7374, %v7007
        %v7457 = vadd.f32 %v7379, %v7008
        %v7458 = vadd.f32 %v7384, %v7009
        %v7459 = vadd.f32 %v7389, %v7010
        %v7460 = vadd.f32 %v7394, %v7011
        %v7461 = vld [vmem:[%s4] sm:$0x1]
        %v7463 = vlaneseq
        %v7464 = vshrl.u32 %v7463, 7
        %v7465 = vsub.s32 0, %v7464
        %v7466 = vrot.slane %v7461, %v7465
        %v7468 = vadd.f32 %v7397, %v7466
        %v7469 = vadd.f32 %v7398, %v7466
        %v7470 = vadd.f32 %v7399, %v7466
        %v7471 = vadd.f32 %v7400, %v7466
        %v7472 = vadd.f32 %v7401, %v7466
        %v7473 = vadd.f32 %v7402, %v7466
        %v7474 = vadd.f32 %v7403, %v7466
        %v7475 = vadd.f32 %v7404, %v7466
        %v7476 = vadd.f32 %v7405, %v7466
        %v7477 = vadd.f32 %v7406, %v7466
        %v7478 = vadd.f32 %v7407, %v7466
        %v7479 = vadd.f32 %v7408, %v7466
        %v7480 = vadd.f32 %v7409, %v7466
        %v7481 = vadd.f32 %v7410, %v7466
        %v7482 = vadd.f32 %v7411, %v7466
        %v7483 = vadd.f32 %v7412, %v7466
        %v7484 = vadd.f32 %v7413, %v7466
        %v7485 = vadd.f32 %v7414, %v7466
        %v7486 = vadd.f32 %v7415, %v7466
        %v7487 = vadd.f32 %v7416, %v7466
        %v7488 = vadd.f32 %v7417, %v7466
        %v7489 = vadd.f32 %v7418, %v7466
        %v7490 = vadd.f32 %v7419, %v7466
        %v7491 = vadd.f32 %v7420, %v7466
        %v7492 = vadd.f32 %v7421, %v7466
        %v7493 = vadd.f32 %v7422, %v7466
        %v7494 = vadd.f32 %v7423, %v7466
        %v7495 = vadd.f32 %v7424, %v7466
        %v7496 = vadd.f32 %v7425, %v7466
        %v7497 = vadd.f32 %v7426, %v7466
        %v7498 = vadd.f32 %v7427, %v7466
        %v7499 = vadd.f32 %v7428, %v7466
        %v7500 = vadd.f32 %v7429, %v7466
        %v7501 = vadd.f32 %v7430, %v7466
        %v7502 = vadd.f32 %v7431, %v7466
        %v7503 = vadd.f32 %v7432, %v7466
        %v7504 = vadd.f32 %v7433, %v7466
        %v7505 = vadd.f32 %v7434, %v7466
        %v7506 = vadd.f32 %v7435, %v7466
        %v7507 = vadd.f32 %v7436, %v7466
        %v7508 = vadd.f32 %v7437, %v7466
        %v7509 = vadd.f32 %v7438, %v7466
        %v7510 = vadd.f32 %v7439, %v7466
        %v7511 = vadd.f32 %v7440, %v7466
        %v7512 = vadd.f32 %v7441, %v7466
        %v7513 = vadd.f32 %v7442, %v7466
        %v7514 = vadd.f32 %v7443, %v7466
        %v7515 = vadd.f32 %v7444, %v7466
        %v7516 = vadd.f32 %v7445, %v7466
        %v7517 = vadd.f32 %v7446, %v7466
        %v7518 = vadd.f32 %v7447, %v7466
        %v7519 = vadd.f32 %v7448, %v7466
        %v7520 = vadd.f32 %v7449, %v7466
        %v7521 = vadd.f32 %v7450, %v7466
        %v7522 = vadd.f32 %v7451, %v7466
        %v7523 = vadd.f32 %v7452, %v7466
        %v7524 = vadd.f32 %v7453, %v7466
        %v7525 = vadd.f32 %v7454, %v7466
        %v7526 = vadd.f32 %v7455, %v7466
        %v7527 = vadd.f32 %v7456, %v7466
        %v7528 = vadd.f32 %v7457, %v7466
        %v7529 = vadd.f32 %v7458, %v7466
        %v7530 = vadd.f32 %v7459, %v7466
        %v7531 = vadd.f32 %v7460, %v7466
        %v7532 = vsel %vm3496, 0.0, %v7531
        %v7533 = vsel %vm3498, 0.0, %v7469
        %v7534 = vsel %vm3500, 0.0, %v7471
        %v7535 = vsel %vm3502, 0.0, %v7473
        %v7536 = vsel %vm3504, 0.0, %v7475
        %v7537 = vsel %vm3506, 0.0, %v7477
        %v7538 = vsel %vm3508, 0.0, %v7479
        %v7539 = vsel %vm3510, 0.0, %v7481
        %v7540 = vsel %vm3512, 0.0, %v7483
        %v7541 = vsel %vm3514, 0.0, %v7485
        %v7542 = vsel %vm3516, 0.0, %v7487
        %v7543 = vsel %vm3518, 0.0, %v7489
        %v7544 = vsel %vm3520, 0.0, %v7491
        %v7545 = vsel %vm3522, 0.0, %v7493
        %v7546 = vsel %vm3524, 0.0, %v7495
        %v7547 = vsel %vm3526, 0.0, %v7497
        %v7548 = vsel %vm3528, 0.0, %v7499
        %v7549 = vsel %vm3530, 0.0, %v7501
        %v7550 = vsel %vm3532, 0.0, %v7503
        %v7551 = vsel %vm3534, 0.0, %v7505
        %v7552 = vsel %vm3536, 0.0, %v7507
        %v7553 = vsel %vm3538, 0.0, %v7509
        %v7554 = vsel %vm3540, 0.0, %v7511
        %v7555 = vsel %vm3542, 0.0, %v7513
        %v7556 = vsel %vm3544, 0.0, %v7515
        %v7557 = vsel %vm3546, 0.0, %v7517
        %v7558 = vsel %vm3548, 0.0, %v7519
        %v7559 = vsel %vm3550, 0.0, %v7521
        %v7560 = vsel %vm3552, 0.0, %v7523
        %v7561 = vsel %vm3554, 0.0, %v7525
        %v7562 = vsel %vm3556, 0.0, %v7527
        %v7563 = vsel %vm3558, 0.0, %v7529
        %v7564 = vsel %vm6884, 0.0, %v7469
        %v7565 = vsel %vm6886, 0.0, %v7471
        %v7566 = vsel %vm6888, 0.0, %v7473
        %v7567 = vsel %vm6890, 0.0, %v7475
        %v7568 = vsel %vm6892, 0.0, %v7477
        %v7569 = vsel %vm6894, 0.0, %v7479
        %v7570 = vsel %vm6896, 0.0, %v7481
        %v7571 = vsel %vm6898, 0.0, %v7483
        %v7572 = vsel %vm6900, 0.0, %v7485
        %v7573 = vsel %vm6902, 0.0, %v7487
        %v7574 = vsel %vm6904, 0.0, %v7489
        %v7575 = vsel %vm6906, 0.0, %v7491
        %v7576 = vsel %vm6908, 0.0, %v7493
        %v7577 = vsel %vm6910, 0.0, %v7495
        %v7578 = vsel %vm6912, 0.0, %v7497
        %v7579 = vsel %vm6914, 0.0, %v7499
        %v7580 = vsel %vm6916, 0.0, %v7501
        %v7581 = vsel %vm6918, 0.0, %v7503
        %v7582 = vsel %vm6920, 0.0, %v7505
        %v7583 = vsel %vm6922, 0.0, %v7507
        %v7584 = vsel %vm6924, 0.0, %v7509
        %v7585 = vsel %vm6926, 0.0, %v7511
        %v7586 = vsel %vm6928, 0.0, %v7513
        %v7587 = vsel %vm6930, 0.0, %v7515
        %v7588 = vsel %vm6932, 0.0, %v7517
        %v7589 = vsel %vm6934, 0.0, %v7519
        %v7590 = vsel %vm6936, 0.0, %v7521
        %v7591 = vsel %vm6938, 0.0, %v7523
        %v7592 = vsel %vm6940, 0.0, %v7525
        %v7593 = vsel %vm6942, 0.0, %v7527
        %v7594 = vsel %vm6944, 0.0, %v7529
        %v7595 = vsel %vm6946, 0.0, %v7531
        %v7596 = vsel %vm6724, 1, 0
        %v7597 = vsel %vm6725, 1, 0
        %v7598 = vsel %vm6726, 1, 0
        %v7599 = vsel %vm6727, 1, 0
        %v7600 = vsel %vm6728, 1, 0
        %v7601 = vsel %vm6729, 1, 0
        %v7602 = vsel %vm6730, 1, 0
        %v7603 = vsel %vm6731, 1, 0
        %v7604 = vsel %vm6732, 1, 0
        %v7605 = vsel %vm6733, 1, 0
        %v7606 = vsel %vm6734, 1, 0
        %v7607 = vsel %vm6735, 1, 0
        %v7608 = vsel %vm6736, 1, 0
        %v7609 = vsel %vm6737, 1, 0
        %v7610 = vsel %vm6738, 1, 0
        %v7611 = vsel %vm6739, 1, 0
        %v7612 = vsel %vm6740, 1, 0
        %v7613 = vsel %vm6741, 1, 0
        %v7614 = vsel %vm6742, 1, 0
        %v7615 = vsel %vm6743, 1, 0
        %v7616 = vsel %vm6744, 1, 0
        %v7617 = vsel %vm6745, 1, 0
        %v7618 = vsel %vm6746, 1, 0
        %v7619 = vsel %vm6747, 1, 0
        %v7620 = vsel %vm6748, 1, 0
        %v7621 = vsel %vm6749, 1, 0
        %v7622 = vsel %vm6750, 1, 0
        %v7623 = vsel %vm6751, 1, 0
        %v7624 = vsel %vm6752, 1, 0
        %v7625 = vsel %vm6753, 1, 0
        %v7626 = vsel %vm6754, 1, 0
        %v7627 = vsel %vm6755, 1, 0
        %vm7628 = vcmp.eq.s32.totalorder %v7596, 1
        %vm7629 = vcmp.eq.s32.totalorder %v7597, 1
        %vm7630 = vcmp.eq.s32.totalorder %v7598, 1
        %vm7631 = vcmp.eq.s32.totalorder %v7599, 1
        %vm7632 = vcmp.eq.s32.totalorder %v7600, 1
        %vm7633 = vcmp.eq.s32.totalorder %v7601, 1
        %vm7634 = vcmp.eq.s32.totalorder %v7602, 1
        %vm7635 = vcmp.eq.s32.totalorder %v7603, 1
        %vm7636 = vcmp.eq.s32.totalorder %v7604, 1
        %vm7637 = vcmp.eq.s32.totalorder %v7605, 1
        %vm7638 = vcmp.eq.s32.totalorder %v7606, 1
        %vm7639 = vcmp.eq.s32.totalorder %v7607, 1
        %vm7640 = vcmp.eq.s32.totalorder %v7608, 1
        %vm7641 = vcmp.eq.s32.totalorder %v7609, 1
        %vm7642 = vcmp.eq.s32.totalorder %v7610, 1
        %vm7643 = vcmp.eq.s32.totalorder %v7611, 1
        %vm7644 = vcmp.eq.s32.totalorder %v7612, 1
        %vm7645 = vcmp.eq.s32.totalorder %v7613, 1
        %vm7646 = vcmp.eq.s32.totalorder %v7614, 1
        %vm7647 = vcmp.eq.s32.totalorder %v7615, 1
        %vm7648 = vcmp.eq.s32.totalorder %v7616, 1
        %vm7649 = vcmp.eq.s32.totalorder %v7617, 1
        %vm7650 = vcmp.eq.s32.totalorder %v7618, 1
        %vm7651 = vcmp.eq.s32.totalorder %v7619, 1
        %vm7652 = vcmp.eq.s32.totalorder %v7620, 1
        %vm7653 = vcmp.eq.s32.totalorder %v7621, 1
        %vm7654 = vcmp.eq.s32.totalorder %v7622, 1
        %vm7655 = vcmp.eq.s32.totalorder %v7623, 1
        %vm7656 = vcmp.eq.s32.totalorder %v7624, 1
        %vm7657 = vcmp.eq.s32.totalorder %v7625, 1
        %vm7658 = vcmp.eq.s32.totalorder %v7626, 1
        %vm7659 = vcmp.eq.s32.totalorder %v7627, 1
        %v7660 = vsel %vm7628, 0.0, %v7470
        %v7661 = vsel %vm7629, 0.0, %v7472
        %v7662 = vsel %vm7630, 0.0, %v7474
        %v7663 = vsel %vm7631, 0.0, %v7476
        %v7664 = vsel %vm7632, 0.0, %v7478
        %v7665 = vsel %vm7633, 0.0, %v7480
        %v7666 = vsel %vm7634, 0.0, %v7482
        %v7667 = vsel %vm7635, 0.0, %v7484
        %v7668 = vsel %vm7636, 0.0, %v7486
        %v7669 = vsel %vm7637, 0.0, %v7488
        %v7670 = vsel %vm7638, 0.0, %v7490
        %v7671 = vsel %vm7639, 0.0, %v7492
        %v7672 = vsel %vm7640, 0.0, %v7494
        %v7673 = vsel %vm7641, 0.0, %v7496
        %v7674 = vsel %vm7642, 0.0, %v7498
        %v7675 = vsel %vm7643, 0.0, %v7500
        %v7676 = vsel %vm7644, 0.0, %v7502
        %v7677 = vsel %vm7645, 0.0, %v7504
        %v7678 = vsel %vm7646, 0.0, %v7506
        %v7679 = vsel %vm7647, 0.0, %v7508
        %v7680 = vsel %vm7648, 0.0, %v7510
        %v7681 = vsel %vm7649, 0.0, %v7512
        %v7682 = vsel %vm7650, 0.0, %v7514
        %v7683 = vsel %vm7651, 0.0, %v7516
        %v7684 = vsel %vm7652, 0.0, %v7518
        %v7685 = vsel %vm7653, 0.0, %v7520
        %v7686 = vsel %vm7654, 0.0, %v7522
        %v7687 = vsel %vm7655, 0.0, %v7524
        %v7688 = vsel %vm7656, 0.0, %v7526
        %v7689 = vsel %vm7657, 0.0, %v7528
        %v7690 = vsel %vm7658, 0.0, %v7530
        %v7691 = vsel %vm7659, 0.0, %v7468
        %v7692 = vmax.f32 %v7468, %v7532
        %v7693 = vmax.f32 %v7470, %v7533
        %v7694 = vmax.f32 %v7472, %v7534
        %v7695 = vmax.f32 %v7474, %v7535
        %v7696 = vmax.f32 %v7476, %v7536
        %v7697 = vmax.f32 %v7478, %v7537
        %v7698 = vmax.f32 %v7480, %v7538
        %v7699 = vmax.f32 %v7482, %v7539
        %v7700 = vmax.f32 %v7484, %v7540
        %v7701 = vmax.f32 %v7486, %v7541
        %v7702 = vmax.f32 %v7488, %v7542
        %v7703 = vmax.f32 %v7490, %v7543
        %v7704 = vmax.f32 %v7492, %v7544
        %v7705 = vmax.f32 %v7494, %v7545
        %v7706 = vmax.f32 %v7496, %v7546
        %v7707 = vmax.f32 %v7498, %v7547
        %v7708 = vmax.f32 %v7500, %v7548
        %v7709 = vmax.f32 %v7502, %v7549
        %v7710 = vmax.f32 %v7504, %v7550
        %v7711 = vmax.f32 %v7506, %v7551
        %v7712 = vmax.f32 %v7508, %v7552
        %v7713 = vmax.f32 %v7510, %v7553
        %v7714 = vmax.f32 %v7512, %v7554
        %v7715 = vmax.f32 %v7514, %v7555
        %v7716 = vmax.f32 %v7516, %v7556
        %v7717 = vmax.f32 %v7518, %v7557
        %v7718 = vmax.f32 %v7520, %v7558
        %v7719 = vmax.f32 %v7522, %v7559
        %v7720 = vmax.f32 %v7524, %v7560
        %v7721 = vmax.f32 %v7526, %v7561
        %v7722 = vmax.f32 %v7528, %v7562
        %v7723 = vmax.f32 %v7530, %v7563
        %v7724 = vmax.f32 %v7564, %v7660
        %v7725 = vmax.f32 %v7565, %v7661
        %v7726 = vmax.f32 %v7566, %v7662
        %v7727 = vmax.f32 %v7567, %v7663
        %v7728 = vmax.f32 %v7568, %v7664
        %v7729 = vmax.f32 %v7569, %v7665
        %v7730 = vmax.f32 %v7570, %v7666
        %v7731 = vmax.f32 %v7571, %v7667
        %v7732 = vmax.f32 %v7572, %v7668
        %v7733 = vmax.f32 %v7573, %v7669
        %v7734 = vmax.f32 %v7574, %v7670
        %v7735 = vmax.f32 %v7575, %v7671
        %v7736 = vmax.f32 %v7576, %v7672
        %v7737 = vmax.f32 %v7577, %v7673
        %v7738 = vmax.f32 %v7578, %v7674
        %v7739 = vmax.f32 %v7579, %v7675
        %v7740 = vmax.f32 %v7580, %v7676
        %v7741 = vmax.f32 %v7581, %v7677
        %v7742 = vmax.f32 %v7582, %v7678
        %v7743 = vmax.f32 %v7583, %v7679
        %v7744 = vmax.f32 %v7584, %v7680
        %v7745 = vmax.f32 %v7585, %v7681
        %v7746 = vmax.f32 %v7586, %v7682
        %v7747 = vmax.f32 %v7587, %v7683
        %v7748 = vmax.f32 %v7588, %v7684
        %v7749 = vmax.f32 %v7589, %v7685
        %v7750 = vmax.f32 %v7590, %v7686
        %v7751 = vmax.f32 %v7591, %v7687
        %v7752 = vmax.f32 %v7592, %v7688
        %v7753 = vmax.f32 %v7593, %v7689
        %v7754 = vmax.f32 %v7594, %v7690
        %v7755 = vmax.f32 %v7595, %v7691
        %v7756 = vmax.f32 %v7692, %v7724
        %v7757 = vmax.f32 %v7693, %v7725
        %v7758 = vmax.f32 %v7694, %v7726
        %v7759 = vmax.f32 %v7695, %v7727
        %v7760 = vmax.f32 %v7696, %v7728
        %v7761 = vmax.f32 %v7697, %v7729
        %v7762 = vmax.f32 %v7698, %v7730
        %v7763 = vmax.f32 %v7699, %v7731
        %v7764 = vmax.f32 %v7700, %v7732
        %v7765 = vmax.f32 %v7701, %v7733
        %v7766 = vmax.f32 %v7702, %v7734
        %v7767 = vmax.f32 %v7703, %v7735
        %v7768 = vmax.f32 %v7704, %v7736
        %v7769 = vmax.f32 %v7705, %v7737
        %v7770 = vmax.f32 %v7706, %v7738
        %v7771 = vmax.f32 %v7707, %v7739
        %v7772 = vmax.f32 %v7708, %v7740
        %v7773 = vmax.f32 %v7709, %v7741
        %v7774 = vmax.f32 %v7710, %v7742
        %v7775 = vmax.f32 %v7711, %v7743
        %v7776 = vmax.f32 %v7712, %v7744
        %v7777 = vmax.f32 %v7713, %v7745
        %v7778 = vmax.f32 %v7714, %v7746
        %v7779 = vmax.f32 %v7715, %v7747
        %v7780 = vmax.f32 %v7716, %v7748
        %v7781 = vmax.f32 %v7717, %v7749
        %v7782 = vmax.f32 %v7718, %v7750
        %v7783 = vmax.f32 %v7719, %v7751
        %v7784 = vmax.f32 %v7720, %v7752
        %v7785 = vmax.f32 %v7721, %v7753
        %v7786 = vmax.f32 %v7722, %v7754
        %v7787 = vmax.f32 %v7723, %v7755
        %v7788 = vmax.f32 %v7756, 0.0
        %v7789 = vmax.f32 %v7757, 0.0
        %v7790 = vmax.f32 %v7758, 0.0
        %v7791 = vmax.f32 %v7759, 0.0
        %v7792 = vmax.f32 %v7760, 0.0
        %v7793 = vmax.f32 %v7761, 0.0
        %v7794 = vmax.f32 %v7762, 0.0
        %v7795 = vmax.f32 %v7763, 0.0
        %v7796 = vmax.f32 %v7764, 0.0
        %v7797 = vmax.f32 %v7765, 0.0
        %v7798 = vmax.f32 %v7766, 0.0
        %v7799 = vmax.f32 %v7767, 0.0
        %v7800 = vmax.f32 %v7768, 0.0
        %v7801 = vmax.f32 %v7769, 0.0
        %v7802 = vmax.f32 %v7770, 0.0
        %v7803 = vmax.f32 %v7771, 0.0
        %v7804 = vmax.f32 %v7772, 0.0
        %v7805 = vmax.f32 %v7773, 0.0
        %v7806 = vmax.f32 %v7774, 0.0
        %v7807 = vmax.f32 %v7775, 0.0
        %v7808 = vmax.f32 %v7776, 0.0
        %v7809 = vmax.f32 %v7777, 0.0
        %v7810 = vmax.f32 %v7778, 0.0
        %v7811 = vmax.f32 %v7779, 0.0
        %v7812 = vmax.f32 %v7780, 0.0
        %v7813 = vmax.f32 %v7781, 0.0
        %v7814 = vmax.f32 %v7782, 0.0
        %v7815 = vmax.f32 %v7783, 0.0
        %v7816 = vmax.f32 %v7784, 0.0
        %v7817 = vmax.f32 %v7785, 0.0
        %v7818 = vmax.f32 %v7786, 0.0
        %v7819 = vmax.f32 %v7787, 0.0
        %v7820 = vld [vmem:[%s5] sm:$0xff]
        %v7821 = vld [vmem:[%s5 + $0x8] sm:$0xff]
        %v7822 = vld [vmem:[%s5 + $0x10] sm:$0xff]
        %v7823 = vld [vmem:[%s5 + $0x18] sm:$0xff]
        %v7824 = vld [vmem:[%s5 + $0x20] sm:$0xff]
        %v7825 = vld [vmem:[%s5 + $0x28] sm:$0xff]
        %v7826 = vld [vmem:[%s5 + $0x30] sm:$0xff]
        %v7827 = vld [vmem:[%s5 + $0x38] sm:$0xff]
        %vm7828 = vcmask 523264
        %v7830 = vsel %vm7828, %v7788, 0
        %v7833 = vsel %vm7828, %v7789, 0
        %v7836 = vsel %vm7828, %v7790, 0
        %v7839 = vsel %vm7828, %v7791, 0
        %v7842 = vsel %vm7828, %v7792, 0
        %v7845 = vsel %vm7828, %v7793, 0
        %v7848 = vsel %vm7828, %v7794, 0
        %v7851 = vsel %vm7828, %v7795, 0
        %v7854 = vsel %vm7828, %v7796, 0
        %v7857 = vsel %vm7828, %v7797, 0
        %v7860 = vsel %vm7828, %v7798, 0
        %v7863 = vsel %vm7828, %v7799, 0
        %v7866 = vsel %vm7828, %v7800, 0
        %v7869 = vsel %vm7828, %v7801, 0
        %v7872 = vsel %vm7828, %v7802, 0
        %v7875 = vsel %vm7828, %v7803, 0
        %v7878 = vsel %vm7828, %v7804, 0
        %v7881 = vsel %vm7828, %v7805, 0
        %v7884 = vsel %vm7828, %v7806, 0
        %v7887 = vsel %vm7828, %v7807, 0
        %v7890 = vsel %vm7828, %v7808, 0
        %v7893 = vsel %vm7828, %v7809, 0
        %v7896 = vsel %vm7828, %v7810, 0
        %v7899 = vsel %vm7828, %v7811, 0
        %v7902 = vsel %vm7828, %v7812, 0
        %v7905 = vsel %vm7828, %v7813, 0
        %v7908 = vsel %vm7828, %v7814, 0
        %v7911 = vsel %vm7828, %v7815, 0
        %v7914 = vsel %vm7828, %v7816, 0
        %v7917 = vsel %vm7828, %v7817, 0
        %v7920 = vsel %vm7828, %v7818, 0
        %v7923 = vsel %vm7828, %v7819, 0
        %7925 = vmatprep.subr.mxu0 0.0
        %7926 = vmatpush1.msra.mxu0 %v7820
        %7927 = vmatprep.subr.mxu0 0.0
        %7928 = vmatpush1.msra.mxu0 %v7821
        %7929 = vmatprep.subr.mxu0 0.0
        %7930 = vmatpush1.msra.mxu0 %v7822
        %7931 = vmatprep.subr.mxu0 0.0
        %7932 = vmatpush1.msra.mxu0 %v7823
        %7933 = vmatprep.subr.mxu0 0.0
        %7934 = vmatpush1.msra.mxu0 %v7824
        %7935 = vmatprep.subr.mxu0 0.0
        %7936 = vmatpush1.msra.mxu0 %v7825
        %7937 = vmatprep.subr.mxu0 0.0
        %7938 = vmatpush1.msra.mxu0 %v7826
        %7939 = vmatprep.subr.mxu0 0.0
        %7940 = vmatpush1.msra.mxu0 %v7827
        %7941 = vmatprep.subr.mxu0 0.0
        %7942 = vmatpush1.msra.mxu0 0.0
        %7943 = vmatprep.subr.mxu0 0.0
        %7944 = vmatpush1.msra.mxu0 0.0
        %7945 = vmatprep.subr.mxu0 0.0
        %7946 = vmatpush1.msra.mxu0 0.0
        %7947 = vmatprep.subr.mxu0 0.0
        %7948 = vmatpush1.msra.mxu0 0.0
        %7949 = vmatprep.subr.mxu0 0.0
        %7950 = vmatpush1.msra.mxu0 0.0
        %7951 = vmatprep.subr.mxu0 0.0
        %7952 = vmatpush1.msra.mxu0 0.0
        %7953 = vmatprep.subr.mxu0 0.0
        %7954 = vmatpush1.msra.mxu0 0.0
        %7955 = vmatprep.subr.mxu0 0.0
        %7956 = vmatpush1.msra.mxu0 0.0
        %7957 = vmatprep.subr.mxu0 0.0
        %7958 = vmatpush1.msra.mxu0 0.0
        %7959 = vmatprep.subr.mxu0 0.0
        %7960 = vmatpush1.msra.mxu0 0.0
        %7961 = vmatprep.subr.mxu0 0.0
        %7962 = vmatpush1.msra.mxu0 0.0
        %7963 = vmatprep.subr.mxu0 0.0
        %7964 = vmatpush1.msra.mxu0 0.0
        %7965 = vmatprep.subr.mxu0 0.0
        %7966 = vmatpush1.msra.mxu0 0.0
        %7967 = vmatprep.subr.mxu0 0.0
        %7968 = vmatpush1.msra.mxu0 0.0
        %7969 = vmatprep.subr.mxu0 0.0
        %7970 = vmatpush1.msra.mxu0 0.0
        %7971 = vmatprep.subr.mxu0 0.0
        %7972 = vmatpush1.msra.mxu0 0.0
        %7973 = vmatprep.subr.mxu0 0.0
        %7974 = vmatpush1.msra.mxu0 0.0
        %7975 = vmatprep.subr.mxu0 0.0
        %7976 = vmatpush1.msra.mxu0 0.0
        %7977 = vmatprep.subr.mxu0 0.0
        %7978 = vmatpush1.msra.mxu0 0.0
        %7979 = vmatprep.subr.mxu0 0.0
        %7980 = vmatpush1.msra.mxu0 0.0
        %7981 = vmatprep.subr.mxu0 0.0
        %7982 = vmatpush1.msra.mxu0 0.0
        %7983 = vmatprep.subr.mxu0 0.0
        %7984 = vmatpush1.msra.mxu0 0.0
        %7985 = vmatprep.subr.mxu0 0.0
        %7986 = vmatpush1.msra.mxu0 0.0
        %7987 = vmatprep.subr.mxu0 0.0
        %7988 = vmatpush1.msra.mxu0 0.0
        %7989 = vmatprep.mubr.f32.mxu0 0.0
        %7990 = vmatmul.mubr.f32.gmra.mrb[0].mxu0 %v7830
        %v7991 = vpop.f32.mrb[0].mxu0
        %v7992 = vadd.f32 0.0, %v7991
        %v7993 = vpop.f32.mrb[0].mxu0
        %7994 = vmatprep.mubr.f32.mxu0 0.0
        %7995 = vmatmul.mubr.f32.gmra.mrb[0].mxu0 %v7833
        %v7996 = vpop.f32.mrb[0].mxu0
        %v7997 = vadd.f32 0.0, %v7996
        %v7998 = vpop.f32.mrb[0].mxu0
        %7999 = vmatprep.mubr.f32.mxu0 0.0
        %8000 = vmatmul.mubr.f32.gmra.mrb[0].mxu0 %v7836
        %v8001 = vpop.f32.mrb[0].mxu0
        %v8002 = vadd.f32 0.0, %v8001
        %v8003 = vpop.f32.mrb[0].mxu0
        %8004 = vmatprep.mubr.f32.mxu0 0.0
        %8005 = vmatmul.mubr.f32.gmra.mrb[0].mxu0 %v7839
        %v8006 = vpop.f32.mrb[0].mxu0
        %v8007 = vadd.f32 0.0, %v8006
        %v8008 = vpop.f32.mrb[0].mxu0
        %8009 = vmatprep.mubr.f32.mxu0 0.0
        %8010 = vmatmul.mubr.f32.gmra.mrb[0].mxu0 %v7842
        %v8011 = vpop.f32.mrb[0].mxu0
        %v8012 = vadd.f32 0.0, %v8011
        %v8013 = vpop.f32.mrb[0].mxu0
        %8014 = vmatprep.mubr.f32.mxu0 0.0
        %8015 = vmatmul.mubr.f32.gmra.mrb[0].mxu0 %v7845
        %v8016 = vpop.f32.mrb[0].mxu0
        %v8017 = vadd.f32 0.0, %v8016
        %v8018 = vpop.f32.mrb[0].mxu0
        %8019 = vmatprep.mubr.f32.mxu0 0.0
        %8020 = vmatmul.mubr.f32.gmra.mrb[0].mxu0 %v7848
        %v8021 = vpop.f32.mrb[0].mxu0
        %v8022 = vadd.f32 0.0, %v8021
        %v8023 = vpop.f32.mrb[0].mxu0
        %8024 = vmatprep.mubr.f32.mxu0 0.0
        %8025 = vmatmul.mubr.f32.gmra.mrb[0].mxu0 %v7851
        %v8026 = vpop.f32.mrb[0].mxu0
        %v8027 = vadd.f32 0.0, %v8026
        %v8028 = vpop.f32.mrb[0].mxu0
        %8029 = vmatprep.mubr.f32.mxu0 0.0
        %8030 = vmatmul.mubr.f32.gmra.mrb[0].mxu0 %v7854
        %v8031 = vpop.f32.mrb[0].mxu0
        %v8032 = vadd.f32 0.0, %v8031
        %v8033 = vpop.f32.mrb[0].mxu0
        %8034 = vmatprep.mubr.f32.mxu0 0.0
        %8035 = vmatmul.mubr.f32.gmra.mrb[0].mxu0 %v7857
        %v8036 = vpop.f32.mrb[0].mxu0
        %v8037 = vadd.f32 0.0, %v8036
        %v8038 = vpop.f32.mrb[0].mxu0
        %8039 = vmatprep.mubr.f32.mxu0 0.0
        %8040 = vmatmul.mubr.f32.gmra.mrb[0].mxu0 %v7860
        %v8041 = vpop.f32.mrb[0].mxu0
        %v8042 = vadd.f32 0.0, %v8041
        %v8043 = vpop.f32.mrb[0].mxu0
        %8044 = vmatprep.mubr.f32.mxu0 0.0
        %8045 = vmatmul.mubr.f32.gmra.mrb[0].mxu0 %v7863
        %v8046 = vpop.f32.mrb[0].mxu0
        %v8047 = vadd.f32 0.0, %v8046
        %v8048 = vpop.f32.mrb[0].mxu0
        %8049 = vmatprep.mubr.f32.mxu0 0.0
        %8050 = vmatmul.mubr.f32.gmra.mrb[0].mxu0 %v7866
        %v8051 = vpop.f32.mrb[0].mxu0
        %v8052 = vadd.f32 0.0, %v8051
        %v8053 = vpop.f32.mrb[0].mxu0
        %8054 = vmatprep.mubr.f32.mxu0 0.0
        %8055 = vmatmul.mubr.f32.gmra.mrb[0].mxu0 %v7869
        %v8056 = vpop.f32.mrb[0].mxu0
        %v8057 = vadd.f32 0.0, %v8056
        %v8058 = vpop.f32.mrb[0].mxu0
        %8059 = vmatprep.mubr.f32.mxu0 0.0
        %8060 = vmatmul.mubr.f32.gmra.mrb[0].mxu0 %v7872
        %v8061 = vpop.f32.mrb[0].mxu0
        %v8062 = vadd.f32 0.0, %v8061
        %v8063 = vpop.f32.mrb[0].mxu0
        %8064 = vmatprep.mubr.f32.mxu0 0.0
        %8065 = vmatmul.mubr.f32.gmra.mrb[0].mxu0 %v7875
        %v8066 = vpop.f32.mrb[0].mxu0
        %v8067 = vadd.f32 0.0, %v8066
        %v8068 = vpop.f32.mrb[0].mxu0
        %8069 = vmatprep.mubr.f32.mxu0 0.0
        %8070 = vmatmul.mubr.f32.gmra.mrb[0].mxu0 %v7878
        %v8071 = vpop.f32.mrb[0].mxu0
        %v8072 = vadd.f32 0.0, %v8071
        %v8073 = vpop.f32.mrb[0].mxu0
        %8074 = vmatprep.mubr.f32.mxu0 0.0
        %8075 = vmatmul.mubr.f32.gmra.mrb[0].mxu0 %v7881
        %v8076 = vpop.f32.mrb[0].mxu0
        %v8077 = vadd.f32 0.0, %v8076
        %v8078 = vpop.f32.mrb[0].mxu0
        %8079 = vmatprep.mubr.f32.mxu0 0.0
        %8080 = vmatmul.mubr.f32.gmra.mrb[0].mxu0 %v7884
        %v8081 = vpop.f32.mrb[0].mxu0
        %v8082 = vadd.f32 0.0, %v8081
        %v8083 = vpop.f32.mrb[0].mxu0
        %8084 = vmatprep.mubr.f32.mxu0 0.0
        %8085 = vmatmul.mubr.f32.gmra.mrb[0].mxu0 %v7887
        %v8086 = vpop.f32.mrb[0].mxu0
        %v8087 = vadd.f32 0.0, %v8086
        %v8088 = vpop.f32.mrb[0].mxu0
        %8089 = vmatprep.mubr.f32.mxu0 0.0
        %8090 = vmatmul.mubr.f32.gmra.mrb[0].mxu0 %v7890
        %v8091 = vpop.f32.mrb[0].mxu0
        %v8092 = vadd.f32 0.0, %v8091
        %v8093 = vpop.f32.mrb[0].mxu0
        %8094 = vmatprep.mubr.f32.mxu0 0.0
        %8095 = vmatmul.mubr.f32.gmra.mrb[0].mxu0 %v7893
        %v8096 = vpop.f32.mrb[0].mxu0
        %v8097 = vadd.f32 0.0, %v8096
        %v8098 = vpop.f32.mrb[0].mxu0
        %8099 = vmatprep.mubr.f32.mxu0 0.0
        %8100 = vmatmul.mubr.f32.gmra.mrb[0].mxu0 %v7896
        %v8101 = vpop.f32.mrb[0].mxu0
        %v8102 = vadd.f32 0.0, %v8101
        %v8103 = vpop.f32.mrb[0].mxu0
        %8104 = vmatprep.mubr.f32.mxu0 0.0
        %8105 = vmatmul.mubr.f32.gmra.mrb[0].mxu0 %v7899
        %v8106 = vpop.f32.mrb[0].mxu0
        %v8107 = vadd.f32 0.0, %v8106
        %v8108 = vpop.f32.mrb[0].mxu0
        %8109 = vmatprep.mubr.f32.mxu0 0.0
        %8110 = vmatmul.mubr.f32.gmra.mrb[0].mxu0 %v7902
        %v8111 = vpop.f32.mrb[0].mxu0
        %v8112 = vadd.f32 0.0, %v8111
        %v8113 = vpop.f32.mrb[0].mxu0
        %8114 = vmatprep.mubr.f32.mxu0 0.0
        %8115 = vmatmul.mubr.f32.gmra.mrb[0].mxu0 %v7905
        %v8116 = vpop.f32.mrb[0].mxu0
        %v8117 = vadd.f32 0.0, %v8116
        %v8118 = vpop.f32.mrb[0].mxu0
        %8119 = vmatprep.mubr.f32.mxu0 0.0
        %8120 = vmatmul.mubr.f32.gmra.mrb[0].mxu0 %v7908
        %v8121 = vpop.f32.mrb[0].mxu0
        %v8122 = vadd.f32 0.0, %v8121
        %v8123 = vpop.f32.mrb[0].mxu0
        %8124 = vmatprep.mubr.f32.mxu0 0.0
        %8125 = vmatmul.mubr.f32.gmra.mrb[0].mxu0 %v7911
        %v8126 = vpop.f32.mrb[0].mxu0
        %v8127 = vadd.f32 0.0, %v8126
        %v8128 = vpop.f32.mrb[0].mxu0
        %8129 = vmatprep.mubr.f32.mxu0 0.0
        %8130 = vmatmul.mubr.f32.gmra.mrb[0].mxu0 %v7914
        %v8131 = vpop.f32.mrb[0].mxu0
        %v8132 = vadd.f32 0.0, %v8131
        %v8133 = vpop.f32.mrb[0].mxu0
        %8134 = vmatprep.mubr.f32.mxu0 0.0
        %8135 = vmatmul.mubr.f32.gmra.mrb[0].mxu0 %v7917
        %v8136 = vpop.f32.mrb[0].mxu0
        %v8137 = vadd.f32 0.0, %v8136
        %v8138 = vpop.f32.mrb[0].mxu0
        %8139 = vmatprep.mubr.f32.mxu0 0.0
        %8140 = vmatmul.mubr.f32.gmra.mrb[0].mxu0 %v7920
        %v8141 = vpop.f32.mrb[0].mxu0
        %v8142 = vadd.f32 0.0, %v8141
        %v8143 = vpop.f32.mrb[0].mxu0
        %8144 = vmatprep.mubr.f32.mxu0 0.0
        %8145 = vmatmul.mubr.f32.gmra.mrb[0].mxu0 %v7923
        %v8146 = vpop.f32.mrb[0].mxu0
        %v8147 = vadd.f32 0.0, %v8146
        %v8148 = vpop.f32.mrb[0].mxu0
        %8149 = vdwg.mxu0
        %s8150 = scalar_lea.vmem %s5, 64
        %v8151 = vld [vmem:[%s8150] sm:$0xff]
        %v8152 = vld [vmem:[%s8150 + $0x8] sm:$0xff]
        %v8153 = vld [vmem:[%s8150 + $0x10] sm:$0xff]
        %v8154 = vld [vmem:[%s8150 + $0x18] sm:$0xff]
        %v8155 = vld [vmem:[%s8150 + $0x20] sm:$0xff]
        %v8156 = vld [vmem:[%s8150 + $0x28] sm:$0xff]
        %v8157 = vld [vmem:[%s8150 + $0x30] sm:$0xff]
        %v8158 = vld [vmem:[%s8150 + $0x38] sm:$0xff]
        %s8159 = scalar_lea.vmem %s5, 128
        %v8160 = vld [vmem:[%s8159] sm:$0xff]
        %v8161 = vld [vmem:[%s8159 + $0x8] sm:$0xff]
        %v8162 = vld [vmem:[%s8159 + $0x10] sm:$0xff]
        %v8163 = vld [vmem:[%s8159 + $0x18] sm:$0xff]
        %v8164 = vld [vmem:[%s8159 + $0x20] sm:$0xff]
        %v8165 = vld [vmem:[%s8159 + $0x28] sm:$0xff]
        %v8166 = vld [vmem:[%s8159 + $0x30] sm:$0xff]
        %v8167 = vld [vmem:[%s8159 + $0x38] sm:$0xff]
        %8168 = vmatprep.subr.mxu0 0.0
        %8169 = vmatpush1.msra.mxu0 %v8160
        %8170 = vmatprep.subr.mxu0 0.0
        %8171 = vmatpush1.msra.mxu0 %v8161
        %8172 = vmatprep.subr.mxu0 0.0
        %8173 = vmatpush1.msra.mxu0 %v8162
        %8174 = vmatprep.subr.mxu0 0.0
        %8175 = vmatpush1.msra.mxu0 %v8163
        %8176 = vmatprep.subr.mxu0 0.0
        %8177 = vmatpush1.msra.mxu0 %v8164
        %8178 = vmatprep.subr.mxu0 0.0
        %8179 = vmatpush1.msra.mxu0 %v8165
        %8180 = vmatprep.subr.mxu0 0.0
        %8181 = vmatpush1.msra.mxu0 %v8166
        %8182 = vmatprep.subr.mxu0 0.0
        %8183 = vmatpush1.msra.mxu0 %v8167
        %8184 = vmatprep.subr.mxu0 0.0
        %8185 = vmatpush1.msra.mxu0 0.0
        %8186 = vmatprep.subr.mxu0 0.0
        %8187 = vmatpush1.msra.mxu0 0.0
        %8188 = vmatprep.subr.mxu0 0.0
        %8189 = vmatpush1.msra.mxu0 0.0
        %8190 = vmatprep.subr.mxu0 0.0
        %8191 = vmatpush1.msra.mxu0 0.0
        %8192 = vmatprep.subr.mxu0 0.0
        %8193 = vmatpush1.msra.mxu0 0.0
        %8194 = vmatprep.subr.mxu0 0.0
        %8195 = vmatpush1.msra.mxu0 0.0
        %8196 = vmatprep.subr.mxu0 0.0
        %8197 = vmatpush1.msra.mxu0 0.0
        %8198 = vmatprep.subr.mxu0 0.0
        %8199 = vmatpush1.msra.mxu0 0.0
        %8200 = vmatprep.subr.mxu0 0.0
        %8201 = vmatpush1.msra.mxu0 0.0
        %8202 = vmatprep.subr.mxu0 0.0
        %8203 = vmatpush1.msra.mxu0 0.0
        %8204 = vmatprep.subr.mxu0 0.0
        %8205 = vmatpush1.msra.mxu0 0.0
        %8206 = vmatprep.subr.mxu0 0.0
        %8207 = vmatpush1.msra.mxu0 0.0
        %8208 = vmatprep.subr.mxu0 0.0
        %8209 = vmatpush1.msra.mxu0 0.0
        %8210 = vmatprep.subr.mxu0 0.0
        %8211 = vmatpush1.msra.mxu0 0.0
        %8212 = vmatprep.subr.mxu0 0.0
        %8213 = vmatpush1.msra.mxu0 0.0
        %8214 = vmatprep.subr.mxu0 0.0
        %8215 = vmatpush1.msra.mxu0 0.0
        %8216 = vmatprep.subr.mxu0 0.0
        %8217 = vmatpush1.msra.mxu0 0.0
        %8218 = vmatprep.subr.mxu0 0.0
        %8219 = vmatpush1.msra.mxu0 0.0
        %8220 = vmatprep.subr.mxu0 0.0
        %8221 = vmatpush1.msra.mxu0 0.0
        %8222 = vmatprep.subr.mxu0 0.0
        %8223 = vmatpush1.msra.mxu0 0.0
        %8224 = vmatprep.subr.mxu0 0.0
        %8225 = vmatpush1.msra.mxu0 0.0
        %8226 = vmatprep.subr.mxu0 0.0
        %8227 = vmatpush1.msra.mxu0 0.0
        %8228 = vmatprep.subr.mxu0 0.0
        %8229 = vmatpush1.msra.mxu0 0.0
        %8230 = vmatprep.subr.mxu0 0.0
        %8231 = vmatpush1.msra.mxu0 0.0
        %8232 = vmatprep.mubr.f32.mxu0 0.0
        %8233 = vmatmul.mubr.f32.gmra.mrb[0].mxu0 %v7830
        %v8234 = vpop.f32.mrb[0].mxu0
        %v8235 = vadd.f32 0.0, %v8234
        %v8236 = vpop.f32.mrb[0].mxu0
        %8237 = vmatprep.mubr.f32.mxu0 0.0
        %8238 = vmatmul.mubr.f32.gmra.mrb[0].mxu0 %v7833
        %v8239 = vpop.f32.mrb[0].mxu0
        %v8240 = vadd.f32 0.0, %v8239
        %v8241 = vpop.f32.mrb[0].mxu0
        %8242 = vmatprep.mubr.f32.mxu0 0.0
        %8243 = vmatmul.mubr.f32.gmra.mrb[0].mxu0 %v7836
        %v8244 = vpop.f32.mrb[0].mxu0
        %v8245 = vadd.f32 0.0, %v8244
        %v8246 = vpop.f32.mrb[0].mxu0
        %8247 = vmatprep.mubr.f32.mxu0 0.0
        %8248 = vmatmul.mubr.f32.gmra.mrb[0].mxu0 %v7839
        %v8249 = vpop.f32.mrb[0].mxu0
        %v8250 = vadd.f32 0.0, %v8249
        %v8251 = vpop.f32.mrb[0].mxu0
        %8252 = vmatprep.mubr.f32.mxu0 0.0
        %8253 = vmatmul.mubr.f32.gmra.mrb[0].mxu0 %v7842
        %v8254 = vpop.f32.mrb[0].mxu0
        %v8255 = vadd.f32 0.0, %v8254
        %v8256 = vpop.f32.mrb[0].mxu0
        %8257 = vmatprep.mubr.f32.mxu0 0.0
        %8258 = vmatmul.mubr.f32.gmra.mrb[0].mxu0 %v7845
        %v8259 = vpop.f32.mrb[0].mxu0
        %v8260 = vadd.f32 0.0, %v8259
        %v8261 = vpop.f32.mrb[0].mxu0
        %8262 = vmatprep.mubr.f32.mxu0 0.0
        %8263 = vmatmul.mubr.f32.gmra.mrb[0].mxu0 %v7848
        %v8264 = vpop.f32.mrb[0].mxu0
        %v8265 = vadd.f32 0.0, %v8264
        %v8266 = vpop.f32.mrb[0].mxu0
        %8267 = vmatprep.mubr.f32.mxu0 0.0
        %8268 = vmatmul.mubr.f32.gmra.mrb[0].mxu0 %v7851
        %v8269 = vpop.f32.mrb[0].mxu0
        %v8270 = vadd.f32 0.0, %v8269
        %v8271 = vpop.f32.mrb[0].mxu0
        %8272 = vmatprep.mubr.f32.mxu0 0.0
        %8273 = vmatmul.mubr.f32.gmra.mrb[0].mxu0 %v7854
        %v8274 = vpop.f32.mrb[0].mxu0
        %v8275 = vadd.f32 0.0, %v8274
        %v8276 = vpop.f32.mrb[0].mxu0
        %8277 = vmatprep.mubr.f32.mxu0 0.0
        %8278 = vmatmul.mubr.f32.gmra.mrb[0].mxu0 %v7857
        %v8279 = vpop.f32.mrb[0].mxu0
        %v8280 = vadd.f32 0.0, %v8279
        %v8281 = vpop.f32.mrb[0].mxu0
        %8282 = vmatprep.mubr.f32.mxu0 0.0
        %8283 = vmatmul.mubr.f32.gmra.mrb[0].mxu0 %v7860
        %v8284 = vpop.f32.mrb[0].mxu0
        %v8285 = vadd.f32 0.0, %v8284
        %v8286 = vpop.f32.mrb[0].mxu0
        %8287 = vmatprep.mubr.f32.mxu0 0.0
        %8288 = vmatmul.mubr.f32.gmra.mrb[0].mxu0 %v7863
        %v8289 = vpop.f32.mrb[0].mxu0
        %v8290 = vadd.f32 0.0, %v8289
        %v8291 = vpop.f32.mrb[0].mxu0
        %8292 = vmatprep.mubr.f32.mxu0 0.0
        %8293 = vmatmul.mubr.f32.gmra.mrb[0].mxu0 %v7866
        %v8294 = vpop.f32.mrb[0].mxu0
        %v8295 = vadd.f32 0.0, %v8294
        %v8296 = vpop.f32.mrb[0].mxu0
        %8297 = vmatprep.mubr.f32.mxu0 0.0
        %8298 = vmatmul.mubr.f32.gmra.mrb[0].mxu0 %v7869
        %v8299 = vpop.f32.mrb[0].mxu0
        %v8300 = vadd.f32 0.0, %v8299
        %v8301 = vpop.f32.mrb[0].mxu0
        %8302 = vmatprep.mubr.f32.mxu0 0.0
        %8303 = vmatmul.mubr.f32.gmra.mrb[0].mxu0 %v7872
        %v8304 = vpop.f32.mrb[0].mxu0
        %v8305 = vadd.f32 0.0, %v8304
        %v8306 = vpop.f32.mrb[0].mxu0
        %8307 = vmatprep.mubr.f32.mxu0 0.0
        %8308 = vmatmul.mubr.f32.gmra.mrb[0].mxu0 %v7875
        %v8309 = vpop.f32.mrb[0].mxu0
        %v8310 = vadd.f32 0.0, %v8309
        %v8311 = vpop.f32.mrb[0].mxu0
        %8312 = vmatprep.mubr.f32.mxu0 0.0
        %8313 = vmatmul.mubr.f32.gmra.mrb[0].mxu0 %v7878
        %v8314 = vpop.f32.mrb[0].mxu0
        %v8315 = vadd.f32 0.0, %v8314
        %v8316 = vpop.f32.mrb[0].mxu0
        %8317 = vmatprep.mubr.f32.mxu0 0.0
        %8318 = vmatmul.mubr.f32.gmra.mrb[0].mxu0 %v7881
        %v8319 = vpop.f32.mrb[0].mxu0
        %v8320 = vadd.f32 0.0, %v8319
        %v8321 = vpop.f32.mrb[0].mxu0
        %8322 = vmatprep.mubr.f32.mxu0 0.0
        %8323 = vmatmul.mubr.f32.gmra.mrb[0].mxu0 %v7884
        %v8324 = vpop.f32.mrb[0].mxu0
        %v8325 = vadd.f32 0.0, %v8324
        %v8326 = vpop.f32.mrb[0].mxu0
        %8327 = vmatprep.mubr.f32.mxu0 0.0
        %8328 = vmatmul.mubr.f32.gmra.mrb[0].mxu0 %v7887
        %v8329 = vpop.f32.mrb[0].mxu0
        %v8330 = vadd.f32 0.0, %v8329
        %v8331 = vpop.f32.mrb[0].mxu0
        %8332 = vmatprep.mubr.f32.mxu0 0.0
        %8333 = vmatmul.mubr.f32.gmra.mrb[0].mxu0 %v7890
        %v8334 = vpop.f32.mrb[0].mxu0
        %v8335 = vadd.f32 0.0, %v8334
        %v8336 = vpop.f32.mrb[0].mxu0
        %8337 = vmatprep.mubr.f32.mxu0 0.0
        %8338 = vmatmul.mubr.f32.gmra.mrb[0].mxu0 %v7893
        %v8339 = vpop.f32.mrb[0].mxu0
        %v8340 = vadd.f32 0.0, %v8339
        %v8341 = vpop.f32.mrb[0].mxu0
        %8342 = vmatprep.mubr.f32.mxu0 0.0
        %8343 = vmatmul.mubr.f32.gmra.mrb[0].mxu0 %v7896
        %v8344 = vpop.f32.mrb[0].mxu0
        %v8345 = vadd.f32 0.0, %v8344
        %v8346 = vpop.f32.mrb[0].mxu0
        %8347 = vmatprep.mubr.f32.mxu0 0.0
        %8348 = vmatmul.mubr.f32.gmra.mrb[0].mxu0 %v7899
        %v8349 = vpop.f32.mrb[0].mxu0
        %v8350 = vadd.f32 0.0, %v8349
        %v8351 = vpop.f32.mrb[0].mxu0
        %8352 = vmatprep.mubr.f32.mxu0 0.0
        %8353 = vmatmul.mubr.f32.gmra.mrb[0].mxu0 %v7902
        %v8354 = vpop.f32.mrb[0].mxu0
        %v8355 = vadd.f32 0.0, %v8354
        %v8356 = vpop.f32.mrb[0].mxu0
        %8357 = vmatprep.mubr.f32.mxu0 0.0
        %8358 = vmatmul.mubr.f32.gmra.mrb[0].mxu0 %v7905
        %v8359 = vpop.f32.mrb[0].mxu0
        %v8360 = vadd.f32 0.0, %v8359
        %v8361 = vpop.f32.mrb[0].mxu0
        %8362 = vmatprep.mubr.f32.mxu0 0.0
        %8363 = vmatmul.mubr.f32.gmra.mrb[0].mxu0 %v7908
        %v8364 = vpop.f32.mrb[0].mxu0
        %v8365 = vadd.f32 0.0, %v8364
        %v8366 = vpop.f32.mrb[0].mxu0
        %8367 = vmatprep.mubr.f32.mxu0 0.0
        %8368 = vmatmul.mubr.f32.gmra.mrb[0].mxu0 %v7911
        %v8369 = vpop.f32.mrb[0].mxu0
        %v8370 = vadd.f32 0.0, %v8369
        %v8371 = vpop.f32.mrb[0].mxu0
        %8372 = vmatprep.mubr.f32.mxu0 0.0
        %8373 = vmatmul.mubr.f32.gmra.mrb[0].mxu0 %v7914
        %v8374 = vpop.f32.mrb[0].mxu0
        %v8375 = vadd.f32 0.0, %v8374
        %v8376 = vpop.f32.mrb[0].mxu0
        %8377 = vmatprep.mubr.f32.mxu0 0.0
        %8378 = vmatmul.mubr.f32.gmra.mrb[0].mxu0 %v7917
        %v8379 = vpop.f32.mrb[0].mxu0
        %v8380 = vadd.f32 0.0, %v8379
        %v8381 = vpop.f32.mrb[0].mxu0
        %8382 = vmatprep.mubr.f32.mxu0 0.0
        %8383 = vmatmul.mubr.f32.gmra.mrb[0].mxu0 %v7920
        %v8384 = vpop.f32.mrb[0].mxu0
        %v8385 = vadd.f32 0.0, %v8384
        %v8386 = vpop.f32.mrb[0].mxu0
        %8387 = vmatprep.mubr.f32.mxu0 0.0
        %8388 = vmatmul.mubr.f32.gmra.mrb[0].mxu0 %v7923
        %v8389 = vpop.f32.mrb[0].mxu0
        %v8390 = vadd.f32 0.0, %v8389
        %v8391 = vpop.f32.mrb[0].mxu0
        %8392 = vdwg.mxu0
        %vm8393 = vcmp.ge.s32.totalorder %v2920, 248
        %vm8394 = vcmp.ge.s32.totalorder %v2921, 248
        %vm8395 = vcmp.ge.s32.totalorder %v2922, 248
        %vm8396 = vcmp.ge.s32.totalorder %v2923, 248
        %vm8397 = vcmp.ge.s32.totalorder %v2924, 248
        %vm8398 = vcmp.ge.s32.totalorder %v2925, 248
        %vm8399 = vcmp.ge.s32.totalorder %v2926, 248
        %vm8400 = vcmp.ge.s32.totalorder %v2927, 248
        %vm8401 = vcmp.ge.s32.totalorder %v2928, 248
        %vm8402 = vcmp.ge.s32.totalorder %v2929, 248
        %vm8403 = vcmp.ge.s32.totalorder %v2930, 248
        %vm8404 = vcmp.ge.s32.totalorder %v2931, 248
        %vm8405 = vcmp.ge.s32.totalorder %v2932, 248
        %vm8406 = vcmp.ge.s32.totalorder %v2933, 248
        %vm8407 = vcmp.ge.s32.totalorder %v2934, 248
        %vm8408 = vcmp.ge.s32.totalorder %v2935, 248
        %vm8409 = vcmp.ge.s32.totalorder %v2936, 248
        %vm8410 = vcmp.ge.s32.totalorder %v2937, 248
        %vm8411 = vcmp.ge.s32.totalorder %v2938, 248
        %vm8412 = vcmp.ge.s32.totalorder %v2939, 248
        %vm8413 = vcmp.ge.s32.totalorder %v2940, 248
        %vm8414 = vcmp.ge.s32.totalorder %v2941, 248
        %vm8415 = vcmp.ge.s32.totalorder %v2942, 248
        %vm8416 = vcmp.ge.s32.totalorder %v2943, 248
        %vm8417 = vcmp.ge.s32.totalorder %v2944, 248
        %vm8418 = vcmp.ge.s32.totalorder %v2945, 248
        %vm8419 = vcmp.ge.s32.totalorder %v2946, 248
        %vm8420 = vcmp.ge.s32.totalorder %v2947, 248
        %vm8421 = vcmp.ge.s32.totalorder %v2948, 248
        %vm8422 = vcmp.ge.s32.totalorder %v2949, 248
        %vm8423 = vcmp.ge.s32.totalorder %v2950, 248
        %vm8424 = vcmp.ge.s32.totalorder %v2951, 248
        %vm8425 = vcmp.ge.s32.totalorder %v2920, 240
        %vm8426 = vcmp.ge.s32.totalorder %v2922, 240
        %vm8427 = vcmp.ge.s32.totalorder %v2924, 240
        %vm8428 = vcmp.ge.s32.totalorder %v2926, 240
        %vm8429 = vcmp.ge.s32.totalorder %v2928, 240
        %vm8430 = vcmp.ge.s32.totalorder %v2930, 240
        %vm8431 = vcmp.ge.s32.totalorder %v2932, 240
        %vm8432 = vcmp.ge.s32.totalorder %v2934, 240
        %vm8433 = vcmp.ge.s32.totalorder %v2936, 240
        %vm8434 = vcmp.ge.s32.totalorder %v2938, 240
        %vm8435 = vcmp.ge.s32.totalorder %v2940, 240
        %vm8436 = vcmp.ge.s32.totalorder %v2942, 240
        %vm8437 = vcmp.ge.s32.totalorder %v2944, 240
        %vm8438 = vcmp.ge.s32.totalorder %v2946, 240
        %vm8439 = vcmp.ge.s32.totalorder %v2948, 240
        %vm8440 = vcmp.ge.s32.totalorder %v2950, 240
        %v8441 = vsel %vm3496, 0.0, %v8147
        %v8442 = vsel %vm3497, 0.0, %v7992
        %v8443 = vsel %vm3498, 0.0, %v7997
        %v8444 = vsel %vm3499, 0.0, %v8002
        %v8445 = vsel %vm3500, 0.0, %v8007
        %v8446 = vsel %vm3501, 0.0, %v8012
        %v8447 = vsel %vm3502, 0.0, %v8017
        %v8448 = vsel %vm3503, 0.0, %v8022
        %v8449 = vsel %vm3504, 0.0, %v8027
        %v8450 = vsel %vm3505, 0.0, %v8032
        %v8451 = vsel %vm3506, 0.0, %v8037
        %v8452 = vsel %vm3507, 0.0, %v8042
        %v8453 = vsel %vm3508, 0.0, %v8047
        %v8454 = vsel %vm3509, 0.0, %v8052
        %v8455 = vsel %vm3510, 0.0, %v8057
        %v8456 = vsel %vm3511, 0.0, %v8062
        %v8457 = vsel %vm3512, 0.0, %v8067
        %v8458 = vsel %vm3513, 0.0, %v8072
        %v8459 = vsel %vm3514, 0.0, %v8077
        %v8460 = vsel %vm3515, 0.0, %v8082
        %v8461 = vsel %vm3516, 0.0, %v8087
        %v8462 = vsel %vm3517, 0.0, %v8092
        %v8463 = vsel %vm3518, 0.0, %v8097
        %v8464 = vsel %vm3519, 0.0, %v8102
        %v8465 = vsel %vm3520, 0.0, %v8107
        %v8466 = vsel %vm3521, 0.0, %v8112
        %v8467 = vsel %vm3522, 0.0, %v8117
        %v8468 = vsel %vm3523, 0.0, %v8122
        %v8469 = vsel %vm3524, 0.0, %v8127
        %v8470 = vsel %vm3525, 0.0, %v8132
        %v8471 = vsel %vm3526, 0.0, %v8137
        %v8472 = vsel %vm3527, 0.0, %v8142
        %v8473 = vsel %vm8393, 1, 0
        %v8474 = vsel %vm8394, 1, 0
        %v8475 = vsel %vm8395, 1, 0
        %v8476 = vsel %vm8396, 1, 0
        %v8477 = vsel %vm8397, 1, 0
        %v8478 = vsel %vm8398, 1, 0
        %v8479 = vsel %vm8399, 1, 0
        %v8480 = vsel %vm8400, 1, 0
        %v8481 = vsel %vm8401, 1, 0
        %v8482 = vsel %vm8402, 1, 0
        %v8483 = vsel %vm8403, 1, 0
        %v8484 = vsel %vm8404, 1, 0
        %v8485 = vsel %vm8405, 1, 0
        %v8486 = vsel %vm8406, 1, 0
        %v8487 = vsel %vm8407, 1, 0
        %v8488 = vsel %vm8408, 1, 0
        %v8489 = vsel %vm8409, 1, 0
        %v8490 = vsel %vm8410, 1, 0
        %v8491 = vsel %vm8411, 1, 0
        %v8492 = vsel %vm8412, 1, 0
        %v8493 = vsel %vm8413, 1, 0
        %v8494 = vsel %vm8414, 1, 0
        %v8495 = vsel %vm8415, 1, 0
        %v8496 = vsel %vm8416, 1, 0
        %v8497 = vsel %vm8417, 1, 0
        %v8498 = vsel %vm8418, 1, 0
        %v8499 = vsel %vm8419, 1, 0
        %v8500 = vsel %vm8420, 1, 0
        %v8501 = vsel %vm8421, 1, 0
        %v8502 = vsel %vm8422, 1, 0
        %v8503 = vsel %vm8423, 1, 0
        %v8504 = vsel %vm8424, 1, 0
        %vm8505 = vcmp.eq.s32.totalorder %v8473, 1
        %vm8506 = vcmp.eq.s32.totalorder %v8474, 1
        %vm8507 = vcmp.eq.s32.totalorder %v8475, 1
        %vm8508 = vcmp.eq.s32.totalorder %v8476, 1
        %vm8509 = vcmp.eq.s32.totalorder %v8477, 1
        %vm8510 = vcmp.eq.s32.totalorder %v8478, 1
        %vm8511 = vcmp.eq.s32.totalorder %v8479, 1
        %vm8512 = vcmp.eq.s32.totalorder %v8480, 1
        %vm8513 = vcmp.eq.s32.totalorder %v8481, 1
        %vm8514 = vcmp.eq.s32.totalorder %v8482, 1
        %vm8515 = vcmp.eq.s32.totalorder %v8483, 1
        %vm8516 = vcmp.eq.s32.totalorder %v8484, 1
        %vm8517 = vcmp.eq.s32.totalorder %v8485, 1
        %vm8518 = vcmp.eq.s32.totalorder %v8486, 1
        %vm8519 = vcmp.eq.s32.totalorder %v8487, 1
        %vm8520 = vcmp.eq.s32.totalorder %v8488, 1
        %vm8521 = vcmp.eq.s32.totalorder %v8489, 1
        %vm8522 = vcmp.eq.s32.totalorder %v8490, 1
        %vm8523 = vcmp.eq.s32.totalorder %v8491, 1
        %vm8524 = vcmp.eq.s32.totalorder %v8492, 1
        %vm8525 = vcmp.eq.s32.totalorder %v8493, 1
        %vm8526 = vcmp.eq.s32.totalorder %v8494, 1
        %vm8527 = vcmp.eq.s32.totalorder %v8495, 1
        %vm8528 = vcmp.eq.s32.totalorder %v8496, 1
        %vm8529 = vcmp.eq.s32.totalorder %v8497, 1
        %vm8530 = vcmp.eq.s32.totalorder %v8498, 1
        %vm8531 = vcmp.eq.s32.totalorder %v8499, 1
        %vm8532 = vcmp.eq.s32.totalorder %v8500, 1
        %vm8533 = vcmp.eq.s32.totalorder %v8501, 1
        %vm8534 = vcmp.eq.s32.totalorder %v8502, 1
        %vm8535 = vcmp.eq.s32.totalorder %v8503, 1
        %vm8536 = vcmp.eq.s32.totalorder %v8504, 1
        %v8537 = vsel %vm8505, 0.0, %v8240
        %v8538 = vsel %vm8506, 0.0, %v8245
        %v8539 = vsel %vm8507, 0.0, %v8250
        %v8540 = vsel %vm8508, 0.0, %v8255
        %v8541 = vsel %vm8509, 0.0, %v8260
        %v8542 = vsel %vm8510, 0.0, %v8265
        %v8543 = vsel %vm8511, 0.0, %v8270
        %v8544 = vsel %vm8512, 0.0, %v8275
        %v8545 = vsel %vm8513, 0.0, %v8280
        %v8546 = vsel %vm8514, 0.0, %v8285
        %v8547 = vsel %vm8515, 0.0, %v8290
        %v8548 = vsel %vm8516, 0.0, %v8295
        %v8549 = vsel %vm8517, 0.0, %v8300
        %v8550 = vsel %vm8518, 0.0, %v8305
        %v8551 = vsel %vm8519, 0.0, %v8310
        %v8552 = vsel %vm8520, 0.0, %v8315
        %v8553 = vsel %vm8521, 0.0, %v8320
        %v8554 = vsel %vm8522, 0.0, %v8325
        %v8555 = vsel %vm8523, 0.0, %v8330
        %v8556 = vsel %vm8524, 0.0, %v8335
        %v8557 = vsel %vm8525, 0.0, %v8340
        %v8558 = vsel %vm8526, 0.0, %v8345
        %v8559 = vsel %vm8527, 0.0, %v8350
        %v8560 = vsel %vm8528, 0.0, %v8355
        %v8561 = vsel %vm8529, 0.0, %v8360
        %v8562 = vsel %vm8530, 0.0, %v8365
        %v8563 = vsel %vm8531, 0.0, %v8370
        %v8564 = vsel %vm8532, 0.0, %v8375
        %v8565 = vsel %vm8533, 0.0, %v8380
        %v8566 = vsel %vm8534, 0.0, %v8385
        %v8567 = vsel %vm8535, 0.0, %v8390
        %v8568 = vsel %vm8536, 0.0, %v8235
        %8569 = vmatprep.subr.mxu0 0.0
        %8570 = vmatpush1.msra.mxu0 %v8151
        %8571 = vmatprep.subr.mxu0 0.0
        %8572 = vmatpush1.msra.mxu0 %v8152
        %8573 = vmatprep.subr.mxu0 0.0
        %8574 = vmatpush1.msra.mxu0 %v8153
        %8575 = vmatprep.subr.mxu0 0.0
        %8576 = vmatpush1.msra.mxu0 %v8154
        %8577 = vmatprep.subr.mxu0 0.0
        %8578 = vmatpush1.msra.mxu0 %v8155
        %8579 = vmatprep.subr.mxu0 0.0
        %8580 = vmatpush1.msra.mxu0 %v8156
        %8581 = vmatprep.subr.mxu0 0.0
        %8582 = vmatpush1.msra.mxu0 %v8157
        %8583 = vmatprep.subr.mxu0 0.0
        %8584 = vmatpush1.msra.mxu0 %v8158
        %8585 = vmatprep.subr.mxu0 0.0
        %8586 = vmatpush1.msra.mxu0 0.0
        %8587 = vmatprep.subr.mxu0 0.0
        %8588 = vmatpush1.msra.mxu0 0.0
        %8589 = vmatprep.subr.mxu0 0.0
        %8590 = vmatpush1.msra.mxu0 0.0
        %8591 = vmatprep.subr.mxu0 0.0
        %8592 = vmatpush1.msra.mxu0 0.0
        %8593 = vmatprep.subr.mxu0 0.0
        %8594 = vmatpush1.msra.mxu0 0.0
        %8595 = vmatprep.subr.mxu0 0.0
        %8596 = vmatpush1.msra.mxu0 0.0
        %8597 = vmatprep.subr.mxu0 0.0
        %8598 = vmatpush1.msra.mxu0 0.0
        %8599 = vmatprep.subr.mxu0 0.0
        %8600 = vmatpush1.msra.mxu0 0.0
        %8601 = vmatprep.subr.mxu0 0.0
        %8602 = vmatpush1.msra.mxu0 0.0
        %8603 = vmatprep.subr.mxu0 0.0
        %8604 = vmatpush1.msra.mxu0 0.0
        %8605 = vmatprep.subr.mxu0 0.0
        %8606 = vmatpush1.msra.mxu0 0.0
        %8607 = vmatprep.subr.mxu0 0.0
        %8608 = vmatpush1.msra.mxu0 0.0
        %8609 = vmatprep.subr.mxu0 0.0
        %8610 = vmatpush1.msra.mxu0 0.0
        %8611 = vmatprep.subr.mxu0 0.0
        %8612 = vmatpush1.msra.mxu0 0.0
        %8613 = vmatprep.subr.mxu0 0.0
        %8614 = vmatpush1.msra.mxu0 0.0
        %8615 = vmatprep.subr.mxu0 0.0
        %8616 = vmatpush1.msra.mxu0 0.0
        %8617 = vmatprep.subr.mxu0 0.0
        %8618 = vmatpush1.msra.mxu0 0.0
        %8619 = vmatprep.subr.mxu0 0.0
        %8620 = vmatpush1.msra.mxu0 0.0
        %8621 = vmatprep.subr.mxu0 0.0
        %8622 = vmatpush1.msra.mxu0 0.0
        %8623 = vmatprep.subr.mxu0 0.0
        %8624 = vmatpush1.msra.mxu0 0.0
        %8625 = vmatprep.subr.mxu0 0.0
        %8626 = vmatpush1.msra.mxu0 0.0
        %8627 = vmatprep.subr.mxu0 0.0
        %8628 = vmatpush1.msra.mxu0 0.0
        %8629 = vmatprep.subr.mxu0 0.0
        %8630 = vmatpush1.msra.mxu0 0.0
        %8631 = vmatprep.subr.mxu0 0.0
        %8632 = vmatpush1.msra.mxu0 0.0
        %8633 = vmatprep.mubr.f32.mxu0 0.0
        %8634 = vmatmul.mubr.f32.gmra.mrb[0].mxu0 %v7830
        %v8635 = vpop.f32.mrb[0].mxu0
        %v8636 = vadd.f32 %v8441, %v8635
        %v8637 = vpop.f32.mrb[0].mxu0
        %8638 = vmatprep.mubr.f32.mxu0 0.0
        %8639 = vmatmul.mubr.f32.gmra.mrb[0].mxu0 %v7833
        %v8640 = vpop.f32.mrb[0].mxu0
        %v8641 = vadd.f32 %v8442, %v8640
        %v8642 = vpop.f32.mrb[0].mxu0
        %8643 = vmatprep.mubr.f32.mxu0 0.0
        %8644 = vmatmul.mubr.f32.gmra.mrb[0].mxu0 %v7836
        %v8645 = vpop.f32.mrb[0].mxu0
        %v8646 = vadd.f32 %v8443, %v8645
        %v8647 = vpop.f32.mrb[0].mxu0
        %8648 = vmatprep.mubr.f32.mxu0 0.0
        %8649 = vmatmul.mubr.f32.gmra.mrb[0].mxu0 %v7839
        %v8650 = vpop.f32.mrb[0].mxu0
        %v8651 = vadd.f32 %v8444, %v8650
        %v8652 = vpop.f32.mrb[0].mxu0
        %8653 = vmatprep.mubr.f32.mxu0 0.0
        %8654 = vmatmul.mubr.f32.gmra.mrb[0].mxu0 %v7842
        %v8655 = vpop.f32.mrb[0].mxu0
        %v8656 = vadd.f32 %v8445, %v8655
        %v8657 = vpop.f32.mrb[0].mxu0
        %8658 = vmatprep.mubr.f32.mxu0 0.0
        %8659 = vmatmul.mubr.f32.gmra.mrb[0].mxu0 %v7845
        %v8660 = vpop.f32.mrb[0].mxu0
        %v8661 = vadd.f32 %v8446, %v8660
        %v8662 = vpop.f32.mrb[0].mxu0
        %8663 = vmatprep.mubr.f32.mxu0 0.0
        %8664 = vmatmul.mubr.f32.gmra.mrb[0].mxu0 %v7848
        %v8665 = vpop.f32.mrb[0].mxu0
        %v8666 = vadd.f32 %v8447, %v8665
        %v8667 = vpop.f32.mrb[0].mxu0
        %8668 = vmatprep.mubr.f32.mxu0 0.0
        %8669 = vmatmul.mubr.f32.gmra.mrb[0].mxu0 %v7851
        %v8670 = vpop.f32.mrb[0].mxu0
        %v8671 = vadd.f32 %v8448, %v8670
        %v8672 = vpop.f32.mrb[0].mxu0
        %8673 = vmatprep.mubr.f32.mxu0 0.0
        %8674 = vmatmul.mubr.f32.gmra.mrb[0].mxu0 %v7854
        %v8675 = vpop.f32.mrb[0].mxu0
        %v8676 = vadd.f32 %v8449, %v8675
        %v8677 = vpop.f32.mrb[0].mxu0
        %8678 = vmatprep.mubr.f32.mxu0 0.0
        %8679 = vmatmul.mubr.f32.gmra.mrb[0].mxu0 %v7857
        %v8680 = vpop.f32.mrb[0].mxu0
        %v8681 = vadd.f32 %v8450, %v8680
        %v8682 = vpop.f32.mrb[0].mxu0
        %8683 = vmatprep.mubr.f32.mxu0 0.0
        %8684 = vmatmul.mubr.f32.gmra.mrb[0].mxu0 %v7860
        %v8685 = vpop.f32.mrb[0].mxu0
        %v8686 = vadd.f32 %v8451, %v8685
        %v8687 = vpop.f32.mrb[0].mxu0
        %8688 = vmatprep.mubr.f32.mxu0 0.0
        %8689 = vmatmul.mubr.f32.gmra.mrb[0].mxu0 %v7863
        %v8690 = vpop.f32.mrb[0].mxu0
        %v8691 = vadd.f32 %v8452, %v8690
        %v8692 = vpop.f32.mrb[0].mxu0
        %8693 = vmatprep.mubr.f32.mxu0 0.0
        %8694 = vmatmul.mubr.f32.gmra.mrb[0].mxu0 %v7866
        %v8695 = vpop.f32.mrb[0].mxu0
        %v8696 = vadd.f32 %v8453, %v8695
        %v8697 = vpop.f32.mrb[0].mxu0
        %8698 = vmatprep.mubr.f32.mxu0 0.0
        %8699 = vmatmul.mubr.f32.gmra.mrb[0].mxu0 %v7869
        %v8700 = vpop.f32.mrb[0].mxu0
        %v8701 = vadd.f32 %v8454, %v8700
        %v8702 = vpop.f32.mrb[0].mxu0
        %8703 = vmatprep.mubr.f32.mxu0 0.0
        %8704 = vmatmul.mubr.f32.gmra.mrb[0].mxu0 %v7872
        %v8705 = vpop.f32.mrb[0].mxu0
        %v8706 = vadd.f32 %v8455, %v8705
        %v8707 = vpop.f32.mrb[0].mxu0
        %8708 = vmatprep.mubr.f32.mxu0 0.0
        %8709 = vmatmul.mubr.f32.gmra.mrb[0].mxu0 %v7875
        %v8710 = vpop.f32.mrb[0].mxu0
        %v8711 = vadd.f32 %v8456, %v8710
        %v8712 = vpop.f32.mrb[0].mxu0
        %8713 = vmatprep.mubr.f32.mxu0 0.0
        %8714 = vmatmul.mubr.f32.gmra.mrb[0].mxu0 %v7878
        %v8715 = vpop.f32.mrb[0].mxu0
        %v8716 = vadd.f32 %v8457, %v8715
        %v8717 = vpop.f32.mrb[0].mxu0
        %8718 = vmatprep.mubr.f32.mxu0 0.0
        %8719 = vmatmul.mubr.f32.gmra.mrb[0].mxu0 %v7881
        %v8720 = vpop.f32.mrb[0].mxu0
        %v8721 = vadd.f32 %v8458, %v8720
        %v8722 = vpop.f32.mrb[0].mxu0
        %8723 = vmatprep.mubr.f32.mxu0 0.0
        %8724 = vmatmul.mubr.f32.gmra.mrb[0].mxu0 %v7884
        %v8725 = vpop.f32.mrb[0].mxu0
        %v8726 = vadd.f32 %v8459, %v8725
        %v8727 = vpop.f32.mrb[0].mxu0
        %8728 = vmatprep.mubr.f32.mxu0 0.0
        %8729 = vmatmul.mubr.f32.gmra.mrb[0].mxu0 %v7887
        %v8730 = vpop.f32.mrb[0].mxu0
        %v8731 = vadd.f32 %v8460, %v8730
        %v8732 = vpop.f32.mrb[0].mxu0
        %8733 = vmatprep.mubr.f32.mxu0 0.0
        %8734 = vmatmul.mubr.f32.gmra.mrb[0].mxu0 %v7890
        %v8735 = vpop.f32.mrb[0].mxu0
        %v8736 = vadd.f32 %v8461, %v8735
        %v8737 = vpop.f32.mrb[0].mxu0
        %8738 = vmatprep.mubr.f32.mxu0 0.0
        %8739 = vmatmul.mubr.f32.gmra.mrb[0].mxu0 %v7893
        %v8740 = vpop.f32.mrb[0].mxu0
        %v8741 = vadd.f32 %v8462, %v8740
        %v8742 = vpop.f32.mrb[0].mxu0
        %8743 = vmatprep.mubr.f32.mxu0 0.0
        %8744 = vmatmul.mubr.f32.gmra.mrb[0].mxu0 %v7896
        %v8745 = vpop.f32.mrb[0].mxu0
        %v8746 = vadd.f32 %v8463, %v8745
        %v8747 = vpop.f32.mrb[0].mxu0
        %8748 = vmatprep.mubr.f32.mxu0 0.0
        %8749 = vmatmul.mubr.f32.gmra.mrb[0].mxu0 %v7899
        %v8750 = vpop.f32.mrb[0].mxu0
        %v8751 = vadd.f32 %v8464, %v8750
        %v8752 = vpop.f32.mrb[0].mxu0
        %8753 = vmatprep.mubr.f32.mxu0 0.0
        %8754 = vmatmul.mubr.f32.gmra.mrb[0].mxu0 %v7902
        %v8755 = vpop.f32.mrb[0].mxu0
        %v8756 = vadd.f32 %v8465, %v8755
        %v8757 = vpop.f32.mrb[0].mxu0
        %8758 = vmatprep.mubr.f32.mxu0 0.0
        %8759 = vmatmul.mubr.f32.gmra.mrb[0].mxu0 %v7905
        %v8760 = vpop.f32.mrb[0].mxu0
        %v8761 = vadd.f32 %v8466, %v8760
        %v8762 = vpop.f32.mrb[0].mxu0
        %8763 = vmatprep.mubr.f32.mxu0 0.0
        %8764 = vmatmul.mubr.f32.gmra.mrb[0].mxu0 %v7908
        %v8765 = vpop.f32.mrb[0].mxu0
        %v8766 = vadd.f32 %v8467, %v8765
        %v8767 = vpop.f32.mrb[0].mxu0
        %8768 = vmatprep.mubr.f32.mxu0 0.0
        %8769 = vmatmul.mubr.f32.gmra.mrb[0].mxu0 %v7911
        %v8770 = vpop.f32.mrb[0].mxu0
        %v8771 = vadd.f32 %v8468, %v8770
        %v8772 = vpop.f32.mrb[0].mxu0
        %8773 = vmatprep.mubr.f32.mxu0 0.0
        %8774 = vmatmul.mubr.f32.gmra.mrb[0].mxu0 %v7914
        %v8775 = vpop.f32.mrb[0].mxu0
        %v8776 = vadd.f32 %v8469, %v8775
        %v8777 = vpop.f32.mrb[0].mxu0
        %8778 = vmatprep.mubr.f32.mxu0 0.0
        %8779 = vmatmul.mubr.f32.gmra.mrb[0].mxu0 %v7917
        %v8780 = vpop.f32.mrb[0].mxu0
        %v8781 = vadd.f32 %v8470, %v8780
        %v8782 = vpop.f32.mrb[0].mxu0
        %8783 = vmatprep.mubr.f32.mxu0 0.0
        %8784 = vmatmul.mubr.f32.gmra.mrb[0].mxu0 %v7920
        %v8785 = vpop.f32.mrb[0].mxu0
        %v8786 = vadd.f32 %v8471, %v8785
        %v8787 = vpop.f32.mrb[0].mxu0
        %8788 = vmatprep.mubr.f32.mxu0 0.0
        %8789 = vmatmul.mubr.f32.gmra.mrb[0].mxu0 %v7923
        %v8790 = vpop.f32.mrb[0].mxu0
        %v8791 = vadd.f32 %v8472, %v8790
        %v8792 = vpop.f32.mrb[0].mxu0
        %8793 = vdwg.mxu0
        %v8794 = vadd.f32 %v8636, %v8537
        %v8795 = vadd.f32 %v8641, %v8538
        %v8796 = vadd.f32 %v8646, %v8539
        %v8797 = vadd.f32 %v8651, %v8540
        %v8798 = vadd.f32 %v8656, %v8541
        %v8799 = vadd.f32 %v8661, %v8542
        %v8800 = vadd.f32 %v8666, %v8543
        %v8801 = vadd.f32 %v8671, %v8544
        %v8802 = vadd.f32 %v8676, %v8545
        %v8803 = vadd.f32 %v8681, %v8546
        %v8804 = vadd.f32 %v8686, %v8547
        %v8805 = vadd.f32 %v8691, %v8548
        %v8806 = vadd.f32 %v8696, %v8549
        %v8807 = vadd.f32 %v8701, %v8550
        %v8808 = vadd.f32 %v8706, %v8551
        %v8809 = vadd.f32 %v8711, %v8552
        %v8810 = vadd.f32 %v8716, %v8553
        %v8811 = vadd.f32 %v8721, %v8554
        %v8812 = vadd.f32 %v8726, %v8555
        %v8813 = vadd.f32 %v8731, %v8556
        %v8814 = vadd.f32 %v8736, %v8557
        %v8815 = vadd.f32 %v8741, %v8558
        %v8816 = vadd.f32 %v8746, %v8559
        %v8817 = vadd.f32 %v8751, %v8560
        %v8818 = vadd.f32 %v8756, %v8561
        %v8819 = vadd.f32 %v8761, %v8562
        %v8820 = vadd.f32 %v8766, %v8563
        %v8821 = vadd.f32 %v8771, %v8564
        %v8822 = vadd.f32 %v8776, %v8565
        %v8823 = vadd.f32 %v8781, %v8566
        %v8824 = vadd.f32 %v8786, %v8567
        %v8825 = vadd.f32 %v8791, %v8568
        %v8826 = vld [vmem:[%s6] sm:$0x1]
        %v8828 = vlaneseq
        %v8829 = vshrl.u32 %v8828, 7
        %v8830 = vsub.s32 0, %v8829
        %v8831 = vrot.slane %v8826, %v8830
        %v8833 = vadd.f32 %v8794, %v8831
        %v8834 = vadd.f32 %v8795, %v8831
        %v8835 = vadd.f32 %v8796, %v8831
        %v8836 = vadd.f32 %v8797, %v8831
        %v8837 = vadd.f32 %v8798, %v8831
        %v8838 = vadd.f32 %v8799, %v8831
        %v8839 = vadd.f32 %v8800, %v8831
        %v8840 = vadd.f32 %v8801, %v8831
        %v8841 = vadd.f32 %v8802, %v8831
        %v8842 = vadd.f32 %v8803, %v8831
        %v8843 = vadd.f32 %v8804, %v8831
        %v8844 = vadd.f32 %v8805, %v8831
        %v8845 = vadd.f32 %v8806, %v8831
        %v8846 = vadd.f32 %v8807, %v8831
        %v8847 = vadd.f32 %v8808, %v8831
        %v8848 = vadd.f32 %v8809, %v8831
        %v8849 = vadd.f32 %v8810, %v8831
        %v8850 = vadd.f32 %v8811, %v8831
        %v8851 = vadd.f32 %v8812, %v8831
        %v8852 = vadd.f32 %v8813, %v8831
        %v8853 = vadd.f32 %v8814, %v8831
        %v8854 = vadd.f32 %v8815, %v8831
        %v8855 = vadd.f32 %v8816, %v8831
        %v8856 = vadd.f32 %v8817, %v8831
        %v8857 = vadd.f32 %v8818, %v8831
        %v8858 = vadd.f32 %v8819, %v8831
        %v8859 = vadd.f32 %v8820, %v8831
        %v8860 = vadd.f32 %v8821, %v8831
        %v8861 = vadd.f32 %v8822, %v8831
        %v8862 = vadd.f32 %v8823, %v8831
        %v8863 = vadd.f32 %v8824, %v8831
        %v8864 = vadd.f32 %v8825, %v8831
        %v8865 = vsel %vm3496, 0.0, %v8864
        %v8866 = vsel %vm3498, 0.0, %v8834
        %v8867 = vsel %vm3500, 0.0, %v8836
        %v8868 = vsel %vm3502, 0.0, %v8838
        %v8869 = vsel %vm3504, 0.0, %v8840
        %v8870 = vsel %vm3506, 0.0, %v8842
        %v8871 = vsel %vm3508, 0.0, %v8844
        %v8872 = vsel %vm3510, 0.0, %v8846
        %v8873 = vsel %vm3512, 0.0, %v8848
        %v8874 = vsel %vm3514, 0.0, %v8850
        %v8875 = vsel %vm3516, 0.0, %v8852
        %v8876 = vsel %vm3518, 0.0, %v8854
        %v8877 = vsel %vm3520, 0.0, %v8856
        %v8878 = vsel %vm3522, 0.0, %v8858
        %v8879 = vsel %vm3524, 0.0, %v8860
        %v8880 = vsel %vm3526, 0.0, %v8862
        %v8881 = vsel %vm8505, 0.0, %v8834
        %v8882 = vsel %vm8507, 0.0, %v8836
        %v8883 = vsel %vm8509, 0.0, %v8838
        %v8884 = vsel %vm8511, 0.0, %v8840
        %v8885 = vsel %vm8513, 0.0, %v8842
        %v8886 = vsel %vm8515, 0.0, %v8844
        %v8887 = vsel %vm8517, 0.0, %v8846
        %v8888 = vsel %vm8519, 0.0, %v8848
        %v8889 = vsel %vm8521, 0.0, %v8850
        %v8890 = vsel %vm8523, 0.0, %v8852
        %v8891 = vsel %vm8525, 0.0, %v8854
        %v8892 = vsel %vm8527, 0.0, %v8856
        %v8893 = vsel %vm8529, 0.0, %v8858
        %v8894 = vsel %vm8531, 0.0, %v8860
        %v8895 = vsel %vm8533, 0.0, %v8862
        %v8896 = vsel %vm8535, 0.0, %v8864
        %v8897 = vsel %vm8425, 1, 0
        %v8898 = vsel %vm8426, 1, 0
        %v8899 = vsel %vm8427, 1, 0
        %v8900 = vsel %vm8428, 1, 0
        %v8901 = vsel %vm8429, 1, 0
        %v8902 = vsel %vm8430, 1, 0
        %v8903 = vsel %vm8431, 1, 0
        %v8904 = vsel %vm8432, 1, 0
        %v8905 = vsel %vm8433, 1, 0
        %v8906 = vsel %vm8434, 1, 0
        %v8907 = vsel %vm8435, 1, 0
        %v8908 = vsel %vm8436, 1, 0
        %v8909 = vsel %vm8437, 1, 0
        %v8910 = vsel %vm8438, 1, 0
        %v8911 = vsel %vm8439, 1, 0
        %v8912 = vsel %vm8440, 1, 0
        %vm8913 = vcmp.eq.s32.totalorder %v8897, 1
        %vm8914 = vcmp.eq.s32.totalorder %v8898, 1
        %vm8915 = vcmp.eq.s32.totalorder %v8899, 1
        %vm8916 = vcmp.eq.s32.totalorder %v8900, 1
        %vm8917 = vcmp.eq.s32.totalorder %v8901, 1
        %vm8918 = vcmp.eq.s32.totalorder %v8902, 1
        %vm8919 = vcmp.eq.s32.totalorder %v8903, 1
        %vm8920 = vcmp.eq.s32.totalorder %v8904, 1
        %vm8921 = vcmp.eq.s32.totalorder %v8905, 1
        %vm8922 = vcmp.eq.s32.totalorder %v8906, 1
        %vm8923 = vcmp.eq.s32.totalorder %v8907, 1
        %vm8924 = vcmp.eq.s32.totalorder %v8908, 1
        %vm8925 = vcmp.eq.s32.totalorder %v8909, 1
        %vm8926 = vcmp.eq.s32.totalorder %v8910, 1
        %vm8927 = vcmp.eq.s32.totalorder %v8911, 1
        %vm8928 = vcmp.eq.s32.totalorder %v8912, 1
        %v8929 = vsel %vm8913, 0.0, %v8835
        %v8930 = vsel %vm8914, 0.0, %v8837
        %v8931 = vsel %vm8915, 0.0, %v8839
        %v8932 = vsel %vm8916, 0.0, %v8841
        %v8933 = vsel %vm8917, 0.0, %v8843
        %v8934 = vsel %vm8918, 0.0, %v8845
        %v8935 = vsel %vm8919, 0.0, %v8847
        %v8936 = vsel %vm8920, 0.0, %v8849
        %v8937 = vsel %vm8921, 0.0, %v8851
        %v8938 = vsel %vm8922, 0.0, %v8853
        %v8939 = vsel %vm8923, 0.0, %v8855
        %v8940 = vsel %vm8924, 0.0, %v8857
        %v8941 = vsel %vm8925, 0.0, %v8859
        %v8942 = vsel %vm8926, 0.0, %v8861
        %v8943 = vsel %vm8927, 0.0, %v8863
        %v8944 = vsel %vm8928, 0.0, %v8833
        %v8945 = vmax.f32 %v8833, %v8865
        %v8946 = vmax.f32 %v8835, %v8866
        %v8947 = vmax.f32 %v8837, %v8867
        %v8948 = vmax.f32 %v8839, %v8868
        %v8949 = vmax.f32 %v8841, %v8869
        %v8950 = vmax.f32 %v8843, %v8870
        %v8951 = vmax.f32 %v8845, %v8871
        %v8952 = vmax.f32 %v8847, %v8872
        %v8953 = vmax.f32 %v8849, %v8873
        %v8954 = vmax.f32 %v8851, %v8874
        %v8955 = vmax.f32 %v8853, %v8875
        %v8956 = vmax.f32 %v8855, %v8876
        %v8957 = vmax.f32 %v8857, %v8877
        %v8958 = vmax.f32 %v8859, %v8878
        %v8959 = vmax.f32 %v8861, %v8879
        %v8960 = vmax.f32 %v8863, %v8880
        %v8961 = vmax.f32 %v8881, %v8929
        %v8962 = vmax.f32 %v8882, %v8930
        %v8963 = vmax.f32 %v8883, %v8931
        %v8964 = vmax.f32 %v8884, %v8932
        %v8965 = vmax.f32 %v8885, %v8933
        %v8966 = vmax.f32 %v8886, %v8934
        %v8967 = vmax.f32 %v8887, %v8935
        %v8968 = vmax.f32 %v8888, %v8936
        %v8969 = vmax.f32 %v8889, %v8937
        %v8970 = vmax.f32 %v8890, %v8938
        %v8971 = vmax.f32 %v8891, %v8939
        %v8972 = vmax.f32 %v8892, %v8940
        %v8973 = vmax.f32 %v8893, %v8941
        %v8974 = vmax.f32 %v8894, %v8942
        %v8975 = vmax.f32 %v8895, %v8943
        %v8976 = vmax.f32 %v8896, %v8944
        %v8977 = vmax.f32 %v8945, %v8961
        %v8978 = vmax.f32 %v8946, %v8962
        %v8979 = vmax.f32 %v8947, %v8963
        %v8980 = vmax.f32 %v8948, %v8964
        %v8981 = vmax.f32 %v8949, %v8965
        %v8982 = vmax.f32 %v8950, %v8966
        %v8983 = vmax.f32 %v8951, %v8967
        %v8984 = vmax.f32 %v8952, %v8968
        %v8985 = vmax.f32 %v8953, %v8969
        %v8986 = vmax.f32 %v8954, %v8970
        %v8987 = vmax.f32 %v8955, %v8971
        %v8988 = vmax.f32 %v8956, %v8972
        %v8989 = vmax.f32 %v8957, %v8973
        %v8990 = vmax.f32 %v8958, %v8974
        %v8991 = vmax.f32 %v8959, %v8975
        %v8992 = vmax.f32 %v8960, %v8976
        %v8993 = vmax.f32 %v8977, 0.0
        %v8994 = vmax.f32 %v8978, 0.0
        %v8995 = vmax.f32 %v8979, 0.0
        %v8996 = vmax.f32 %v8980, 0.0
        %v8997 = vmax.f32 %v8981, 0.0
        %v8998 = vmax.f32 %v8982, 0.0
        %v8999 = vmax.f32 %v8983, 0.0
        %v9000 = vmax.f32 %v8984, 0.0
        %v9001 = vmax.f32 %v8985, 0.0
        %v9002 = vmax.f32 %v8986, 0.0
        %v9003 = vmax.f32 %v8987, 0.0
        %v9004 = vmax.f32 %v8988, 0.0
        %v9005 = vmax.f32 %v8989, 0.0
        %v9006 = vmax.f32 %v8990, 0.0
        %v9007 = vmax.f32 %v8991, 0.0
        %v9008 = vmax.f32 %v8992, 0.0
        %v9009 = vld [vmem:[%s7] sm:$0xff]
        %v9010 = vld [vmem:[%s7 + $0x8] sm:$0xff]
        %v9011 = vld [vmem:[%s7 + $0x10] sm:$0xff]
        %v9012 = vld [vmem:[%s7 + $0x18] sm:$0xff]
        %v9013 = vld [vmem:[%s7 + $0x20] sm:$0xff]
        %v9014 = vld [vmem:[%s7 + $0x28] sm:$0xff]
        %v9015 = vld [vmem:[%s7 + $0x30] sm:$0xff]
        %v9016 = vld [vmem:[%s7 + $0x38] sm:$0xff]
        %v9017 = vld [vmem:[%s7 + $0x40] sm:$0xff]
        %v9018 = vld [vmem:[%s7 + $0x48] sm:$0xff]
        %v9019 = vld [vmem:[%s7 + $0x50] sm:$0xff]
        %v9020 = vld [vmem:[%s7 + $0x58] sm:$0xff]
        %v9021 = vld [vmem:[%s7 + $0x60] sm:$0xff]
        %v9022 = vld [vmem:[%s7 + $0x68] sm:$0xff]
        %v9023 = vld [vmem:[%s7 + $0x70] sm:$0xff]
        %v9024 = vld [vmem:[%s7 + $0x78] sm:$0xff]
        %v9025 = vld [vmem:[%s7 + $0x80] sm:$0xff]
        %v9026 = vld [vmem:[%s7 + $0x88] sm:$0xff]
        %v9027 = vld [vmem:[%s7 + $0x90] sm:$0xff]
        %v9028 = vld [vmem:[%s7 + $0x98] sm:$0xff]
        %v9029 = vld [vmem:[%s7 + $0xa0] sm:$0xff]
        %v9030 = vld [vmem:[%s7 + $0xa8] sm:$0xff]
        %v9031 = vld [vmem:[%s7 + $0xb0] sm:$0xff]
        %v9032 = vld [vmem:[%s7 + $0xb8] sm:$0xff]
        %v9033 = vld [vmem:[%s7 + $0xc0] sm:$0xff]
        %v9034 = vld [vmem:[%s7 + $0xc8] sm:$0xff]
        %v9035 = vld [vmem:[%s7 + $0xd0] sm:$0xff]
        %v9036 = vld [vmem:[%s7 + $0xd8] sm:$0xff]
        %v9037 = vld [vmem:[%s7 + $0xe0] sm:$0xff]
        %v9038 = vld [vmem:[%s7 + $0xe8] sm:$0xff]
        %v9039 = vld [vmem:[%s7 + $0xf0] sm:$0xff]
        %v9040 = vld [vmem:[%s7 + $0xf8] sm:$0xff]
        %v9041 = vld [vmem:[%s7 + $0x100] sm:$0xff]
        %v9042 = vld [vmem:[%s7 + $0x108] sm:$0xff]
        %v9043 = vld [vmem:[%s7 + $0x110] sm:$0xff]
        %v9044 = vld [vmem:[%s7 + $0x118] sm:$0xff]
        %v9045 = vld [vmem:[%s7 + $0x120] sm:$0xff]
        %v9046 = vld [vmem:[%s7 + $0x128] sm:$0xff]
        %v9047 = vld [vmem:[%s7 + $0x130] sm:$0xff]
        %v9048 = vld [vmem:[%s7 + $0x138] sm:$0xff]
        %v9049 = vld [vmem:[%s7 + $0x140] sm:$0xff]
        %v9050 = vld [vmem:[%s7 + $0x148] sm:$0xff]
        %v9051 = vld [vmem:[%s7 + $0x150] sm:$0xff]
        %v9052 = vld [vmem:[%s7 + $0x158] sm:$0xff]
        %v9053 = vld [vmem:[%s7 + $0x160] sm:$0xff]
        %v9054 = vld [vmem:[%s7 + $0x168] sm:$0xff]
        %v9055 = vld [vmem:[%s7 + $0x170] sm:$0xff]
        %v9056 = vld [vmem:[%s7 + $0x178] sm:$0xff]
        %v9057 = vld [vmem:[%s7 + $0x180] sm:$0xff]
        %v9058 = vld [vmem:[%s7 + $0x188] sm:$0xff]
        %v9059 = vld [vmem:[%s7 + $0x190] sm:$0xff]
        %v9060 = vld [vmem:[%s7 + $0x198] sm:$0xff]
        %v9061 = vld [vmem:[%s7 + $0x1a0] sm:$0xff]
        %v9062 = vld [vmem:[%s7 + $0x1a8] sm:$0xff]
        %v9063 = vld [vmem:[%s7 + $0x1b0] sm:$0xff]
        %v9064 = vld [vmem:[%s7 + $0x1b8] sm:$0xff]
        %v9065 = vld [vmem:[%s7 + $0x1c0] sm:$0xff]
        %v9066 = vld [vmem:[%s7 + $0x1c8] sm:$0xff]
        %v9067 = vld [vmem:[%s7 + $0x1d0] sm:$0xff]
        %v9068 = vld [vmem:[%s7 + $0x1d8] sm:$0xff]
        %v9069 = vld [vmem:[%s7 + $0x1e0] sm:$0xff]
        %v9070 = vld [vmem:[%s7 + $0x1e8] sm:$0xff]
        %v9071 = vld [vmem:[%s7 + $0x1f0] sm:$0xff]
        %v9072 = vld [vmem:[%s7 + $0x1f8] sm:$0xff]
        %v9073 = vld [vmem:[%s7 + $0x200] sm:$0xff]
        %v9074 = vld [vmem:[%s7 + $0x208] sm:$0xff]
        %v9075 = vld [vmem:[%s7 + $0x210] sm:$0xff]
        %v9076 = vld [vmem:[%s7 + $0x218] sm:$0xff]
        %v9077 = vld [vmem:[%s7 + $0x220] sm:$0xff]
        %v9078 = vld [vmem:[%s7 + $0x228] sm:$0xff]
        %v9079 = vld [vmem:[%s7 + $0x230] sm:$0xff]
        %v9080 = vld [vmem:[%s7 + $0x238] sm:$0xff]
        %v9081 = vld [vmem:[%s7 + $0x240] sm:$0xff]
        %v9082 = vld [vmem:[%s7 + $0x248] sm:$0xff]
        %v9083 = vld [vmem:[%s7 + $0x250] sm:$0xff]
        %v9084 = vld [vmem:[%s7 + $0x258] sm:$0xff]
        %v9085 = vld [vmem:[%s7 + $0x260] sm:$0xff]
        %v9086 = vld [vmem:[%s7 + $0x268] sm:$0xff]
        %v9087 = vld [vmem:[%s7 + $0x270] sm:$0xff]
        %v9088 = vld [vmem:[%s7 + $0x278] sm:$0xff]
        %v9089 = vld [vmem:[%s7 + $0x280] sm:$0xff]
        %v9090 = vld [vmem:[%s7 + $0x288] sm:$0xff]
        %v9091 = vld [vmem:[%s7 + $0x290] sm:$0xff]
        %v9092 = vld [vmem:[%s7 + $0x298] sm:$0xff]
        %v9093 = vld [vmem:[%s7 + $0x2a0] sm:$0xff]
        %v9094 = vld [vmem:[%s7 + $0x2a8] sm:$0xff]
        %v9095 = vld [vmem:[%s7 + $0x2b0] sm:$0xff]
        %v9096 = vld [vmem:[%s7 + $0x2b8] sm:$0xff]
        %v9097 = vld [vmem:[%s7 + $0x2c0] sm:$0xff]
        %v9098 = vld [vmem:[%s7 + $0x2c8] sm:$0xff]
        %v9099 = vld [vmem:[%s7 + $0x2d0] sm:$0xff]
        %v9100 = vld [vmem:[%s7 + $0x2d8] sm:$0xff]
        %v9101 = vld [vmem:[%s7 + $0x2e0] sm:$0xff]
        %v9102 = vld [vmem:[%s7 + $0x2e8] sm:$0xff]
        %v9103 = vld [vmem:[%s7 + $0x2f0] sm:$0xff]
        %v9104 = vld [vmem:[%s7 + $0x2f8] sm:$0xff]
        %v9105 = vld [vmem:[%s7 + $0x300] sm:$0xff]
        %v9106 = vld [vmem:[%s7 + $0x308] sm:$0xff]
        %v9107 = vld [vmem:[%s7 + $0x310] sm:$0xff]
        %v9108 = vld [vmem:[%s7 + $0x318] sm:$0xff]
        %v9109 = vld [vmem:[%s7 + $0x320] sm:$0xff]
        %v9110 = vld [vmem:[%s7 + $0x328] sm:$0xff]
        %v9111 = vld [vmem:[%s7 + $0x330] sm:$0xff]
        %v9112 = vld [vmem:[%s7 + $0x338] sm:$0xff]
        %v9113 = vld [vmem:[%s7 + $0x340] sm:$0xff]
        %v9114 = vld [vmem:[%s7 + $0x348] sm:$0xff]
        %v9115 = vld [vmem:[%s7 + $0x350] sm:$0xff]
        %v9116 = vld [vmem:[%s7 + $0x358] sm:$0xff]
        %v9117 = vld [vmem:[%s7 + $0x360] sm:$0xff]
        %v9118 = vld [vmem:[%s7 + $0x368] sm:$0xff]
        %v9119 = vld [vmem:[%s7 + $0x370] sm:$0xff]
        %v9120 = vld [vmem:[%s7 + $0x378] sm:$0xff]
        %v9121 = vld [vmem:[%s7 + $0x380] sm:$0xff]
        %v9122 = vld [vmem:[%s7 + $0x388] sm:$0xff]
        %v9123 = vld [vmem:[%s7 + $0x390] sm:$0xff]
        %v9124 = vld [vmem:[%s7 + $0x398] sm:$0xff]
        %v9125 = vld [vmem:[%s7 + $0x3a0] sm:$0xff]
        %v9126 = vld [vmem:[%s7 + $0x3a8] sm:$0xff]
        %v9127 = vld [vmem:[%s7 + $0x3b0] sm:$0xff]
        %v9128 = vld [vmem:[%s7 + $0x3b8] sm:$0xff]
        %v9129 = vld [vmem:[%s7 + $0x3c0] sm:$0xff]
        %v9130 = vld [vmem:[%s7 + $0x3c8] sm:$0xff]
        %v9131 = vld [vmem:[%s7 + $0x3d0] sm:$0xff]
        %v9132 = vld [vmem:[%s7 + $0x3d8] sm:$0xff]
        %v9133 = vld [vmem:[%s7 + $0x3e0] sm:$0xff]
        %v9134 = vld [vmem:[%s7 + $0x3e8] sm:$0xff]
        %v9135 = vld [vmem:[%s7 + $0x3f0] sm:$0xff]
        %v9136 = vld [vmem:[%s7 + $0x3f8] sm:$0xff]
        %v9137 = vld [vmem:[%s7 + $0x400] sm:$0xff]
        %v9138 = vld [vmem:[%s7 + $0x408] sm:$0xff]
        %v9139 = vld [vmem:[%s7 + $0x410] sm:$0xff]
        %v9140 = vld [vmem:[%s7 + $0x418] sm:$0xff]
        %v9141 = vld [vmem:[%s7 + $0x420] sm:$0xff]
        %v9142 = vld [vmem:[%s7 + $0x428] sm:$0xff]
        %v9143 = vld [vmem:[%s7 + $0x430] sm:$0xff]
        %v9144 = vld [vmem:[%s7 + $0x438] sm:$0xff]
        %v9145 = vld [vmem:[%s7 + $0x440] sm:$0xff]
        %v9146 = vld [vmem:[%s7 + $0x448] sm:$0xff]
        %v9147 = vld [vmem:[%s7 + $0x450] sm:$0xff]
        %v9148 = vld [vmem:[%s7 + $0x458] sm:$0xff]
        %v9149 = vld [vmem:[%s7 + $0x460] sm:$0xff]
        %v9150 = vld [vmem:[%s7 + $0x468] sm:$0xff]
        %v9151 = vld [vmem:[%s7 + $0x470] sm:$0xff]
        %v9152 = vld [vmem:[%s7 + $0x478] sm:$0xff]
        %v9153 = vld [vmem:[%s7 + $0x480] sm:$0xff]
        %v9154 = vld [vmem:[%s7 + $0x488] sm:$0xff]
        %v9155 = vld [vmem:[%s7 + $0x490] sm:$0xff]
        %v9156 = vld [vmem:[%s7 + $0x498] sm:$0xff]
        %v9157 = vld [vmem:[%s7 + $0x4a0] sm:$0xff]
        %v9158 = vld [vmem:[%s7 + $0x4a8] sm:$0xff]
        %v9159 = vld [vmem:[%s7 + $0x4b0] sm:$0xff]
        %v9160 = vld [vmem:[%s7 + $0x4b8] sm:$0xff]
        %v9161 = vld [vmem:[%s7 + $0x4c0] sm:$0xff]
        %v9162 = vld [vmem:[%s7 + $0x4c8] sm:$0xff]
        %v9163 = vld [vmem:[%s7 + $0x4d0] sm:$0xff]
        %v9164 = vld [vmem:[%s7 + $0x4d8] sm:$0xff]
        %v9165 = vld [vmem:[%s7 + $0x4e0] sm:$0xff]
        %v9166 = vld [vmem:[%s7 + $0x4e8] sm:$0xff]
        %v9167 = vld [vmem:[%s7 + $0x4f0] sm:$0xff]
        %v9168 = vld [vmem:[%s7 + $0x4f8] sm:$0xff]
        %v9169 = vld [vmem:[%s7 + $0x500] sm:$0xff]
        %v9170 = vld [vmem:[%s7 + $0x508] sm:$0xff]
        %v9171 = vld [vmem:[%s7 + $0x510] sm:$0xff]
        %v9172 = vld [vmem:[%s7 + $0x518] sm:$0xff]
        %v9173 = vld [vmem:[%s7 + $0x520] sm:$0xff]
        %v9174 = vld [vmem:[%s7 + $0x528] sm:$0xff]
        %v9175 = vld [vmem:[%s7 + $0x530] sm:$0xff]
        %v9176 = vld [vmem:[%s7 + $0x538] sm:$0xff]
        %v9177 = vld [vmem:[%s7 + $0x540] sm:$0xff]
        %v9178 = vld [vmem:[%s7 + $0x548] sm:$0xff]
        %v9179 = vld [vmem:[%s7 + $0x550] sm:$0xff]
        %v9180 = vld [vmem:[%s7 + $0x558] sm:$0xff]
        %v9181 = vld [vmem:[%s7 + $0x560] sm:$0xff]
        %v9182 = vld [vmem:[%s7 + $0x568] sm:$0xff]
        %v9183 = vld [vmem:[%s7 + $0x570] sm:$0xff]
        %v9184 = vld [vmem:[%s7 + $0x578] sm:$0xff]
        %v9185 = vld [vmem:[%s7 + $0x580] sm:$0xff]
        %v9186 = vld [vmem:[%s7 + $0x588] sm:$0xff]
        %v9187 = vld [vmem:[%s7 + $0x590] sm:$0xff]
        %v9188 = vld [vmem:[%s7 + $0x598] sm:$0xff]
        %v9189 = vld [vmem:[%s7 + $0x5a0] sm:$0xff]
        %v9190 = vld [vmem:[%s7 + $0x5a8] sm:$0xff]
        %v9191 = vld [vmem:[%s7 + $0x5b0] sm:$0xff]
        %v9192 = vld [vmem:[%s7 + $0x5b8] sm:$0xff]
        %v9193 = vld [vmem:[%s7 + $0x5c0] sm:$0xff]
        %v9194 = vld [vmem:[%s7 + $0x5c8] sm:$0xff]
        %v9195 = vld [vmem:[%s7 + $0x5d0] sm:$0xff]
        %v9196 = vld [vmem:[%s7 + $0x5d8] sm:$0xff]
        %v9197 = vld [vmem:[%s7 + $0x5e0] sm:$0xff]
        %v9198 = vld [vmem:[%s7 + $0x5e8] sm:$0xff]
        %v9199 = vld [vmem:[%s7 + $0x5f0] sm:$0xff]
        %v9200 = vld [vmem:[%s7 + $0x5f8] sm:$0xff]
        %v9201 = vld [vmem:[%s7 + $0x600] sm:$0xff]
        %v9202 = vld [vmem:[%s7 + $0x608] sm:$0xff]
        %v9203 = vld [vmem:[%s7 + $0x610] sm:$0xff]
        %v9204 = vld [vmem:[%s7 + $0x618] sm:$0xff]
        %v9205 = vld [vmem:[%s7 + $0x620] sm:$0xff]
        %v9206 = vld [vmem:[%s7 + $0x628] sm:$0xff]
        %v9207 = vld [vmem:[%s7 + $0x630] sm:$0xff]
        %v9208 = vld [vmem:[%s7 + $0x638] sm:$0xff]
        %v9209 = vld [vmem:[%s7 + $0x640] sm:$0xff]
        %v9210 = vld [vmem:[%s7 + $0x648] sm:$0xff]
        %v9211 = vld [vmem:[%s7 + $0x650] sm:$0xff]
        %v9212 = vld [vmem:[%s7 + $0x658] sm:$0xff]
        %v9213 = vld [vmem:[%s7 + $0x660] sm:$0xff]
        %v9214 = vld [vmem:[%s7 + $0x668] sm:$0xff]
        %v9215 = vld [vmem:[%s7 + $0x670] sm:$0xff]
        %v9216 = vld [vmem:[%s7 + $0x678] sm:$0xff]
        %v9217 = vld [vmem:[%s7 + $0x680] sm:$0xff]
        %v9218 = vld [vmem:[%s7 + $0x688] sm:$0xff]
        %v9219 = vld [vmem:[%s7 + $0x690] sm:$0xff]
        %v9220 = vld [vmem:[%s7 + $0x698] sm:$0xff]
        %v9221 = vld [vmem:[%s7 + $0x6a0] sm:$0xff]
        %v9222 = vld [vmem:[%s7 + $0x6a8] sm:$0xff]
        %v9223 = vld [vmem:[%s7 + $0x6b0] sm:$0xff]
        %v9224 = vld [vmem:[%s7 + $0x6b8] sm:$0xff]
        %v9225 = vld [vmem:[%s7 + $0x6c0] sm:$0xff]
        %v9226 = vld [vmem:[%s7 + $0x6c8] sm:$0xff]
        %v9227 = vld [vmem:[%s7 + $0x6d0] sm:$0xff]
        %v9228 = vld [vmem:[%s7 + $0x6d8] sm:$0xff]
        %v9229 = vld [vmem:[%s7 + $0x6e0] sm:$0xff]
        %v9230 = vld [vmem:[%s7 + $0x6e8] sm:$0xff]
        %v9231 = vld [vmem:[%s7 + $0x6f0] sm:$0xff]
        %v9232 = vld [vmem:[%s7 + $0x6f8] sm:$0xff]
        %v9233 = vld [vmem:[%s7 + $0x700] sm:$0xff]
        %v9234 = vld [vmem:[%s7 + $0x708] sm:$0xff]
        %v9235 = vld [vmem:[%s7 + $0x710] sm:$0xff]
        %v9236 = vld [vmem:[%s7 + $0x718] sm:$0xff]
        %v9237 = vld [vmem:[%s7 + $0x720] sm:$0xff]
        %v9238 = vld [vmem:[%s7 + $0x728] sm:$0xff]
        %v9239 = vld [vmem:[%s7 + $0x730] sm:$0xff]
        %v9240 = vld [vmem:[%s7 + $0x738] sm:$0xff]
        %v9241 = vld [vmem:[%s7 + $0x740] sm:$0xff]
        %v9242 = vld [vmem:[%s7 + $0x748] sm:$0xff]
        %v9243 = vld [vmem:[%s7 + $0x750] sm:$0xff]
        %v9244 = vld [vmem:[%s7 + $0x758] sm:$0xff]
        %v9245 = vld [vmem:[%s7 + $0x760] sm:$0xff]
        %v9246 = vld [vmem:[%s7 + $0x768] sm:$0xff]
        %v9247 = vld [vmem:[%s7 + $0x770] sm:$0xff]
        %v9248 = vld [vmem:[%s7 + $0x778] sm:$0xff]
        %v9249 = vld [vmem:[%s7 + $0x780] sm:$0xff]
        %v9250 = vld [vmem:[%s7 + $0x788] sm:$0xff]
        %v9251 = vld [vmem:[%s7 + $0x790] sm:$0xff]
        %v9252 = vld [vmem:[%s7 + $0x798] sm:$0xff]
        %v9253 = vld [vmem:[%s7 + $0x7a0] sm:$0xff]
        %v9254 = vld [vmem:[%s7 + $0x7a8] sm:$0xff]
        %v9255 = vld [vmem:[%s7 + $0x7b0] sm:$0xff]
        %v9256 = vld [vmem:[%s7 + $0x7b8] sm:$0xff]
        %v9257 = vld [vmem:[%s7 + $0x7c0] sm:$0xff]
        %v9258 = vld [vmem:[%s7 + $0x7c8] sm:$0xff]
        %v9259 = vld [vmem:[%s7 + $0x7d0] sm:$0xff]
        %v9260 = vld [vmem:[%s7 + $0x7d8] sm:$0xff]
        %v9261 = vld [vmem:[%s7 + $0x7e0] sm:$0xff]
        %v9262 = vld [vmem:[%s7 + $0x7e8] sm:$0xff]
        %v9263 = vld [vmem:[%s7 + $0x7f0] sm:$0xff]
        %v9264 = vld [vmem:[%s7 + $0x7f8] sm:$0xff]
        %v9265 = vld [vmem:[%s8] sm:$0x1]
        %v9267 = vlaneseq
        %v9268 = vshrl.u32 %v9267, 7
        %v9269 = vsub.s32 0, %v9268
        %v9270 = vrot.slane %v9265, %v9269
        %9272 = vmatprep.subr.mxu0 0.0
        %9273 = vmatpush1.msra.mxu0 %v9009
        %9274 = vmatprep.subr.mxu0 0.0
        %9275 = vmatpush1.msra.mxu0 %v9010
        %9276 = vmatprep.subr.mxu0 0.0
        %9277 = vmatpush1.msra.mxu0 %v9011
        %9278 = vmatprep.subr.mxu0 0.0
        %9279 = vmatpush1.msra.mxu0 %v9012
        %9280 = vmatprep.subr.mxu0 0.0
        %9281 = vmatpush1.msra.mxu0 %v9013
        %9282 = vmatprep.subr.mxu0 0.0
        %9283 = vmatpush1.msra.mxu0 %v9014
        %9284 = vmatprep.subr.mxu0 0.0
        %9285 = vmatpush1.msra.mxu0 %v9015
        %9286 = vmatprep.subr.mxu0 0.0
        %9287 = vmatpush1.msra.mxu0 %v9016
        %9288 = vmatprep.subr.mxu0 0.0
        %9289 = vmatpush1.msra.mxu0 %v9017
        %9290 = vmatprep.subr.mxu0 0.0
        %9291 = vmatpush1.msra.mxu0 %v9018
        %9292 = vmatprep.subr.mxu0 0.0
        %9293 = vmatpush1.msra.mxu0 %v9019
        %9294 = vmatprep.subr.mxu0 0.0
        %9295 = vmatpush1.msra.mxu0 %v9020
        %9296 = vmatprep.subr.mxu0 0.0
        %9297 = vmatpush1.msra.mxu0 %v9021
        %9298 = vmatprep.subr.mxu0 0.0
        %9299 = vmatpush1.msra.mxu0 %v9022
        %9300 = vmatprep.subr.mxu0 0.0
        %9301 = vmatpush1.msra.mxu0 %v9023
        %9302 = vmatprep.subr.mxu0 0.0
        %9303 = vmatpush1.msra.mxu0 %v9024
        %9304 = vmatprep.subr.mxu0 0.0
        %9305 = vmatpush1.msra.mxu0 %v9025
        %9306 = vmatprep.subr.mxu0 0.0
        %9307 = vmatpush1.msra.mxu0 %v9026
        %9308 = vmatprep.subr.mxu0 0.0
        %9309 = vmatpush1.msra.mxu0 %v9027
        %9310 = vmatprep.subr.mxu0 0.0
        %9311 = vmatpush1.msra.mxu0 %v9028
        %9312 = vmatprep.subr.mxu0 0.0
        %9313 = vmatpush1.msra.mxu0 %v9029
        %9314 = vmatprep.subr.mxu0 0.0
        %9315 = vmatpush1.msra.mxu0 %v9030
        %9316 = vmatprep.subr.mxu0 0.0
        %9317 = vmatpush1.msra.mxu0 %v9031
        %9318 = vmatprep.subr.mxu0 0.0
        %9319 = vmatpush1.msra.mxu0 %v9032
        %9320 = vmatprep.subr.mxu0 0.0
        %9321 = vmatpush1.msra.mxu0 %v9033
        %9322 = vmatprep.subr.mxu0 0.0
        %9323 = vmatpush1.msra.mxu0 %v9034
        %9324 = vmatprep.subr.mxu0 0.0
        %9325 = vmatpush1.msra.mxu0 %v9035
        %9326 = vmatprep.subr.mxu0 0.0
        %9327 = vmatpush1.msra.mxu0 %v9036
        %9328 = vmatprep.subr.mxu0 0.0
        %9329 = vmatpush1.msra.mxu0 %v9037
        %9330 = vmatprep.subr.mxu0 0.0
        %9331 = vmatpush1.msra.mxu0 %v9038
        %9332 = vmatprep.subr.mxu0 0.0
        %9333 = vmatpush1.msra.mxu0 %v9039
        %9334 = vmatprep.subr.mxu0 0.0
        %9335 = vmatpush1.msra.mxu0 %v9040
        %9336 = vmatprep.mubr.f32.mxu0 %v8994
        %9337 = vmatmul.mubr.f32.gmra.mrb[0].mxu0 %v8993
        %v9338 = vpop.f32.mrb[0].mxu0
        %v9339 = vadd.f32 %v9270, %v9338
        %v9340 = vpop.f32.mrb[0].mxu0
        %9341 = vdwg.mxu0
        %9342 = vmatprep.subr.mxu0 0.0
        %9343 = vmatpush1.msra.mxu0 %v9041
        %9344 = vmatprep.subr.mxu0 0.0
        %9345 = vmatpush1.msra.mxu0 %v9042
        %9346 = vmatprep.subr.mxu0 0.0
        %9347 = vmatpush1.msra.mxu0 %v9043
        %9348 = vmatprep.subr.mxu0 0.0
        %9349 = vmatpush1.msra.mxu0 %v9044
        %9350 = vmatprep.subr.mxu0 0.0
        %9351 = vmatpush1.msra.mxu0 %v9045
        %9352 = vmatprep.subr.mxu0 0.0
        %9353 = vmatpush1.msra.mxu0 %v9046
        %9354 = vmatprep.subr.mxu0 0.0
        %9355 = vmatpush1.msra.mxu0 %v9047
        %9356 = vmatprep.subr.mxu0 0.0
        %9357 = vmatpush1.msra.mxu0 %v9048
        %9358 = vmatprep.subr.mxu0 0.0
        %9359 = vmatpush1.msra.mxu0 %v9049
        %9360 = vmatprep.subr.mxu0 0.0
        %9361 = vmatpush1.msra.mxu0 %v9050
        %9362 = vmatprep.subr.mxu0 0.0
        %9363 = vmatpush1.msra.mxu0 %v9051
        %9364 = vmatprep.subr.mxu0 0.0
        %9365 = vmatpush1.msra.mxu0 %v9052
        %9366 = vmatprep.subr.mxu0 0.0
        %9367 = vmatpush1.msra.mxu0 %v9053
        %9368 = vmatprep.subr.mxu0 0.0
        %9369 = vmatpush1.msra.mxu0 %v9054
        %9370 = vmatprep.subr.mxu0 0.0
        %9371 = vmatpush1.msra.mxu0 %v9055
        %9372 = vmatprep.subr.mxu0 0.0
        %9373 = vmatpush1.msra.mxu0 %v9056
        %9374 = vmatprep.subr.mxu0 0.0
        %9375 = vmatpush1.msra.mxu0 %v9057
        %9376 = vmatprep.subr.mxu0 0.0
        %9377 = vmatpush1.msra.mxu0 %v9058
        %9378 = vmatprep.subr.mxu0 0.0
        %9379 = vmatpush1.msra.mxu0 %v9059
        %9380 = vmatprep.subr.mxu0 0.0
        %9381 = vmatpush1.msra.mxu0 %v9060
        %9382 = vmatprep.subr.mxu0 0.0
        %9383 = vmatpush1.msra.mxu0 %v9061
        %9384 = vmatprep.subr.mxu0 0.0
        %9385 = vmatpush1.msra.mxu0 %v9062
        %9386 = vmatprep.subr.mxu0 0.0
        %9387 = vmatpush1.msra.mxu0 %v9063
        %9388 = vmatprep.subr.mxu0 0.0
        %9389 = vmatpush1.msra.mxu0 %v9064
        %9390 = vmatprep.subr.mxu0 0.0
        %9391 = vmatpush1.msra.mxu0 %v9065
        %9392 = vmatprep.subr.mxu0 0.0
        %9393 = vmatpush1.msra.mxu0 %v9066
        %9394 = vmatprep.subr.mxu0 0.0
        %9395 = vmatpush1.msra.mxu0 %v9067
        %9396 = vmatprep.subr.mxu0 0.0
        %9397 = vmatpush1.msra.mxu0 %v9068
        %9398 = vmatprep.subr.mxu0 0.0
        %9399 = vmatpush1.msra.mxu0 %v9069
        %9400 = vmatprep.subr.mxu0 0.0
        %9401 = vmatpush1.msra.mxu0 %v9070
        %9402 = vmatprep.subr.mxu0 0.0
        %9403 = vmatpush1.msra.mxu0 %v9071
        %9404 = vmatprep.subr.mxu0 0.0
        %9405 = vmatpush1.msra.mxu0 %v9072
        %9406 = vmatprep.mubr.f32.mxu0 %v8996
        %9407 = vmatmul.mubr.f32.gmra.mrb[0].mxu0 %v8995
        %v9408 = vpop.f32.mrb[0].mxu0
        %v9409 = vadd.f32 %v9339, %v9408
        %v9410 = vpop.f32.mrb[0].mxu0
        %9411 = vdwg.mxu0
        %9412 = vmatprep.subr.mxu0 0.0
        %9413 = vmatpush1.msra.mxu0 %v9073
        %9414 = vmatprep.subr.mxu0 0.0
        %9415 = vmatpush1.msra.mxu0 %v9074
        %9416 = vmatprep.subr.mxu0 0.0
        %9417 = vmatpush1.msra.mxu0 %v9075
        %9418 = vmatprep.subr.mxu0 0.0
        %9419 = vmatpush1.msra.mxu0 %v9076
        %9420 = vmatprep.subr.mxu0 0.0
        %9421 = vmatpush1.msra.mxu0 %v9077
        %9422 = vmatprep.subr.mxu0 0.0
        %9423 = vmatpush1.msra.mxu0 %v9078
        %9424 = vmatprep.subr.mxu0 0.0
        %9425 = vmatpush1.msra.mxu0 %v9079
        %9426 = vmatprep.subr.mxu0 0.0
        %9427 = vmatpush1.msra.mxu0 %v9080
        %9428 = vmatprep.subr.mxu0 0.0
        %9429 = vmatpush1.msra.mxu0 %v9081
        %9430 = vmatprep.subr.mxu0 0.0
        %9431 = vmatpush1.msra.mxu0 %v9082
        %9432 = vmatprep.subr.mxu0 0.0
        %9433 = vmatpush1.msra.mxu0 %v9083
        %9434 = vmatprep.subr.mxu0 0.0
        %9435 = vmatpush1.msra.mxu0 %v9084
        %9436 = vmatprep.subr.mxu0 0.0
        %9437 = vmatpush1.msra.mxu0 %v9085
        %9438 = vmatprep.subr.mxu0 0.0
        %9439 = vmatpush1.msra.mxu0 %v9086
        %9440 = vmatprep.subr.mxu0 0.0
        %9441 = vmatpush1.msra.mxu0 %v9087
        %9442 = vmatprep.subr.mxu0 0.0
        %9443 = vmatpush1.msra.mxu0 %v9088
        %9444 = vmatprep.subr.mxu0 0.0
        %9445 = vmatpush1.msra.mxu0 %v9089
        %9446 = vmatprep.subr.mxu0 0.0
        %9447 = vmatpush1.msra.mxu0 %v9090
        %9448 = vmatprep.subr.mxu0 0.0
        %9449 = vmatpush1.msra.mxu0 %v9091
        %9450 = vmatprep.subr.mxu0 0.0
        %9451 = vmatpush1.msra.mxu0 %v9092
        %9452 = vmatprep.subr.mxu0 0.0
        %9453 = vmatpush1.msra.mxu0 %v9093
        %9454 = vmatprep.subr.mxu0 0.0
        %9455 = vmatpush1.msra.mxu0 %v9094
        %9456 = vmatprep.subr.mxu0 0.0
        %9457 = vmatpush1.msra.mxu0 %v9095
        %9458 = vmatprep.subr.mxu0 0.0
        %9459 = vmatpush1.msra.mxu0 %v9096
        %9460 = vmatprep.subr.mxu0 0.0
        %9461 = vmatpush1.msra.mxu0 %v9097
        %9462 = vmatprep.subr.mxu0 0.0
        %9463 = vmatpush1.msra.mxu0 %v9098
        %9464 = vmatprep.subr.mxu0 0.0
        %9465 = vmatpush1.msra.mxu0 %v9099
        %9466 = vmatprep.subr.mxu0 0.0
        %9467 = vmatpush1.msra.mxu0 %v9100
        %9468 = vmatprep.subr.mxu0 0.0
        %9469 = vmatpush1.msra.mxu0 %v9101
        %9470 = vmatprep.subr.mxu0 0.0
        %9471 = vmatpush1.msra.mxu0 %v9102
        %9472 = vmatprep.subr.mxu0 0.0
        %9473 = vmatpush1.msra.mxu0 %v9103
        %9474 = vmatprep.subr.mxu0 0.0
        %9475 = vmatpush1.msra.mxu0 %v9104
        %9476 = vmatprep.mubr.f32.mxu0 %v8998
        %9477 = vmatmul.mubr.f32.gmra.mrb[0].mxu0 %v8997
        %v9478 = vpop.f32.mrb[0].mxu0
        %v9479 = vadd.f32 %v9409, %v9478
        %v9480 = vpop.f32.mrb[0].mxu0
        %9481 = vdwg.mxu0
        %9482 = vmatprep.subr.mxu0 0.0
        %9483 = vmatpush1.msra.mxu0 %v9105
        %9484 = vmatprep.subr.mxu0 0.0
        %9485 = vmatpush1.msra.mxu0 %v9106
        %9486 = vmatprep.subr.mxu0 0.0
        %9487 = vmatpush1.msra.mxu0 %v9107
        %9488 = vmatprep.subr.mxu0 0.0
        %9489 = vmatpush1.msra.mxu0 %v9108
        %9490 = vmatprep.subr.mxu0 0.0
        %9491 = vmatpush1.msra.mxu0 %v9109
        %9492 = vmatprep.subr.mxu0 0.0
        %9493 = vmatpush1.msra.mxu0 %v9110
        %9494 = vmatprep.subr.mxu0 0.0
        %9495 = vmatpush1.msra.mxu0 %v9111
        %9496 = vmatprep.subr.mxu0 0.0
        %9497 = vmatpush1.msra.mxu0 %v9112
        %9498 = vmatprep.subr.mxu0 0.0
        %9499 = vmatpush1.msra.mxu0 %v9113
        %9500 = vmatprep.subr.mxu0 0.0
        %9501 = vmatpush1.msra.mxu0 %v9114
        %9502 = vmatprep.subr.mxu0 0.0
        %9503 = vmatpush1.msra.mxu0 %v9115
        %9504 = vmatprep.subr.mxu0 0.0
        %9505 = vmatpush1.msra.mxu0 %v9116
        %9506 = vmatprep.subr.mxu0 0.0
        %9507 = vmatpush1.msra.mxu0 %v9117
        %9508 = vmatprep.subr.mxu0 0.0
        %9509 = vmatpush1.msra.mxu0 %v9118
        %9510 = vmatprep.subr.mxu0 0.0
        %9511 = vmatpush1.msra.mxu0 %v9119
        %9512 = vmatprep.subr.mxu0 0.0
        %9513 = vmatpush1.msra.mxu0 %v9120
        %9514 = vmatprep.subr.mxu0 0.0
        %9515 = vmatpush1.msra.mxu0 %v9121
        %9516 = vmatprep.subr.mxu0 0.0
        %9517 = vmatpush1.msra.mxu0 %v9122
        %9518 = vmatprep.subr.mxu0 0.0
        %9519 = vmatpush1.msra.mxu0 %v9123
        %9520 = vmatprep.subr.mxu0 0.0
        %9521 = vmatpush1.msra.mxu0 %v9124
        %9522 = vmatprep.subr.mxu0 0.0
        %9523 = vmatpush1.msra.mxu0 %v9125
        %9524 = vmatprep.subr.mxu0 0.0
        %9525 = vmatpush1.msra.mxu0 %v9126
        %9526 = vmatprep.subr.mxu0 0.0
        %9527 = vmatpush1.msra.mxu0 %v9127
        %9528 = vmatprep.subr.mxu0 0.0
        %9529 = vmatpush1.msra.mxu0 %v9128
        %9530 = vmatprep.subr.mxu0 0.0
        %9531 = vmatpush1.msra.mxu0 %v9129
        %9532 = vmatprep.subr.mxu0 0.0
        %9533 = vmatpush1.msra.mxu0 %v9130
        %9534 = vmatprep.subr.mxu0 0.0
        %9535 = vmatpush1.msra.mxu0 %v9131
        %9536 = vmatprep.subr.mxu0 0.0
        %9537 = vmatpush1.msra.mxu0 %v9132
        %9538 = vmatprep.subr.mxu0 0.0
        %9539 = vmatpush1.msra.mxu0 %v9133
        %9540 = vmatprep.subr.mxu0 0.0
        %9541 = vmatpush1.msra.mxu0 %v9134
        %9542 = vmatprep.subr.mxu0 0.0
        %9543 = vmatpush1.msra.mxu0 %v9135
        %9544 = vmatprep.subr.mxu0 0.0
        %9545 = vmatpush1.msra.mxu0 %v9136
        %9546 = vmatprep.mubr.f32.mxu0 %v9000
        %9547 = vmatmul.mubr.f32.gmra.mrb[0].mxu0 %v8999
        %v9548 = vpop.f32.mrb[0].mxu0
        %v9549 = vadd.f32 %v9479, %v9548
        %v9550 = vpop.f32.mrb[0].mxu0
        %9551 = vdwg.mxu0
        %9552 = vmatprep.subr.mxu0 0.0
        %9553 = vmatpush1.msra.mxu0 %v9137
        %9554 = vmatprep.subr.mxu0 0.0
        %9555 = vmatpush1.msra.mxu0 %v9138
        %9556 = vmatprep.subr.mxu0 0.0
        %9557 = vmatpush1.msra.mxu0 %v9139
        %9558 = vmatprep.subr.mxu0 0.0
        %9559 = vmatpush1.msra.mxu0 %v9140
        %9560 = vmatprep.subr.mxu0 0.0
        %9561 = vmatpush1.msra.mxu0 %v9141
        %9562 = vmatprep.subr.mxu0 0.0
        %9563 = vmatpush1.msra.mxu0 %v9142
        %9564 = vmatprep.subr.mxu0 0.0
        %9565 = vmatpush1.msra.mxu0 %v9143
        %9566 = vmatprep.subr.mxu0 0.0
        %9567 = vmatpush1.msra.mxu0 %v9144
        %9568 = vmatprep.subr.mxu0 0.0
        %9569 = vmatpush1.msra.mxu0 %v9145
        %9570 = vmatprep.subr.mxu0 0.0
        %9571 = vmatpush1.msra.mxu0 %v9146
        %9572 = vmatprep.subr.mxu0 0.0
        %9573 = vmatpush1.msra.mxu0 %v9147
        %9574 = vmatprep.subr.mxu0 0.0
        %9575 = vmatpush1.msra.mxu0 %v9148
        %9576 = vmatprep.subr.mxu0 0.0
        %9577 = vmatpush1.msra.mxu0 %v9149
        %9578 = vmatprep.subr.mxu0 0.0
        %9579 = vmatpush1.msra.mxu0 %v9150
        %9580 = vmatprep.subr.mxu0 0.0
        %9581 = vmatpush1.msra.mxu0 %v9151
        %9582 = vmatprep.subr.mxu0 0.0
        %9583 = vmatpush1.msra.mxu0 %v9152
        %9584 = vmatprep.subr.mxu0 0.0
        %9585 = vmatpush1.msra.mxu0 %v9153
        %9586 = vmatprep.subr.mxu0 0.0
        %9587 = vmatpush1.msra.mxu0 %v9154
        %9588 = vmatprep.subr.mxu0 0.0
        %9589 = vmatpush1.msra.mxu0 %v9155
        %9590 = vmatprep.subr.mxu0 0.0
        %9591 = vmatpush1.msra.mxu0 %v9156
        %9592 = vmatprep.subr.mxu0 0.0
        %9593 = vmatpush1.msra.mxu0 %v9157
        %9594 = vmatprep.subr.mxu0 0.0
        %9595 = vmatpush1.msra.mxu0 %v9158
        %9596 = vmatprep.subr.mxu0 0.0
        %9597 = vmatpush1.msra.mxu0 %v9159
        %9598 = vmatprep.subr.mxu0 0.0
        %9599 = vmatpush1.msra.mxu0 %v9160
        %9600 = vmatprep.subr.mxu0 0.0
        %9601 = vmatpush1.msra.mxu0 %v9161
        %9602 = vmatprep.subr.mxu0 0.0
        %9603 = vmatpush1.msra.mxu0 %v9162
        %9604 = vmatprep.subr.mxu0 0.0
        %9605 = vmatpush1.msra.mxu0 %v9163
        %9606 = vmatprep.subr.mxu0 0.0
        %9607 = vmatpush1.msra.mxu0 %v9164
        %9608 = vmatprep.subr.mxu0 0.0
        %9609 = vmatpush1.msra.mxu0 %v9165
        %9610 = vmatprep.subr.mxu0 0.0
        %9611 = vmatpush1.msra.mxu0 %v9166
        %9612 = vmatprep.subr.mxu0 0.0
        %9613 = vmatpush1.msra.mxu0 %v9167
        %9614 = vmatprep.subr.mxu0 0.0
        %9615 = vmatpush1.msra.mxu0 %v9168
        %9616 = vmatprep.mubr.f32.mxu0 %v9002
        %9617 = vmatmul.mubr.f32.gmra.mrb[0].mxu0 %v9001
        %v9618 = vpop.f32.mrb[0].mxu0
        %v9619 = vadd.f32 %v9549, %v9618
        %v9620 = vpop.f32.mrb[0].mxu0
        %9621 = vdwg.mxu0
        %9622 = vmatprep.subr.mxu0 0.0
        %9623 = vmatpush1.msra.mxu0 %v9169
        %9624 = vmatprep.subr.mxu0 0.0
        %9625 = vmatpush1.msra.mxu0 %v9170
        %9626 = vmatprep.subr.mxu0 0.0
        %9627 = vmatpush1.msra.mxu0 %v9171
        %9628 = vmatprep.subr.mxu0 0.0
        %9629 = vmatpush1.msra.mxu0 %v9172
        %9630 = vmatprep.subr.mxu0 0.0
        %9631 = vmatpush1.msra.mxu0 %v9173
        %9632 = vmatprep.subr.mxu0 0.0
        %9633 = vmatpush1.msra.mxu0 %v9174
        %9634 = vmatprep.subr.mxu0 0.0
        %9635 = vmatpush1.msra.mxu0 %v9175
        %9636 = vmatprep.subr.mxu0 0.0
        %9637 = vmatpush1.msra.mxu0 %v9176
        %9638 = vmatprep.subr.mxu0 0.0
        %9639 = vmatpush1.msra.mxu0 %v9177
        %9640 = vmatprep.subr.mxu0 0.0
        %9641 = vmatpush1.msra.mxu0 %v9178
        %9642 = vmatprep.subr.mxu0 0.0
        %9643 = vmatpush1.msra.mxu0 %v9179
        %9644 = vmatprep.subr.mxu0 0.0
        %9645 = vmatpush1.msra.mxu0 %v9180
        %9646 = vmatprep.subr.mxu0 0.0
        %9647 = vmatpush1.msra.mxu0 %v9181
        %9648 = vmatprep.subr.mxu0 0.0
        %9649 = vmatpush1.msra.mxu0 %v9182
        %9650 = vmatprep.subr.mxu0 0.0
        %9651 = vmatpush1.msra.mxu0 %v9183
        %9652 = vmatprep.subr.mxu0 0.0
        %9653 = vmatpush1.msra.mxu0 %v9184
        %9654 = vmatprep.subr.mxu0 0.0
        %9655 = vmatpush1.msra.mxu0 %v9185
        %9656 = vmatprep.subr.mxu0 0.0
        %9657 = vmatpush1.msra.mxu0 %v9186
        %9658 = vmatprep.subr.mxu0 0.0
        %9659 = vmatpush1.msra.mxu0 %v9187
        %9660 = vmatprep.subr.mxu0 0.0
        %9661 = vmatpush1.msra.mxu0 %v9188
        %9662 = vmatprep.subr.mxu0 0.0
        %9663 = vmatpush1.msra.mxu0 %v9189
        %9664 = vmatprep.subr.mxu0 0.0
        %9665 = vmatpush1.msra.mxu0 %v9190
        %9666 = vmatprep.subr.mxu0 0.0
        %9667 = vmatpush1.msra.mxu0 %v9191
        %9668 = vmatprep.subr.mxu0 0.0
        %9669 = vmatpush1.msra.mxu0 %v9192
        %9670 = vmatprep.subr.mxu0 0.0
        %9671 = vmatpush1.msra.mxu0 %v9193
        %9672 = vmatprep.subr.mxu0 0.0
        %9673 = vmatpush1.msra.mxu0 %v9194
        %9674 = vmatprep.subr.mxu0 0.0
        %9675 = vmatpush1.msra.mxu0 %v9195
        %9676 = vmatprep.subr.mxu0 0.0
        %9677 = vmatpush1.msra.mxu0 %v9196
        %9678 = vmatprep.subr.mxu0 0.0
        %9679 = vmatpush1.msra.mxu0 %v9197
        %9680 = vmatprep.subr.mxu0 0.0
        %9681 = vmatpush1.msra.mxu0 %v9198
        %9682 = vmatprep.subr.mxu0 0.0
        %9683 = vmatpush1.msra.mxu0 %v9199
        %9684 = vmatprep.subr.mxu0 0.0
        %9685 = vmatpush1.msra.mxu0 %v9200
        %9686 = vmatprep.mubr.f32.mxu0 %v9004
        %9687 = vmatmul.mubr.f32.gmra.mrb[0].mxu0 %v9003
        %v9688 = vpop.f32.mrb[0].mxu0
        %v9689 = vadd.f32 %v9619, %v9688
        %v9690 = vpop.f32.mrb[0].mxu0
        %9691 = vdwg.mxu0
        %9692 = vmatprep.subr.mxu0 0.0
        %9693 = vmatpush1.msra.mxu0 %v9201
        %9694 = vmatprep.subr.mxu0 0.0
        %9695 = vmatpush1.msra.mxu0 %v9202
        %9696 = vmatprep.subr.mxu0 0.0
        %9697 = vmatpush1.msra.mxu0 %v9203
        %9698 = vmatprep.subr.mxu0 0.0
        %9699 = vmatpush1.msra.mxu0 %v9204
        %9700 = vmatprep.subr.mxu0 0.0
        %9701 = vmatpush1.msra.mxu0 %v9205
        %9702 = vmatprep.subr.mxu0 0.0
        %9703 = vmatpush1.msra.mxu0 %v9206
        %9704 = vmatprep.subr.mxu0 0.0
        %9705 = vmatpush1.msra.mxu0 %v9207
        %9706 = vmatprep.subr.mxu0 0.0
        %9707 = vmatpush1.msra.mxu0 %v9208
        %9708 = vmatprep.subr.mxu0 0.0
        %9709 = vmatpush1.msra.mxu0 %v9209
        %9710 = vmatprep.subr.mxu0 0.0
        %9711 = vmatpush1.msra.mxu0 %v9210
        %9712 = vmatprep.subr.mxu0 0.0
        %9713 = vmatpush1.msra.mxu0 %v9211
        %9714 = vmatprep.subr.mxu0 0.0
        %9715 = vmatpush1.msra.mxu0 %v9212
        %9716 = vmatprep.subr.mxu0 0.0
        %9717 = vmatpush1.msra.mxu0 %v9213
        %9718 = vmatprep.subr.mxu0 0.0
        %9719 = vmatpush1.msra.mxu0 %v9214
        %9720 = vmatprep.subr.mxu0 0.0
        %9721 = vmatpush1.msra.mxu0 %v9215
        %9722 = vmatprep.subr.mxu0 0.0
        %9723 = vmatpush1.msra.mxu0 %v9216
        %9724 = vmatprep.subr.mxu0 0.0
        %9725 = vmatpush1.msra.mxu0 %v9217
        %9726 = vmatprep.subr.mxu0 0.0
        %9727 = vmatpush1.msra.mxu0 %v9218
        %9728 = vmatprep.subr.mxu0 0.0
        %9729 = vmatpush1.msra.mxu0 %v9219
        %9730 = vmatprep.subr.mxu0 0.0
        %9731 = vmatpush1.msra.mxu0 %v9220
        %9732 = vmatprep.subr.mxu0 0.0
        %9733 = vmatpush1.msra.mxu0 %v9221
        %9734 = vmatprep.subr.mxu0 0.0
        %9735 = vmatpush1.msra.mxu0 %v9222
        %9736 = vmatprep.subr.mxu0 0.0
        %9737 = vmatpush1.msra.mxu0 %v9223
        %9738 = vmatprep.subr.mxu0 0.0
        %9739 = vmatpush1.msra.mxu0 %v9224
        %9740 = vmatprep.subr.mxu0 0.0
        %9741 = vmatpush1.msra.mxu0 %v9225
        %9742 = vmatprep.subr.mxu0 0.0
        %9743 = vmatpush1.msra.mxu0 %v9226
        %9744 = vmatprep.subr.mxu0 0.0
        %9745 = vmatpush1.msra.mxu0 %v9227
        %9746 = vmatprep.subr.mxu0 0.0
        %9747 = vmatpush1.msra.mxu0 %v9228
        %9748 = vmatprep.subr.mxu0 0.0
        %9749 = vmatpush1.msra.mxu0 %v9229
        %9750 = vmatprep.subr.mxu0 0.0
        %9751 = vmatpush1.msra.mxu0 %v9230
        %9752 = vmatprep.subr.mxu0 0.0
        %9753 = vmatpush1.msra.mxu0 %v9231
        %9754 = vmatprep.subr.mxu0 0.0
        %9755 = vmatpush1.msra.mxu0 %v9232
        %9756 = vmatprep.mubr.f32.mxu0 %v9006
        %9757 = vmatmul.mubr.f32.gmra.mrb[0].mxu0 %v9005
        %v9758 = vpop.f32.mrb[0].mxu0
        %v9759 = vadd.f32 %v9689, %v9758
        %v9760 = vpop.f32.mrb[0].mxu0
        %9761 = vdwg.mxu0
        %9762 = vmatprep.subr.mxu0 0.0
        %9763 = vmatpush1.msra.mxu0 %v9233
        %9764 = vmatprep.subr.mxu0 0.0
        %9765 = vmatpush1.msra.mxu0 %v9234
        %9766 = vmatprep.subr.mxu0 0.0
        %9767 = vmatpush1.msra.mxu0 %v9235
        %9768 = vmatprep.subr.mxu0 0.0
        %9769 = vmatpush1.msra.mxu0 %v9236
        %9770 = vmatprep.subr.mxu0 0.0
        %9771 = vmatpush1.msra.mxu0 %v9237
        %9772 = vmatprep.subr.mxu0 0.0
        %9773 = vmatpush1.msra.mxu0 %v9238
        %9774 = vmatprep.subr.mxu0 0.0
        %9775 = vmatpush1.msra.mxu0 %v9239
        %9776 = vmatprep.subr.mxu0 0.0
        %9777 = vmatpush1.msra.mxu0 %v9240
        %9778 = vmatprep.subr.mxu0 0.0
        %9779 = vmatpush1.msra.mxu0 %v9241
        %9780 = vmatprep.subr.mxu0 0.0
        %9781 = vmatpush1.msra.mxu0 %v9242
        %9782 = vmatprep.subr.mxu0 0.0
        %9783 = vmatpush1.msra.mxu0 %v9243
        %9784 = vmatprep.subr.mxu0 0.0
        %9785 = vmatpush1.msra.mxu0 %v9244
        %9786 = vmatprep.subr.mxu0 0.0
        %9787 = vmatpush1.msra.mxu0 %v9245
        %9788 = vmatprep.subr.mxu0 0.0
        %9789 = vmatpush1.msra.mxu0 %v9246
        %9790 = vmatprep.subr.mxu0 0.0
        %9791 = vmatpush1.msra.mxu0 %v9247
        %9792 = vmatprep.subr.mxu0 0.0
        %9793 = vmatpush1.msra.mxu0 %v9248
        %9794 = vmatprep.subr.mxu0 0.0
        %9795 = vmatpush1.msra.mxu0 %v9249
        %9796 = vmatprep.subr.mxu0 0.0
        %9797 = vmatpush1.msra.mxu0 %v9250
        %9798 = vmatprep.subr.mxu0 0.0
        %9799 = vmatpush1.msra.mxu0 %v9251
        %9800 = vmatprep.subr.mxu0 0.0
        %9801 = vmatpush1.msra.mxu0 %v9252
        %9802 = vmatprep.subr.mxu0 0.0
        %9803 = vmatpush1.msra.mxu0 %v9253
        %9804 = vmatprep.subr.mxu0 0.0
        %9805 = vmatpush1.msra.mxu0 %v9254
        %9806 = vmatprep.subr.mxu0 0.0
        %9807 = vmatpush1.msra.mxu0 %v9255
        %9808 = vmatprep.subr.mxu0 0.0
        %9809 = vmatpush1.msra.mxu0 %v9256
        %9810 = vmatprep.subr.mxu0 0.0
        %9811 = vmatpush1.msra.mxu0 %v9257
        %9812 = vmatprep.subr.mxu0 0.0
        %9813 = vmatpush1.msra.mxu0 %v9258
        %9814 = vmatprep.subr.mxu0 0.0
        %9815 = vmatpush1.msra.mxu0 %v9259
        %9816 = vmatprep.subr.mxu0 0.0
        %9817 = vmatpush1.msra.mxu0 %v9260
        %9818 = vmatprep.subr.mxu0 0.0
        %9819 = vmatpush1.msra.mxu0 %v9261
        %9820 = vmatprep.subr.mxu0 0.0
        %9821 = vmatpush1.msra.mxu0 %v9262
        %9822 = vmatprep.subr.mxu0 0.0
        %9823 = vmatpush1.msra.mxu0 %v9263
        %9824 = vmatprep.subr.mxu0 0.0
        %9825 = vmatpush1.msra.mxu0 %v9264
        %9826 = vmatprep.mubr.f32.mxu0 %v9008
        %9827 = vmatmul.mubr.f32.gmra.mrb[0].mxu0 %v9007
        %v9828 = vpop.f32.mrb[0].mxu0
        %v9829 = vadd.f32 %v9759, %v9828
        %v9830 = vpop.f32.mrb[0].mxu0
        %9831 = vdwg.mxu0
        %v9832 = vtanh.pop %v9829
        %v9833 = vld [vmem:[%s9] sm:$0xff]
        %v9834 = vld [vmem:[%s9 + $0x8] sm:$0xff]
        %v9835 = vld [vmem:[%s9 + $0x10] sm:$0xff]
        %v9836 = vld [vmem:[%s9 + $0x18] sm:$0xff]
        %v9837 = vld [vmem:[%s9 + $0x20] sm:$0xff]
        %v9838 = vld [vmem:[%s9 + $0x28] sm:$0xff]
        %v9839 = vld [vmem:[%s9 + $0x30] sm:$0xff]
        %v9840 = vld [vmem:[%s9 + $0x38] sm:$0xff]
        %v9841 = vld [vmem:[%s9 + $0x40] sm:$0xff]
        %v9842 = vld [vmem:[%s9 + $0x48] sm:$0xff]
        %v9843 = vld [vmem:[%s9 + $0x50] sm:$0xff]
        %v9844 = vld [vmem:[%s9 + $0x58] sm:$0xff]
        %v9845 = vld [vmem:[%s9 + $0x60] sm:$0xf]
        %v9846 = vld [vmem:[%s10] sm:$0x1]
        %v9848 = vlaneseq
        %v9849 = vshrl.u32 %v9848, 7
        %v9850 = vsub.s32 0, %v9849
        %v9851 = vrot.slane %v9846, %v9850
        %vm9853 = vcmask 818176
        %v9855 = vsel %vm9853, %v9832, 0
        %vm9857 = vcmask 1043456
        %v9859 = vsel %vm9857, %v9845, 0
        %9861 = vmatprep.subr.mxu0 0.0
        %9862 = vmatpush1.msra.mxu0 %v9833
        %9863 = vmatprep.subr.mxu0 0.0
        %9864 = vmatpush1.msra.mxu0 %v9834
        %9865 = vmatprep.subr.mxu0 0.0
        %9866 = vmatpush1.msra.mxu0 %v9835
        %9867 = vmatprep.subr.mxu0 0.0
        %9868 = vmatpush1.msra.mxu0 %v9836
        %9869 = vmatprep.subr.mxu0 0.0
        %9870 = vmatpush1.msra.mxu0 %v9837
        %9871 = vmatprep.subr.mxu0 0.0
        %9872 = vmatpush1.msra.mxu0 %v9838
        %9873 = vmatprep.subr.mxu0 0.0
        %9874 = vmatpush1.msra.mxu0 %v9839
        %9875 = vmatprep.subr.mxu0 0.0
        %9876 = vmatpush1.msra.mxu0 %v9840
        %9877 = vmatprep.subr.mxu0 0.0
        %9878 = vmatpush1.msra.mxu0 %v9841
        %9879 = vmatprep.subr.mxu0 0.0
        %9880 = vmatpush1.msra.mxu0 %v9842
        %9881 = vmatprep.subr.mxu0 0.0
        %9882 = vmatpush1.msra.mxu0 %v9843
        %9883 = vmatprep.subr.mxu0 0.0
        %9884 = vmatpush1.msra.mxu0 %v9844
        %9885 = vmatprep.subr.mxu0 0.0
        %9886 = vmatpush1.msra.mxu0 %v9859
        %9887 = vmatprep.subr.mxu0 0.0
        %9888 = vmatpush1.msra.mxu0 0.0
        %9889 = vmatprep.subr.mxu0 0.0
        %9890 = vmatpush1.msra.mxu0 0.0
        %9891 = vmatprep.subr.mxu0 0.0
        %9892 = vmatpush1.msra.mxu0 0.0
        %9893 = vmatprep.subr.mxu0 0.0
        %9894 = vmatpush1.msra.mxu0 0.0
        %9895 = vmatprep.subr.mxu0 0.0
        %9896 = vmatpush1.msra.mxu0 0.0
        %9897 = vmatprep.subr.mxu0 0.0
        %9898 = vmatpush1.msra.mxu0 0.0
        %9899 = vmatprep.subr.mxu0 0.0
        %9900 = vmatpush1.msra.mxu0 0.0
        %9901 = vmatprep.subr.mxu0 0.0
        %9902 = vmatpush1.msra.mxu0 0.0
        %9903 = vmatprep.subr.mxu0 0.0
        %9904 = vmatpush1.msra.mxu0 0.0
        %9905 = vmatprep.subr.mxu0 0.0
        %9906 = vmatpush1.msra.mxu0 0.0
        %9907 = vmatprep.subr.mxu0 0.0
        %9908 = vmatpush1.msra.mxu0 0.0
        %9909 = vmatprep.subr.mxu0 0.0
        %9910 = vmatpush1.msra.mxu0 0.0
        %9911 = vmatprep.subr.mxu0 0.0
        %9912 = vmatpush1.msra.mxu0 0.0
        %9913 = vmatprep.subr.mxu0 0.0
        %9914 = vmatpush1.msra.mxu0 0.0
        %9915 = vmatprep.subr.mxu0 0.0
        %9916 = vmatpush1.msra.mxu0 0.0
        %9917 = vmatprep.subr.mxu0 0.0
        %9918 = vmatpush1.msra.mxu0 0.0
        %9919 = vmatprep.subr.mxu0 0.0
        %9920 = vmatpush1.msra.mxu0 0.0
        %9921 = vmatprep.subr.mxu0 0.0
        %9922 = vmatpush1.msra.mxu0 0.0
        %9923 = vmatprep.subr.mxu0 0.0
        %9924 = vmatpush1.msra.mxu0 0.0
        %9925 = vmatprep.mubr.f32.mxu0 0.0
        %9926 = vmatmul.mubr.f32.gmra.mrb[0].mxu0 %v9855
        %v9927 = vpop.f32.mrb[0].mxu0
        %v9928 = vadd.f32 %v9851, %v9927
        %v9929 = vpop.f32.mrb[0].mxu0
        %9930 = vdwg.mxu0
        %v9931 = vtanh.pop %v9928
        %v9932 = vld [vmem:[%s11] sm:$0xff]
        %v9933 = vld [vmem:[%s11 + $0x8] sm:$0xff]
        %v9934 = vld [vmem:[%s11 + $0x10] sm:$0xff]
        %v9935 = vld [vmem:[%s11 + $0x18] sm:$0xff]
        %v9936 = vld [vmem:[%s11 + $0x20] sm:$0xff]
        %v9937 = vld [vmem:[%s11 + $0x28] sm:$0xff]
        %v9938 = vld [vmem:[%s11 + $0x30] sm:$0xff]
        %v9939 = vld [vmem:[%s11 + $0x38] sm:$0xff]
        %v9940 = vld [vmem:[%s11 + $0x40] sm:$0xff]
        %v9941 = vld [vmem:[%s11 + $0x48] sm:$0xff]
        %v9942 = vld [vmem:[%s11 + $0x50] sm:$0xff]
        %v9943 = vld [vmem:[%s11 + $0x58] sm:$0xff]
        %v9944 = vld [vmem:[%s11 + $0x60] sm:$0xf]
        %v9945 = vld [vmem:[%s12] sm:$0x1]
        %v9947 = vlaneseq
        %v9948 = vshrl.u32 %v9947, 7
        %v9949 = vsub.s32 0, %v9948
        %v9950 = vrot.slane %v9945, %v9949
        %v9953 = vsel %vm9853, %v9931, 0
        %v9956 = vsel %vm9857, %v9944, 0
        %9958 = vmatprep.subr.mxu0 0.0
        %9959 = vmatpush1.msra.mxu0 %v9932
        %9960 = vmatprep.subr.mxu0 0.0
        %9961 = vmatpush1.msra.mxu0 %v9933
        %9962 = vmatprep.subr.mxu0 0.0
        %9963 = vmatpush1.msra.mxu0 %v9934
        %9964 = vmatprep.subr.mxu0 0.0
        %9965 = vmatpush1.msra.mxu0 %v9935
        %9966 = vmatprep.subr.mxu0 0.0
        %9967 = vmatpush1.msra.mxu0 %v9936
        %9968 = vmatprep.subr.mxu0 0.0
        %9969 = vmatpush1.msra.mxu0 %v9937
        %9970 = vmatprep.subr.mxu0 0.0
        %9971 = vmatpush1.msra.mxu0 %v9938
        %9972 = vmatprep.subr.mxu0 0.0
        %9973 = vmatpush1.msra.mxu0 %v9939
        %9974 = vmatprep.subr.mxu0 0.0
        %9975 = vmatpush1.msra.mxu0 %v9940
        %9976 = vmatprep.subr.mxu0 0.0
        %9977 = vmatpush1.msra.mxu0 %v9941
        %9978 = vmatprep.subr.mxu0 0.0
        %9979 = vmatpush1.msra.mxu0 %v9942
        %9980 = vmatprep.subr.mxu0 0.0
        %9981 = vmatpush1.msra.mxu0 %v9943
        %9982 = vmatprep.subr.mxu0 0.0
        %9983 = vmatpush1.msra.mxu0 %v9956
        %9984 = vmatprep.subr.mxu0 0.0
        %9985 = vmatpush1.msra.mxu0 0.0
        %9986 = vmatprep.subr.mxu0 0.0
        %9987 = vmatpush1.msra.mxu0 0.0
        %9988 = vmatprep.subr.mxu0 0.0
        %9989 = vmatpush1.msra.mxu0 0.0
        %9990 = vmatprep.subr.mxu0 0.0
        %9991 = vmatpush1.msra.mxu0 0.0
        %9992 = vmatprep.subr.mxu0 0.0
        %9993 = vmatpush1.msra.mxu0 0.0
        %9994 = vmatprep.subr.mxu0 0.0
        %9995 = vmatpush1.msra.mxu0 0.0
        %9996 = vmatprep.subr.mxu0 0.0
        %9997 = vmatpush1.msra.mxu0 0.0
        %9998 = vmatprep.subr.mxu0 0.0
        %9999 = vmatpush1.msra.mxu0 0.0
        %10000 = vmatprep.subr.mxu0 0.0
        %10001 = vmatpush1.msra.mxu0 0.0
        %10002 = vmatprep.subr.mxu0 0.0
        %10003 = vmatpush1.msra.mxu0 0.0
        %10004 = vmatprep.subr.mxu0 0.0
        %10005 = vmatpush1.msra.mxu0 0.0
        %10006 = vmatprep.subr.mxu0 0.0
        %10007 = vmatpush1.msra.mxu0 0.0
        %10008 = vmatprep.subr.mxu0 0.0
        %10009 = vmatpush1.msra.mxu0 0.0
        %10010 = vmatprep.subr.mxu0 0.0
        %10011 = vmatpush1.msra.mxu0 0.0
        %10012 = vmatprep.subr.mxu0 0.0
        %10013 = vmatpush1.msra.mxu0 0.0
        %10014 = vmatprep.subr.mxu0 0.0
        %10015 = vmatpush1.msra.mxu0 0.0
        %10016 = vmatprep.subr.mxu0 0.0
        %10017 = vmatpush1.msra.mxu0 0.0
        %10018 = vmatprep.subr.mxu0 0.0
        %10019 = vmatpush1.msra.mxu0 0.0
        %10020 = vmatprep.subr.mxu0 0.0
        %10021 = vmatpush1.msra.mxu0 0.0
        %10022 = vmatprep.mubr.f32.mxu0 0.0
        %10023 = vmatmul.mubr.f32.gmra.mrb[0].mxu0 %v9953
        %v10024 = vpop.f32.mrb[0].mxu0
        %v10025 = vadd.f32 %v9950, %v10024
        %v10026 = vpop.f32.mrb[0].mxu0
        %10027 = vdwg.mxu0
        %10028 = vst [vmem:[%s980] sm:$0xff] %v10025
        %s10029 = sand.u32 %s313, 1
        %s10030 = scalar_lea.sflag [#allocation4], %s10029
        %s10031 = sand.u32 %s313, 1
        %s10032 = smul.addr %s10031, 8
        %s10033 = scalar_lea.vmem [#allocation3], %s10032
        // Predicated region
        $region111: #{tpu_custom_call.1} parent=105 // pred_check
          %p10034 = pneg %p323
        $region112: #{tpu_custom_call.1} parent=105 // pred_check_branch
          %10036 = sbr.rel (%p10034) target = $region114
        $region113: #{tpu_custom_call.1} parent=105 // pred_region
          %s10038 = ssub.s32 128, 128
          %10039 = vsyncadd %s10030, %s10038
          %s10040 = smul.addr %s27, 128
          %s10041 = scalar_lea.hbm %s13, %s10040
          %s10043 = sshll.u32 %s10033, 4
          %s10044 = int_to_ptr.vmem [resolvable:$true] %s10043
          %10046 = dma.vmem_to_hbm [thread:$0]  %s10044, 128, %s10041, %s10030
        $region114: #{tpu_custom_call.1} parent=105 // pred_fallthru
          _
      $region106: #{tpu_custom_call.1} parent=5 // pred_fallthru
        _
      %p10047 = scmp.le.s32.totalorder 2, %s22
      // Predicated region
      $region115: #{tpu_custom_call.1} parent=5 // pred_check
        %p10048 = pneg %p10047
      $region116: #{tpu_custom_call.1} parent=5 // pred_check_branch
        %10050 = sbr.rel (%p10048) target = $region118
      $region117: #{tpu_custom_call.1} parent=5 // pred_region
        %s10051 = ssub.s32 %s22, 2
        // Predicated region
        $region119: #{tpu_custom_call.1} parent=117 // pred_check
          %p10052 = pneg %p329
        $region120: #{tpu_custom_call.1} parent=117 // pred_check_branch
          %10054 = sbr.rel (%p10052) target = $region122
        $region121: #{tpu_custom_call.1} parent=117 // pred_region
          %s10055 = sand.u32 %s314, 1
          %s10056 = scalar_lea.sflag [#allocation4], %s10055
          %s10057 = sand.u32 %s314, 1
          %s10058 = smul.addr %s10057, 8
          %s10059 = scalar_lea.vmem [#allocation3], %s10058
          %10060 = dma.done %s10056, 128
        $region122: #{tpu_custom_call.1} parent=117 // pred_fallthru
          _
      $region118: #{tpu_custom_call.1} parent=5 // pred_fallthru
        _
    $region6: #{tpu_custom_call.1} parent=1 // loop_footer
      %s26 = sadd.s32 1, %s22
    $region7: #{tpu_custom_call.1} parent=1 // loop_footer_branch
      %21 = sbr.rel target = $region3
    $region8: #{tpu_custom_call.1} parent=1 // loop_exit
      _
    %10061 = vsyncpa [#allocation4], 1
    %s10062 = scalar_lea.sflag [#allocation4], 1
    %10063 = vsyncpa %s10062, 1

</llo_original>
